<compile_context>
chip_gen: v5e
topology: v5e:2x2
jax: 0.10.0
libtpu: 0.0.40
codegen_flags: <defaults>
</compile_context>

<pallas_src>
import jax
import jax.numpy as jnp
import numpy as np
from jax.experimental import pallas as pl
from jax.experimental.pallas import tpu as pltpu

BN_EPS = 1e-5

IN_H, IN_W = 25, 50
IN_PIX = IN_H * IN_W                  # 1250 real contraction rows
IN_PIX_PAD = 1280                     # padded to a multiple of 128 lanes / 16 sublanes (bf16)
K1 = 11                               # conv1 kernel (11, 11)
C1 = 4                                # conv1 out channels
PH, PW = 7, 20                        # pooled spatial map
POOL_COLS = PH * PW * C1              # 560 real columns per pool-offset group
GROUP = 640                           # padded to a multiple of 128 for lane-aligned slices
NCOLS = 4 * GROUP                     # 2560 conv1 matmul output columns
OC2 = 64                              # conv2 out channels
OC2_PAD = 128                         # lane-dense output width


def _round_up(a, b):
    return (a + b - 1) // b * b


def _build_conv1_pool_matrix(w1):
    """Build the (1280, 2560) conv1+pool matrix from w1 (4,1,11,11).

    Column layout: off*640 + (ph*20+pw)*4 + oc, where off=(dh*2+dw) is the 2x2 pool-window
    offset; columns 560..639 of each group are zero padding (killed later by zero W2 rows).
    Row layout: i*50 + j over the raw 25x50 input pixels; rows 1250..1279 are zero padding
    matching the zero-padded columns of xflat.
    """
    w = np.transpose(w1[:, 0], (1, 2, 0))            # (11, 11, 4) = [ki, kj, oc]
    W = np.zeros((IN_H, IN_W, 2, 2, PH, PW, C1), np.float32)
    for dh in range(2):
        for dw in range(2):
            for ph in range(PH):
                for pw in range(PW):
                    r0, c0 = 2 * ph + dh, 2 * pw + dw
                    W[r0:r0 + K1, c0:c0 + K1, dh, dw, ph, pw, :] = w
    W = W.reshape(IN_PIX, 4, POOL_COLS)
    W = np.pad(W, ((0, 0), (0, 0), (0, GROUP - POOL_COLS)))
    W = W.reshape(IN_PIX, NCOLS)
    return np.pad(W, ((0, IN_PIX_PAD - IN_PIX), (0, 0)))   # K-pad 1250 -> 1280


def prepare_params(params):
    """One-time, data-independent weight re-layout (pure glue, done outside the hot path)."""
    w1 = np.asarray(params["w1"], np.float32)        # (4, 1, 11, 11)
    w2 = np.asarray(params["w2"], np.float32)        # (64, 4, 7, 20)
    b1 = np.asarray(params["b1"], np.float32)        # (4,)
    b2 = np.asarray(params["b2"], np.float32)        # (64,)

    w1_big = _build_conv1_pool_matrix(w1)            # (1280, 2560)

    # conv2 weights: rows indexed (ph*20+pw)*4 + c to match the pooled column order,
    # padded to 640 rows / 128 lane-dense output columns.
    w2_mat = np.transpose(w2, (2, 3, 1, 0)).reshape(POOL_COLS, OC2)
    w2_pad = np.zeros((GROUP, OC2_PAD), np.float32)
    w2_pad[:POOL_COLS, :OC2] = w2_mat
    b2_pad = np.zeros((OC2_PAD,), np.float32)
    b2_pad[:OC2] = b2

    return {
        "w1_big": jnp.asarray(w1_big, dtype=jnp.bfloat16),   # bf16 MXU operand, DMA'd once
        "w2_pad": jnp.asarray(w2_pad),                        # scaled by BN inv per call
        "b1": jnp.asarray(b1),
        "b2_pad": jnp.asarray(b2_pad),
        "w1_sum": jnp.asarray(w1[:, 0].sum(axis=(1, 2))),     # S[oc] = sum of conv1 taps
    }


def mfcc_kernel(x_ref, w1_ref, b1_ref, w2_ref, b2_ref, out_ref):
    """One batch tile per grid step.

    x_ref   : (NB, 1280)   bf16  raw input pixels (row-major 25x50, K-padded with zeros)
    w1_ref  : (1280, 2560) bf16  conv1 (+pool offsets) matrix, resident (single-buffered)
    b1_ref  : (1, 2560)    f32   BN-folded conv1 bias, tiled per column
    w2_ref  : (640, 128)   bf16  conv2 weights (scaled by BN inv), zero-padded
    b2_ref  : (1, 128)     f32   conv2 bias, zero-padded
    out_ref : (NB, 128)    f32   lane-dense output (first 64 cols are real)
    """
    # conv1 for all four 2x2 pool-window offsets as ONE MXU matmul (bf16 in, f32 accum).
    y = jnp.dot(x_ref[...], w1_ref[...], preferred_element_type=jnp.float32)  # (NB, 2560)
    y = jnp.maximum(y + b1_ref[...], 0.0)                                     # bias + ReLU

    # 2x2 / stride-2 max-pool == elementwise max over the four lane-aligned 640-wide groups.
    p = jnp.maximum(
        jnp.maximum(y[:, 0:GROUP], y[:, GROUP:2 * GROUP]),
        jnp.maximum(y[:, 2 * GROUP:3 * GROUP], y[:, 3 * GROUP:4 * GROUP]),
    )                                                                          # (NB, 640)

    # conv2: 7x20 kernel covers the whole pooled map -> one dense matmul per tile.
    z = jnp.dot(p.astype(jnp.bfloat16), w2_ref[...],
                preferred_element_type=jnp.float32)                            # (NB, 128)
    out_ref[...] = jnp.maximum(z + b2_ref[...], 0.0)                           # bias + ReLU


def mfcc_forward(x, prep):
    """x: (N, 1, 25, 50) float32 (NCHW, like PyTorch). Returns (N, 64, 1, 1)."""
    N = x.shape[0]
    x = x.astype(jnp.float32)

    # --- single f32 pass over x: the bf16 cast.  BatchNorm2d(1, affine=False) batch stats
    # (biased var, eps=1e-5) are then computed from the bf16 copy with f32 accumulation —
    # both reductions fuse into one half-width pass, instead of three full f32 passes.
    xflat = x[:, 0].reshape(N, IN_PIX).astype(jnp.bfloat16)
    xs = xflat.astype(jnp.float32)
    mean = jnp.mean(xs)
    var = jnp.maximum(jnp.mean(jnp.square(xs)) - jnp.square(mean), 0.0)
    inv = jax.lax.rsqrt(var + BN_EPS)

    # relu(inv*(conv1_raw - mean*S) + b1) == inv * relu(conv1_raw + b1/inv - mean*S);
    # the leading inv passes through max-pool (inv > 0) and is folded into the conv2 weights.
    b1p = prep["b1"] / inv - mean * prep["w1_sum"]                   # (4,)
    b1_group = jnp.concatenate([jnp.tile(b1p, PH * PW),
                                jnp.zeros((GROUP - POOL_COLS,), jnp.float32)])
    b1_tiled = jnp.tile(b1_group, 4).reshape(1, NCOLS)               # (1, 2560)
    w2_eff = (inv * prep["w2_pad"]).astype(jnp.bfloat16)             # (640, 128)
    b2_tiled = prep["b2_pad"].reshape(1, OC2_PAD)                    # (1, 128)

    # --- batch tiling: tile up to 256 rows (multiple of 16 for bf16 sublane packing) and
    # force a >= 2-step grid whenever possible so megacore (v7x) has work on both cores.
    nb = min(256, _round_up(N, 16))
    if N > 16 and _round_up(N, nb) // nb < 2:
        nb = _round_up((N + 1) // 2, 16)
    npad = _round_up(N, nb)
    grid = (npad // nb,)

    # pad batch up to npad rows and the contraction dim up to 1280 (lane-dense, unmasked).
    xflat = jnp.pad(xflat, ((0, npad - N), (0, IN_PIX_PAD - IN_PIX)))

    const2 = lambda i: (0, 0)
    out = pl.pallas_call(
        mfcc_kernel,
        out_shape=jax.ShapeDtypeStruct((npad, OC2_PAD), jnp.float32),
        grid=grid,
        in_specs=[
            pl.BlockSpec((nb, IN_PIX_PAD), lambda i: (i, 0)),        # x tile (per grid step)
            # grid-invariant operands: single-buffered (no point double-buffering constants).
            pl.BlockSpec((IN_PIX_PAD, NCOLS), const2,
                         pipeline_mode=pl.Buffered(1)),              # conv1 matrix (resident)
            pl.BlockSpec((1, NCOLS), const2,
                         pipeline_mode=pl.Buffered(1)),              # conv1 bias
            pl.BlockSpec((GROUP, OC2_PAD), const2,
                         pipeline_mode=pl.Buffered(1)),              # conv2 weights
            pl.BlockSpec((1, OC2_PAD), const2,
                         pipeline_mode=pl.Buffered(1)),              # conv2 bias
        ],
        out_specs=pl.BlockSpec((nb, OC2_PAD), lambda i: (i, 0)),     # keep 128-lane-dense
        compiler_params=pltpu.CompilerParams(
            dimension_semantics=("parallel",),                       # megacore split on v7x
            vmem_limit_bytes=48 * 1024 * 1024,                       # <= v7x 64 MiB/TC budget
        ),
        cost_estimate=pl.CostEstimate(
            flops=2 * npad * IN_PIX_PAD * NCOLS + 2 * npad * GROUP * OC2_PAD,
            transcendentals=0,
            bytes_accessed=(npad * IN_PIX_PAD * 2 + IN_PIX_PAD * NCOLS * 2 + NCOLS * 4
                            + GROUP * OC2_PAD * 2 + OC2_PAD * 4 + npad * OC2_PAD * 4),
        ),
    )(xflat, prep["w1_big"], b1_tiled, w2_eff, b2_tiled)

    return out[:N, :OC2].reshape(N, OC2, 1, 1)


def reference_forward(x, params):
    """Plain-JAX reference with identical semantics (numerical sanity check)."""
    w1, b1, w2, b2 = params["w1"], params["b1"], params["w2"], params["b2"]
    mean = jnp.mean(x)
    var = jnp.mean((x - mean) ** 2)
    xb = (x - mean) / jnp.sqrt(var + BN_EPS)
    dn = ("NCHW", "OIHW", "NCHW")
    y = jax.lax.conv_general_dilated(xb, w1, (1, 1), "VALID", dimension_numbers=dn)
    y = jnp.maximum(y + b1[None, :, None, None], 0.0)
    y = jax.lax.reduce_window(y, -jnp.inf, jax.lax.max, (1, 1, 2, 2), (1, 1, 2, 2), "VALID")
    z = jax.lax.conv_general_dilated(y, w2, (1, 1), "VALID", dimension_numbers=dn)
    z = jnp.maximum(z + b2[None, :, None, None], 0.0)
    return z


if __name__ == "__main__":
    key = jax.random.PRNGKey(0)
    kx, k1, k2, k3, k4 = jax.random.split(key, 5)

    N = 2
    x = jax.random.normal(kx, (N, 1, 25, 50), dtype=jnp.float32)

    # deterministic synthetic parameters (shapes from MfccNet.__init__)
    params = {
        "w1": 0.10 * jax.random.normal(k1, (4, 1, 11, 11), dtype=jnp.float32),
        "b1": 0.10 * jax.random.normal(k2, (4,), dtype=jnp.float32),
        "w2": 0.05 * jax.random.normal(k3, (64, 4, 7, 20), dtype=jnp.float32),
        "b2": 0.05 * jax.random.normal(k4, (64,), dtype=jnp.float32),
    }

    prep = prepare_params(params)          # one-time weight re-layout
    out = jax.jit(mfcc_forward)(x, prep)
    out = jax.block_until_ready(out)
    assert out.shape == (N, 64, 1, 1)

    ref = reference_forward(x, params)
    # bf16 MXU operands with f32 accumulation -> slightly looser tolerance than pure f32.
    np.testing.assert_allclose(np.asarray(out), np.asarray(ref), rtol=3e-2, atol=3e-2)

    print("KERNEL_OK")
</pallas_src>

<mosaic_0001>
module attributes {stable_mosaic.version = 11 : i64} {
  func.func @mfcc_kernel(%arg0: i32, %arg1: memref<16x1280xbf16, #tpu.memory_space<vmem>>, %arg2: memref<1280x2560xbf16, #tpu.memory_space<vmem>>, %arg3: memref<1x2560xf32, #tpu.memory_space<vmem>>, %arg4: memref<640x128xbf16, #tpu.memory_space<vmem>>, %arg5: memref<1x128xf32, #tpu.memory_space<vmem>>, %arg6: memref<16x128xf32, #tpu.memory_space<vmem>>) attributes {dimension_semantics = [#tpu.dimension_semantics<parallel>], iteration_bounds = array<i64: 1>, scalar_prefetch = 0 : i64, scratch_operands = 0 : i64, tpu.core_type = #tpu.core_type<tc>, window_params = [{transform_indices = @transform_0, window_bounds = array<i64: 16, 1280>}, {pipeline_mode = #tpu.pipeline_mode<synchronous>, transform_indices = @transform_1, window_bounds = array<i64: 1280, 2560>}, {pipeline_mode = #tpu.pipeline_mode<synchronous>, transform_indices = @transform_2, window_bounds = array<i64: 1, 2560>}, {pipeline_mode = #tpu.pipeline_mode<synchronous>, transform_indices = @transform_3, window_bounds = array<i64: 640, 128>}, {pipeline_mode = #tpu.pipeline_mode<synchronous>, transform_indices = @transform_4, window_bounds = array<i64: 1, 128>}, {transform_indices = @transform_5, window_bounds = array<i64: 16, 128>}]} {
    %c0 = arith.constant 0 : index
    %c0_0 = arith.constant 0 : index
    %0 = vector.load %arg1[%c0, %c0_0] : memref<16x1280xbf16, #tpu.memory_space<vmem>>, vector<16x1280xbf16>
    %c0_1 = arith.constant 0 : index
    %c0_2 = arith.constant 0 : index
    %1 = vector.load %arg2[%c0_1, %c0_2] : memref<1280x2560xbf16, #tpu.memory_space<vmem>>, vector<1280x2560xbf16>
    %cst = arith.constant dense<0.000000e+00> : vector<16x2560xf32>
    %2 = tpu.matmul %0, %1, %cst {dimension_numbers = #tpu.dot_dimension_numbers<[1], [0], [0], [1], [0, 0, 1, 1], [], []>} : vector<16x1280xbf16>, vector<1280x2560xbf16>, vector<16x2560xf32> -> vector<16x2560xf32>
    %c0_3 = arith.constant 0 : index
    %c0_4 = arith.constant 0 : index
    %3 = vector.load %arg3[%c0_3, %c0_4] : memref<1x2560xf32, #tpu.memory_space<vmem>>, vector<1x2560xf32>
    %4 = vector.broadcast %3 : vector<1x2560xf32> to vector<16x2560xf32>
    %5 = arith.addf %2, %4 : vector<16x2560xf32>
    %cst_5 = arith.constant 0.000000e+00 : f32
    %6 = vector.broadcast %cst_5 : f32 to vector<16x2560xf32>
    %7 = arith.maximumf %5, %6 : vector<16x2560xf32>
    %8 = vector.extract_strided_slice %7 {offsets = [0, 0], sizes = [16, 640], strides = [1, 1]} : vector<16x2560xf32> to vector<16x640xf32>
    %9 = vector.extract_strided_slice %7 {offsets = [0, 640], sizes = [16, 640], strides = [1, 1]} : vector<16x2560xf32> to vector<16x640xf32>
    %10 = arith.maximumf %8, %9 : vector<16x640xf32>
    %11 = vector.extract_strided_slice %7 {offsets = [0, 1280], sizes = [16, 640], strides = [1, 1]} : vector<16x2560xf32> to vector<16x640xf32>
    %12 = vector.extract_strided_slice %7 {offsets = [0, 1920], sizes = [16, 640], strides = [1, 1]} : vector<16x2560xf32> to vector<16x640xf32>
    %13 = arith.maximumf %11, %12 : vector<16x640xf32>
    %14 = arith.maximumf %10, %13 : vector<16x640xf32>
    %15 = arith.truncf %14 : vector<16x640xf32> to vector<16x640xbf16>
    %c0_6 = arith.constant 0 : index
    %c0_7 = arith.constant 0 : index
    %16 = vector.load %arg4[%c0_6, %c0_7] : memref<640x128xbf16, #tpu.memory_space<vmem>>, vector<640x128xbf16>
    %cst_8 = arith.constant dense<0.000000e+00> : vector<16x128xf32>
    %17 = tpu.matmul %15, %16, %cst_8 {dimension_numbers = #tpu.dot_dimension_numbers<[1], [0], [0], [1], [0, 0, 1, 1], [], []>} : vector<16x640xbf16>, vector<640x128xbf16>, vector<16x128xf32> -> vector<16x128xf32>
    %c0_9 = arith.constant 0 : index
    %c0_10 = arith.constant 0 : index
    %18 = vector.load %arg5[%c0_9, %c0_10] : memref<1x128xf32, #tpu.memory_space<vmem>>, vector<1x128xf32>
    %19 = vector.broadcast %18 : vector<1x128xf32> to vector<16x128xf32>
    %20 = arith.addf %17, %19 : vector<16x128xf32>
    %cst_11 = arith.constant 0.000000e+00 : f32
    %21 = vector.broadcast %cst_11 : f32 to vector<16x128xf32>
    %22 = arith.maximumf %20, %21 : vector<16x128xf32>
    %c0_12 = arith.constant 0 : index
    %c0_13 = arith.constant 0 : index
    %23 = vector.load %arg6[%c0_12, %c0_13] : memref<16x128xf32, #tpu.memory_space<vmem>>, vector<16x128xf32>
    tpu.vector_store %arg6[%c0_12, %c0_13], %22 {strides = array<i32>} : memref<16x128xf32, #tpu.memory_space<vmem>>, vector<16x128xf32>,
    return
  }
  func.func @transform_0(%arg0: i32) -> (i32, i32) {
    %c0_i32 = arith.constant 0 : i32
    %c0_i32_0 = arith.constant 0 : i32
    return %arg0, %c0_i32 : i32, i32
  }
  func.func @transform_1(%arg0: i32) -> (i32, i32) {
    %c0_i32 = arith.constant 0 : i32
    %c0_i32_0 = arith.constant 0 : i32
    %c0_i32_1 = arith.constant 0 : i32
    return %c0_i32, %c0_i32_0 : i32, i32
  }
  func.func @transform_2(%arg0: i32) -> (i32, i32) {
    %c0_i32 = arith.constant 0 : i32
    %c0_i32_0 = arith.constant 0 : i32
    %c0_i32_1 = arith.constant 0 : i32
    return %c0_i32, %c0_i32_0 : i32, i32
  }
  func.func @transform_3(%arg0: i32) -> (i32, i32) {
    %c0_i32 = arith.constant 0 : i32
    %c0_i32_0 = arith.constant 0 : i32
    %c0_i32_1 = arith.constant 0 : i32
    return %c0_i32, %c0_i32_0 : i32, i32
  }
  func.func @transform_4(%arg0: i32) -> (i32, i32) {
    %c0_i32 = arith.constant 0 : i32
    %c0_i32_0 = arith.constant 0 : i32
    %c0_i32_1 = arith.constant 0 : i32
    return %c0_i32, %c0_i32_0 : i32, i32
  }
  func.func @transform_5(%arg0: i32) -> (i32, i32) {
    %c0_i32 = arith.constant 0 : i32
    %c0_i32_0 = arith.constant 0 : i32
    return %arg0, %c0_i32 : i32, i32
  }
}

</mosaic_0001>

<llo_original>
// kernel: tile.13
$region0: #{tile.13}
  #allocation0 [shape = 's32[1]{0}', space=sflag, size = 0x4, scoped, tag = 'scoped memory for tile.13']
  %s0 = inlined_call_operand.vmem [shape: f32[4], index: 0, kind: input, shape index: {}]
  %s1 = inlined_call_operand.vmem [shape: f32[140,4], index: 1, kind: output, shape index: {}]
  // Predicated region
  $region2: #{tile.13} parent=0 // pred_check
    _
  $region3: #{tile.13} parent=0 // pred_check_branch
    %3 = sbr.rel (0) target = $region5
  $region4: #{tile.13} parent=0 // pred_region
    _
  $region5: #{tile.13} parent=0 // pred_fallthru
    _
  %v4 = vld [vmem:[%s0] ss:$0 sm:$0xff]
  %5 = vst [vmem:[%s1] sm:$0xff] %v4
  %s6 = scalar_lea.vmem %s1, 8
  %7 = vst [vmem:[%s6] sm:$0xff] %v4
  %s8 = scalar_lea.vmem %s1, 16
  %9 = vst [vmem:[%s8] sm:$0xff] %v4
  %s10 = scalar_lea.vmem %s1, 24
  %11 = vst [vmem:[%s10] sm:$0xff] %v4
  %s12 = scalar_lea.vmem %s1, 32
  %13 = vst [vmem:[%s12] sm:$0xff] %v4
  %s14 = scalar_lea.vmem %s1, 40
  %15 = vst [vmem:[%s14] sm:$0xff] %v4
  %s16 = scalar_lea.vmem %s1, 48
  %17 = vst [vmem:[%s16] sm:$0xff] %v4
  %s18 = scalar_lea.vmem %s1, 56
  %19 = vst [vmem:[%s18] sm:$0xff] %v4
  %s20 = scalar_lea.vmem %s1, 64
  %21 = vst [vmem:[%s20] sm:$0xff] %v4
  %s22 = scalar_lea.vmem %s1, 72
  %23 = vst [vmem:[%s22] sm:$0xff] %v4
  %s24 = scalar_lea.vmem %s1, 80
  %25 = vst [vmem:[%s24] sm:$0xff] %v4
  %s26 = scalar_lea.vmem %s1, 88
  %27 = vst [vmem:[%s26] sm:$0xff] %v4
  %s28 = scalar_lea.vmem %s1, 96
  %29 = vst [vmem:[%s28] sm:$0xff] %v4
  %s30 = scalar_lea.vmem %s1, 104
  %31 = vst [vmem:[%s30] sm:$0xff] %v4
  %s32 = scalar_lea.vmem %s1, 112
  %33 = vst [vmem:[%s32] sm:$0xff] %v4
  %s34 = scalar_lea.vmem %s1, 120
  %35 = vst [vmem:[%s34] sm:$0xff] %v4
  %s36 = scalar_lea.vmem %s1, 128
  %37 = vst [vmem:[%s36] sm:$0xff] %v4
  %s38 = scalar_lea.vmem %s1, 136
  %39 = vst [vmem:[%s38] sm:$0xff] %v4

// kernel: tile.14
$region0: #{tile.14}
  %s0 = inlined_call_operand.vmem [shape: f32[140,4], index: 0, kind: input, shape index: {}]
  %s1 = inlined_call_operand.vmem [shape: f32[560], index: 1, kind: output, shape index: {}]
  %v2 = vld [vmem:[%s0] sm:$0x1]
  %s3 = scalar_lea.vmem %s0, 31
  %v4 = vld [vmem:[%s3] sm:$0x2]
  %vm5 = vcmask 1041409
  %v6 = vsel %vm5, %v4, %v2
  %s7 = scalar_lea.vmem %s0, 62
  %v8 = vld [vmem:[%s7] sm:$0x4]
  %vm9 = vcmask 1042434
  %v10 = vsel %vm9, %v8, %v6
  %s11 = scalar_lea.vmem %s0, 93
  %v12 = vld [vmem:[%s11] sm:$0x8]
  %vm13 = vcmask 1043459
  %v14 = vsel %vm13, %v12, %v10
  %s15 = scalar_lea.vmem %s0, 124
  %v16 = vld [vmem:[%s15] sm:$0x10]
  %vm17 = vcmask 1044484
  %v18 = vsel %vm17, %v16, %v14
  %vm19 = vcmask 31744
  %20 = vst.msk [vmem:[%s1] sm:$0x1f] %vm19, %v18
  %s21 = scalar_lea.vmem %s0, 31
  %v22 = vld [vmem:[%s21] sm:$0x1]
  %s23 = scalar_lea.vmem %s0, 62
  %v24 = vld [vmem:[%s23] sm:$0x2]
  %vm25 = vcmask 1041409
  %v26 = vsel %vm25, %v24, %v22
  %s27 = scalar_lea.vmem %s0, 93
  %v28 = vld [vmem:[%s27] sm:$0x4]
  %vm29 = vcmask 1042434
  %v30 = vsel %vm29, %v28, %v26
  %s31 = scalar_lea.vmem %s0, 124
  %v32 = vld [vmem:[%s31] sm:$0x8]
  %vm33 = vcmask 1043459
  %v34 = vsel %vm33, %v32, %v30
  %35 = vrot.lane.b32.xlu0 %v34, 124
  %v36 = vpop.permute.xlu0 %35
  %vm37 = vcmask 1048544
  %38 = vst.msk [vmem:[%s1] sm:$0xf] %vm37, %v36
  %s39 = scalar_lea.vmem %s0, 30
  %v40 = vld [vmem:[%s39] sm:$0x1]
  %s41 = scalar_lea.vmem %s0, 61
  %v42 = vld [vmem:[%s41] sm:$0x2]
  %vm43 = vcmask 1041409
  %v44 = vsel %vm43, %v42, %v40
  %s45 = scalar_lea.vmem %s0, 92
  %v46 = vld [vmem:[%s45] sm:$0x4]
  %vm47 = vcmask 1042434
  %v48 = vsel %vm47, %v46, %v44
  %s49 = scalar_lea.vmem %s0, 123
  %v50 = vld [vmem:[%s49] sm:$0x8]
  %vm51 = vcmask 1043459
  %v52 = vsel %vm51, %v50, %v48
  %53 = vrot.lane.b32.xlu0 %v52, 120
  %v54 = vpop.permute.xlu0 %53
  %vm55 = vcmask 1015744
  %56 = vst.msk [vmem:[%s1] sm:$0xf] %vm55, %v54
  %s57 = scalar_lea.vmem %s0, 29
  %v58 = vld [vmem:[%s57] sm:$0x1]
  %s59 = scalar_lea.vmem %s0, 60
  %v60 = vld [vmem:[%s59] sm:$0x2]
  %vm61 = vcmask 1041409
  %v62 = vsel %vm61, %v60, %v58
  %s63 = scalar_lea.vmem %s0, 91
  %v64 = vld [vmem:[%s63] sm:$0x4]
  %vm65 = vcmask 1042434
  %v66 = vsel %vm65, %v64, %v62
  %s67 = scalar_lea.vmem %s0, 122
  %v68 = vld [vmem:[%s67] sm:$0x8]
  %vm69 = vcmask 1043459
  %v70 = vsel %vm69, %v68, %v66
  %71 = vrot.lane.b32.xlu0 %v70, 116
  %v72 = vpop.permute.xlu0 %71
  %vm73 = vcmask 982944
  %74 = vst.msk [vmem:[%s1] sm:$0xf] %vm73, %v72
  %s75 = scalar_lea.vmem %s0, 28
  %v76 = vld [vmem:[%s75] sm:$0x1]
  %s77 = scalar_lea.vmem %s0, 59
  %v78 = vld [vmem:[%s77] sm:$0x2]
  %vm79 = vcmask 1041409
  %v80 = vsel %vm79, %v78, %v76
  %s81 = scalar_lea.vmem %s0, 90
  %v82 = vld [vmem:[%s81] sm:$0x4]
  %vm83 = vcmask 1042434
  %v84 = vsel %vm83, %v82, %v80
  %s85 = scalar_lea.vmem %s0, 121
  %v86 = vld [vmem:[%s85] sm:$0x8]
  %vm87 = vcmask 1043459
  %v88 = vsel %vm87, %v86, %v84
  %89 = vrot.lane.b32.xlu0 %v88, 112
  %v90 = vpop.permute.xlu0 %89
  %vm91 = vcmask 950144
  %92 = vst.msk [vmem:[%s1] sm:$0xf] %vm91, %v90
  %s93 = scalar_lea.vmem %s0, 27
  %v94 = vld [vmem:[%s93] sm:$0x1]
  %s95 = scalar_lea.vmem %s0, 58
  %v96 = vld [vmem:[%s95] sm:$0x2]
  %vm97 = vcmask 1041409
  %v98 = vsel %vm97, %v96, %v94
  %s99 = scalar_lea.vmem %s0, 89
  %v100 = vld [vmem:[%s99] sm:$0x4]
  %vm101 = vcmask 1042434
  %v102 = vsel %vm101, %v100, %v98
  %s103 = scalar_lea.vmem %s0, 120
  %v104 = vld [vmem:[%s103] sm:$0x8]
  %vm105 = vcmask 1043459
  %v106 = vsel %vm105, %v104, %v102
  %107 = vrot.lane.b32.xlu0 %v106, 108
  %v108 = vpop.permute.xlu0 %107
  %vm109 = vcmask 917344
  %110 = vst.msk [vmem:[%s1] sm:$0xf] %vm109, %v108
  %s111 = scalar_lea.vmem %s0, 26
  %v112 = vld [vmem:[%s111] sm:$0x1]
  %s113 = scalar_lea.vmem %s0, 57
  %v114 = vld [vmem:[%s113] sm:$0x2]
  %vm115 = vcmask 1041409
  %v116 = vsel %vm115, %v114, %v112
  %s117 = scalar_lea.vmem %s0, 88
  %v118 = vld [vmem:[%s117] sm:$0x4]
  %vm119 = vcmask 1042434
  %v120 = vsel %vm119, %v118, %v116
  %s121 = scalar_lea.vmem %s0, 119
  %v122 = vld [vmem:[%s121] sm:$0x8]
  %vm123 = vcmask 1043459
  %v124 = vsel %vm123, %v122, %v120
  %125 = vrot.lane.b32.xlu0 %v124, 104
  %v126 = vpop.permute.xlu0 %125
  %vm127 = vcmask 884544
  %128 = vst.msk [vmem:[%s1] sm:$0xf] %vm127, %v126
  %s129 = scalar_lea.vmem %s0, 25
  %v130 = vld [vmem:[%s129] sm:$0x1]
  %s131 = scalar_lea.vmem %s0, 56
  %v132 = vld [vmem:[%s131] sm:$0x2]
  %vm133 = vcmask 1041409
  %v134 = vsel %vm133, %v132, %v130
  %s135 = scalar_lea.vmem %s0, 87
  %v136 = vld [vmem:[%s135] sm:$0x4]
  %vm137 = vcmask 1042434
  %v138 = vsel %vm137, %v136, %v134
  %s139 = scalar_lea.vmem %s0, 118
  %v140 = vld [vmem:[%s139] sm:$0x8]
  %vm141 = vcmask 1043459
  %v142 = vsel %vm141, %v140, %v138
  %143 = vrot.lane.b32.xlu0 %v142, 100
  %v144 = vpop.permute.xlu0 %143
  %vm145 = vcmask 851744
  %146 = vst.msk [vmem:[%s1] sm:$0xf] %vm145, %v144
  %s147 = scalar_lea.vmem %s0, 24
  %v148 = vld [vmem:[%s147] sm:$0x1]
  %s149 = scalar_lea.vmem %s0, 55
  %v150 = vld [vmem:[%s149] sm:$0x2]
  %vm151 = vcmask 1041409
  %v152 = vsel %vm151, %v150, %v148
  %s153 = scalar_lea.vmem %s0, 86
  %v154 = vld [vmem:[%s153] sm:$0x4]
  %vm155 = vcmask 1042434
  %v156 = vsel %vm155, %v154, %v152
  %s157 = scalar_lea.vmem %s0, 117
  %v158 = vld [vmem:[%s157] sm:$0x8]
  %vm159 = vcmask 1043459
  %v160 = vsel %vm159, %v158, %v156
  %161 = vrot.lane.b32.xlu0 %v160, 96
  %v162 = vpop.permute.xlu0 %161
  %vm163 = vcmask 818944
  %164 = vst.msk [vmem:[%s1] sm:$0xf] %vm163, %v162
  %s165 = scalar_lea.vmem %s0, 23
  %v166 = vld [vmem:[%s165] sm:$0x1]
  %s167 = scalar_lea.vmem %s0, 54
  %v168 = vld [vmem:[%s167] sm:$0x2]
  %vm169 = vcmask 1041409
  %v170 = vsel %vm169, %v168, %v166
  %s171 = scalar_lea.vmem %s0, 85
  %v172 = vld [vmem:[%s171] sm:$0x4]
  %vm173 = vcmask 1042434
  %v174 = vsel %vm173, %v172, %v170
  %s175 = scalar_lea.vmem %s0, 116
  %v176 = vld [vmem:[%s175] sm:$0x8]
  %vm177 = vcmask 1043459
  %v178 = vsel %vm177, %v176, %v174
  %179 = vrot.lane.b32.xlu0 %v178, 92
  %v180 = vpop.permute.xlu0 %179
  %vm181 = vcmask 786144
  %182 = vst.msk [vmem:[%s1] sm:$0xf] %vm181, %v180
  %s183 = scalar_lea.vmem %s0, 22
  %v184 = vld [vmem:[%s183] sm:$0x1]
  %s185 = scalar_lea.vmem %s0, 53
  %v186 = vld [vmem:[%s185] sm:$0x2]
  %vm187 = vcmask 1041409
  %v188 = vsel %vm187, %v186, %v184
  %s189 = scalar_lea.vmem %s0, 84
  %v190 = vld [vmem:[%s189] sm:$0x4]
  %vm191 = vcmask 1042434
  %v192 = vsel %vm191, %v190, %v188
  %s193 = scalar_lea.vmem %s0, 115
  %v194 = vld [vmem:[%s193] sm:$0x8]
  %vm195 = vcmask 1043459
  %v196 = vsel %vm195, %v194, %v192
  %197 = vrot.lane.b32.xlu0 %v196, 88
  %v198 = vpop.permute.xlu0 %197
  %vm199 = vcmask 753344
  %200 = vst.msk [vmem:[%s1] sm:$0xf] %vm199, %v198
  %s201 = scalar_lea.vmem %s0, 21
  %v202 = vld [vmem:[%s201] sm:$0x1]
  %s203 = scalar_lea.vmem %s0, 52
  %v204 = vld [vmem:[%s203] sm:$0x2]
  %vm205 = vcmask 1041409
  %v206 = vsel %vm205, %v204, %v202
  %s207 = scalar_lea.vmem %s0, 83
  %v208 = vld [vmem:[%s207] sm:$0x4]
  %vm209 = vcmask 1042434
  %v210 = vsel %vm209, %v208, %v206
  %s211 = scalar_lea.vmem %s0, 114
  %v212 = vld [vmem:[%s211] sm:$0x8]
  %vm213 = vcmask 1043459
  %v214 = vsel %vm213, %v212, %v210
  %215 = vrot.lane.b32.xlu0 %v214, 84
  %v216 = vpop.permute.xlu0 %215
  %vm217 = vcmask 720544
  %218 = vst.msk [vmem:[%s1] sm:$0xf] %vm217, %v216
  %s219 = scalar_lea.vmem %s0, 20
  %v220 = vld [vmem:[%s219] sm:$0x1]
  %s221 = scalar_lea.vmem %s0, 51
  %v222 = vld [vmem:[%s221] sm:$0x2]
  %vm223 = vcmask 1041409
  %v224 = vsel %vm223, %v222, %v220
  %s225 = scalar_lea.vmem %s0, 82
  %v226 = vld [vmem:[%s225] sm:$0x4]
  %vm227 = vcmask 1042434
  %v228 = vsel %vm227, %v226, %v224
  %s229 = scalar_lea.vmem %s0, 113
  %v230 = vld [vmem:[%s229] sm:$0x8]
  %vm231 = vcmask 1043459
  %v232 = vsel %vm231, %v230, %v228
  %233 = vrot.lane.b32.xlu0 %v232, 80
  %v234 = vpop.permute.xlu0 %233
  %vm235 = vcmask 687744
  %236 = vst.msk [vmem:[%s1] sm:$0xf] %vm235, %v234
  %s237 = scalar_lea.vmem %s0, 19
  %v238 = vld [vmem:[%s237] sm:$0x1]
  %s239 = scalar_lea.vmem %s0, 50
  %v240 = vld [vmem:[%s239] sm:$0x2]
  %vm241 = vcmask 1041409
  %v242 = vsel %vm241, %v240, %v238
  %s243 = scalar_lea.vmem %s0, 81
  %v244 = vld [vmem:[%s243] sm:$0x4]
  %vm245 = vcmask 1042434
  %v246 = vsel %vm245, %v244, %v242
  %s247 = scalar_lea.vmem %s0, 112
  %v248 = vld [vmem:[%s247] sm:$0x8]
  %vm249 = vcmask 1043459
  %v250 = vsel %vm249, %v248, %v246
  %251 = vrot.lane.b32.xlu0 %v250, 76
  %v252 = vpop.permute.xlu0 %251
  %vm253 = vcmask 654944
  %254 = vst.msk [vmem:[%s1] sm:$0xf] %vm253, %v252
  %s255 = scalar_lea.vmem %s0, 18
  %v256 = vld [vmem:[%s255] sm:$0x1]
  %s257 = scalar_lea.vmem %s0, 49
  %v258 = vld [vmem:[%s257] sm:$0x2]
  %vm259 = vcmask 1041409
  %v260 = vsel %vm259, %v258, %v256
  %s261 = scalar_lea.vmem %s0, 80
  %v262 = vld [vmem:[%s261] sm:$0x4]
  %vm263 = vcmask 1042434
  %v264 = vsel %vm263, %v262, %v260
  %s265 = scalar_lea.vmem %s0, 111
  %v266 = vld [vmem:[%s265] sm:$0x8]
  %vm267 = vcmask 1043459
  %v268 = vsel %vm267, %v266, %v264
  %269 = vrot.lane.b32.xlu0 %v268, 72
  %v270 = vpop.permute.xlu0 %269
  %vm271 = vcmask 622144
  %272 = vst.msk [vmem:[%s1] sm:$0xf] %vm271, %v270
  %s273 = scalar_lea.vmem %s0, 17
  %v274 = vld [vmem:[%s273] sm:$0x1]
  %s275 = scalar_lea.vmem %s0, 48
  %v276 = vld [vmem:[%s275] sm:$0x2]
  %vm277 = vcmask 1041409
  %v278 = vsel %vm277, %v276, %v274
  %s279 = scalar_lea.vmem %s0, 79
  %v280 = vld [vmem:[%s279] sm:$0x4]
  %vm281 = vcmask 1042434
  %v282 = vsel %vm281, %v280, %v278
  %s283 = scalar_lea.vmem %s0, 110
  %v284 = vld [vmem:[%s283] sm:$0x8]
  %vm285 = vcmask 1043459
  %v286 = vsel %vm285, %v284, %v282
  %287 = vrot.lane.b32.xlu0 %v286, 68
  %v288 = vpop.permute.xlu0 %287
  %vm289 = vcmask 589344
  %290 = vst.msk [vmem:[%s1] sm:$0xf] %vm289, %v288
  %s291 = scalar_lea.vmem %s0, 16
  %v292 = vld [vmem:[%s291] sm:$0x1]
  %s293 = scalar_lea.vmem %s0, 47
  %v294 = vld [vmem:[%s293] sm:$0x2]
  %vm295 = vcmask 1041409
  %v296 = vsel %vm295, %v294, %v292
  %s297 = scalar_lea.vmem %s0, 78
  %v298 = vld [vmem:[%s297] sm:$0x4]
  %vm299 = vcmask 1042434
  %v300 = vsel %vm299, %v298, %v296
  %s301 = scalar_lea.vmem %s0, 109
  %v302 = vld [vmem:[%s301] sm:$0x8]
  %vm303 = vcmask 1043459
  %v304 = vsel %vm303, %v302, %v300
  %305 = vrot.lane.b32.xlu0 %v304, 64
  %v306 = vpop.permute.xlu0 %305
  %vm307 = vcmask 556544
  %308 = vst.msk [vmem:[%s1] sm:$0xf] %vm307, %v306
  %s309 = scalar_lea.vmem %s0, 15
  %v310 = vld [vmem:[%s309] sm:$0x1]
  %s311 = scalar_lea.vmem %s0, 46
  %v312 = vld [vmem:[%s311] sm:$0x2]
  %vm313 = vcmask 1041409
  %v314 = vsel %vm313, %v312, %v310
  %s315 = scalar_lea.vmem %s0, 77
  %v316 = vld [vmem:[%s315] sm:$0x4]
  %vm317 = vcmask 1042434
  %v318 = vsel %vm317, %v316, %v314
  %s319 = scalar_lea.vmem %s0, 108
  %v320 = vld [vmem:[%s319] sm:$0x8]
  %vm321 = vcmask 1043459
  %v322 = vsel %vm321, %v320, %v318
  %323 = vrot.lane.b32.xlu0 %v322, 60
  %v324 = vpop.permute.xlu0 %323
  %vm325 = vcmask 523744
  %326 = vst.msk [vmem:[%s1] sm:$0xf] %vm325, %v324
  %s327 = scalar_lea.vmem %s0, 14
  %v328 = vld [vmem:[%s327] sm:$0x1]
  %s329 = scalar_lea.vmem %s0, 45
  %v330 = vld [vmem:[%s329] sm:$0x2]
  %vm331 = vcmask 1041409
  %v332 = vsel %vm331, %v330, %v328
  %s333 = scalar_lea.vmem %s0, 76
  %v334 = vld [vmem:[%s333] sm:$0x4]
  %vm335 = vcmask 1042434
  %v336 = vsel %vm335, %v334, %v332
  %s337 = scalar_lea.vmem %s0, 107
  %v338 = vld [vmem:[%s337] sm:$0x8]
  %vm339 = vcmask 1043459
  %v340 = vsel %vm339, %v338, %v336
  %341 = vrot.lane.b32.xlu0 %v340, 56
  %v342 = vpop.permute.xlu0 %341
  %vm343 = vcmask 490944
  %344 = vst.msk [vmem:[%s1] sm:$0xf] %vm343, %v342
  %s345 = scalar_lea.vmem %s0, 13
  %v346 = vld [vmem:[%s345] sm:$0x1]
  %s347 = scalar_lea.vmem %s0, 44
  %v348 = vld [vmem:[%s347] sm:$0x2]
  %vm349 = vcmask 1041409
  %v350 = vsel %vm349, %v348, %v346
  %s351 = scalar_lea.vmem %s0, 75
  %v352 = vld [vmem:[%s351] sm:$0x4]
  %vm353 = vcmask 1042434
  %v354 = vsel %vm353, %v352, %v350
  %s355 = scalar_lea.vmem %s0, 106
  %v356 = vld [vmem:[%s355] sm:$0x8]
  %vm357 = vcmask 1043459
  %v358 = vsel %vm357, %v356, %v354
  %359 = vrot.lane.b32.xlu0 %v358, 52
  %v360 = vpop.permute.xlu0 %359
  %vm361 = vcmask 458144
  %362 = vst.msk [vmem:[%s1] sm:$0xf] %vm361, %v360
  %s363 = scalar_lea.vmem %s0, 12
  %v364 = vld [vmem:[%s363] sm:$0x1]
  %s365 = scalar_lea.vmem %s0, 43
  %v366 = vld [vmem:[%s365] sm:$0x2]
  %vm367 = vcmask 1041409
  %v368 = vsel %vm367, %v366, %v364
  %s369 = scalar_lea.vmem %s0, 74
  %v370 = vld [vmem:[%s369] sm:$0x4]
  %vm371 = vcmask 1042434
  %v372 = vsel %vm371, %v370, %v368
  %s373 = scalar_lea.vmem %s0, 105
  %v374 = vld [vmem:[%s373] sm:$0x8]
  %vm375 = vcmask 1043459
  %v376 = vsel %vm375, %v374, %v372
  %377 = vrot.lane.b32.xlu0 %v376, 48
  %v378 = vpop.permute.xlu0 %377
  %vm379 = vcmask 425344
  %380 = vst.msk [vmem:[%s1] sm:$0xf] %vm379, %v378
  %s381 = scalar_lea.vmem %s0, 11
  %v382 = vld [vmem:[%s381] sm:$0x1]
  %s383 = scalar_lea.vmem %s0, 42
  %v384 = vld [vmem:[%s383] sm:$0x2]
  %vm385 = vcmask 1041409
  %v386 = vsel %vm385, %v384, %v382
  %s387 = scalar_lea.vmem %s0, 73
  %v388 = vld [vmem:[%s387] sm:$0x4]
  %vm389 = vcmask 1042434
  %v390 = vsel %vm389, %v388, %v386
  %s391 = scalar_lea.vmem %s0, 104
  %v392 = vld [vmem:[%s391] sm:$0x8]
  %vm393 = vcmask 1043459
  %v394 = vsel %vm393, %v392, %v390
  %s395 = scalar_lea.vmem %s0, 135
  %v396 = vld [vmem:[%s395] sm:$0x10]
  %vm397 = vcmask 1044484
  %v398 = vsel %vm397, %v396, %v394
  %399 = vrot.lane.b32.xlu0 %v398, 44
  %v400 = vpop.permute.xlu0 %399
  %vm401 = vcmask 392544
  %402 = vst.msk [vmem:[%s1] sm:$0x1f] %vm401, %v400
  %s403 = scalar_lea.vmem %s0, 10
  %v404 = vld [vmem:[%s403] sm:$0x1]
  %s405 = scalar_lea.vmem %s0, 41
  %v406 = vld [vmem:[%s405] sm:$0x2]
  %vm407 = vcmask 1041409
  %v408 = vsel %vm407, %v406, %v404
  %s409 = scalar_lea.vmem %s0, 72
  %v410 = vld [vmem:[%s409] sm:$0x4]
  %vm411 = vcmask 1042434
  %v412 = vsel %vm411, %v410, %v408
  %s413 = scalar_lea.vmem %s0, 103
  %v414 = vld [vmem:[%s413] sm:$0x8]
  %vm415 = vcmask 1043459
  %v416 = vsel %vm415, %v414, %v412
  %s417 = scalar_lea.vmem %s0, 134
  %v418 = vld [vmem:[%s417] sm:$0x10]
  %vm419 = vcmask 1044484
  %v420 = vsel %vm419, %v418, %v416
  %421 = vrot.lane.b32.xlu0 %v420, 40
  %v422 = vpop.permute.xlu0 %421
  %vm423 = vcmask 359744
  %424 = vst.msk [vmem:[%s1] sm:$0x1f] %vm423, %v422
  %s425 = scalar_lea.vmem %s0, 9
  %v426 = vld [vmem:[%s425] sm:$0x1]
  %s427 = scalar_lea.vmem %s0, 40
  %v428 = vld [vmem:[%s427] sm:$0x2]
  %vm429 = vcmask 1041409
  %v430 = vsel %vm429, %v428, %v426
  %s431 = scalar_lea.vmem %s0, 71
  %v432 = vld [vmem:[%s431] sm:$0x4]
  %vm433 = vcmask 1042434
  %v434 = vsel %vm433, %v432, %v430
  %s435 = scalar_lea.vmem %s0, 102
  %v436 = vld [vmem:[%s435] sm:$0x8]
  %vm437 = vcmask 1043459
  %v438 = vsel %vm437, %v436, %v434
  %s439 = scalar_lea.vmem %s0, 133
  %v440 = vld [vmem:[%s439] sm:$0x10]
  %vm441 = vcmask 1044484
  %v442 = vsel %vm441, %v440, %v438
  %443 = vrot.lane.b32.xlu0 %v442, 36
  %v444 = vpop.permute.xlu0 %443
  %vm445 = vcmask 326944
  %446 = vst.msk [vmem:[%s1] sm:$0x1f] %vm445, %v444
  %s447 = scalar_lea.vmem %s0, 8
  %v448 = vld [vmem:[%s447] sm:$0x1]
  %s449 = scalar_lea.vmem %s0, 39
  %v450 = vld [vmem:[%s449] sm:$0x2]
  %vm451 = vcmask 1041409
  %v452 = vsel %vm451, %v450, %v448
  %s453 = scalar_lea.vmem %s0, 70
  %v454 = vld [vmem:[%s453] sm:$0x4]
  %vm455 = vcmask 1042434
  %v456 = vsel %vm455, %v454, %v452
  %s457 = scalar_lea.vmem %s0, 101
  %v458 = vld [vmem:[%s457] sm:$0x8]
  %vm459 = vcmask 1043459
  %v460 = vsel %vm459, %v458, %v456
  %s461 = scalar_lea.vmem %s0, 132
  %v462 = vld [vmem:[%s461] sm:$0x10]
  %vm463 = vcmask 1044484
  %v464 = vsel %vm463, %v462, %v460
  %465 = vrot.lane.b32.xlu0 %v464, 32
  %v466 = vpop.permute.xlu0 %465
  %vm467 = vcmask 294144
  %468 = vst.msk [vmem:[%s1] sm:$0x1f] %vm467, %v466
  %s469 = scalar_lea.vmem %s0, 7
  %v470 = vld [vmem:[%s469] sm:$0x1]
  %s471 = scalar_lea.vmem %s0, 38
  %v472 = vld [vmem:[%s471] sm:$0x2]
  %vm473 = vcmask 1041409
  %v474 = vsel %vm473, %v472, %v470
  %s475 = scalar_lea.vmem %s0, 69
  %v476 = vld [vmem:[%s475] sm:$0x4]
  %vm477 = vcmask 1042434
  %v478 = vsel %vm477, %v476, %v474
  %s479 = scalar_lea.vmem %s0, 100
  %v480 = vld [vmem:[%s479] sm:$0x8]
  %vm481 = vcmask 1043459
  %v482 = vsel %vm481, %v480, %v478
  %s483 = scalar_lea.vmem %s0, 131
  %v484 = vld [vmem:[%s483] sm:$0x10]
  %vm485 = vcmask 1044484
  %v486 = vsel %vm485, %v484, %v482
  %487 = vrot.lane.b32.xlu0 %v486, 28
  %v488 = vpop.permute.xlu0 %487
  %vm489 = vcmask 261344
  %490 = vst.msk [vmem:[%s1] sm:$0x1f] %vm489, %v488
  %s491 = scalar_lea.vmem %s0, 6
  %v492 = vld [vmem:[%s491] sm:$0x1]
  %s493 = scalar_lea.vmem %s0, 37
  %v494 = vld [vmem:[%s493] sm:$0x2]
  %vm495 = vcmask 1041409
  %v496 = vsel %vm495, %v494, %v492
  %s497 = scalar_lea.vmem %s0, 68
  %v498 = vld [vmem:[%s497] sm:$0x4]
  %vm499 = vcmask 1042434
  %v500 = vsel %vm499, %v498, %v496
  %s501 = scalar_lea.vmem %s0, 99
  %v502 = vld [vmem:[%s501] sm:$0x8]
  %vm503 = vcmask 1043459
  %v504 = vsel %vm503, %v502, %v500
  %s505 = scalar_lea.vmem %s0, 130
  %v506 = vld [vmem:[%s505] sm:$0x10]
  %vm507 = vcmask 1044484
  %v508 = vsel %vm507, %v506, %v504
  %509 = vrot.lane.b32.xlu0 %v508, 24
  %v510 = vpop.permute.xlu0 %509
  %vm511 = vcmask 228544
  %512 = vst.msk [vmem:[%s1] sm:$0x1f] %vm511, %v510
  %s513 = scalar_lea.vmem %s0, 5
  %v514 = vld [vmem:[%s513] sm:$0x1]
  %s515 = scalar_lea.vmem %s0, 36
  %v516 = vld [vmem:[%s515] sm:$0x2]
  %vm517 = vcmask 1041409
  %v518 = vsel %vm517, %v516, %v514
  %s519 = scalar_lea.vmem %s0, 67
  %v520 = vld [vmem:[%s519] sm:$0x4]
  %vm521 = vcmask 1042434
  %v522 = vsel %vm521, %v520, %v518
  %s523 = scalar_lea.vmem %s0, 98
  %v524 = vld [vmem:[%s523] sm:$0x8]
  %vm525 = vcmask 1043459
  %v526 = vsel %vm525, %v524, %v522
  %s527 = scalar_lea.vmem %s0, 129
  %v528 = vld [vmem:[%s527] sm:$0x10]
  %vm529 = vcmask 1044484
  %v530 = vsel %vm529, %v528, %v526
  %531 = vrot.lane.b32.xlu0 %v530, 20
  %v532 = vpop.permute.xlu0 %531
  %vm533 = vcmask 195744
  %534 = vst.msk [vmem:[%s1] sm:$0x1f] %vm533, %v532
  %s535 = scalar_lea.vmem %s0, 4
  %v536 = vld [vmem:[%s535] sm:$0x1]
  %s537 = scalar_lea.vmem %s0, 35
  %v538 = vld [vmem:[%s537] sm:$0x2]
  %vm539 = vcmask 1041409
  %v540 = vsel %vm539, %v538, %v536
  %s541 = scalar_lea.vmem %s0, 66
  %v542 = vld [vmem:[%s541] sm:$0x4]
  %vm543 = vcmask 1042434
  %v544 = vsel %vm543, %v542, %v540
  %s545 = scalar_lea.vmem %s0, 97
  %v546 = vld [vmem:[%s545] sm:$0x8]
  %vm547 = vcmask 1043459
  %v548 = vsel %vm547, %v546, %v544
  %s549 = scalar_lea.vmem %s0, 128
  %v550 = vld [vmem:[%s549] sm:$0x10]
  %vm551 = vcmask 1044484
  %v552 = vsel %vm551, %v550, %v548
  %553 = vrot.lane.b32.xlu0 %v552, 16
  %v554 = vpop.permute.xlu0 %553
  %vm555 = vcmask 162944
  %556 = vst.msk [vmem:[%s1] sm:$0x1f] %vm555, %v554
  %s557 = scalar_lea.vmem %s0, 3
  %v558 = vld [vmem:[%s557] sm:$0x1]
  %s559 = scalar_lea.vmem %s0, 34
  %v560 = vld [vmem:[%s559] sm:$0x2]
  %vm561 = vcmask 1041409
  %v562 = vsel %vm561, %v560, %v558
  %s563 = scalar_lea.vmem %s0, 65
  %v564 = vld [vmem:[%s563] sm:$0x4]
  %vm565 = vcmask 1042434
  %v566 = vsel %vm565, %v564, %v562
  %s567 = scalar_lea.vmem %s0, 96
  %v568 = vld [vmem:[%s567] sm:$0x8]
  %vm569 = vcmask 1043459
  %v570 = vsel %vm569, %v568, %v566
  %s571 = scalar_lea.vmem %s0, 127
  %v572 = vld [vmem:[%s571] sm:$0x10]
  %vm573 = vcmask 1044484
  %v574 = vsel %vm573, %v572, %v570
  %575 = vrot.lane.b32.xlu0 %v574, 12
  %v576 = vpop.permute.xlu0 %575
  %vm577 = vcmask 130144
  %578 = vst.msk [vmem:[%s1] sm:$0x1f] %vm577, %v576
  %s579 = scalar_lea.vmem %s0, 2
  %v580 = vld [vmem:[%s579] sm:$0x1]
  %s581 = scalar_lea.vmem %s0, 33
  %v582 = vld [vmem:[%s581] sm:$0x2]
  %vm583 = vcmask 1041409
  %v584 = vsel %vm583, %v582, %v580
  %s585 = scalar_lea.vmem %s0, 64
  %v586 = vld [vmem:[%s585] sm:$0x4]
  %vm587 = vcmask 1042434
  %v588 = vsel %vm587, %v586, %v584
  %s589 = scalar_lea.vmem %s0, 95
  %v590 = vld [vmem:[%s589] sm:$0x8]
  %vm591 = vcmask 1043459
  %v592 = vsel %vm591, %v590, %v588
  %s593 = scalar_lea.vmem %s0, 126
  %v594 = vld [vmem:[%s593] sm:$0x10]
  %vm595 = vcmask 1044484
  %v596 = vsel %vm595, %v594, %v592
  %597 = vrot.lane.b32.xlu0 %v596, 8
  %v598 = vpop.permute.xlu0 %597
  %vm599 = vcmask 97344
  %600 = vst.msk [vmem:[%s1] sm:$0x1f] %vm599, %v598
  %s601 = scalar_lea.vmem %s0, 1
  %v602 = vld [vmem:[%s601] sm:$0x1]
  %s603 = scalar_lea.vmem %s0, 32
  %v604 = vld [vmem:[%s603] sm:$0x2]
  %vm605 = vcmask 1041409
  %v606 = vsel %vm605, %v604, %v602
  %s607 = scalar_lea.vmem %s0, 63
  %v608 = vld [vmem:[%s607] sm:$0x4]
  %vm609 = vcmask 1042434
  %v610 = vsel %vm609, %v608, %v606
  %s611 = scalar_lea.vmem %s0, 94
  %v612 = vld [vmem:[%s611] sm:$0x8]
  %vm613 = vcmask 1043459
  %v614 = vsel %vm613, %v612, %v610
  %s615 = scalar_lea.vmem %s0, 125
  %v616 = vld [vmem:[%s615] sm:$0x10]
  %vm617 = vcmask 1044484
  %v618 = vsel %vm617, %v616, %v614
  %619 = vrot.lane.b32.xlu0 %v618, 4
  %v620 = vpop.permute.xlu0 %619
  %vm621 = vcmask 64544
  %622 = vst.msk [vmem:[%s1] sm:$0x1f] %vm621, %v620

// kernel: mfcc_forward.1
$region0: #{mfcc_forward.1}
  #allocation0 [shape = 'u32[]', space=smem, size = 0x4, offset = 0x4, fixed_abs, tag = 'smem constant byte address 0x4 - core index']
  #allocation1 [shape = 'u32[72,128]{1,0:T(1,128)}', space=vmem, size = 0x9000, scoped, tag = 'internal scratch']
  %s0 = inlined_call_operand.vmem [shape: bf16[16,1280], index: 0, kind: input, shape index: {}]
  %s1 = inlined_call_operand.hbm [shape: bf16[1280,2560], index: 1, kind: input, shape index: {}]
  %s2 = inlined_call_operand.vmem [shape: f32[1,2560], index: 2, kind: input, shape index: {}]
  %s3 = inlined_call_operand.vmem [shape: bf16[640,128], index: 3, kind: input, shape index: {}]
  %s4 = inlined_call_operand.hbm [shape: f32[1,128], index: 4, kind: input, shape index: {}]
  %s5 = inlined_call_operand.vmem [shape: f32[16,128], index: 5, kind: output, shape index: {}]
  %s6 = sld [smem:[#allocation0]]
  $region38: #{mfcc_forward.1} parent=0
    _
  %s8 = ssub.s32 1, %s6
  %s9 = scalar_select 0, %s8, %s6
  $region1: #{mfcc_forward.1} parent=0
    #allocation2 [shape = 'u8[6553600]{0}', space=vmem, size = 0x640000, scoped, tag = 'input window, operand 1, single buffered']
    #allocation3 [shape = 's32[1]{0}', space=sflag, size = 0x4, scoped, tag = 'scoped memory for mfcc_forward.1']
    #allocation4 [shape = 'u8[512]{0}', space=vmem, size = 0x400, scoped, tag = 'input window, operand 4, single buffered']
    #allocation5 [shape = 's32[1]{0}', space=sflag, size = 0x4, scoped, tag = 'scoped memory for mfcc_forward.1']
    %10 = vsyncpa [#allocation3], 0
    %11 = vsyncpa [#allocation5], 0
    // Predicated region
    $region2: #{mfcc_forward.1} parent=1 // pred_check
      _
    $region3: #{mfcc_forward.1} parent=1 // pred_check_branch
      %13 = sbr.rel (0) target = $region5
    $region4: #{mfcc_forward.1} parent=1 // pred_region
      _
    $region5: #{mfcc_forward.1} parent=1 // pred_fallthru
      _
    // Predicated region
    $region6: #{mfcc_forward.1} parent=1 // pred_check
      _
    $region7: #{mfcc_forward.1} parent=1 // pred_check_branch
      %15 = sbr.rel (0) target = $region9
    $region8: #{mfcc_forward.1} parent=1 // pred_region
      %17 = vsyncadd [#allocation3], 0
      %s18 = sshll.u32 %s1, 4
      %s19 = int_to_ptr.hbm [resolvable:$true] %s18
      %s20 = sshll.u32 [#allocation2], 4
      %s21 = int_to_ptr.vmem [resolvable:$true] %s20
      %26 = dma.hbm_to_vmem [thread:$0]  %s19, 204800, %s21, [#allocation3], 1280, 1280, 80
    $region9: #{mfcc_forward.1} parent=1 // pred_fallthru
      _
    // Predicated region
    $region10: #{mfcc_forward.1} parent=1 // pred_check
      _
    $region11: #{mfcc_forward.1} parent=1 // pred_check_branch
      %28 = sbr.rel (0) target = $region13
    $region12: #{mfcc_forward.1} parent=1 // pred_region
      _
    $region13: #{mfcc_forward.1} parent=1 // pred_fallthru
      _
    // Predicated region
    $region14: #{mfcc_forward.1} parent=1 // pred_check
      _
    $region15: #{mfcc_forward.1} parent=1 // pred_check_branch
      %30 = sbr.rel (0) target = $region17
    $region16: #{mfcc_forward.1} parent=1 // pred_region
      _
    $region17: #{mfcc_forward.1} parent=1 // pred_fallthru
      _
    // Predicated region
    $region18: #{mfcc_forward.1} parent=1 // pred_check
      _
    $region19: #{mfcc_forward.1} parent=1 // pred_check_branch
      %32 = sbr.rel (0) target = $region21
    $region20: #{mfcc_forward.1} parent=1 // pred_region
      %34 = vsyncadd [#allocation5], 0
      %s36 = sshll.u32 %s4, 4
      %s37 = int_to_ptr.hbm [resolvable:$true] %s36
      %s38 = sshll.u32 [#allocation4], 4
      %s39 = int_to_ptr.vmem [resolvable:$true] %s38
      %41 = dma.hbm_to_vmem [thread:$0]  %s37, 16, %s39, [#allocation5]
    $region21: #{mfcc_forward.1} parent=1 // pred_fallthru
      _
    // Predicated region
    $region22: #{mfcc_forward.1} parent=1 // pred_check
      _
    $region23: #{mfcc_forward.1} parent=1 // pred_check_branch
      %43 = sbr.rel (0) target = $region25
    $region24: #{mfcc_forward.1} parent=1 // pred_region
      %45 = dma.done [#allocation3], 204800
    $region25: #{mfcc_forward.1} parent=1 // pred_fallthru
      _
    // Predicated region
    $region26: #{mfcc_forward.1} parent=1 // pred_check
      _
    $region27: #{mfcc_forward.1} parent=1 // pred_check_branch
      %47 = sbr.rel (0) target = $region29
    $region28: #{mfcc_forward.1} parent=1 // pred_region
      %49 = dma.done [#allocation5], 16
    $region29: #{mfcc_forward.1} parent=1 // pred_fallthru
      _
    %v50 = vld [vmem:[%s0] sm:$0xff]
    %v51 = vld [vmem:[%s0 + $0x8] sm:$0xff]
    %v52 = vld [vmem:[%s0 + $0x10] sm:$0xff]
    %v53 = vld [vmem:[%s0 + $0x18] sm:$0xff]
    %v54 = vld [vmem:[%s0 + $0x20] sm:$0xff]
    %v55 = vld [vmem:[%s0 + $0x28] sm:$0xff]
    %v56 = vld [vmem:[%s0 + $0x30] sm:$0xff]
    %v57 = vld [vmem:[%s0 + $0x38] sm:$0xff]
    %v58 = vld [vmem:[%s0 + $0x40] sm:$0xff]
    %v59 = vld [vmem:[%s0 + $0x48] sm:$0xff]
    %v60 = vld [vmem:[#allocation2] sm:$0xff]
    %v61 = vld [vmem:[#allocation2 + $0x8] sm:$0xff]
    %v62 = vld [vmem:[#allocation2 + $0x10] sm:$0xff]
    %v63 = vld [vmem:[#allocation2 + $0x18] sm:$0xff]
    %v64 = vld [vmem:[#allocation2 + $0x20] sm:$0xff]
    %v65 = vld [vmem:[#allocation2 + $0x28] sm:$0xff]
    %v66 = vld [vmem:[#allocation2 + $0x30] sm:$0xff]
    %v67 = vld [vmem:[#allocation2 + $0x38] sm:$0xff]
    %v68 = vld [vmem:[#allocation2 + $0x40] sm:$0xff]
    %v69 = vld [vmem:[#allocation2 + $0x48] sm:$0xff]
    %v70 = vld [vmem:[#allocation2 + $0x50] sm:$0xff]
    %v71 = vld [vmem:[#allocation2 + $0x58] sm:$0xff]
    %v72 = vld [vmem:[#allocation2 + $0x60] sm:$0xff]
    %v73 = vld [vmem:[#allocation2 + $0x68] sm:$0xff]
    %v74 = vld [vmem:[#allocation2 + $0x70] sm:$0xff]
    %v75 = vld [vmem:[#allocation2 + $0x78] sm:$0xff]
    %v76 = vld [vmem:[#allocation2 + $0x80] sm:$0xff]
    %v77 = vld [vmem:[#allocation2 + $0x88] sm:$0xff]
    %v78 = vld [vmem:[#allocation2 + $0x90] sm:$0xff]
    %v79 = vld [vmem:[#allocation2 + $0x98] sm:$0xff]
    %v80 = vld [vmem:[#allocation2 + $0xa0] sm:$0xff]
    %v81 = vld [vmem:[#allocation2 + $0xa8] sm:$0xff]
    %v82 = vld [vmem:[#allocation2 + $0xb0] sm:$0xff]
    %v83 = vld [vmem:[#allocation2 + $0xb8] sm:$0xff]
    %v84 = vld [vmem:[#allocation2 + $0xc0] sm:$0xff]
    %v85 = vld [vmem:[#allocation2 + $0xc8] sm:$0xff]
    %v86 = vld [vmem:[#allocation2 + $0xd0] sm:$0xff]
    %v87 = vld [vmem:[#allocation2 + $0xd8] sm:$0xff]
    %v88 = vld [vmem:[#allocation2 + $0xe0] sm:$0xff]
    %v89 = vld [vmem:[#allocation2 + $0xe8] sm:$0xff]
    %v90 = vld [vmem:[#allocation2 + $0xf0] sm:$0xff]
    %v91 = vld [vmem:[#allocation2 + $0xf8] sm:$0xff]
    %v92 = vld [vmem:[#allocation2 + $0x100] sm:$0xff]
    %v93 = vld [vmem:[#allocation2 + $0x108] sm:$0xff]
    %v94 = vld [vmem:[#allocation2 + $0x110] sm:$0xff]
    %v95 = vld [vmem:[#allocation2 + $0x118] sm:$0xff]
    %v96 = vld [vmem:[#allocation2 + $0x120] sm:$0xff]
    %v97 = vld [vmem:[#allocation2 + $0x128] sm:$0xff]
    %v98 = vld [vmem:[#allocation2 + $0x130] sm:$0xff]
    %v99 = vld [vmem:[#allocation2 + $0x138] sm:$0xff]
    %v100 = vld [vmem:[#allocation2 + $0x140] sm:$0xff]
    %v101 = vld [vmem:[#allocation2 + $0x148] sm:$0xff]
    %v102 = vld [vmem:[#allocation2 + $0x150] sm:$0xff]
    %v103 = vld [vmem:[#allocation2 + $0x158] sm:$0xff]
    %v104 = vld [vmem:[#allocation2 + $0x160] sm:$0xff]
    %v105 = vld [vmem:[#allocation2 + $0x168] sm:$0xff]
    %v106 = vld [vmem:[#allocation2 + $0x170] sm:$0xff]
    %v107 = vld [vmem:[#allocation2 + $0x178] sm:$0xff]
    %v108 = vld [vmem:[#allocation2 + $0x180] sm:$0xff]
    %v109 = vld [vmem:[#allocation2 + $0x188] sm:$0xff]
    %v110 = vld [vmem:[#allocation2 + $0x190] sm:$0xff]
    %v111 = vld [vmem:[#allocation2 + $0x198] sm:$0xff]
    %v112 = vld [vmem:[#allocation2 + $0x1a0] sm:$0xff]
    %v113 = vld [vmem:[#allocation2 + $0x1a8] sm:$0xff]
    %v114 = vld [vmem:[#allocation2 + $0x1b0] sm:$0xff]
    %v115 = vld [vmem:[#allocation2 + $0x1b8] sm:$0xff]
    %v116 = vld [vmem:[#allocation2 + $0x1c0] sm:$0xff]
    %v117 = vld [vmem:[#allocation2 + $0x1c8] sm:$0xff]
    %v118 = vld [vmem:[#allocation2 + $0x1d0] sm:$0xff]
    %v119 = vld [vmem:[#allocation2 + $0x1d8] sm:$0xff]
    %v120 = vld [vmem:[#allocation2 + $0x1e0] sm:$0xff]
    %v121 = vld [vmem:[#allocation2 + $0x1e8] sm:$0xff]
    %v122 = vld [vmem:[#allocation2 + $0x1f0] sm:$0xff]
    %v123 = vld [vmem:[#allocation2 + $0x1f8] sm:$0xff]
    %v124 = vld [vmem:[#allocation2 + $0x200] sm:$0xff]
    %v125 = vld [vmem:[#allocation2 + $0x208] sm:$0xff]
    %v126 = vld [vmem:[#allocation2 + $0x210] sm:$0xff]
    %v127 = vld [vmem:[#allocation2 + $0x218] sm:$0xff]
    %v128 = vld [vmem:[#allocation2 + $0x220] sm:$0xff]
    %v129 = vld [vmem:[#allocation2 + $0x228] sm:$0xff]
    %v130 = vld [vmem:[#allocation2 + $0x230] sm:$0xff]
    %v131 = vld [vmem:[#allocation2 + $0x238] sm:$0xff]
    %v132 = vld [vmem:[#allocation2 + $0x240] sm:$0xff]
    %v133 = vld [vmem:[#allocation2 + $0x248] sm:$0xff]
    %v134 = vld [vmem:[#allocation2 + $0x250] sm:$0xff]
    %v135 = vld [vmem:[#allocation2 + $0x258] sm:$0xff]
    %v136 = vld [vmem:[#allocation2 + $0x260] sm:$0xff]
    %v137 = vld [vmem:[#allocation2 + $0x268] sm:$0xff]
    %v138 = vld [vmem:[#allocation2 + $0x270] sm:$0xff]
    %v139 = vld [vmem:[#allocation2 + $0x278] sm:$0xff]
    %v140 = vld [vmem:[#allocation2 + $0x280] sm:$0xff]
    %v141 = vld [vmem:[#allocation2 + $0x288] sm:$0xff]
    %v142 = vld [vmem:[#allocation2 + $0x290] sm:$0xff]
    %v143 = vld [vmem:[#allocation2 + $0x298] sm:$0xff]
    %v144 = vld [vmem:[#allocation2 + $0x2a0] sm:$0xff]
    %v145 = vld [vmem:[#allocation2 + $0x2a8] sm:$0xff]
    %v146 = vld [vmem:[#allocation2 + $0x2b0] sm:$0xff]
    %v147 = vld [vmem:[#allocation2 + $0x2b8] sm:$0xff]
    %v148 = vld [vmem:[#allocation2 + $0x2c0] sm:$0xff]
    %v149 = vld [vmem:[#allocation2 + $0x2c8] sm:$0xff]
    %v150 = vld [vmem:[#allocation2 + $0x2d0] sm:$0xff]
    %v151 = vld [vmem:[#allocation2 + $0x2d8] sm:$0xff]
    %v152 = vld [vmem:[#allocation2 + $0x2e0] sm:$0xff]
    %v153 = vld [vmem:[#allocation2 + $0x2e8] sm:$0xff]
    %v154 = vld [vmem:[#allocation2 + $0x2f0] sm:$0xff]
    %v155 = vld [vmem:[#allocation2 + $0x2f8] sm:$0xff]
    %v156 = vld [vmem:[#allocation2 + $0x300] sm:$0xff]
    %v157 = vld [vmem:[#allocation2 + $0x308] sm:$0xff]
    %v158 = vld [vmem:[#allocation2 + $0x310] sm:$0xff]
    %v159 = vld [vmem:[#allocation2 + $0x318] sm:$0xff]
    %v160 = vld [vmem:[#allocation2 + $0x320] sm:$0xff]
    %v161 = vld [vmem:[#allocation2 + $0x328] sm:$0xff]
    %v162 = vld [vmem:[#allocation2 + $0x330] sm:$0xff]
    %v163 = vld [vmem:[#allocation2 + $0x338] sm:$0xff]
    %v164 = vld [vmem:[#allocation2 + $0x340] sm:$0xff]
    %v165 = vld [vmem:[#allocation2 + $0x348] sm:$0xff]
    %v166 = vld [vmem:[#allocation2 + $0x350] sm:$0xff]
    %v167 = vld [vmem:[#allocation2 + $0x358] sm:$0xff]
    %v168 = vld [vmem:[#allocation2 + $0x360] sm:$0xff]
    %v169 = vld [vmem:[#allocation2 + $0x368] sm:$0xff]
    %v170 = vld [vmem:[#allocation2 + $0x370] sm:$0xff]
    %v171 = vld [vmem:[#allocation2 + $0x378] sm:$0xff]
    %v172 = vld [vmem:[#allocation2 + $0x380] sm:$0xff]
    %v173 = vld [vmem:[#allocation2 + $0x388] sm:$0xff]
    %v174 = vld [vmem:[#allocation2 + $0x390] sm:$0xff]
    %v175 = vld [vmem:[#allocation2 + $0x398] sm:$0xff]
    %v176 = vld [vmem:[#allocation2 + $0x3a0] sm:$0xff]
    %v177 = vld [vmem:[#allocation2 + $0x3a8] sm:$0xff]
    %v178 = vld [vmem:[#allocation2 + $0x3b0] sm:$0xff]
    %v179 = vld [vmem:[#allocation2 + $0x3b8] sm:$0xff]
    %v180 = vld [vmem:[#allocation2 + $0x3c0] sm:$0xff]
    %v181 = vld [vmem:[#allocation2 + $0x3c8] sm:$0xff]
    %v182 = vld [vmem:[#allocation2 + $0x3d0] sm:$0xff]
    %v183 = vld [vmem:[#allocation2 + $0x3d8] sm:$0xff]
    %v184 = vld [vmem:[#allocation2 + $0x3e0] sm:$0xff]
    %v185 = vld [vmem:[#allocation2 + $0x3e8] sm:$0xff]
    %v186 = vld [vmem:[#allocation2 + $0x3f0] sm:$0xff]
    %v187 = vld [vmem:[#allocation2 + $0x3f8] sm:$0xff]
    %v188 = vld [vmem:[#allocation2 + $0x400] sm:$0xff]
    %v189 = vld [vmem:[#allocation2 + $0x408] sm:$0xff]
    %v190 = vld [vmem:[#allocation2 + $0x410] sm:$0xff]
    %v191 = vld [vmem:[#allocation2 + $0x418] sm:$0xff]
    %v192 = vld [vmem:[#allocation2 + $0x420] sm:$0xff]
    %v193 = vld [vmem:[#allocation2 + $0x428] sm:$0xff]
    %v194 = vld [vmem:[#allocation2 + $0x430] sm:$0xff]
    %v195 = vld [vmem:[#allocation2 + $0x438] sm:$0xff]
    %v196 = vld [vmem:[#allocation2 + $0x440] sm:$0xff]
    %v197 = vld [vmem:[#allocation2 + $0x448] sm:$0xff]
    %v198 = vld [vmem:[#allocation2 + $0x450] sm:$0xff]
    %v199 = vld [vmem:[#allocation2 + $0x458] sm:$0xff]
    %v200 = vld [vmem:[#allocation2 + $0x460] sm:$0xff]
    %v201 = vld [vmem:[#allocation2 + $0x468] sm:$0xff]
    %v202 = vld [vmem:[#allocation2 + $0x470] sm:$0xff]
    %v203 = vld [vmem:[#allocation2 + $0x478] sm:$0xff]
    %v204 = vld [vmem:[#allocation2 + $0x480] sm:$0xff]
    %v205 = vld [vmem:[#allocation2 + $0x488] sm:$0xff]
    %v206 = vld [vmem:[#allocation2 + $0x490] sm:$0xff]
    %v207 = vld [vmem:[#allocation2 + $0x498] sm:$0xff]
    %v208 = vld [vmem:[#allocation2 + $0x4a0] sm:$0xff]
    %v209 = vld [vmem:[#allocation2 + $0x4a8] sm:$0xff]
    %v210 = vld [vmem:[#allocation2 + $0x4b0] sm:$0xff]
    %v211 = vld [vmem:[#allocation2 + $0x4b8] sm:$0xff]
    %v212 = vld [vmem:[#allocation2 + $0x4c0] sm:$0xff]
    %v213 = vld [vmem:[#allocation2 + $0x4c8] sm:$0xff]
    %v214 = vld [vmem:[#allocation2 + $0x4d0] sm:$0xff]
    %v215 = vld [vmem:[#allocation2 + $0x4d8] sm:$0xff]
    %v216 = vld [vmem:[#allocation2 + $0x4e0] sm:$0xff]
    %v217 = vld [vmem:[#allocation2 + $0x4e8] sm:$0xff]
    %v218 = vld [vmem:[#allocation2 + $0x4f0] sm:$0xff]
    %v219 = vld [vmem:[#allocation2 + $0x4f8] sm:$0xff]
    %v220 = vld [vmem:[#allocation2 + $0x500] sm:$0xff]
    %v221 = vld [vmem:[#allocation2 + $0x508] sm:$0xff]
    %v222 = vld [vmem:[#allocation2 + $0x510] sm:$0xff]
    %v223 = vld [vmem:[#allocation2 + $0x518] sm:$0xff]
    %v224 = vld [vmem:[#allocation2 + $0x520] sm:$0xff]
    %v225 = vld [vmem:[#allocation2 + $0x528] sm:$0xff]
    %v226 = vld [vmem:[#allocation2 + $0x530] sm:$0xff]
    %v227 = vld [vmem:[#allocation2 + $0x538] sm:$0xff]
    %v228 = vld [vmem:[#allocation2 + $0x540] sm:$0xff]
    %v229 = vld [vmem:[#allocation2 + $0x548] sm:$0xff]
    %v230 = vld [vmem:[#allocation2 + $0x550] sm:$0xff]
    %v231 = vld [vmem:[#allocation2 + $0x558] sm:$0xff]
    %v232 = vld [vmem:[#allocation2 + $0x560] sm:$0xff]
    %v233 = vld [vmem:[#allocation2 + $0x568] sm:$0xff]
    %v234 = vld [vmem:[#allocation2 + $0x570] sm:$0xff]
    %v235 = vld [vmem:[#allocation2 + $0x578] sm:$0xff]
    %v236 = vld [vmem:[#allocation2 + $0x580] sm:$0xff]
    %v237 = vld [vmem:[#allocation2 + $0x588] sm:$0xff]
    %v238 = vld [vmem:[#allocation2 + $0x590] sm:$0xff]
    %v239 = vld [vmem:[#allocation2 + $0x598] sm:$0xff]
    %v240 = vld [vmem:[#allocation2 + $0x5a0] sm:$0xff]
    %v241 = vld [vmem:[#allocation2 + $0x5a8] sm:$0xff]
    %v242 = vld [vmem:[#allocation2 + $0x5b0] sm:$0xff]
    %v243 = vld [vmem:[#allocation2 + $0x5b8] sm:$0xff]
    %v244 = vld [vmem:[#allocation2 + $0x5c0] sm:$0xff]
    %v245 = vld [vmem:[#allocation2 + $0x5c8] sm:$0xff]
    %v246 = vld [vmem:[#allocation2 + $0x5d0] sm:$0xff]
    %v247 = vld [vmem:[#allocation2 + $0x5d8] sm:$0xff]
    %v248 = vld [vmem:[#allocation2 + $0x5e0] sm:$0xff]
    %v249 = vld [vmem:[#allocation2 + $0x5e8] sm:$0xff]
    %v250 = vld [vmem:[#allocation2 + $0x5f0] sm:$0xff]
    %v251 = vld [vmem:[#allocation2 + $0x5f8] sm:$0xff]
    %v252 = vld [vmem:[#allocation2 + $0x600] sm:$0xff]
    %v253 = vld [vmem:[#allocation2 + $0x608] sm:$0xff]
    %v254 = vld [vmem:[#allocation2 + $0x610] sm:$0xff]
    %v255 = vld [vmem:[#allocation2 + $0x618] sm:$0xff]
    %v256 = vld [vmem:[#allocation2 + $0x620] sm:$0xff]
    %v257 = vld [vmem:[#allocation2 + $0x628] sm:$0xff]
    %v258 = vld [vmem:[#allocation2 + $0x630] sm:$0xff]
    %v259 = vld [vmem:[#allocation2 + $0x638] sm:$0xff]
    %v260 = vld [vmem:[#allocation2 + $0x640] sm:$0xff]
    %v261 = vld [vmem:[#allocation2 + $0x648] sm:$0xff]
    %v262 = vld [vmem:[#allocation2 + $0x650] sm:$0xff]
    %v263 = vld [vmem:[#allocation2 + $0x658] sm:$0xff]
    %v264 = vld [vmem:[#allocation2 + $0x660] sm:$0xff]
    %v265 = vld [vmem:[#allocation2 + $0x668] sm:$0xff]
    %v266 = vld [vmem:[#allocation2 + $0x670] sm:$0xff]
    %v267 = vld [vmem:[#allocation2 + $0x678] sm:$0xff]
    %v268 = vld [vmem:[#allocation2 + $0x680] sm:$0xff]
    %v269 = vld [vmem:[#allocation2 + $0x688] sm:$0xff]
    %v270 = vld [vmem:[#allocation2 + $0x690] sm:$0xff]
    %v271 = vld [vmem:[#allocation2 + $0x698] sm:$0xff]
    %v272 = vld [vmem:[#allocation2 + $0x6a0] sm:$0xff]
    %v273 = vld [vmem:[#allocation2 + $0x6a8] sm:$0xff]
    %v274 = vld [vmem:[#allocation2 + $0x6b0] sm:$0xff]
    %v275 = vld [vmem:[#allocation2 + $0x6b8] sm:$0xff]
    %v276 = vld [vmem:[#allocation2 + $0x6c0] sm:$0xff]
    %v277 = vld [vmem:[#allocation2 + $0x6c8] sm:$0xff]
    %v278 = vld [vmem:[#allocation2 + $0x6d0] sm:$0xff]
    %v279 = vld [vmem:[#allocation2 + $0x6d8] sm:$0xff]
    %v280 = vld [vmem:[#allocation2 + $0x6e0] sm:$0xff]
    %v281 = vld [vmem:[#allocation2 + $0x6e8] sm:$0xff]
    %v282 = vld [vmem:[#allocation2 + $0x6f0] sm:$0xff]
    %v283 = vld [vmem:[#allocation2 + $0x6f8] sm:$0xff]
    %v284 = vld [vmem:[#allocation2 + $0x700] sm:$0xff]
    %v285 = vld [vmem:[#allocation2 + $0x708] sm:$0xff]
    %v286 = vld [vmem:[#allocation2 + $0x710] sm:$0xff]
    %v287 = vld [vmem:[#allocation2 + $0x718] sm:$0xff]
    %v288 = vld [vmem:[#allocation2 + $0x720] sm:$0xff]
    %v289 = vld [vmem:[#allocation2 + $0x728] sm:$0xff]
    %v290 = vld [vmem:[#allocation2 + $0x730] sm:$0xff]
    %v291 = vld [vmem:[#allocation2 + $0x738] sm:$0xff]
    %v292 = vld [vmem:[#allocation2 + $0x740] sm:$0xff]
    %v293 = vld [vmem:[#allocation2 + $0x748] sm:$0xff]
    %v294 = vld [vmem:[#allocation2 + $0x750] sm:$0xff]
    %v295 = vld [vmem:[#allocation2 + $0x758] sm:$0xff]
    %v296 = vld [vmem:[#allocation2 + $0x760] sm:$0xff]
    %v297 = vld [vmem:[#allocation2 + $0x768] sm:$0xff]
    %v298 = vld [vmem:[#allocation2 + $0x770] sm:$0xff]
    %v299 = vld [vmem:[#allocation2 + $0x778] sm:$0xff]
    %v300 = vld [vmem:[#allocation2 + $0x780] sm:$0xff]
    %v301 = vld [vmem:[#allocation2 + $0x788] sm:$0xff]
    %v302 = vld [vmem:[#allocation2 + $0x790] sm:$0xff]
    %v303 = vld [vmem:[#allocation2 + $0x798] sm:$0xff]
    %v304 = vld [vmem:[#allocation2 + $0x7a0] sm:$0xff]
    %v305 = vld [vmem:[#allocation2 + $0x7a8] sm:$0xff]
    %v306 = vld [vmem:[#allocation2 + $0x7b0] sm:$0xff]
    %v307 = vld [vmem:[#allocation2 + $0x7b8] sm:$0xff]
    %v308 = vld [vmem:[#allocation2 + $0x7c0] sm:$0xff]
    %v309 = vld [vmem:[#allocation2 + $0x7c8] sm:$0xff]
    %v310 = vld [vmem:[#allocation2 + $0x7d0] sm:$0xff]
    %v311 = vld [vmem:[#allocation2 + $0x7d8] sm:$0xff]
    %v312 = vld [vmem:[#allocation2 + $0x7e0] sm:$0xff]
    %v313 = vld [vmem:[#allocation2 + $0x7e8] sm:$0xff]
    %v314 = vld [vmem:[#allocation2 + $0x7f0] sm:$0xff]
    %v315 = vld [vmem:[#allocation2 + $0x7f8] sm:$0xff]
    %v316 = vld [vmem:[#allocation2 + $0x800] sm:$0xff]
    %v317 = vld [vmem:[#allocation2 + $0x808] sm:$0xff]
    %v318 = vld [vmem:[#allocation2 + $0x810] sm:$0xff]
    %v319 = vld [vmem:[#allocation2 + $0x818] sm:$0xff]
    %v320 = vld [vmem:[#allocation2 + $0x820] sm:$0xff]
    %v321 = vld [vmem:[#allocation2 + $0x828] sm:$0xff]
    %v322 = vld [vmem:[#allocation2 + $0x830] sm:$0xff]
    %v323 = vld [vmem:[#allocation2 + $0x838] sm:$0xff]
    %v324 = vld [vmem:[#allocation2 + $0x840] sm:$0xff]
    %v325 = vld [vmem:[#allocation2 + $0x848] sm:$0xff]
    %v326 = vld [vmem:[#allocation2 + $0x850] sm:$0xff]
    %v327 = vld [vmem:[#allocation2 + $0x858] sm:$0xff]
    %v328 = vld [vmem:[#allocation2 + $0x860] sm:$0xff]
    %v329 = vld [vmem:[#allocation2 + $0x868] sm:$0xff]
    %v330 = vld [vmem:[#allocation2 + $0x870] sm:$0xff]
    %v331 = vld [vmem:[#allocation2 + $0x878] sm:$0xff]
    %v332 = vld [vmem:[#allocation2 + $0x880] sm:$0xff]
    %v333 = vld [vmem:[#allocation2 + $0x888] sm:$0xff]
    %v334 = vld [vmem:[#allocation2 + $0x890] sm:$0xff]
    %v335 = vld [vmem:[#allocation2 + $0x898] sm:$0xff]
    %v336 = vld [vmem:[#allocation2 + $0x8a0] sm:$0xff]
    %v337 = vld [vmem:[#allocation2 + $0x8a8] sm:$0xff]
    %v338 = vld [vmem:[#allocation2 + $0x8b0] sm:$0xff]
    %v339 = vld [vmem:[#allocation2 + $0x8b8] sm:$0xff]
    %v340 = vld [vmem:[#allocation2 + $0x8c0] sm:$0xff]
    %v341 = vld [vmem:[#allocation2 + $0x8c8] sm:$0xff]
    %v342 = vld [vmem:[#allocation2 + $0x8d0] sm:$0xff]
    %v343 = vld [vmem:[#allocation2 + $0x8d8] sm:$0xff]
    %v344 = vld [vmem:[#allocation2 + $0x8e0] sm:$0xff]
    %v345 = vld [vmem:[#allocation2 + $0x8e8] sm:$0xff]
    %v346 = vld [vmem:[#allocation2 + $0x8f0] sm:$0xff]
    %v347 = vld [vmem:[#allocation2 + $0x8f8] sm:$0xff]
    %v348 = vld [vmem:[#allocation2 + $0x900] sm:$0xff]
    %v349 = vld [vmem:[#allocation2 + $0x908] sm:$0xff]
    %v350 = vld [vmem:[#allocation2 + $0x910] sm:$0xff]
    %v351 = vld [vmem:[#allocation2 + $0x918] sm:$0xff]
    %v352 = vld [vmem:[#allocation2 + $0x920] sm:$0xff]
    %v353 = vld [vmem:[#allocation2 + $0x928] sm:$0xff]
    %v354 = vld [vmem:[#allocation2 + $0x930] sm:$0xff]
    %v355 = vld [vmem:[#allocation2 + $0x938] sm:$0xff]
    %v356 = vld [vmem:[#allocation2 + $0x940] sm:$0xff]
    %v357 = vld [vmem:[#allocation2 + $0x948] sm:$0xff]
    %v358 = vld [vmem:[#allocation2 + $0x950] sm:$0xff]
    %v359 = vld [vmem:[#allocation2 + $0x958] sm:$0xff]
    %v360 = vld [vmem:[#allocation2 + $0x960] sm:$0xff]
    %v361 = vld [vmem:[#allocation2 + $0x968] sm:$0xff]
    %v362 = vld [vmem:[#allocation2 + $0x970] sm:$0xff]
    %v363 = vld [vmem:[#allocation2 + $0x978] sm:$0xff]
    %v364 = vld [vmem:[#allocation2 + $0x980] sm:$0xff]
    %v365 = vld [vmem:[#allocation2 + $0x988] sm:$0xff]
    %v366 = vld [vmem:[#allocation2 + $0x990] sm:$0xff]
    %v367 = vld [vmem:[#allocation2 + $0x998] sm:$0xff]
    %v368 = vld [vmem:[#allocation2 + $0x9a0] sm:$0xff]
    %v369 = vld [vmem:[#allocation2 + $0x9a8] sm:$0xff]
    %v370 = vld [vmem:[#allocation2 + $0x9b0] sm:$0xff]
    %v371 = vld [vmem:[#allocation2 + $0x9b8] sm:$0xff]
    %v372 = vld [vmem:[#allocation2 + $0x9c0] sm:$0xff]
    %v373 = vld [vmem:[#allocation2 + $0x9c8] sm:$0xff]
    %v374 = vld [vmem:[#allocation2 + $0x9d0] sm:$0xff]
    %v375 = vld [vmem:[#allocation2 + $0x9d8] sm:$0xff]
    %v376 = vld [vmem:[#allocation2 + $0x9e0] sm:$0xff]
    %v377 = vld [vmem:[#allocation2 + $0x9e8] sm:$0xff]
    %v378 = vld [vmem:[#allocation2 + $0x9f0] sm:$0xff]
    %v379 = vld [vmem:[#allocation2 + $0x9f8] sm:$0xff]
    %v380 = vld [vmem:[#allocation2 + $0xa00] sm:$0xff]
    %v381 = vld [vmem:[#allocation2 + $0xa08] sm:$0xff]
    %v382 = vld [vmem:[#allocation2 + $0xa10] sm:$0xff]
    %v383 = vld [vmem:[#allocation2 + $0xa18] sm:$0xff]
    %v384 = vld [vmem:[#allocation2 + $0xa20] sm:$0xff]
    %v385 = vld [vmem:[#allocation2 + $0xa28] sm:$0xff]
    %v386 = vld [vmem:[#allocation2 + $0xa30] sm:$0xff]
    %v387 = vld [vmem:[#allocation2 + $0xa38] sm:$0xff]
    %v388 = vld [vmem:[#allocation2 + $0xa40] sm:$0xff]
    %v389 = vld [vmem:[#allocation2 + $0xa48] sm:$0xff]
    %v390 = vld [vmem:[#allocation2 + $0xa50] sm:$0xff]
    %v391 = vld [vmem:[#allocation2 + $0xa58] sm:$0xff]
    %v392 = vld [vmem:[#allocation2 + $0xa60] sm:$0xff]
    %v393 = vld [vmem:[#allocation2 + $0xa68] sm:$0xff]
    %v394 = vld [vmem:[#allocation2 + $0xa70] sm:$0xff]
    %v395 = vld [vmem:[#allocation2 + $0xa78] sm:$0xff]
    %v396 = vld [vmem:[#allocation2 + $0xa80] sm:$0xff]
    %v397 = vld [vmem:[#allocation2 + $0xa88] sm:$0xff]
    %v398 = vld [vmem:[#allocation2 + $0xa90] sm:$0xff]
    %v399 = vld [vmem:[#allocation2 + $0xa98] sm:$0xff]
    %v400 = vld [vmem:[#allocation2 + $0xaa0] sm:$0xff]
    %v401 = vld [vmem:[#allocation2 + $0xaa8] sm:$0xff]
    %v402 = vld [vmem:[#allocation2 + $0xab0] sm:$0xff]
    %v403 = vld [vmem:[#allocation2 + $0xab8] sm:$0xff]
    %v404 = vld [vmem:[#allocation2 + $0xac0] sm:$0xff]
    %v405 = vld [vmem:[#allocation2 + $0xac8] sm:$0xff]
    %v406 = vld [vmem:[#allocation2 + $0xad0] sm:$0xff]
    %v407 = vld [vmem:[#allocation2 + $0xad8] sm:$0xff]
    %v408 = vld [vmem:[#allocation2 + $0xae0] sm:$0xff]
    %v409 = vld [vmem:[#allocation2 + $0xae8] sm:$0xff]
    %v410 = vld [vmem:[#allocation2 + $0xaf0] sm:$0xff]
    %v411 = vld [vmem:[#allocation2 + $0xaf8] sm:$0xff]
    %v412 = vld [vmem:[#allocation2 + $0xb00] sm:$0xff]
    %v413 = vld [vmem:[#allocation2 + $0xb08] sm:$0xff]
    %v414 = vld [vmem:[#allocation2 + $0xb10] sm:$0xff]
    %v415 = vld [vmem:[#allocation2 + $0xb18] sm:$0xff]
    %v416 = vld [vmem:[#allocation2 + $0xb20] sm:$0xff]
    %v417 = vld [vmem:[#allocation2 + $0xb28] sm:$0xff]
    %v418 = vld [vmem:[#allocation2 + $0xb30] sm:$0xff]
    %v419 = vld [vmem:[#allocation2 + $0xb38] sm:$0xff]
    %v420 = vld [vmem:[#allocation2 + $0xb40] sm:$0xff]
    %v421 = vld [vmem:[#allocation2 + $0xb48] sm:$0xff]
    %v422 = vld [vmem:[#allocation2 + $0xb50] sm:$0xff]
    %v423 = vld [vmem:[#allocation2 + $0xb58] sm:$0xff]
    %v424 = vld [vmem:[#allocation2 + $0xb60] sm:$0xff]
    %v425 = vld [vmem:[#allocation2 + $0xb68] sm:$0xff]
    %v426 = vld [vmem:[#allocation2 + $0xb70] sm:$0xff]
    %v427 = vld [vmem:[#allocation2 + $0xb78] sm:$0xff]
    %v428 = vld [vmem:[#allocation2 + $0xb80] sm:$0xff]
    %v429 = vld [vmem:[#allocation2 + $0xb88] sm:$0xff]
    %v430 = vld [vmem:[#allocation2 + $0xb90] sm:$0xff]
    %v431 = vld [vmem:[#allocation2 + $0xb98] sm:$0xff]
    %v432 = vld [vmem:[#allocation2 + $0xba0] sm:$0xff]
    %v433 = vld [vmem:[#allocation2 + $0xba8] sm:$0xff]
    %v434 = vld [vmem:[#allocation2 + $0xbb0] sm:$0xff]
    %v435 = vld [vmem:[#allocation2 + $0xbb8] sm:$0xff]
    %v436 = vld [vmem:[#allocation2 + $0xbc0] sm:$0xff]
    %v437 = vld [vmem:[#allocation2 + $0xbc8] sm:$0xff]
    %v438 = vld [vmem:[#allocation2 + $0xbd0] sm:$0xff]
    %v439 = vld [vmem:[#allocation2 + $0xbd8] sm:$0xff]
    %v440 = vld [vmem:[#allocation2 + $0xbe0] sm:$0xff]
    %v441 = vld [vmem:[#allocation2 + $0xbe8] sm:$0xff]
    %v442 = vld [vmem:[#allocation2 + $0xbf0] sm:$0xff]
    %v443 = vld [vmem:[#allocation2 + $0xbf8] sm:$0xff]
    %v444 = vld [vmem:[#allocation2 + $0xc00] sm:$0xff]
    %v445 = vld [vmem:[#allocation2 + $0xc08] sm:$0xff]
    %v446 = vld [vmem:[#allocation2 + $0xc10] sm:$0xff]
    %v447 = vld [vmem:[#allocation2 + $0xc18] sm:$0xff]
    %v448 = vld [vmem:[#allocation2 + $0xc20] sm:$0xff]
    %v449 = vld [vmem:[#allocation2 + $0xc28] sm:$0xff]
    %v450 = vld [vmem:[#allocation2 + $0xc30] sm:$0xff]
    %v451 = vld [vmem:[#allocation2 + $0xc38] sm:$0xff]
    %v452 = vld [vmem:[#allocation2 + $0xc40] sm:$0xff]
    %v453 = vld [vmem:[#allocation2 + $0xc48] sm:$0xff]
    %v454 = vld [vmem:[#allocation2 + $0xc50] sm:$0xff]
    %v455 = vld [vmem:[#allocation2 + $0xc58] sm:$0xff]
    %v456 = vld [vmem:[#allocation2 + $0xc60] sm:$0xff]
    %v457 = vld [vmem:[#allocation2 + $0xc68] sm:$0xff]
    %v458 = vld [vmem:[#allocation2 + $0xc70] sm:$0xff]
    %v459 = vld [vmem:[#allocation2 + $0xc78] sm:$0xff]
    %v460 = vld [vmem:[#allocation2 + $0xc80] sm:$0xff]
    %v461 = vld [vmem:[#allocation2 + $0xc88] sm:$0xff]
    %v462 = vld [vmem:[#allocation2 + $0xc90] sm:$0xff]
    %v463 = vld [vmem:[#allocation2 + $0xc98] sm:$0xff]
    %v464 = vld [vmem:[#allocation2 + $0xca0] sm:$0xff]
    %v465 = vld [vmem:[#allocation2 + $0xca8] sm:$0xff]
    %v466 = vld [vmem:[#allocation2 + $0xcb0] sm:$0xff]
    %v467 = vld [vmem:[#allocation2 + $0xcb8] sm:$0xff]
    %v468 = vld [vmem:[#allocation2 + $0xcc0] sm:$0xff]
    %v469 = vld [vmem:[#allocation2 + $0xcc8] sm:$0xff]
    %v470 = vld [vmem:[#allocation2 + $0xcd0] sm:$0xff]
    %v471 = vld [vmem:[#allocation2 + $0xcd8] sm:$0xff]
    %v472 = vld [vmem:[#allocation2 + $0xce0] sm:$0xff]
    %v473 = vld [vmem:[#allocation2 + $0xce8] sm:$0xff]
    %v474 = vld [vmem:[#allocation2 + $0xcf0] sm:$0xff]
    %v475 = vld [vmem:[#allocation2 + $0xcf8] sm:$0xff]
    %v476 = vld [vmem:[#allocation2 + $0xd00] sm:$0xff]
    %v477 = vld [vmem:[#allocation2 + $0xd08] sm:$0xff]
    %v478 = vld [vmem:[#allocation2 + $0xd10] sm:$0xff]
    %v479 = vld [vmem:[#allocation2 + $0xd18] sm:$0xff]
    %v480 = vld [vmem:[#allocation2 + $0xd20] sm:$0xff]
    %v481 = vld [vmem:[#allocation2 + $0xd28] sm:$0xff]
    %v482 = vld [vmem:[#allocation2 + $0xd30] sm:$0xff]
    %v483 = vld [vmem:[#allocation2 + $0xd38] sm:$0xff]
    %v484 = vld [vmem:[#allocation2 + $0xd40] sm:$0xff]
    %v485 = vld [vmem:[#allocation2 + $0xd48] sm:$0xff]
    %v486 = vld [vmem:[#allocation2 + $0xd50] sm:$0xff]
    %v487 = vld [vmem:[#allocation2 + $0xd58] sm:$0xff]
    %v488 = vld [vmem:[#allocation2 + $0xd60] sm:$0xff]
    %v489 = vld [vmem:[#allocation2 + $0xd68] sm:$0xff]
    %v490 = vld [vmem:[#allocation2 + $0xd70] sm:$0xff]
    %v491 = vld [vmem:[#allocation2 + $0xd78] sm:$0xff]
    %v492 = vld [vmem:[#allocation2 + $0xd80] sm:$0xff]
    %v493 = vld [vmem:[#allocation2 + $0xd88] sm:$0xff]
    %v494 = vld [vmem:[#allocation2 + $0xd90] sm:$0xff]
    %v495 = vld [vmem:[#allocation2 + $0xd98] sm:$0xff]
    %v496 = vld [vmem:[#allocation2 + $0xda0] sm:$0xff]
    %v497 = vld [vmem:[#allocation2 + $0xda8] sm:$0xff]
    %v498 = vld [vmem:[#allocation2 + $0xdb0] sm:$0xff]
    %v499 = vld [vmem:[#allocation2 + $0xdb8] sm:$0xff]
    %v500 = vld [vmem:[#allocation2 + $0xdc0] sm:$0xff]
    %v501 = vld [vmem:[#allocation2 + $0xdc8] sm:$0xff]
    %v502 = vld [vmem:[#allocation2 + $0xdd0] sm:$0xff]
    %v503 = vld [vmem:[#allocation2 + $0xdd8] sm:$0xff]
    %v504 = vld [vmem:[#allocation2 + $0xde0] sm:$0xff]
    %v505 = vld [vmem:[#allocation2 + $0xde8] sm:$0xff]
    %v506 = vld [vmem:[#allocation2 + $0xdf0] sm:$0xff]
    %v507 = vld [vmem:[#allocation2 + $0xdf8] sm:$0xff]
    %v508 = vld [vmem:[#allocation2 + $0xe00] sm:$0xff]
    %v509 = vld [vmem:[#allocation2 + $0xe08] sm:$0xff]
    %v510 = vld [vmem:[#allocation2 + $0xe10] sm:$0xff]
    %v511 = vld [vmem:[#allocation2 + $0xe18] sm:$0xff]
    %v512 = vld [vmem:[#allocation2 + $0xe20] sm:$0xff]
    %v513 = vld [vmem:[#allocation2 + $0xe28] sm:$0xff]
    %v514 = vld [vmem:[#allocation2 + $0xe30] sm:$0xff]
    %v515 = vld [vmem:[#allocation2 + $0xe38] sm:$0xff]
    %v516 = vld [vmem:[#allocation2 + $0xe40] sm:$0xff]
    %v517 = vld [vmem:[#allocation2 + $0xe48] sm:$0xff]
    %v518 = vld [vmem:[#allocation2 + $0xe50] sm:$0xff]
    %v519 = vld [vmem:[#allocation2 + $0xe58] sm:$0xff]
    %v520 = vld [vmem:[#allocation2 + $0xe60] sm:$0xff]
    %v521 = vld [vmem:[#allocation2 + $0xe68] sm:$0xff]
    %v522 = vld [vmem:[#allocation2 + $0xe70] sm:$0xff]
    %v523 = vld [vmem:[#allocation2 + $0xe78] sm:$0xff]
    %v524 = vld [vmem:[#allocation2 + $0xe80] sm:$0xff]
    %v525 = vld [vmem:[#allocation2 + $0xe88] sm:$0xff]
    %v526 = vld [vmem:[#allocation2 + $0xe90] sm:$0xff]
    %v527 = vld [vmem:[#allocation2 + $0xe98] sm:$0xff]
    %v528 = vld [vmem:[#allocation2 + $0xea0] sm:$0xff]
    %v529 = vld [vmem:[#allocation2 + $0xea8] sm:$0xff]
    %v530 = vld [vmem:[#allocation2 + $0xeb0] sm:$0xff]
    %v531 = vld [vmem:[#allocation2 + $0xeb8] sm:$0xff]
    %v532 = vld [vmem:[#allocation2 + $0xec0] sm:$0xff]
    %v533 = vld [vmem:[#allocation2 + $0xec8] sm:$0xff]
    %v534 = vld [vmem:[#allocation2 + $0xed0] sm:$0xff]
    %v535 = vld [vmem:[#allocation2 + $0xed8] sm:$0xff]
    %v536 = vld [vmem:[#allocation2 + $0xee0] sm:$0xff]
    %v537 = vld [vmem:[#allocation2 + $0xee8] sm:$0xff]
    %v538 = vld [vmem:[#allocation2 + $0xef0] sm:$0xff]
    %v539 = vld [vmem:[#allocation2 + $0xef8] sm:$0xff]
    %v540 = vld [vmem:[#allocation2 + $0xf00] sm:$0xff]
    %v541 = vld [vmem:[#allocation2 + $0xf08] sm:$0xff]
    %v542 = vld [vmem:[#allocation2 + $0xf10] sm:$0xff]
    %v543 = vld [vmem:[#allocation2 + $0xf18] sm:$0xff]
    %v544 = vld [vmem:[#allocation2 + $0xf20] sm:$0xff]
    %v545 = vld [vmem:[#allocation2 + $0xf28] sm:$0xff]
    %v546 = vld [vmem:[#allocation2 + $0xf30] sm:$0xff]
    %v547 = vld [vmem:[#allocation2 + $0xf38] sm:$0xff]
    %v548 = vld [vmem:[#allocation2 + $0xf40] sm:$0xff]
    %v549 = vld [vmem:[#allocation2 + $0xf48] sm:$0xff]
    %v550 = vld [vmem:[#allocation2 + $0xf50] sm:$0xff]
    %v551 = vld [vmem:[#allocation2 + $0xf58] sm:$0xff]
    %v552 = vld [vmem:[#allocation2 + $0xf60] sm:$0xff]
    %v553 = vld [vmem:[#allocation2 + $0xf68] sm:$0xff]
    %v554 = vld [vmem:[#allocation2 + $0xf70] sm:$0xff]
    %v555 = vld [vmem:[#allocation2 + $0xf78] sm:$0xff]
    %v556 = vld [vmem:[#allocation2 + $0xf80] sm:$0xff]
    %v557 = vld [vmem:[#allocation2 + $0xf88] sm:$0xff]
    %v558 = vld [vmem:[#allocation2 + $0xf90] sm:$0xff]
    %v559 = vld [vmem:[#allocation2 + $0xf98] sm:$0xff]
    %v560 = vld [vmem:[#allocation2 + $0xfa0] sm:$0xff]
    %v561 = vld [vmem:[#allocation2 + $0xfa8] sm:$0xff]
    %v562 = vld [vmem:[#allocation2 + $0xfb0] sm:$0xff]
    %v563 = vld [vmem:[#allocation2 + $0xfb8] sm:$0xff]
    %v564 = vld [vmem:[#allocation2 + $0xfc0] sm:$0xff]
    %v565 = vld [vmem:[#allocation2 + $0xfc8] sm:$0xff]
    %v566 = vld [vmem:[#allocation2 + $0xfd0] sm:$0xff]
    %v567 = vld [vmem:[#allocation2 + $0xfd8] sm:$0xff]
    %v568 = vld [vmem:[#allocation2 + $0xfe0] sm:$0xff]
    %v569 = vld [vmem:[#allocation2 + $0xfe8] sm:$0xff]
    %v570 = vld [vmem:[#allocation2 + $0xff0] sm:$0xff]
    %v571 = vld [vmem:[#allocation2 + $0xff8] sm:$0xff]
    %v572 = vld [vmem:[#allocation2 + $0x1000] sm:$0xff]
    %v573 = vld [vmem:[#allocation2 + $0x1008] sm:$0xff]
    %v574 = vld [vmem:[#allocation2 + $0x1010] sm:$0xff]
    %v575 = vld [vmem:[#allocation2 + $0x1018] sm:$0xff]
    %v576 = vld [vmem:[#allocation2 + $0x1020] sm:$0xff]
    %v577 = vld [vmem:[#allocation2 + $0x1028] sm:$0xff]
    %v578 = vld [vmem:[#allocation2 + $0x1030] sm:$0xff]
    %v579 = vld [vmem:[#allocation2 + $0x1038] sm:$0xff]
    %v580 = vld [vmem:[#allocation2 + $0x1040] sm:$0xff]
    %v581 = vld [vmem:[#allocation2 + $0x1048] sm:$0xff]
    %v582 = vld [vmem:[#allocation2 + $0x1050] sm:$0xff]
    %v583 = vld [vmem:[#allocation2 + $0x1058] sm:$0xff]
    %v584 = vld [vmem:[#allocation2 + $0x1060] sm:$0xff]
    %v585 = vld [vmem:[#allocation2 + $0x1068] sm:$0xff]
    %v586 = vld [vmem:[#allocation2 + $0x1070] sm:$0xff]
    %v587 = vld [vmem:[#allocation2 + $0x1078] sm:$0xff]
    %v588 = vld [vmem:[#allocation2 + $0x1080] sm:$0xff]
    %v589 = vld [vmem:[#allocation2 + $0x1088] sm:$0xff]
    %v590 = vld [vmem:[#allocation2 + $0x1090] sm:$0xff]
    %v591 = vld [vmem:[#allocation2 + $0x1098] sm:$0xff]
    %v592 = vld [vmem:[#allocation2 + $0x10a0] sm:$0xff]
    %v593 = vld [vmem:[#allocation2 + $0x10a8] sm:$0xff]
    %v594 = vld [vmem:[#allocation2 + $0x10b0] sm:$0xff]
    %v595 = vld [vmem:[#allocation2 + $0x10b8] sm:$0xff]
    %v596 = vld [vmem:[#allocation2 + $0x10c0] sm:$0xff]
    %v597 = vld [vmem:[#allocation2 + $0x10c8] sm:$0xff]
    %v598 = vld [vmem:[#allocation2 + $0x10d0] sm:$0xff]
    %v599 = vld [vmem:[#allocation2 + $0x10d8] sm:$0xff]
    %v600 = vld [vmem:[#allocation2 + $0x10e0] sm:$0xff]
    %v601 = vld [vmem:[#allocation2 + $0x10e8] sm:$0xff]
    %v602 = vld [vmem:[#allocation2 + $0x10f0] sm:$0xff]
    %v603 = vld [vmem:[#allocation2 + $0x10f8] sm:$0xff]
    %v604 = vld [vmem:[#allocation2 + $0x1100] sm:$0xff]
    %v605 = vld [vmem:[#allocation2 + $0x1108] sm:$0xff]
    %v606 = vld [vmem:[#allocation2 + $0x1110] sm:$0xff]
    %v607 = vld [vmem:[#allocation2 + $0x1118] sm:$0xff]
    %v608 = vld [vmem:[#allocation2 + $0x1120] sm:$0xff]
    %v609 = vld [vmem:[#allocation2 + $0x1128] sm:$0xff]
    %v610 = vld [vmem:[#allocation2 + $0x1130] sm:$0xff]
    %v611 = vld [vmem:[#allocation2 + $0x1138] sm:$0xff]
    %v612 = vld [vmem:[#allocation2 + $0x1140] sm:$0xff]
    %v613 = vld [vmem:[#allocation2 + $0x1148] sm:$0xff]
    %v614 = vld [vmem:[#allocation2 + $0x1150] sm:$0xff]
    %v615 = vld [vmem:[#allocation2 + $0x1158] sm:$0xff]
    %v616 = vld [vmem:[#allocation2 + $0x1160] sm:$0xff]
    %v617 = vld [vmem:[#allocation2 + $0x1168] sm:$0xff]
    %v618 = vld [vmem:[#allocation2 + $0x1170] sm:$0xff]
    %v619 = vld [vmem:[#allocation2 + $0x1178] sm:$0xff]
    %v620 = vld [vmem:[#allocation2 + $0x1180] sm:$0xff]
    %v621 = vld [vmem:[#allocation2 + $0x1188] sm:$0xff]
    %v622 = vld [vmem:[#allocation2 + $0x1190] sm:$0xff]
    %v623 = vld [vmem:[#allocation2 + $0x1198] sm:$0xff]
    %v624 = vld [vmem:[#allocation2 + $0x11a0] sm:$0xff]
    %v625 = vld [vmem:[#allocation2 + $0x11a8] sm:$0xff]
    %v626 = vld [vmem:[#allocation2 + $0x11b0] sm:$0xff]
    %v627 = vld [vmem:[#allocation2 + $0x11b8] sm:$0xff]
    %v628 = vld [vmem:[#allocation2 + $0x11c0] sm:$0xff]
    %v629 = vld [vmem:[#allocation2 + $0x11c8] sm:$0xff]
    %v630 = vld [vmem:[#allocation2 + $0x11d0] sm:$0xff]
    %v631 = vld [vmem:[#allocation2 + $0x11d8] sm:$0xff]
    %v632 = vld [vmem:[#allocation2 + $0x11e0] sm:$0xff]
    %v633 = vld [vmem:[#allocation2 + $0x11e8] sm:$0xff]
    %v634 = vld [vmem:[#allocation2 + $0x11f0] sm:$0xff]
    %v635 = vld [vmem:[#allocation2 + $0x11f8] sm:$0xff]
    %v636 = vld [vmem:[#allocation2 + $0x1200] sm:$0xff]
    %v637 = vld [vmem:[#allocation2 + $0x1208] sm:$0xff]
    %v638 = vld [vmem:[#allocation2 + $0x1210] sm:$0xff]
    %v639 = vld [vmem:[#allocation2 + $0x1218] sm:$0xff]
    %v640 = vld [vmem:[#allocation2 + $0x1220] sm:$0xff]
    %v641 = vld [vmem:[#allocation2 + $0x1228] sm:$0xff]
    %v642 = vld [vmem:[#allocation2 + $0x1230] sm:$0xff]
    %v643 = vld [vmem:[#allocation2 + $0x1238] sm:$0xff]
    %v644 = vld [vmem:[#allocation2 + $0x1240] sm:$0xff]
    %v645 = vld [vmem:[#allocation2 + $0x1248] sm:$0xff]
    %v646 = vld [vmem:[#allocation2 + $0x1250] sm:$0xff]
    %v647 = vld [vmem:[#allocation2 + $0x1258] sm:$0xff]
    %v648 = vld [vmem:[#allocation2 + $0x1260] sm:$0xff]
    %v649 = vld [vmem:[#allocation2 + $0x1268] sm:$0xff]
    %v650 = vld [vmem:[#allocation2 + $0x1270] sm:$0xff]
    %v651 = vld [vmem:[#allocation2 + $0x1278] sm:$0xff]
    %v652 = vld [vmem:[#allocation2 + $0x1280] sm:$0xff]
    %v653 = vld [vmem:[#allocation2 + $0x1288] sm:$0xff]
    %v654 = vld [vmem:[#allocation2 + $0x1290] sm:$0xff]
    %v655 = vld [vmem:[#allocation2 + $0x1298] sm:$0xff]
    %v656 = vld [vmem:[#allocation2 + $0x12a0] sm:$0xff]
    %v657 = vld [vmem:[#allocation2 + $0x12a8] sm:$0xff]
    %v658 = vld [vmem:[#allocation2 + $0x12b0] sm:$0xff]
    %v659 = vld [vmem:[#allocation2 + $0x12b8] sm:$0xff]
    %v660 = vld [vmem:[#allocation2 + $0x12c0] sm:$0xff]
    %v661 = vld [vmem:[#allocation2 + $0x12c8] sm:$0xff]
    %v662 = vld [vmem:[#allocation2 + $0x12d0] sm:$0xff]
    %v663 = vld [vmem:[#allocation2 + $0x12d8] sm:$0xff]
    %v664 = vld [vmem:[#allocation2 + $0x12e0] sm:$0xff]
    %v665 = vld [vmem:[#allocation2 + $0x12e8] sm:$0xff]
    %v666 = vld [vmem:[#allocation2 + $0x12f0] sm:$0xff]
    %v667 = vld [vmem:[#allocation2 + $0x12f8] sm:$0xff]
    %v668 = vld [vmem:[#allocation2 + $0x1300] sm:$0xff]
    %v669 = vld [vmem:[#allocation2 + $0x1308] sm:$0xff]
    %v670 = vld [vmem:[#allocation2 + $0x1310] sm:$0xff]
    %v671 = vld [vmem:[#allocation2 + $0x1318] sm:$0xff]
    %v672 = vld [vmem:[#allocation2 + $0x1320] sm:$0xff]
    %v673 = vld [vmem:[#allocation2 + $0x1328] sm:$0xff]
    %v674 = vld [vmem:[#allocation2 + $0x1330] sm:$0xff]
    %v675 = vld [vmem:[#allocation2 + $0x1338] sm:$0xff]
    %v676 = vld [vmem:[#allocation2 + $0x1340] sm:$0xff]
    %v677 = vld [vmem:[#allocation2 + $0x1348] sm:$0xff]
    %v678 = vld [vmem:[#allocation2 + $0x1350] sm:$0xff]
    %v679 = vld [vmem:[#allocation2 + $0x1358] sm:$0xff]
    %v680 = vld [vmem:[#allocation2 + $0x1360] sm:$0xff]
    %v681 = vld [vmem:[#allocation2 + $0x1368] sm:$0xff]
    %v682 = vld [vmem:[#allocation2 + $0x1370] sm:$0xff]
    %v683 = vld [vmem:[#allocation2 + $0x1378] sm:$0xff]
    %v684 = vld [vmem:[#allocation2 + $0x1380] sm:$0xff]
    %v685 = vld [vmem:[#allocation2 + $0x1388] sm:$0xff]
    %v686 = vld [vmem:[#allocation2 + $0x1390] sm:$0xff]
    %v687 = vld [vmem:[#allocation2 + $0x1398] sm:$0xff]
    %v688 = vld [vmem:[#allocation2 + $0x13a0] sm:$0xff]
    %v689 = vld [vmem:[#allocation2 + $0x13a8] sm:$0xff]
    %v690 = vld [vmem:[#allocation2 + $0x13b0] sm:$0xff]
    %v691 = vld [vmem:[#allocation2 + $0x13b8] sm:$0xff]
    %v692 = vld [vmem:[#allocation2 + $0x13c0] sm:$0xff]
    %v693 = vld [vmem:[#allocation2 + $0x13c8] sm:$0xff]
    %v694 = vld [vmem:[#allocation2 + $0x13d0] sm:$0xff]
    %v695 = vld [vmem:[#allocation2 + $0x13d8] sm:$0xff]
    %v696 = vld [vmem:[#allocation2 + $0x13e0] sm:$0xff]
    %v697 = vld [vmem:[#allocation2 + $0x13e8] sm:$0xff]
    %v698 = vld [vmem:[#allocation2 + $0x13f0] sm:$0xff]
    %v699 = vld [vmem:[#allocation2 + $0x13f8] sm:$0xff]
    %v700 = vld [vmem:[#allocation2 + $0x1400] sm:$0xff]
    %v701 = vld [vmem:[#allocation2 + $0x1408] sm:$0xff]
    %v702 = vld [vmem:[#allocation2 + $0x1410] sm:$0xff]
    %v703 = vld [vmem:[#allocation2 + $0x1418] sm:$0xff]
    %v704 = vld [vmem:[#allocation2 + $0x1420] sm:$0xff]
    %v705 = vld [vmem:[#allocation2 + $0x1428] sm:$0xff]
    %v706 = vld [vmem:[#allocation2 + $0x1430] sm:$0xff]
    %v707 = vld [vmem:[#allocation2 + $0x1438] sm:$0xff]
    %v708 = vld [vmem:[#allocation2 + $0x1440] sm:$0xff]
    %v709 = vld [vmem:[#allocation2 + $0x1448] sm:$0xff]
    %v710 = vld [vmem:[#allocation2 + $0x1450] sm:$0xff]
    %v711 = vld [vmem:[#allocation2 + $0x1458] sm:$0xff]
    %v712 = vld [vmem:[#allocation2 + $0x1460] sm:$0xff]
    %v713 = vld [vmem:[#allocation2 + $0x1468] sm:$0xff]
    %v714 = vld [vmem:[#allocation2 + $0x1470] sm:$0xff]
    %v715 = vld [vmem:[#allocation2 + $0x1478] sm:$0xff]
    %v716 = vld [vmem:[#allocation2 + $0x1480] sm:$0xff]
    %v717 = vld [vmem:[#allocation2 + $0x1488] sm:$0xff]
    %v718 = vld [vmem:[#allocation2 + $0x1490] sm:$0xff]
    %v719 = vld [vmem:[#allocation2 + $0x1498] sm:$0xff]
    %v720 = vld [vmem:[#allocation2 + $0x14a0] sm:$0xff]
    %v721 = vld [vmem:[#allocation2 + $0x14a8] sm:$0xff]
    %v722 = vld [vmem:[#allocation2 + $0x14b0] sm:$0xff]
    %v723 = vld [vmem:[#allocation2 + $0x14b8] sm:$0xff]
    %v724 = vld [vmem:[#allocation2 + $0x14c0] sm:$0xff]
    %v725 = vld [vmem:[#allocation2 + $0x14c8] sm:$0xff]
    %v726 = vld [vmem:[#allocation2 + $0x14d0] sm:$0xff]
    %v727 = vld [vmem:[#allocation2 + $0x14d8] sm:$0xff]
    %v728 = vld [vmem:[#allocation2 + $0x14e0] sm:$0xff]
    %v729 = vld [vmem:[#allocation2 + $0x14e8] sm:$0xff]
    %v730 = vld [vmem:[#allocation2 + $0x14f0] sm:$0xff]
    %v731 = vld [vmem:[#allocation2 + $0x14f8] sm:$0xff]
    %v732 = vld [vmem:[#allocation2 + $0x1500] sm:$0xff]
    %v733 = vld [vmem:[#allocation2 + $0x1508] sm:$0xff]
    %v734 = vld [vmem:[#allocation2 + $0x1510] sm:$0xff]
    %v735 = vld [vmem:[#allocation2 + $0x1518] sm:$0xff]
    %v736 = vld [vmem:[#allocation2 + $0x1520] sm:$0xff]
    %v737 = vld [vmem:[#allocation2 + $0x1528] sm:$0xff]
    %v738 = vld [vmem:[#allocation2 + $0x1530] sm:$0xff]
    %v739 = vld [vmem:[#allocation2 + $0x1538] sm:$0xff]
    %v740 = vld [vmem:[#allocation2 + $0x1540] sm:$0xff]
    %v741 = vld [vmem:[#allocation2 + $0x1548] sm:$0xff]
    %v742 = vld [vmem:[#allocation2 + $0x1550] sm:$0xff]
    %v743 = vld [vmem:[#allocation2 + $0x1558] sm:$0xff]
    %v744 = vld [vmem:[#allocation2 + $0x1560] sm:$0xff]
    %v745 = vld [vmem:[#allocation2 + $0x1568] sm:$0xff]
    %v746 = vld [vmem:[#allocation2 + $0x1570] sm:$0xff]
    %v747 = vld [vmem:[#allocation2 + $0x1578] sm:$0xff]
    %v748 = vld [vmem:[#allocation2 + $0x1580] sm:$0xff]
    %v749 = vld [vmem:[#allocation2 + $0x1588] sm:$0xff]
    %v750 = vld [vmem:[#allocation2 + $0x1590] sm:$0xff]
    %v751 = vld [vmem:[#allocation2 + $0x1598] sm:$0xff]
    %v752 = vld [vmem:[#allocation2 + $0x15a0] sm:$0xff]
    %v753 = vld [vmem:[#allocation2 + $0x15a8] sm:$0xff]
    %v754 = vld [vmem:[#allocation2 + $0x15b0] sm:$0xff]
    %v755 = vld [vmem:[#allocation2 + $0x15b8] sm:$0xff]
    %v756 = vld [vmem:[#allocation2 + $0x15c0] sm:$0xff]
    %v757 = vld [vmem:[#allocation2 + $0x15c8] sm:$0xff]
    %v758 = vld [vmem:[#allocation2 + $0x15d0] sm:$0xff]
    %v759 = vld [vmem:[#allocation2 + $0x15d8] sm:$0xff]
    %v760 = vld [vmem:[#allocation2 + $0x15e0] sm:$0xff]
    %v761 = vld [vmem:[#allocation2 + $0x15e8] sm:$0xff]
    %v762 = vld [vmem:[#allocation2 + $0x15f0] sm:$0xff]
    %v763 = vld [vmem:[#allocation2 + $0x15f8] sm:$0xff]
    %v764 = vld [vmem:[#allocation2 + $0x1600] sm:$0xff]
    %v765 = vld [vmem:[#allocation2 + $0x1608] sm:$0xff]
    %v766 = vld [vmem:[#allocation2 + $0x1610] sm:$0xff]
    %v767 = vld [vmem:[#allocation2 + $0x1618] sm:$0xff]
    %v768 = vld [vmem:[#allocation2 + $0x1620] sm:$0xff]
    %v769 = vld [vmem:[#allocation2 + $0x1628] sm:$0xff]
    %v770 = vld [vmem:[#allocation2 + $0x1630] sm:$0xff]
    %v771 = vld [vmem:[#allocation2 + $0x1638] sm:$0xff]
    %v772 = vld [vmem:[#allocation2 + $0x1640] sm:$0xff]
    %v773 = vld [vmem:[#allocation2 + $0x1648] sm:$0xff]
    %v774 = vld [vmem:[#allocation2 + $0x1650] sm:$0xff]
    %v775 = vld [vmem:[#allocation2 + $0x1658] sm:$0xff]
    %v776 = vld [vmem:[#allocation2 + $0x1660] sm:$0xff]
    %v777 = vld [vmem:[#allocation2 + $0x1668] sm:$0xff]
    %v778 = vld [vmem:[#allocation2 + $0x1670] sm:$0xff]
    %v779 = vld [vmem:[#allocation2 + $0x1678] sm:$0xff]
    %v780 = vld [vmem:[#allocation2 + $0x1680] sm:$0xff]
    %v781 = vld [vmem:[#allocation2 + $0x1688] sm:$0xff]
    %v782 = vld [vmem:[#allocation2 + $0x1690] sm:$0xff]
    %v783 = vld [vmem:[#allocation2 + $0x1698] sm:$0xff]
    %v784 = vld [vmem:[#allocation2 + $0x16a0] sm:$0xff]
    %v785 = vld [vmem:[#allocation2 + $0x16a8] sm:$0xff]
    %v786 = vld [vmem:[#allocation2 + $0x16b0] sm:$0xff]
    %v787 = vld [vmem:[#allocation2 + $0x16b8] sm:$0xff]
    %v788 = vld [vmem:[#allocation2 + $0x16c0] sm:$0xff]
    %v789 = vld [vmem:[#allocation2 + $0x16c8] sm:$0xff]
    %v790 = vld [vmem:[#allocation2 + $0x16d0] sm:$0xff]
    %v791 = vld [vmem:[#allocation2 + $0x16d8] sm:$0xff]
    %v792 = vld [vmem:[#allocation2 + $0x16e0] sm:$0xff]
    %v793 = vld [vmem:[#allocation2 + $0x16e8] sm:$0xff]
    %v794 = vld [vmem:[#allocation2 + $0x16f0] sm:$0xff]
    %v795 = vld [vmem:[#allocation2 + $0x16f8] sm:$0xff]
    %v796 = vld [vmem:[#allocation2 + $0x1700] sm:$0xff]
    %v797 = vld [vmem:[#allocation2 + $0x1708] sm:$0xff]
    %v798 = vld [vmem:[#allocation2 + $0x1710] sm:$0xff]
    %v799 = vld [vmem:[#allocation2 + $0x1718] sm:$0xff]
    %v800 = vld [vmem:[#allocation2 + $0x1720] sm:$0xff]
    %v801 = vld [vmem:[#allocation2 + $0x1728] sm:$0xff]
    %v802 = vld [vmem:[#allocation2 + $0x1730] sm:$0xff]
    %v803 = vld [vmem:[#allocation2 + $0x1738] sm:$0xff]
    %v804 = vld [vmem:[#allocation2 + $0x1740] sm:$0xff]
    %v805 = vld [vmem:[#allocation2 + $0x1748] sm:$0xff]
    %v806 = vld [vmem:[#allocation2 + $0x1750] sm:$0xff]
    %v807 = vld [vmem:[#allocation2 + $0x1758] sm:$0xff]
    %v808 = vld [vmem:[#allocation2 + $0x1760] sm:$0xff]
    %v809 = vld [vmem:[#allocation2 + $0x1768] sm:$0xff]
    %v810 = vld [vmem:[#allocation2 + $0x1770] sm:$0xff]
    %v811 = vld [vmem:[#allocation2 + $0x1778] sm:$0xff]
    %v812 = vld [vmem:[#allocation2 + $0x1780] sm:$0xff]
    %v813 = vld [vmem:[#allocation2 + $0x1788] sm:$0xff]
    %v814 = vld [vmem:[#allocation2 + $0x1790] sm:$0xff]
    %v815 = vld [vmem:[#allocation2 + $0x1798] sm:$0xff]
    %v816 = vld [vmem:[#allocation2 + $0x17a0] sm:$0xff]
    %v817 = vld [vmem:[#allocation2 + $0x17a8] sm:$0xff]
    %v818 = vld [vmem:[#allocation2 + $0x17b0] sm:$0xff]
    %v819 = vld [vmem:[#allocation2 + $0x17b8] sm:$0xff]
    %v820 = vld [vmem:[#allocation2 + $0x17c0] sm:$0xff]
    %v821 = vld [vmem:[#allocation2 + $0x17c8] sm:$0xff]
    %v822 = vld [vmem:[#allocation2 + $0x17d0] sm:$0xff]
    %v823 = vld [vmem:[#allocation2 + $0x17d8] sm:$0xff]
    %v824 = vld [vmem:[#allocation2 + $0x17e0] sm:$0xff]
    %v825 = vld [vmem:[#allocation2 + $0x17e8] sm:$0xff]
    %v826 = vld [vmem:[#allocation2 + $0x17f0] sm:$0xff]
    %v827 = vld [vmem:[#allocation2 + $0x17f8] sm:$0xff]
    %v828 = vld [vmem:[#allocation2 + $0x1800] sm:$0xff]
    %v829 = vld [vmem:[#allocation2 + $0x1808] sm:$0xff]
    %v830 = vld [vmem:[#allocation2 + $0x1810] sm:$0xff]
    %v831 = vld [vmem:[#allocation2 + $0x1818] sm:$0xff]
    %v832 = vld [vmem:[#allocation2 + $0x1820] sm:$0xff]
    %v833 = vld [vmem:[#allocation2 + $0x1828] sm:$0xff]
    %v834 = vld [vmem:[#allocation2 + $0x1830] sm:$0xff]
    %v835 = vld [vmem:[#allocation2 + $0x1838] sm:$0xff]
    %v836 = vld [vmem:[#allocation2 + $0x1840] sm:$0xff]
    %v837 = vld [vmem:[#allocation2 + $0x1848] sm:$0xff]
    %v838 = vld [vmem:[#allocation2 + $0x1850] sm:$0xff]
    %v839 = vld [vmem:[#allocation2 + $0x1858] sm:$0xff]
    %v840 = vld [vmem:[#allocation2 + $0x1860] sm:$0xff]
    %v841 = vld [vmem:[#allocation2 + $0x1868] sm:$0xff]
    %v842 = vld [vmem:[#allocation2 + $0x1870] sm:$0xff]
    %v843 = vld [vmem:[#allocation2 + $0x1878] sm:$0xff]
    %v844 = vld [vmem:[#allocation2 + $0x1880] sm:$0xff]
    %v845 = vld [vmem:[#allocation2 + $0x1888] sm:$0xff]
    %v846 = vld [vmem:[#allocation2 + $0x1890] sm:$0xff]
    %v847 = vld [vmem:[#allocation2 + $0x1898] sm:$0xff]
    %v848 = vld [vmem:[#allocation2 + $0x18a0] sm:$0xff]
    %v849 = vld [vmem:[#allocation2 + $0x18a8] sm:$0xff]
    %v850 = vld [vmem:[#allocation2 + $0x18b0] sm:$0xff]
    %v851 = vld [vmem:[#allocation2 + $0x18b8] sm:$0xff]
    %v852 = vld [vmem:[#allocation2 + $0x18c0] sm:$0xff]
    %v853 = vld [vmem:[#allocation2 + $0x18c8] sm:$0xff]
    %v854 = vld [vmem:[#allocation2 + $0x18d0] sm:$0xff]
    %v855 = vld [vmem:[#allocation2 + $0x18d8] sm:$0xff]
    %v856 = vld [vmem:[#allocation2 + $0x18e0] sm:$0xff]
    %v857 = vld [vmem:[#allocation2 + $0x18e8] sm:$0xff]
    %v858 = vld [vmem:[#allocation2 + $0x18f0] sm:$0xff]
    %v859 = vld [vmem:[#allocation2 + $0x18f8] sm:$0xff]
    %v860 = vld [vmem:[#allocation2 + $0x1900] sm:$0xff]
    %v861 = vld [vmem:[#allocation2 + $0x1908] sm:$0xff]
    %v862 = vld [vmem:[#allocation2 + $0x1910] sm:$0xff]
    %v863 = vld [vmem:[#allocation2 + $0x1918] sm:$0xff]
    %v864 = vld [vmem:[#allocation2 + $0x1920] sm:$0xff]
    %v865 = vld [vmem:[#allocation2 + $0x1928] sm:$0xff]
    %v866 = vld [vmem:[#allocation2 + $0x1930] sm:$0xff]
    %v867 = vld [vmem:[#allocation2 + $0x1938] sm:$0xff]
    %v868 = vld [vmem:[#allocation2 + $0x1940] sm:$0xff]
    %v869 = vld [vmem:[#allocation2 + $0x1948] sm:$0xff]
    %v870 = vld [vmem:[#allocation2 + $0x1950] sm:$0xff]
    %v871 = vld [vmem:[#allocation2 + $0x1958] sm:$0xff]
    %v872 = vld [vmem:[#allocation2 + $0x1960] sm:$0xff]
    %v873 = vld [vmem:[#allocation2 + $0x1968] sm:$0xff]
    %v874 = vld [vmem:[#allocation2 + $0x1970] sm:$0xff]
    %v875 = vld [vmem:[#allocation2 + $0x1978] sm:$0xff]
    %v876 = vld [vmem:[#allocation2 + $0x1980] sm:$0xff]
    %v877 = vld [vmem:[#allocation2 + $0x1988] sm:$0xff]
    %v878 = vld [vmem:[#allocation2 + $0x1990] sm:$0xff]
    %v879 = vld [vmem:[#allocation2 + $0x1998] sm:$0xff]
    %v880 = vld [vmem:[#allocation2 + $0x19a0] sm:$0xff]
    %v881 = vld [vmem:[#allocation2 + $0x19a8] sm:$0xff]
    %v882 = vld [vmem:[#allocation2 + $0x19b0] sm:$0xff]
    %v883 = vld [vmem:[#allocation2 + $0x19b8] sm:$0xff]
    %v884 = vld [vmem:[#allocation2 + $0x19c0] sm:$0xff]
    %v885 = vld [vmem:[#allocation2 + $0x19c8] sm:$0xff]
    %v886 = vld [vmem:[#allocation2 + $0x19d0] sm:$0xff]
    %v887 = vld [vmem:[#allocation2 + $0x19d8] sm:$0xff]
    %v888 = vld [vmem:[#allocation2 + $0x19e0] sm:$0xff]
    %v889 = vld [vmem:[#allocation2 + $0x19e8] sm:$0xff]
    %v890 = vld [vmem:[#allocation2 + $0x19f0] sm:$0xff]
    %v891 = vld [vmem:[#allocation2 + $0x19f8] sm:$0xff]
    %v892 = vld [vmem:[#allocation2 + $0x1a00] sm:$0xff]
    %v893 = vld [vmem:[#allocation2 + $0x1a08] sm:$0xff]
    %v894 = vld [vmem:[#allocation2 + $0x1a10] sm:$0xff]
    %v895 = vld [vmem:[#allocation2 + $0x1a18] sm:$0xff]
    %v896 = vld [vmem:[#allocation2 + $0x1a20] sm:$0xff]
    %v897 = vld [vmem:[#allocation2 + $0x1a28] sm:$0xff]
    %v898 = vld [vmem:[#allocation2 + $0x1a30] sm:$0xff]
    %v899 = vld [vmem:[#allocation2 + $0x1a38] sm:$0xff]
    %v900 = vld [vmem:[#allocation2 + $0x1a40] sm:$0xff]
    %v901 = vld [vmem:[#allocation2 + $0x1a48] sm:$0xff]
    %v902 = vld [vmem:[#allocation2 + $0x1a50] sm:$0xff]
    %v903 = vld [vmem:[#allocation2 + $0x1a58] sm:$0xff]
    %v904 = vld [vmem:[#allocation2 + $0x1a60] sm:$0xff]
    %v905 = vld [vmem:[#allocation2 + $0x1a68] sm:$0xff]
    %v906 = vld [vmem:[#allocation2 + $0x1a70] sm:$0xff]
    %v907 = vld [vmem:[#allocation2 + $0x1a78] sm:$0xff]
    %v908 = vld [vmem:[#allocation2 + $0x1a80] sm:$0xff]
    %v909 = vld [vmem:[#allocation2 + $0x1a88] sm:$0xff]
    %v910 = vld [vmem:[#allocation2 + $0x1a90] sm:$0xff]
    %v911 = vld [vmem:[#allocation2 + $0x1a98] sm:$0xff]
    %v912 = vld [vmem:[#allocation2 + $0x1aa0] sm:$0xff]
    %v913 = vld [vmem:[#allocation2 + $0x1aa8] sm:$0xff]
    %v914 = vld [vmem:[#allocation2 + $0x1ab0] sm:$0xff]
    %v915 = vld [vmem:[#allocation2 + $0x1ab8] sm:$0xff]
    %v916 = vld [vmem:[#allocation2 + $0x1ac0] sm:$0xff]
    %v917 = vld [vmem:[#allocation2 + $0x1ac8] sm:$0xff]
    %v918 = vld [vmem:[#allocation2 + $0x1ad0] sm:$0xff]
    %v919 = vld [vmem:[#allocation2 + $0x1ad8] sm:$0xff]
    %v920 = vld [vmem:[#allocation2 + $0x1ae0] sm:$0xff]
    %v921 = vld [vmem:[#allocation2 + $0x1ae8] sm:$0xff]
    %v922 = vld [vmem:[#allocation2 + $0x1af0] sm:$0xff]
    %v923 = vld [vmem:[#allocation2 + $0x1af8] sm:$0xff]
    %v924 = vld [vmem:[#allocation2 + $0x1b00] sm:$0xff]
    %v925 = vld [vmem:[#allocation2 + $0x1b08] sm:$0xff]
    %v926 = vld [vmem:[#allocation2 + $0x1b10] sm:$0xff]
    %v927 = vld [vmem:[#allocation2 + $0x1b18] sm:$0xff]
    %v928 = vld [vmem:[#allocation2 + $0x1b20] sm:$0xff]
    %v929 = vld [vmem:[#allocation2 + $0x1b28] sm:$0xff]
    %v930 = vld [vmem:[#allocation2 + $0x1b30] sm:$0xff]
    %v931 = vld [vmem:[#allocation2 + $0x1b38] sm:$0xff]
    %v932 = vld [vmem:[#allocation2 + $0x1b40] sm:$0xff]
    %v933 = vld [vmem:[#allocation2 + $0x1b48] sm:$0xff]
    %v934 = vld [vmem:[#allocation2 + $0x1b50] sm:$0xff]
    %v935 = vld [vmem:[#allocation2 + $0x1b58] sm:$0xff]
    %v936 = vld [vmem:[#allocation2 + $0x1b60] sm:$0xff]
    %v937 = vld [vmem:[#allocation2 + $0x1b68] sm:$0xff]
    %v938 = vld [vmem:[#allocation2 + $0x1b70] sm:$0xff]
    %v939 = vld [vmem:[#allocation2 + $0x1b78] sm:$0xff]
    %v940 = vld [vmem:[#allocation2 + $0x1b80] sm:$0xff]
    %v941 = vld [vmem:[#allocation2 + $0x1b88] sm:$0xff]
    %v942 = vld [vmem:[#allocation2 + $0x1b90] sm:$0xff]
    %v943 = vld [vmem:[#allocation2 + $0x1b98] sm:$0xff]
    %v944 = vld [vmem:[#allocation2 + $0x1ba0] sm:$0xff]
    %v945 = vld [vmem:[#allocation2 + $0x1ba8] sm:$0xff]
    %v946 = vld [vmem:[#allocation2 + $0x1bb0] sm:$0xff]
    %v947 = vld [vmem:[#allocation2 + $0x1bb8] sm:$0xff]
    %v948 = vld [vmem:[#allocation2 + $0x1bc0] sm:$0xff]
    %v949 = vld [vmem:[#allocation2 + $0x1bc8] sm:$0xff]
    %v950 = vld [vmem:[#allocation2 + $0x1bd0] sm:$0xff]
    %v951 = vld [vmem:[#allocation2 + $0x1bd8] sm:$0xff]
    %v952 = vld [vmem:[#allocation2 + $0x1be0] sm:$0xff]
    %v953 = vld [vmem:[#allocation2 + $0x1be8] sm:$0xff]
    %v954 = vld [vmem:[#allocation2 + $0x1bf0] sm:$0xff]
    %v955 = vld [vmem:[#allocation2 + $0x1bf8] sm:$0xff]
    %v956 = vld [vmem:[#allocation2 + $0x1c00] sm:$0xff]
    %v957 = vld [vmem:[#allocation2 + $0x1c08] sm:$0xff]
    %v958 = vld [vmem:[#allocation2 + $0x1c10] sm:$0xff]
    %v959 = vld [vmem:[#allocation2 + $0x1c18] sm:$0xff]
    %v960 = vld [vmem:[#allocation2 + $0x1c20] sm:$0xff]
    %v961 = vld [vmem:[#allocation2 + $0x1c28] sm:$0xff]
    %v962 = vld [vmem:[#allocation2 + $0x1c30] sm:$0xff]
    %v963 = vld [vmem:[#allocation2 + $0x1c38] sm:$0xff]
    %v964 = vld [vmem:[#allocation2 + $0x1c40] sm:$0xff]
    %v965 = vld [vmem:[#allocation2 + $0x1c48] sm:$0xff]
    %v966 = vld [vmem:[#allocation2 + $0x1c50] sm:$0xff]
    %v967 = vld [vmem:[#allocation2 + $0x1c58] sm:$0xff]
    %v968 = vld [vmem:[#allocation2 + $0x1c60] sm:$0xff]
    %v969 = vld [vmem:[#allocation2 + $0x1c68] sm:$0xff]
    %v970 = vld [vmem:[#allocation2 + $0x1c70] sm:$0xff]
    %v971 = vld [vmem:[#allocation2 + $0x1c78] sm:$0xff]
    %v972 = vld [vmem:[#allocation2 + $0x1c80] sm:$0xff]
    %v973 = vld [vmem:[#allocation2 + $0x1c88] sm:$0xff]
    %v974 = vld [vmem:[#allocation2 + $0x1c90] sm:$0xff]
    %v975 = vld [vmem:[#allocation2 + $0x1c98] sm:$0xff]
    %v976 = vld [vmem:[#allocation2 + $0x1ca0] sm:$0xff]
    %v977 = vld [vmem:[#allocation2 + $0x1ca8] sm:$0xff]
    %v978 = vld [vmem:[#allocation2 + $0x1cb0] sm:$0xff]
    %v979 = vld [vmem:[#allocation2 + $0x1cb8] sm:$0xff]
    %v980 = vld [vmem:[#allocation2 + $0x1cc0] sm:$0xff]
    %v981 = vld [vmem:[#allocation2 + $0x1cc8] sm:$0xff]
    %v982 = vld [vmem:[#allocation2 + $0x1cd0] sm:$0xff]
    %v983 = vld [vmem:[#allocation2 + $0x1cd8] sm:$0xff]
    %v984 = vld [vmem:[#allocation2 + $0x1ce0] sm:$0xff]
    %v985 = vld [vmem:[#allocation2 + $0x1ce8] sm:$0xff]
    %v986 = vld [vmem:[#allocation2 + $0x1cf0] sm:$0xff]
    %v987 = vld [vmem:[#allocation2 + $0x1cf8] sm:$0xff]
    %v988 = vld [vmem:[#allocation2 + $0x1d00] sm:$0xff]
    %v989 = vld [vmem:[#allocation2 + $0x1d08] sm:$0xff]
    %v990 = vld [vmem:[#allocation2 + $0x1d10] sm:$0xff]
    %v991 = vld [vmem:[#allocation2 + $0x1d18] sm:$0xff]
    %v992 = vld [vmem:[#allocation2 + $0x1d20] sm:$0xff]
    %v993 = vld [vmem:[#allocation2 + $0x1d28] sm:$0xff]
    %v994 = vld [vmem:[#allocation2 + $0x1d30] sm:$0xff]
    %v995 = vld [vmem:[#allocation2 + $0x1d38] sm:$0xff]
    %v996 = vld [vmem:[#allocation2 + $0x1d40] sm:$0xff]
    %v997 = vld [vmem:[#allocation2 + $0x1d48] sm:$0xff]
    %v998 = vld [vmem:[#allocation2 + $0x1d50] sm:$0xff]
    %v999 = vld [vmem:[#allocation2 + $0x1d58] sm:$0xff]
    %v1000 = vld [vmem:[#allocation2 + $0x1d60] sm:$0xff]
    %v1001 = vld [vmem:[#allocation2 + $0x1d68] sm:$0xff]
    %v1002 = vld [vmem:[#allocation2 + $0x1d70] sm:$0xff]
    %v1003 = vld [vmem:[#allocation2 + $0x1d78] sm:$0xff]
    %v1004 = vld [vmem:[#allocation2 + $0x1d80] sm:$0xff]
    %v1005 = vld [vmem:[#allocation2 + $0x1d88] sm:$0xff]
    %v1006 = vld [vmem:[#allocation2 + $0x1d90] sm:$0xff]
    %v1007 = vld [vmem:[#allocation2 + $0x1d98] sm:$0xff]
    %v1008 = vld [vmem:[#allocation2 + $0x1da0] sm:$0xff]
    %v1009 = vld [vmem:[#allocation2 + $0x1da8] sm:$0xff]
    %v1010 = vld [vmem:[#allocation2 + $0x1db0] sm:$0xff]
    %v1011 = vld [vmem:[#allocation2 + $0x1db8] sm:$0xff]
    %v1012 = vld [vmem:[#allocation2 + $0x1dc0] sm:$0xff]
    %v1013 = vld [vmem:[#allocation2 + $0x1dc8] sm:$0xff]
    %v1014 = vld [vmem:[#allocation2 + $0x1dd0] sm:$0xff]
    %v1015 = vld [vmem:[#allocation2 + $0x1dd8] sm:$0xff]
    %v1016 = vld [vmem:[#allocation2 + $0x1de0] sm:$0xff]
    %v1017 = vld [vmem:[#allocation2 + $0x1de8] sm:$0xff]
    %v1018 = vld [vmem:[#allocation2 + $0x1df0] sm:$0xff]
    %v1019 = vld [vmem:[#allocation2 + $0x1df8] sm:$0xff]
    %v1020 = vld [vmem:[#allocation2 + $0x1e00] sm:$0xff]
    %v1021 = vld [vmem:[#allocation2 + $0x1e08] sm:$0xff]
    %v1022 = vld [vmem:[#allocation2 + $0x1e10] sm:$0xff]
    %v1023 = vld [vmem:[#allocation2 + $0x1e18] sm:$0xff]
    %v1024 = vld [vmem:[#allocation2 + $0x1e20] sm:$0xff]
    %v1025 = vld [vmem:[#allocation2 + $0x1e28] sm:$0xff]
    %v1026 = vld [vmem:[#allocation2 + $0x1e30] sm:$0xff]
    %v1027 = vld [vmem:[#allocation2 + $0x1e38] sm:$0xff]
    %v1028 = vld [vmem:[#allocation2 + $0x1e40] sm:$0xff]
    %v1029 = vld [vmem:[#allocation2 + $0x1e48] sm:$0xff]
    %v1030 = vld [vmem:[#allocation2 + $0x1e50] sm:$0xff]
    %v1031 = vld [vmem:[#allocation2 + $0x1e58] sm:$0xff]
    %v1032 = vld [vmem:[#allocation2 + $0x1e60] sm:$0xff]
    %v1033 = vld [vmem:[#allocation2 + $0x1e68] sm:$0xff]
    %v1034 = vld [vmem:[#allocation2 + $0x1e70] sm:$0xff]
    %v1035 = vld [vmem:[#allocation2 + $0x1e78] sm:$0xff]
    %v1036 = vld [vmem:[#allocation2 + $0x1e80] sm:$0xff]
    %v1037 = vld [vmem:[#allocation2 + $0x1e88] sm:$0xff]
    %v1038 = vld [vmem:[#allocation2 + $0x1e90] sm:$0xff]
    %v1039 = vld [vmem:[#allocation2 + $0x1e98] sm:$0xff]
    %v1040 = vld [vmem:[#allocation2 + $0x1ea0] sm:$0xff]
    %v1041 = vld [vmem:[#allocation2 + $0x1ea8] sm:$0xff]
    %v1042 = vld [vmem:[#allocation2 + $0x1eb0] sm:$0xff]
    %v1043 = vld [vmem:[#allocation2 + $0x1eb8] sm:$0xff]
    %v1044 = vld [vmem:[#allocation2 + $0x1ec0] sm:$0xff]
    %v1045 = vld [vmem:[#allocation2 + $0x1ec8] sm:$0xff]
    %v1046 = vld [vmem:[#allocation2 + $0x1ed0] sm:$0xff]
    %v1047 = vld [vmem:[#allocation2 + $0x1ed8] sm:$0xff]
    %v1048 = vld [vmem:[#allocation2 + $0x1ee0] sm:$0xff]
    %v1049 = vld [vmem:[#allocation2 + $0x1ee8] sm:$0xff]
    %v1050 = vld [vmem:[#allocation2 + $0x1ef0] sm:$0xff]
    %v1051 = vld [vmem:[#allocation2 + $0x1ef8] sm:$0xff]
    %v1052 = vld [vmem:[#allocation2 + $0x1f00] sm:$0xff]
    %v1053 = vld [vmem:[#allocation2 + $0x1f08] sm:$0xff]
    %v1054 = vld [vmem:[#allocation2 + $0x1f10] sm:$0xff]
    %v1055 = vld [vmem:[#allocation2 + $0x1f18] sm:$0xff]
    %v1056 = vld [vmem:[#allocation2 + $0x1f20] sm:$0xff]
    %v1057 = vld [vmem:[#allocation2 + $0x1f28] sm:$0xff]
    %v1058 = vld [vmem:[#allocation2 + $0x1f30] sm:$0xff]
    %v1059 = vld [vmem:[#allocation2 + $0x1f38] sm:$0xff]
    %v1060 = vld [vmem:[#allocation2 + $0x1f40] sm:$0xff]
    %v1061 = vld [vmem:[#allocation2 + $0x1f48] sm:$0xff]
    %v1062 = vld [vmem:[#allocation2 + $0x1f50] sm:$0xff]
    %v1063 = vld [vmem:[#allocation2 + $0x1f58] sm:$0xff]
    %v1064 = vld [vmem:[#allocation2 + $0x1f60] sm:$0xff]
    %v1065 = vld [vmem:[#allocation2 + $0x1f68] sm:$0xff]
    %v1066 = vld [vmem:[#allocation2 + $0x1f70] sm:$0xff]
    %v1067 = vld [vmem:[#allocation2 + $0x1f78] sm:$0xff]
    %v1068 = vld [vmem:[#allocation2 + $0x1f80] sm:$0xff]
    %v1069 = vld [vmem:[#allocation2 + $0x1f88] sm:$0xff]
    %v1070 = vld [vmem:[#allocation2 + $0x1f90] sm:$0xff]
    %v1071 = vld [vmem:[#allocation2 + $0x1f98] sm:$0xff]
    %v1072 = vld [vmem:[#allocation2 + $0x1fa0] sm:$0xff]
    %v1073 = vld [vmem:[#allocation2 + $0x1fa8] sm:$0xff]
    %v1074 = vld [vmem:[#allocation2 + $0x1fb0] sm:$0xff]
    %v1075 = vld [vmem:[#allocation2 + $0x1fb8] sm:$0xff]
    %v1076 = vld [vmem:[#allocation2 + $0x1fc0] sm:$0xff]
    %v1077 = vld [vmem:[#allocation2 + $0x1fc8] sm:$0xff]
    %v1078 = vld [vmem:[#allocation2 + $0x1fd0] sm:$0xff]
    %v1079 = vld [vmem:[#allocation2 + $0x1fd8] sm:$0xff]
    %v1080 = vld [vmem:[#allocation2 + $0x1fe0] sm:$0xff]
    %v1081 = vld [vmem:[#allocation2 + $0x1fe8] sm:$0xff]
    %v1082 = vld [vmem:[#allocation2 + $0x1ff0] sm:$0xff]
    %v1083 = vld [vmem:[#allocation2 + $0x1ff8] sm:$0xff]
    %v1084 = vld [vmem:[#allocation2 + $0x2000] sm:$0xff]
    %v1085 = vld [vmem:[#allocation2 + $0x2008] sm:$0xff]
    %v1086 = vld [vmem:[#allocation2 + $0x2010] sm:$0xff]
    %v1087 = vld [vmem:[#allocation2 + $0x2018] sm:$0xff]
    %v1088 = vld [vmem:[#allocation2 + $0x2020] sm:$0xff]
    %v1089 = vld [vmem:[#allocation2 + $0x2028] sm:$0xff]
    %v1090 = vld [vmem:[#allocation2 + $0x2030] sm:$0xff]
    %v1091 = vld [vmem:[#allocation2 + $0x2038] sm:$0xff]
    %v1092 = vld [vmem:[#allocation2 + $0x2040] sm:$0xff]
    %v1093 = vld [vmem:[#allocation2 + $0x2048] sm:$0xff]
    %v1094 = vld [vmem:[#allocation2 + $0x2050] sm:$0xff]
    %v1095 = vld [vmem:[#allocation2 + $0x2058] sm:$0xff]
    %v1096 = vld [vmem:[#allocation2 + $0x2060] sm:$0xff]
    %v1097 = vld [vmem:[#allocation2 + $0x2068] sm:$0xff]
    %v1098 = vld [vmem:[#allocation2 + $0x2070] sm:$0xff]
    %v1099 = vld [vmem:[#allocation2 + $0x2078] sm:$0xff]
    %v1100 = vld [vmem:[#allocation2 + $0x2080] sm:$0xff]
    %v1101 = vld [vmem:[#allocation2 + $0x2088] sm:$0xff]
    %v1102 = vld [vmem:[#allocation2 + $0x2090] sm:$0xff]
    %v1103 = vld [vmem:[#allocation2 + $0x2098] sm:$0xff]
    %v1104 = vld [vmem:[#allocation2 + $0x20a0] sm:$0xff]
    %v1105 = vld [vmem:[#allocation2 + $0x20a8] sm:$0xff]
    %v1106 = vld [vmem:[#allocation2 + $0x20b0] sm:$0xff]
    %v1107 = vld [vmem:[#allocation2 + $0x20b8] sm:$0xff]
    %v1108 = vld [vmem:[#allocation2 + $0x20c0] sm:$0xff]
    %v1109 = vld [vmem:[#allocation2 + $0x20c8] sm:$0xff]
    %v1110 = vld [vmem:[#allocation2 + $0x20d0] sm:$0xff]
    %v1111 = vld [vmem:[#allocation2 + $0x20d8] sm:$0xff]
    %v1112 = vld [vmem:[#allocation2 + $0x20e0] sm:$0xff]
    %v1113 = vld [vmem:[#allocation2 + $0x20e8] sm:$0xff]
    %v1114 = vld [vmem:[#allocation2 + $0x20f0] sm:$0xff]
    %v1115 = vld [vmem:[#allocation2 + $0x20f8] sm:$0xff]
    %v1116 = vld [vmem:[#allocation2 + $0x2100] sm:$0xff]
    %v1117 = vld [vmem:[#allocation2 + $0x2108] sm:$0xff]
    %v1118 = vld [vmem:[#allocation2 + $0x2110] sm:$0xff]
    %v1119 = vld [vmem:[#allocation2 + $0x2118] sm:$0xff]
    %v1120 = vld [vmem:[#allocation2 + $0x2120] sm:$0xff]
    %v1121 = vld [vmem:[#allocation2 + $0x2128] sm:$0xff]
    %v1122 = vld [vmem:[#allocation2 + $0x2130] sm:$0xff]
    %v1123 = vld [vmem:[#allocation2 + $0x2138] sm:$0xff]
    %v1124 = vld [vmem:[#allocation2 + $0x2140] sm:$0xff]
    %v1125 = vld [vmem:[#allocation2 + $0x2148] sm:$0xff]
    %v1126 = vld [vmem:[#allocation2 + $0x2150] sm:$0xff]
    %v1127 = vld [vmem:[#allocation2 + $0x2158] sm:$0xff]
    %v1128 = vld [vmem:[#allocation2 + $0x2160] sm:$0xff]
    %v1129 = vld [vmem:[#allocation2 + $0x2168] sm:$0xff]
    %v1130 = vld [vmem:[#allocation2 + $0x2170] sm:$0xff]
    %v1131 = vld [vmem:[#allocation2 + $0x2178] sm:$0xff]
    %v1132 = vld [vmem:[#allocation2 + $0x2180] sm:$0xff]
    %v1133 = vld [vmem:[#allocation2 + $0x2188] sm:$0xff]
    %v1134 = vld [vmem:[#allocation2 + $0x2190] sm:$0xff]
    %v1135 = vld [vmem:[#allocation2 + $0x2198] sm:$0xff]
    %v1136 = vld [vmem:[#allocation2 + $0x21a0] sm:$0xff]
    %v1137 = vld [vmem:[#allocation2 + $0x21a8] sm:$0xff]
    %v1138 = vld [vmem:[#allocation2 + $0x21b0] sm:$0xff]
    %v1139 = vld [vmem:[#allocation2 + $0x21b8] sm:$0xff]
    %v1140 = vld [vmem:[#allocation2 + $0x21c0] sm:$0xff]
    %v1141 = vld [vmem:[#allocation2 + $0x21c8] sm:$0xff]
    %v1142 = vld [vmem:[#allocation2 + $0x21d0] sm:$0xff]
    %v1143 = vld [vmem:[#allocation2 + $0x21d8] sm:$0xff]
    %v1144 = vld [vmem:[#allocation2 + $0x21e0] sm:$0xff]
    %v1145 = vld [vmem:[#allocation2 + $0x21e8] sm:$0xff]
    %v1146 = vld [vmem:[#allocation2 + $0x21f0] sm:$0xff]
    %v1147 = vld [vmem:[#allocation2 + $0x21f8] sm:$0xff]
    %v1148 = vld [vmem:[#allocation2 + $0x2200] sm:$0xff]
    %v1149 = vld [vmem:[#allocation2 + $0x2208] sm:$0xff]
    %v1150 = vld [vmem:[#allocation2 + $0x2210] sm:$0xff]
    %v1151 = vld [vmem:[#allocation2 + $0x2218] sm:$0xff]
    %v1152 = vld [vmem:[#allocation2 + $0x2220] sm:$0xff]
    %v1153 = vld [vmem:[#allocation2 + $0x2228] sm:$0xff]
    %v1154 = vld [vmem:[#allocation2 + $0x2230] sm:$0xff]
    %v1155 = vld [vmem:[#allocation2 + $0x2238] sm:$0xff]
    %v1156 = vld [vmem:[#allocation2 + $0x2240] sm:$0xff]
    %v1157 = vld [vmem:[#allocation2 + $0x2248] sm:$0xff]
    %v1158 = vld [vmem:[#allocation2 + $0x2250] sm:$0xff]
    %v1159 = vld [vmem:[#allocation2 + $0x2258] sm:$0xff]
    %v1160 = vld [vmem:[#allocation2 + $0x2260] sm:$0xff]
    %v1161 = vld [vmem:[#allocation2 + $0x2268] sm:$0xff]
    %v1162 = vld [vmem:[#allocation2 + $0x2270] sm:$0xff]
    %v1163 = vld [vmem:[#allocation2 + $0x2278] sm:$0xff]
    %v1164 = vld [vmem:[#allocation2 + $0x2280] sm:$0xff]
    %v1165 = vld [vmem:[#allocation2 + $0x2288] sm:$0xff]
    %v1166 = vld [vmem:[#allocation2 + $0x2290] sm:$0xff]
    %v1167 = vld [vmem:[#allocation2 + $0x2298] sm:$0xff]
    %v1168 = vld [vmem:[#allocation2 + $0x22a0] sm:$0xff]
    %v1169 = vld [vmem:[#allocation2 + $0x22a8] sm:$0xff]
    %v1170 = vld [vmem:[#allocation2 + $0x22b0] sm:$0xff]
    %v1171 = vld [vmem:[#allocation2 + $0x22b8] sm:$0xff]
    %v1172 = vld [vmem:[#allocation2 + $0x22c0] sm:$0xff]
    %v1173 = vld [vmem:[#allocation2 + $0x22c8] sm:$0xff]
    %v1174 = vld [vmem:[#allocation2 + $0x22d0] sm:$0xff]
    %v1175 = vld [vmem:[#allocation2 + $0x22d8] sm:$0xff]
    %v1176 = vld [vmem:[#allocation2 + $0x22e0] sm:$0xff]
    %v1177 = vld [vmem:[#allocation2 + $0x22e8] sm:$0xff]
    %v1178 = vld [vmem:[#allocation2 + $0x22f0] sm:$0xff]
    %v1179 = vld [vmem:[#allocation2 + $0x22f8] sm:$0xff]
    %v1180 = vld [vmem:[#allocation2 + $0x2300] sm:$0xff]
    %v1181 = vld [vmem:[#allocation2 + $0x2308] sm:$0xff]
    %v1182 = vld [vmem:[#allocation2 + $0x2310] sm:$0xff]
    %v1183 = vld [vmem:[#allocation2 + $0x2318] sm:$0xff]
    %v1184 = vld [vmem:[#allocation2 + $0x2320] sm:$0xff]
    %v1185 = vld [vmem:[#allocation2 + $0x2328] sm:$0xff]
    %v1186 = vld [vmem:[#allocation2 + $0x2330] sm:$0xff]
    %v1187 = vld [vmem:[#allocation2 + $0x2338] sm:$0xff]
    %v1188 = vld [vmem:[#allocation2 + $0x2340] sm:$0xff]
    %v1189 = vld [vmem:[#allocation2 + $0x2348] sm:$0xff]
    %v1190 = vld [vmem:[#allocation2 + $0x2350] sm:$0xff]
    %v1191 = vld [vmem:[#allocation2 + $0x2358] sm:$0xff]
    %v1192 = vld [vmem:[#allocation2 + $0x2360] sm:$0xff]
    %v1193 = vld [vmem:[#allocation2 + $0x2368] sm:$0xff]
    %v1194 = vld [vmem:[#allocation2 + $0x2370] sm:$0xff]
    %v1195 = vld [vmem:[#allocation2 + $0x2378] sm:$0xff]
    %v1196 = vld [vmem:[#allocation2 + $0x2380] sm:$0xff]
    %v1197 = vld [vmem:[#allocation2 + $0x2388] sm:$0xff]
    %v1198 = vld [vmem:[#allocation2 + $0x2390] sm:$0xff]
    %v1199 = vld [vmem:[#allocation2 + $0x2398] sm:$0xff]
    %v1200 = vld [vmem:[#allocation2 + $0x23a0] sm:$0xff]
    %v1201 = vld [vmem:[#allocation2 + $0x23a8] sm:$0xff]
    %v1202 = vld [vmem:[#allocation2 + $0x23b0] sm:$0xff]
    %v1203 = vld [vmem:[#allocation2 + $0x23b8] sm:$0xff]
    %v1204 = vld [vmem:[#allocation2 + $0x23c0] sm:$0xff]
    %v1205 = vld [vmem:[#allocation2 + $0x23c8] sm:$0xff]
    %v1206 = vld [vmem:[#allocation2 + $0x23d0] sm:$0xff]
    %v1207 = vld [vmem:[#allocation2 + $0x23d8] sm:$0xff]
    %v1208 = vld [vmem:[#allocation2 + $0x23e0] sm:$0xff]
    %v1209 = vld [vmem:[#allocation2 + $0x23e8] sm:$0xff]
    %v1210 = vld [vmem:[#allocation2 + $0x23f0] sm:$0xff]
    %v1211 = vld [vmem:[#allocation2 + $0x23f8] sm:$0xff]
    %v1212 = vld [vmem:[#allocation2 + $0x2400] sm:$0xff]
    %v1213 = vld [vmem:[#allocation2 + $0x2408] sm:$0xff]
    %v1214 = vld [vmem:[#allocation2 + $0x2410] sm:$0xff]
    %v1215 = vld [vmem:[#allocation2 + $0x2418] sm:$0xff]
    %v1216 = vld [vmem:[#allocation2 + $0x2420] sm:$0xff]
    %v1217 = vld [vmem:[#allocation2 + $0x2428] sm:$0xff]
    %v1218 = vld [vmem:[#allocation2 + $0x2430] sm:$0xff]
    %v1219 = vld [vmem:[#allocation2 + $0x2438] sm:$0xff]
    %v1220 = vld [vmem:[#allocation2 + $0x2440] sm:$0xff]
    %v1221 = vld [vmem:[#allocation2 + $0x2448] sm:$0xff]
    %v1222 = vld [vmem:[#allocation2 + $0x2450] sm:$0xff]
    %v1223 = vld [vmem:[#allocation2 + $0x2458] sm:$0xff]
    %v1224 = vld [vmem:[#allocation2 + $0x2460] sm:$0xff]
    %v1225 = vld [vmem:[#allocation2 + $0x2468] sm:$0xff]
    %v1226 = vld [vmem:[#allocation2 + $0x2470] sm:$0xff]
    %v1227 = vld [vmem:[#allocation2 + $0x2478] sm:$0xff]
    %v1228 = vld [vmem:[#allocation2 + $0x2480] sm:$0xff]
    %v1229 = vld [vmem:[#allocation2 + $0x2488] sm:$0xff]
    %v1230 = vld [vmem:[#allocation2 + $0x2490] sm:$0xff]
    %v1231 = vld [vmem:[#allocation2 + $0x2498] sm:$0xff]
    %v1232 = vld [vmem:[#allocation2 + $0x24a0] sm:$0xff]
    %v1233 = vld [vmem:[#allocation2 + $0x24a8] sm:$0xff]
    %v1234 = vld [vmem:[#allocation2 + $0x24b0] sm:$0xff]
    %v1235 = vld [vmem:[#allocation2 + $0x24b8] sm:$0xff]
    %v1236 = vld [vmem:[#allocation2 + $0x24c0] sm:$0xff]
    %v1237 = vld [vmem:[#allocation2 + $0x24c8] sm:$0xff]
    %v1238 = vld [vmem:[#allocation2 + $0x24d0] sm:$0xff]
    %v1239 = vld [vmem:[#allocation2 + $0x24d8] sm:$0xff]
    %v1240 = vld [vmem:[#allocation2 + $0x24e0] sm:$0xff]
    %v1241 = vld [vmem:[#allocation2 + $0x24e8] sm:$0xff]
    %v1242 = vld [vmem:[#allocation2 + $0x24f0] sm:$0xff]
    %v1243 = vld [vmem:[#allocation2 + $0x24f8] sm:$0xff]
    %v1244 = vld [vmem:[#allocation2 + $0x2500] sm:$0xff]
    %v1245 = vld [vmem:[#allocation2 + $0x2508] sm:$0xff]
    %v1246 = vld [vmem:[#allocation2 + $0x2510] sm:$0xff]
    %v1247 = vld [vmem:[#allocation2 + $0x2518] sm:$0xff]
    %v1248 = vld [vmem:[#allocation2 + $0x2520] sm:$0xff]
    %v1249 = vld [vmem:[#allocation2 + $0x2528] sm:$0xff]
    %v1250 = vld [vmem:[#allocation2 + $0x2530] sm:$0xff]
    %v1251 = vld [vmem:[#allocation2 + $0x2538] sm:$0xff]
    %v1252 = vld [vmem:[#allocation2 + $0x2540] sm:$0xff]
    %v1253 = vld [vmem:[#allocation2 + $0x2548] sm:$0xff]
    %v1254 = vld [vmem:[#allocation2 + $0x2550] sm:$0xff]
    %v1255 = vld [vmem:[#allocation2 + $0x2558] sm:$0xff]
    %v1256 = vld [vmem:[#allocation2 + $0x2560] sm:$0xff]
    %v1257 = vld [vmem:[#allocation2 + $0x2568] sm:$0xff]
    %v1258 = vld [vmem:[#allocation2 + $0x2570] sm:$0xff]
    %v1259 = vld [vmem:[#allocation2 + $0x2578] sm:$0xff]
    %v1260 = vld [vmem:[#allocation2 + $0x2580] sm:$0xff]
    %v1261 = vld [vmem:[#allocation2 + $0x2588] sm:$0xff]
    %v1262 = vld [vmem:[#allocation2 + $0x2590] sm:$0xff]
    %v1263 = vld [vmem:[#allocation2 + $0x2598] sm:$0xff]
    %v1264 = vld [vmem:[#allocation2 + $0x25a0] sm:$0xff]
    %v1265 = vld [vmem:[#allocation2 + $0x25a8] sm:$0xff]
    %v1266 = vld [vmem:[#allocation2 + $0x25b0] sm:$0xff]
    %v1267 = vld [vmem:[#allocation2 + $0x25b8] sm:$0xff]
    %v1268 = vld [vmem:[#allocation2 + $0x25c0] sm:$0xff]
    %v1269 = vld [vmem:[#allocation2 + $0x25c8] sm:$0xff]
    %v1270 = vld [vmem:[#allocation2 + $0x25d0] sm:$0xff]
    %v1271 = vld [vmem:[#allocation2 + $0x25d8] sm:$0xff]
    %v1272 = vld [vmem:[#allocation2 + $0x25e0] sm:$0xff]
    %v1273 = vld [vmem:[#allocation2 + $0x25e8] sm:$0xff]
    %v1274 = vld [vmem:[#allocation2 + $0x25f0] sm:$0xff]
    %v1275 = vld [vmem:[#allocation2 + $0x25f8] sm:$0xff]
    %v1276 = vld [vmem:[#allocation2 + $0x2600] sm:$0xff]
    %v1277 = vld [vmem:[#allocation2 + $0x2608] sm:$0xff]
    %v1278 = vld [vmem:[#allocation2 + $0x2610] sm:$0xff]
    %v1279 = vld [vmem:[#allocation2 + $0x2618] sm:$0xff]
    %v1280 = vld [vmem:[#allocation2 + $0x2620] sm:$0xff]
    %v1281 = vld [vmem:[#allocation2 + $0x2628] sm:$0xff]
    %v1282 = vld [vmem:[#allocation2 + $0x2630] sm:$0xff]
    %v1283 = vld [vmem:[#allocation2 + $0x2638] sm:$0xff]
    %v1284 = vld [vmem:[#allocation2 + $0x2640] sm:$0xff]
    %v1285 = vld [vmem:[#allocation2 + $0x2648] sm:$0xff]
    %v1286 = vld [vmem:[#allocation2 + $0x2650] sm:$0xff]
    %v1287 = vld [vmem:[#allocation2 + $0x2658] sm:$0xff]
    %v1288 = vld [vmem:[#allocation2 + $0x2660] sm:$0xff]
    %v1289 = vld [vmem:[#allocation2 + $0x2668] sm:$0xff]
    %v1290 = vld [vmem:[#allocation2 + $0x2670] sm:$0xff]
    %v1291 = vld [vmem:[#allocation2 + $0x2678] sm:$0xff]
    %v1292 = vld [vmem:[#allocation2 + $0x2680] sm:$0xff]
    %v1293 = vld [vmem:[#allocation2 + $0x2688] sm:$0xff]
    %v1294 = vld [vmem:[#allocation2 + $0x2690] sm:$0xff]
    %v1295 = vld [vmem:[#allocation2 + $0x2698] sm:$0xff]
    %v1296 = vld [vmem:[#allocation2 + $0x26a0] sm:$0xff]
    %v1297 = vld [vmem:[#allocation2 + $0x26a8] sm:$0xff]
    %v1298 = vld [vmem:[#allocation2 + $0x26b0] sm:$0xff]
    %v1299 = vld [vmem:[#allocation2 + $0x26b8] sm:$0xff]
    %v1300 = vld [vmem:[#allocation2 + $0x26c0] sm:$0xff]
    %v1301 = vld [vmem:[#allocation2 + $0x26c8] sm:$0xff]
    %v1302 = vld [vmem:[#allocation2 + $0x26d0] sm:$0xff]
    %v1303 = vld [vmem:[#allocation2 + $0x26d8] sm:$0xff]
    %v1304 = vld [vmem:[#allocation2 + $0x26e0] sm:$0xff]
    %v1305 = vld [vmem:[#allocation2 + $0x26e8] sm:$0xff]
    %v1306 = vld [vmem:[#allocation2 + $0x26f0] sm:$0xff]
    %v1307 = vld [vmem:[#allocation2 + $0x26f8] sm:$0xff]
    %v1308 = vld [vmem:[#allocation2 + $0x2700] sm:$0xff]
    %v1309 = vld [vmem:[#allocation2 + $0x2708] sm:$0xff]
    %v1310 = vld [vmem:[#allocation2 + $0x2710] sm:$0xff]
    %v1311 = vld [vmem:[#allocation2 + $0x2718] sm:$0xff]
    %v1312 = vld [vmem:[#allocation2 + $0x2720] sm:$0xff]
    %v1313 = vld [vmem:[#allocation2 + $0x2728] sm:$0xff]
    %v1314 = vld [vmem:[#allocation2 + $0x2730] sm:$0xff]
    %v1315 = vld [vmem:[#allocation2 + $0x2738] sm:$0xff]
    %v1316 = vld [vmem:[#allocation2 + $0x2740] sm:$0xff]
    %v1317 = vld [vmem:[#allocation2 + $0x2748] sm:$0xff]
    %v1318 = vld [vmem:[#allocation2 + $0x2750] sm:$0xff]
    %v1319 = vld [vmem:[#allocation2 + $0x2758] sm:$0xff]
    %v1320 = vld [vmem:[#allocation2 + $0x2760] sm:$0xff]
    %v1321 = vld [vmem:[#allocation2 + $0x2768] sm:$0xff]
    %v1322 = vld [vmem:[#allocation2 + $0x2770] sm:$0xff]
    %v1323 = vld [vmem:[#allocation2 + $0x2778] sm:$0xff]
    %v1324 = vld [vmem:[#allocation2 + $0x2780] sm:$0xff]
    %v1325 = vld [vmem:[#allocation2 + $0x2788] sm:$0xff]
    %v1326 = vld [vmem:[#allocation2 + $0x2790] sm:$0xff]
    %v1327 = vld [vmem:[#allocation2 + $0x2798] sm:$0xff]
    %v1328 = vld [vmem:[#allocation2 + $0x27a0] sm:$0xff]
    %v1329 = vld [vmem:[#allocation2 + $0x27a8] sm:$0xff]
    %v1330 = vld [vmem:[#allocation2 + $0x27b0] sm:$0xff]
    %v1331 = vld [vmem:[#allocation2 + $0x27b8] sm:$0xff]
    %v1332 = vld [vmem:[#allocation2 + $0x27c0] sm:$0xff]
    %v1333 = vld [vmem:[#allocation2 + $0x27c8] sm:$0xff]
    %v1334 = vld [vmem:[#allocation2 + $0x27d0] sm:$0xff]
    %v1335 = vld [vmem:[#allocation2 + $0x27d8] sm:$0xff]
    %v1336 = vld [vmem:[#allocation2 + $0x27e0] sm:$0xff]
    %v1337 = vld [vmem:[#allocation2 + $0x27e8] sm:$0xff]
    %v1338 = vld [vmem:[#allocation2 + $0x27f0] sm:$0xff]
    %v1339 = vld [vmem:[#allocation2 + $0x27f8] sm:$0xff]
    %v1340 = vld [vmem:[#allocation2 + $0x2800] sm:$0xff]
    %v1341 = vld [vmem:[#allocation2 + $0x2808] sm:$0xff]
    %v1342 = vld [vmem:[#allocation2 + $0x2810] sm:$0xff]
    %v1343 = vld [vmem:[#allocation2 + $0x2818] sm:$0xff]
    %v1344 = vld [vmem:[#allocation2 + $0x2820] sm:$0xff]
    %v1345 = vld [vmem:[#allocation2 + $0x2828] sm:$0xff]
    %v1346 = vld [vmem:[#allocation2 + $0x2830] sm:$0xff]
    %v1347 = vld [vmem:[#allocation2 + $0x2838] sm:$0xff]
    %v1348 = vld [vmem:[#allocation2 + $0x2840] sm:$0xff]
    %v1349 = vld [vmem:[#allocation2 + $0x2848] sm:$0xff]
    %v1350 = vld [vmem:[#allocation2 + $0x2850] sm:$0xff]
    %v1351 = vld [vmem:[#allocation2 + $0x2858] sm:$0xff]
    %v1352 = vld [vmem:[#allocation2 + $0x2860] sm:$0xff]
    %v1353 = vld [vmem:[#allocation2 + $0x2868] sm:$0xff]
    %v1354 = vld [vmem:[#allocation2 + $0x2870] sm:$0xff]
    %v1355 = vld [vmem:[#allocation2 + $0x2878] sm:$0xff]
    %v1356 = vld [vmem:[#allocation2 + $0x2880] sm:$0xff]
    %v1357 = vld [vmem:[#allocation2 + $0x2888] sm:$0xff]
    %v1358 = vld [vmem:[#allocation2 + $0x2890] sm:$0xff]
    %v1359 = vld [vmem:[#allocation2 + $0x2898] sm:$0xff]
    %v1360 = vld [vmem:[#allocation2 + $0x28a0] sm:$0xff]
    %v1361 = vld [vmem:[#allocation2 + $0x28a8] sm:$0xff]
    %v1362 = vld [vmem:[#allocation2 + $0x28b0] sm:$0xff]
    %v1363 = vld [vmem:[#allocation2 + $0x28b8] sm:$0xff]
    %v1364 = vld [vmem:[#allocation2 + $0x28c0] sm:$0xff]
    %v1365 = vld [vmem:[#allocation2 + $0x28c8] sm:$0xff]
    %v1366 = vld [vmem:[#allocation2 + $0x28d0] sm:$0xff]
    %v1367 = vld [vmem:[#allocation2 + $0x28d8] sm:$0xff]
    %v1368 = vld [vmem:[#allocation2 + $0x28e0] sm:$0xff]
    %v1369 = vld [vmem:[#allocation2 + $0x28e8] sm:$0xff]
    %v1370 = vld [vmem:[#allocation2 + $0x28f0] sm:$0xff]
    %v1371 = vld [vmem:[#allocation2 + $0x28f8] sm:$0xff]
    %v1372 = vld [vmem:[#allocation2 + $0x2900] sm:$0xff]
    %v1373 = vld [vmem:[#allocation2 + $0x2908] sm:$0xff]
    %v1374 = vld [vmem:[#allocation2 + $0x2910] sm:$0xff]
    %v1375 = vld [vmem:[#allocation2 + $0x2918] sm:$0xff]
    %v1376 = vld [vmem:[#allocation2 + $0x2920] sm:$0xff]
    %v1377 = vld [vmem:[#allocation2 + $0x2928] sm:$0xff]
    %v1378 = vld [vmem:[#allocation2 + $0x2930] sm:$0xff]
    %v1379 = vld [vmem:[#allocation2 + $0x2938] sm:$0xff]
    %v1380 = vld [vmem:[#allocation2 + $0x2940] sm:$0xff]
    %v1381 = vld [vmem:[#allocation2 + $0x2948] sm:$0xff]
    %v1382 = vld [vmem:[#allocation2 + $0x2950] sm:$0xff]
    %v1383 = vld [vmem:[#allocation2 + $0x2958] sm:$0xff]
    %v1384 = vld [vmem:[#allocation2 + $0x2960] sm:$0xff]
    %v1385 = vld [vmem:[#allocation2 + $0x2968] sm:$0xff]
    %v1386 = vld [vmem:[#allocation2 + $0x2970] sm:$0xff]
    %v1387 = vld [vmem:[#allocation2 + $0x2978] sm:$0xff]
    %v1388 = vld [vmem:[#allocation2 + $0x2980] sm:$0xff]
    %v1389 = vld [vmem:[#allocation2 + $0x2988] sm:$0xff]
    %v1390 = vld [vmem:[#allocation2 + $0x2990] sm:$0xff]
    %v1391 = vld [vmem:[#allocation2 + $0x2998] sm:$0xff]
    %v1392 = vld [vmem:[#allocation2 + $0x29a0] sm:$0xff]
    %v1393 = vld [vmem:[#allocation2 + $0x29a8] sm:$0xff]
    %v1394 = vld [vmem:[#allocation2 + $0x29b0] sm:$0xff]
    %v1395 = vld [vmem:[#allocation2 + $0x29b8] sm:$0xff]
    %v1396 = vld [vmem:[#allocation2 + $0x29c0] sm:$0xff]
    %v1397 = vld [vmem:[#allocation2 + $0x29c8] sm:$0xff]
    %v1398 = vld [vmem:[#allocation2 + $0x29d0] sm:$0xff]
    %v1399 = vld [vmem:[#allocation2 + $0x29d8] sm:$0xff]
    %v1400 = vld [vmem:[#allocation2 + $0x29e0] sm:$0xff]
    %v1401 = vld [vmem:[#allocation2 + $0x29e8] sm:$0xff]
    %v1402 = vld [vmem:[#allocation2 + $0x29f0] sm:$0xff]
    %v1403 = vld [vmem:[#allocation2 + $0x29f8] sm:$0xff]
    %v1404 = vld [vmem:[#allocation2 + $0x2a00] sm:$0xff]
    %v1405 = vld [vmem:[#allocation2 + $0x2a08] sm:$0xff]
    %v1406 = vld [vmem:[#allocation2 + $0x2a10] sm:$0xff]
    %v1407 = vld [vmem:[#allocation2 + $0x2a18] sm:$0xff]
    %v1408 = vld [vmem:[#allocation2 + $0x2a20] sm:$0xff]
    %v1409 = vld [vmem:[#allocation2 + $0x2a28] sm:$0xff]
    %v1410 = vld [vmem:[#allocation2 + $0x2a30] sm:$0xff]
    %v1411 = vld [vmem:[#allocation2 + $0x2a38] sm:$0xff]
    %v1412 = vld [vmem:[#allocation2 + $0x2a40] sm:$0xff]
    %v1413 = vld [vmem:[#allocation2 + $0x2a48] sm:$0xff]
    %v1414 = vld [vmem:[#allocation2 + $0x2a50] sm:$0xff]
    %v1415 = vld [vmem:[#allocation2 + $0x2a58] sm:$0xff]
    %v1416 = vld [vmem:[#allocation2 + $0x2a60] sm:$0xff]
    %v1417 = vld [vmem:[#allocation2 + $0x2a68] sm:$0xff]
    %v1418 = vld [vmem:[#allocation2 + $0x2a70] sm:$0xff]
    %v1419 = vld [vmem:[#allocation2 + $0x2a78] sm:$0xff]
    %v1420 = vld [vmem:[#allocation2 + $0x2a80] sm:$0xff]
    %v1421 = vld [vmem:[#allocation2 + $0x2a88] sm:$0xff]
    %v1422 = vld [vmem:[#allocation2 + $0x2a90] sm:$0xff]
    %v1423 = vld [vmem:[#allocation2 + $0x2a98] sm:$0xff]
    %v1424 = vld [vmem:[#allocation2 + $0x2aa0] sm:$0xff]
    %v1425 = vld [vmem:[#allocation2 + $0x2aa8] sm:$0xff]
    %v1426 = vld [vmem:[#allocation2 + $0x2ab0] sm:$0xff]
    %v1427 = vld [vmem:[#allocation2 + $0x2ab8] sm:$0xff]
    %v1428 = vld [vmem:[#allocation2 + $0x2ac0] sm:$0xff]
    %v1429 = vld [vmem:[#allocation2 + $0x2ac8] sm:$0xff]
    %v1430 = vld [vmem:[#allocation2 + $0x2ad0] sm:$0xff]
    %v1431 = vld [vmem:[#allocation2 + $0x2ad8] sm:$0xff]
    %v1432 = vld [vmem:[#allocation2 + $0x2ae0] sm:$0xff]
    %v1433 = vld [vmem:[#allocation2 + $0x2ae8] sm:$0xff]
    %v1434 = vld [vmem:[#allocation2 + $0x2af0] sm:$0xff]
    %v1435 = vld [vmem:[#allocation2 + $0x2af8] sm:$0xff]
    %v1436 = vld [vmem:[#allocation2 + $0x2b00] sm:$0xff]
    %v1437 = vld [vmem:[#allocation2 + $0x2b08] sm:$0xff]
    %v1438 = vld [vmem:[#allocation2 + $0x2b10] sm:$0xff]
    %v1439 = vld [vmem:[#allocation2 + $0x2b18] sm:$0xff]
    %v1440 = vld [vmem:[#allocation2 + $0x2b20] sm:$0xff]
    %v1441 = vld [vmem:[#allocation2 + $0x2b28] sm:$0xff]
    %v1442 = vld [vmem:[#allocation2 + $0x2b30] sm:$0xff]
    %v1443 = vld [vmem:[#allocation2 + $0x2b38] sm:$0xff]
    %v1444 = vld [vmem:[#allocation2 + $0x2b40] sm:$0xff]
    %v1445 = vld [vmem:[#allocation2 + $0x2b48] sm:$0xff]
    %v1446 = vld [vmem:[#allocation2 + $0x2b50] sm:$0xff]
    %v1447 = vld [vmem:[#allocation2 + $0x2b58] sm:$0xff]
    %v1448 = vld [vmem:[#allocation2 + $0x2b60] sm:$0xff]
    %v1449 = vld [vmem:[#allocation2 + $0x2b68] sm:$0xff]
    %v1450 = vld [vmem:[#allocation2 + $0x2b70] sm:$0xff]
    %v1451 = vld [vmem:[#allocation2 + $0x2b78] sm:$0xff]
    %v1452 = vld [vmem:[#allocation2 + $0x2b80] sm:$0xff]
    %v1453 = vld [vmem:[#allocation2 + $0x2b88] sm:$0xff]
    %v1454 = vld [vmem:[#allocation2 + $0x2b90] sm:$0xff]
    %v1455 = vld [vmem:[#allocation2 + $0x2b98] sm:$0xff]
    %v1456 = vld [vmem:[#allocation2 + $0x2ba0] sm:$0xff]
    %v1457 = vld [vmem:[#allocation2 + $0x2ba8] sm:$0xff]
    %v1458 = vld [vmem:[#allocation2 + $0x2bb0] sm:$0xff]
    %v1459 = vld [vmem:[#allocation2 + $0x2bb8] sm:$0xff]
    %v1460 = vld [vmem:[#allocation2 + $0x2bc0] sm:$0xff]
    %v1461 = vld [vmem:[#allocation2 + $0x2bc8] sm:$0xff]
    %v1462 = vld [vmem:[#allocation2 + $0x2bd0] sm:$0xff]
    %v1463 = vld [vmem:[#allocation2 + $0x2bd8] sm:$0xff]
    %v1464 = vld [vmem:[#allocation2 + $0x2be0] sm:$0xff]
    %v1465 = vld [vmem:[#allocation2 + $0x2be8] sm:$0xff]
    %v1466 = vld [vmem:[#allocation2 + $0x2bf0] sm:$0xff]
    %v1467 = vld [vmem:[#allocation2 + $0x2bf8] sm:$0xff]
    %v1468 = vld [vmem:[#allocation2 + $0x2c00] sm:$0xff]
    %v1469 = vld [vmem:[#allocation2 + $0x2c08] sm:$0xff]
    %v1470 = vld [vmem:[#allocation2 + $0x2c10] sm:$0xff]
    %v1471 = vld [vmem:[#allocation2 + $0x2c18] sm:$0xff]
    %v1472 = vld [vmem:[#allocation2 + $0x2c20] sm:$0xff]
    %v1473 = vld [vmem:[#allocation2 + $0x2c28] sm:$0xff]
    %v1474 = vld [vmem:[#allocation2 + $0x2c30] sm:$0xff]
    %v1475 = vld [vmem:[#allocation2 + $0x2c38] sm:$0xff]
    %v1476 = vld [vmem:[#allocation2 + $0x2c40] sm:$0xff]
    %v1477 = vld [vmem:[#allocation2 + $0x2c48] sm:$0xff]
    %v1478 = vld [vmem:[#allocation2 + $0x2c50] sm:$0xff]
    %v1479 = vld [vmem:[#allocation2 + $0x2c58] sm:$0xff]
    %v1480 = vld [vmem:[#allocation2 + $0x2c60] sm:$0xff]
    %v1481 = vld [vmem:[#allocation2 + $0x2c68] sm:$0xff]
    %v1482 = vld [vmem:[#allocation2 + $0x2c70] sm:$0xff]
    %v1483 = vld [vmem:[#allocation2 + $0x2c78] sm:$0xff]
    %v1484 = vld [vmem:[#allocation2 + $0x2c80] sm:$0xff]
    %v1485 = vld [vmem:[#allocation2 + $0x2c88] sm:$0xff]
    %v1486 = vld [vmem:[#allocation2 + $0x2c90] sm:$0xff]
    %v1487 = vld [vmem:[#allocation2 + $0x2c98] sm:$0xff]
    %v1488 = vld [vmem:[#allocation2 + $0x2ca0] sm:$0xff]
    %v1489 = vld [vmem:[#allocation2 + $0x2ca8] sm:$0xff]
    %v1490 = vld [vmem:[#allocation2 + $0x2cb0] sm:$0xff]
    %v1491 = vld [vmem:[#allocation2 + $0x2cb8] sm:$0xff]
    %v1492 = vld [vmem:[#allocation2 + $0x2cc0] sm:$0xff]
    %v1493 = vld [vmem:[#allocation2 + $0x2cc8] sm:$0xff]
    %v1494 = vld [vmem:[#allocation2 + $0x2cd0] sm:$0xff]
    %v1495 = vld [vmem:[#allocation2 + $0x2cd8] sm:$0xff]
    %v1496 = vld [vmem:[#allocation2 + $0x2ce0] sm:$0xff]
    %v1497 = vld [vmem:[#allocation2 + $0x2ce8] sm:$0xff]
    %v1498 = vld [vmem:[#allocation2 + $0x2cf0] sm:$0xff]
    %v1499 = vld [vmem:[#allocation2 + $0x2cf8] sm:$0xff]
    %v1500 = vld [vmem:[#allocation2 + $0x2d00] sm:$0xff]
    %v1501 = vld [vmem:[#allocation2 + $0x2d08] sm:$0xff]
    %v1502 = vld [vmem:[#allocation2 + $0x2d10] sm:$0xff]
    %v1503 = vld [vmem:[#allocation2 + $0x2d18] sm:$0xff]
    %v1504 = vld [vmem:[#allocation2 + $0x2d20] sm:$0xff]
    %v1505 = vld [vmem:[#allocation2 + $0x2d28] sm:$0xff]
    %v1506 = vld [vmem:[#allocation2 + $0x2d30] sm:$0xff]
    %v1507 = vld [vmem:[#allocation2 + $0x2d38] sm:$0xff]
    %v1508 = vld [vmem:[#allocation2 + $0x2d40] sm:$0xff]
    %v1509 = vld [vmem:[#allocation2 + $0x2d48] sm:$0xff]
    %v1510 = vld [vmem:[#allocation2 + $0x2d50] sm:$0xff]
    %v1511 = vld [vmem:[#allocation2 + $0x2d58] sm:$0xff]
    %v1512 = vld [vmem:[#allocation2 + $0x2d60] sm:$0xff]
    %v1513 = vld [vmem:[#allocation2 + $0x2d68] sm:$0xff]
    %v1514 = vld [vmem:[#allocation2 + $0x2d70] sm:$0xff]
    %v1515 = vld [vmem:[#allocation2 + $0x2d78] sm:$0xff]
    %v1516 = vld [vmem:[#allocation2 + $0x2d80] sm:$0xff]
    %v1517 = vld [vmem:[#allocation2 + $0x2d88] sm:$0xff]
    %v1518 = vld [vmem:[#allocation2 + $0x2d90] sm:$0xff]
    %v1519 = vld [vmem:[#allocation2 + $0x2d98] sm:$0xff]
    %v1520 = vld [vmem:[#allocation2 + $0x2da0] sm:$0xff]
    %v1521 = vld [vmem:[#allocation2 + $0x2da8] sm:$0xff]
    %v1522 = vld [vmem:[#allocation2 + $0x2db0] sm:$0xff]
    %v1523 = vld [vmem:[#allocation2 + $0x2db8] sm:$0xff]
    %v1524 = vld [vmem:[#allocation2 + $0x2dc0] sm:$0xff]
    %v1525 = vld [vmem:[#allocation2 + $0x2dc8] sm:$0xff]
    %v1526 = vld [vmem:[#allocation2 + $0x2dd0] sm:$0xff]
    %v1527 = vld [vmem:[#allocation2 + $0x2dd8] sm:$0xff]
    %v1528 = vld [vmem:[#allocation2 + $0x2de0] sm:$0xff]
    %v1529 = vld [vmem:[#allocation2 + $0x2de8] sm:$0xff]
    %v1530 = vld [vmem:[#allocation2 + $0x2df0] sm:$0xff]
    %v1531 = vld [vmem:[#allocation2 + $0x2df8] sm:$0xff]
    %v1532 = vld [vmem:[#allocation2 + $0x2e00] sm:$0xff]
    %v1533 = vld [vmem:[#allocation2 + $0x2e08] sm:$0xff]
    %v1534 = vld [vmem:[#allocation2 + $0x2e10] sm:$0xff]
    %v1535 = vld [vmem:[#allocation2 + $0x2e18] sm:$0xff]
    %v1536 = vld [vmem:[#allocation2 + $0x2e20] sm:$0xff]
    %v1537 = vld [vmem:[#allocation2 + $0x2e28] sm:$0xff]
    %v1538 = vld [vmem:[#allocation2 + $0x2e30] sm:$0xff]
    %v1539 = vld [vmem:[#allocation2 + $0x2e38] sm:$0xff]
    %v1540 = vld [vmem:[#allocation2 + $0x2e40] sm:$0xff]
    %v1541 = vld [vmem:[#allocation2 + $0x2e48] sm:$0xff]
    %v1542 = vld [vmem:[#allocation2 + $0x2e50] sm:$0xff]
    %v1543 = vld [vmem:[#allocation2 + $0x2e58] sm:$0xff]
    %v1544 = vld [vmem:[#allocation2 + $0x2e60] sm:$0xff]
    %v1545 = vld [vmem:[#allocation2 + $0x2e68] sm:$0xff]
    %v1546 = vld [vmem:[#allocation2 + $0x2e70] sm:$0xff]
    %v1547 = vld [vmem:[#allocation2 + $0x2e78] sm:$0xff]
    %v1548 = vld [vmem:[#allocation2 + $0x2e80] sm:$0xff]
    %v1549 = vld [vmem:[#allocation2 + $0x2e88] sm:$0xff]
    %v1550 = vld [vmem:[#allocation2 + $0x2e90] sm:$0xff]
    %v1551 = vld [vmem:[#allocation2 + $0x2e98] sm:$0xff]
    %v1552 = vld [vmem:[#allocation2 + $0x2ea0] sm:$0xff]
    %v1553 = vld [vmem:[#allocation2 + $0x2ea8] sm:$0xff]
    %v1554 = vld [vmem:[#allocation2 + $0x2eb0] sm:$0xff]
    %v1555 = vld [vmem:[#allocation2 + $0x2eb8] sm:$0xff]
    %v1556 = vld [vmem:[#allocation2 + $0x2ec0] sm:$0xff]
    %v1557 = vld [vmem:[#allocation2 + $0x2ec8] sm:$0xff]
    %v1558 = vld [vmem:[#allocation2 + $0x2ed0] sm:$0xff]
    %v1559 = vld [vmem:[#allocation2 + $0x2ed8] sm:$0xff]
    %v1560 = vld [vmem:[#allocation2 + $0x2ee0] sm:$0xff]
    %v1561 = vld [vmem:[#allocation2 + $0x2ee8] sm:$0xff]
    %v1562 = vld [vmem:[#allocation2 + $0x2ef0] sm:$0xff]
    %v1563 = vld [vmem:[#allocation2 + $0x2ef8] sm:$0xff]
    %v1564 = vld [vmem:[#allocation2 + $0x2f00] sm:$0xff]
    %v1565 = vld [vmem:[#allocation2 + $0x2f08] sm:$0xff]
    %v1566 = vld [vmem:[#allocation2 + $0x2f10] sm:$0xff]
    %v1567 = vld [vmem:[#allocation2 + $0x2f18] sm:$0xff]
    %v1568 = vld [vmem:[#allocation2 + $0x2f20] sm:$0xff]
    %v1569 = vld [vmem:[#allocation2 + $0x2f28] sm:$0xff]
    %v1570 = vld [vmem:[#allocation2 + $0x2f30] sm:$0xff]
    %v1571 = vld [vmem:[#allocation2 + $0x2f38] sm:$0xff]
    %v1572 = vld [vmem:[#allocation2 + $0x2f40] sm:$0xff]
    %v1573 = vld [vmem:[#allocation2 + $0x2f48] sm:$0xff]
    %v1574 = vld [vmem:[#allocation2 + $0x2f50] sm:$0xff]
    %v1575 = vld [vmem:[#allocation2 + $0x2f58] sm:$0xff]
    %v1576 = vld [vmem:[#allocation2 + $0x2f60] sm:$0xff]
    %v1577 = vld [vmem:[#allocation2 + $0x2f68] sm:$0xff]
    %v1578 = vld [vmem:[#allocation2 + $0x2f70] sm:$0xff]
    %v1579 = vld [vmem:[#allocation2 + $0x2f78] sm:$0xff]
    %v1580 = vld [vmem:[#allocation2 + $0x2f80] sm:$0xff]
    %v1581 = vld [vmem:[#allocation2 + $0x2f88] sm:$0xff]
    %v1582 = vld [vmem:[#allocation2 + $0x2f90] sm:$0xff]
    %v1583 = vld [vmem:[#allocation2 + $0x2f98] sm:$0xff]
    %v1584 = vld [vmem:[#allocation2 + $0x2fa0] sm:$0xff]
    %v1585 = vld [vmem:[#allocation2 + $0x2fa8] sm:$0xff]
    %v1586 = vld [vmem:[#allocation2 + $0x2fb0] sm:$0xff]
    %v1587 = vld [vmem:[#allocation2 + $0x2fb8] sm:$0xff]
    %v1588 = vld [vmem:[#allocation2 + $0x2fc0] sm:$0xff]
    %v1589 = vld [vmem:[#allocation2 + $0x2fc8] sm:$0xff]
    %v1590 = vld [vmem:[#allocation2 + $0x2fd0] sm:$0xff]
    %v1591 = vld [vmem:[#allocation2 + $0x2fd8] sm:$0xff]
    %v1592 = vld [vmem:[#allocation2 + $0x2fe0] sm:$0xff]
    %v1593 = vld [vmem:[#allocation2 + $0x2fe8] sm:$0xff]
    %v1594 = vld [vmem:[#allocation2 + $0x2ff0] sm:$0xff]
    %v1595 = vld [vmem:[#allocation2 + $0x2ff8] sm:$0xff]
    %v1596 = vld [vmem:[#allocation2 + $0x3000] sm:$0xff]
    %v1597 = vld [vmem:[#allocation2 + $0x3008] sm:$0xff]
    %v1598 = vld [vmem:[#allocation2 + $0x3010] sm:$0xff]
    %v1599 = vld [vmem:[#allocation2 + $0x3018] sm:$0xff]
    %v1600 = vld [vmem:[#allocation2 + $0x3020] sm:$0xff]
    %v1601 = vld [vmem:[#allocation2 + $0x3028] sm:$0xff]
    %v1602 = vld [vmem:[#allocation2 + $0x3030] sm:$0xff]
    %v1603 = vld [vmem:[#allocation2 + $0x3038] sm:$0xff]
    %v1604 = vld [vmem:[#allocation2 + $0x3040] sm:$0xff]
    %v1605 = vld [vmem:[#allocation2 + $0x3048] sm:$0xff]
    %v1606 = vld [vmem:[#allocation2 + $0x3050] sm:$0xff]
    %v1607 = vld [vmem:[#allocation2 + $0x3058] sm:$0xff]
    %v1608 = vld [vmem:[#allocation2 + $0x3060] sm:$0xff]
    %v1609 = vld [vmem:[#allocation2 + $0x3068] sm:$0xff]
    %v1610 = vld [vmem:[#allocation2 + $0x3070] sm:$0xff]
    %v1611 = vld [vmem:[#allocation2 + $0x3078] sm:$0xff]
    %v1612 = vld [vmem:[#allocation2 + $0x3080] sm:$0xff]
    %v1613 = vld [vmem:[#allocation2 + $0x3088] sm:$0xff]
    %v1614 = vld [vmem:[#allocation2 + $0x3090] sm:$0xff]
    %v1615 = vld [vmem:[#allocation2 + $0x3098] sm:$0xff]
    %v1616 = vld [vmem:[#allocation2 + $0x30a0] sm:$0xff]
    %v1617 = vld [vmem:[#allocation2 + $0x30a8] sm:$0xff]
    %v1618 = vld [vmem:[#allocation2 + $0x30b0] sm:$0xff]
    %v1619 = vld [vmem:[#allocation2 + $0x30b8] sm:$0xff]
    %v1620 = vld [vmem:[#allocation2 + $0x30c0] sm:$0xff]
    %v1621 = vld [vmem:[#allocation2 + $0x30c8] sm:$0xff]
    %v1622 = vld [vmem:[#allocation2 + $0x30d0] sm:$0xff]
    %v1623 = vld [vmem:[#allocation2 + $0x30d8] sm:$0xff]
    %v1624 = vld [vmem:[#allocation2 + $0x30e0] sm:$0xff]
    %v1625 = vld [vmem:[#allocation2 + $0x30e8] sm:$0xff]
    %v1626 = vld [vmem:[#allocation2 + $0x30f0] sm:$0xff]
    %v1627 = vld [vmem:[#allocation2 + $0x30f8] sm:$0xff]
    %v1628 = vld [vmem:[#allocation2 + $0x3100] sm:$0xff]
    %v1629 = vld [vmem:[#allocation2 + $0x3108] sm:$0xff]
    %v1630 = vld [vmem:[#allocation2 + $0x3110] sm:$0xff]
    %v1631 = vld [vmem:[#allocation2 + $0x3118] sm:$0xff]
    %v1632 = vld [vmem:[#allocation2 + $0x3120] sm:$0xff]
    %v1633 = vld [vmem:[#allocation2 + $0x3128] sm:$0xff]
    %v1634 = vld [vmem:[#allocation2 + $0x3130] sm:$0xff]
    %v1635 = vld [vmem:[#allocation2 + $0x3138] sm:$0xff]
    %v1636 = vld [vmem:[#allocation2 + $0x3140] sm:$0xff]
    %v1637 = vld [vmem:[#allocation2 + $0x3148] sm:$0xff]
    %v1638 = vld [vmem:[#allocation2 + $0x3150] sm:$0xff]
    %v1639 = vld [vmem:[#allocation2 + $0x3158] sm:$0xff]
    %v1640 = vld [vmem:[#allocation2 + $0x3160] sm:$0xff]
    %v1641 = vld [vmem:[#allocation2 + $0x3168] sm:$0xff]
    %v1642 = vld [vmem:[#allocation2 + $0x3170] sm:$0xff]
    %v1643 = vld [vmem:[#allocation2 + $0x3178] sm:$0xff]
    %v1644 = vld [vmem:[#allocation2 + $0x3180] sm:$0xff]
    %v1645 = vld [vmem:[#allocation2 + $0x3188] sm:$0xff]
    %v1646 = vld [vmem:[#allocation2 + $0x3190] sm:$0xff]
    %v1647 = vld [vmem:[#allocation2 + $0x3198] sm:$0xff]
    %v1648 = vld [vmem:[#allocation2 + $0x31a0] sm:$0xff]
    %v1649 = vld [vmem:[#allocation2 + $0x31a8] sm:$0xff]
    %v1650 = vld [vmem:[#allocation2 + $0x31b0] sm:$0xff]
    %v1651 = vld [vmem:[#allocation2 + $0x31b8] sm:$0xff]
    %v1652 = vld [vmem:[#allocation2 + $0x31c0] sm:$0xff]
    %v1653 = vld [vmem:[#allocation2 + $0x31c8] sm:$0xff]
    %v1654 = vld [vmem:[#allocation2 + $0x31d0] sm:$0xff]
    %v1655 = vld [vmem:[#allocation2 + $0x31d8] sm:$0xff]
    %v1656 = vld [vmem:[#allocation2 + $0x31e0] sm:$0xff]
    %v1657 = vld [vmem:[#allocation2 + $0x31e8] sm:$0xff]
    %v1658 = vld [vmem:[#allocation2 + $0x31f0] sm:$0xff]
    %v1659 = vld [vmem:[#allocation2 + $0x31f8] sm:$0xff]
    %v1660 = vld [vmem:[%s2] sm:$0xff]
    %v1661 = vld [vmem:[%s2 + $0x8] sm:$0xff]
    %v1662 = vld [vmem:[%s2 + $0x10] sm:$0xf]
    %v1666 = vperm.slane %v1660, 0
    %v1667 = vperm.slane %v1660, 1
    %v1668 = vperm.slane %v1660, 2
    %v1669 = vperm.slane %v1660, 3
    %v1670 = vperm.slane %v1660, 4
    %v1671 = vperm.slane %v1660, 5
    %v1672 = vperm.slane %v1660, 6
    %v1673 = vperm.slane %v1660, 7
    %v1674 = vperm.slane %v1661, 0
    %v1675 = vperm.slane %v1661, 1
    %v1676 = vperm.slane %v1661, 2
    %v1677 = vperm.slane %v1661, 3
    %v1678 = vperm.slane %v1661, 4
    %v1679 = vperm.slane %v1661, 5
    %v1680 = vperm.slane %v1661, 6
    %v1681 = vperm.slane %v1661, 7
    %v1682 = vperm.slane %v1662, 0
    %v1683 = vperm.slane %v1662, 1
    %v1684 = vperm.slane %v1662, 2
    %v1685 = vperm.slane %v1662, 3
    %v1716 = vunpack.c.l.b16 %v50
    %v1717 = vunpack.c.h.b16 %v50
    %v1718 = vunpack.c.l.b16 %v51
    %v1719 = vunpack.c.h.b16 %v51
    %v1720 = vunpack.c.l.b16 %v52
    %v1721 = vunpack.c.h.b16 %v52
    %v1722 = vunpack.c.l.b16 %v53
    %v1723 = vunpack.c.h.b16 %v53
    %v1724 = vunpack.c.l.b16 %v54
    %v1725 = vunpack.c.h.b16 %v54
    %v1726 = vunpack.c.l.b16 %v55
    %v1727 = vunpack.c.h.b16 %v55
    %v1728 = vunpack.c.l.b16 %v56
    %v1729 = vunpack.c.h.b16 %v56
    %v1730 = vunpack.c.l.b16 %v57
    %v1731 = vunpack.c.h.b16 %v57
    %v1732 = vunpack.c.l.b16 %v58
    %v1733 = vunpack.c.h.b16 %v58
    %v1734 = vunpack.c.l.b16 %v59
    %v1735 = vunpack.c.h.b16 %v59
    %v1736 = vpack.c.b16 %v1726, %v1716
    %v1737 = vpack.c.b16 %v1727, %v1717
    %v1738 = vpack.c.b16 %v1728, %v1718
    %v1739 = vpack.c.b16 %v1729, %v1719
    %v1740 = vpack.c.b16 %v1730, %v1720
    %v1741 = vpack.c.b16 %v1731, %v1721
    %v1742 = vpack.c.b16 %v1732, %v1722
    %v1743 = vpack.c.b16 %v1733, %v1723
    %v1744 = vpack.c.b16 %v1734, %v1724
    %v1745 = vpack.c.b16 %v1735, %v1725
    %v3356 = vunpack.c.l.b16 %v60
    %v3357 = vunpack.c.h.b16 %v60
    %v3358 = vunpack.c.l.b16 %v61
    %v3359 = vunpack.c.h.b16 %v61
    %v3360 = vunpack.c.l.b16 %v62
    %v3361 = vunpack.c.h.b16 %v62
    %v3362 = vunpack.c.l.b16 %v63
    %v3363 = vunpack.c.h.b16 %v63
    %v3364 = vunpack.c.l.b16 %v64
    %v3365 = vunpack.c.h.b16 %v64
    %v3366 = vunpack.c.l.b16 %v65
    %v3367 = vunpack.c.h.b16 %v65
    %v3368 = vunpack.c.l.b16 %v66
    %v3369 = vunpack.c.h.b16 %v66
    %v3370 = vunpack.c.l.b16 %v67
    %v3371 = vunpack.c.h.b16 %v67
    %v3372 = vunpack.c.l.b16 %v68
    %v3373 = vunpack.c.h.b16 %v68
    %v3374 = vunpack.c.l.b16 %v69
    %v3375 = vunpack.c.h.b16 %v69
    %v3376 = vunpack.c.l.b16 %v70
    %v3377 = vunpack.c.h.b16 %v70
    %v3378 = vunpack.c.l.b16 %v71
    %v3379 = vunpack.c.h.b16 %v71
    %v3380 = vunpack.c.l.b16 %v72
    %v3381 = vunpack.c.h.b16 %v72
    %v3382 = vunpack.c.l.b16 %v73
    %v3383 = vunpack.c.h.b16 %v73
    %v3384 = vunpack.c.l.b16 %v74
    %v3385 = vunpack.c.h.b16 %v74
    %v3386 = vunpack.c.l.b16 %v75
    %v3387 = vunpack.c.h.b16 %v75
    %v3388 = vunpack.c.l.b16 %v76
    %v3389 = vunpack.c.h.b16 %v76
    %v3390 = vunpack.c.l.b16 %v77
    %v3391 = vunpack.c.h.b16 %v77
    %v3392 = vunpack.c.l.b16 %v78
    %v3393 = vunpack.c.h.b16 %v78
    %v3394 = vunpack.c.l.b16 %v79
    %v3395 = vunpack.c.h.b16 %v79
    %v3396 = vunpack.c.l.b16 %v80
    %v3397 = vunpack.c.h.b16 %v80
    %v3398 = vunpack.c.l.b16 %v81
    %v3399 = vunpack.c.h.b16 %v81
    %v3400 = vunpack.c.l.b16 %v82
    %v3401 = vunpack.c.h.b16 %v82
    %v3402 = vunpack.c.l.b16 %v83
    %v3403 = vunpack.c.h.b16 %v83
    %v3404 = vunpack.c.l.b16 %v84
    %v3405 = vunpack.c.h.b16 %v84
    %v3406 = vunpack.c.l.b16 %v85
    %v3407 = vunpack.c.h.b16 %v85
    %v3408 = vunpack.c.l.b16 %v86
    %v3409 = vunpack.c.h.b16 %v86
    %v3410 = vunpack.c.l.b16 %v87
    %v3411 = vunpack.c.h.b16 %v87
    %v3412 = vunpack.c.l.b16 %v88
    %v3413 = vunpack.c.h.b16 %v88
    %v3414 = vunpack.c.l.b16 %v89
    %v3415 = vunpack.c.h.b16 %v89
    %v3416 = vunpack.c.l.b16 %v90
    %v3417 = vunpack.c.h.b16 %v90
    %v3418 = vunpack.c.l.b16 %v91
    %v3419 = vunpack.c.h.b16 %v91
    %v3420 = vunpack.c.l.b16 %v92
    %v3421 = vunpack.c.h.b16 %v92
    %v3422 = vunpack.c.l.b16 %v93
    %v3423 = vunpack.c.h.b16 %v93
    %v3424 = vunpack.c.l.b16 %v94
    %v3425 = vunpack.c.h.b16 %v94
    %v3426 = vunpack.c.l.b16 %v95
    %v3427 = vunpack.c.h.b16 %v95
    %v3428 = vunpack.c.l.b16 %v96
    %v3429 = vunpack.c.h.b16 %v96
    %v3430 = vunpack.c.l.b16 %v97
    %v3431 = vunpack.c.h.b16 %v97
    %v3432 = vunpack.c.l.b16 %v98
    %v3433 = vunpack.c.h.b16 %v98
    %v3434 = vunpack.c.l.b16 %v99
    %v3435 = vunpack.c.h.b16 %v99
    %v3436 = vunpack.c.l.b16 %v100
    %v3437 = vunpack.c.h.b16 %v100
    %v3438 = vunpack.c.l.b16 %v101
    %v3439 = vunpack.c.h.b16 %v101
    %v3440 = vunpack.c.l.b16 %v102
    %v3441 = vunpack.c.h.b16 %v102
    %v3442 = vunpack.c.l.b16 %v103
    %v3443 = vunpack.c.h.b16 %v103
    %v3444 = vunpack.c.l.b16 %v104
    %v3445 = vunpack.c.h.b16 %v104
    %v3446 = vunpack.c.l.b16 %v105
    %v3447 = vunpack.c.h.b16 %v105
    %v3448 = vunpack.c.l.b16 %v106
    %v3449 = vunpack.c.h.b16 %v106
    %v3450 = vunpack.c.l.b16 %v107
    %v3451 = vunpack.c.h.b16 %v107
    %v3452 = vunpack.c.l.b16 %v108
    %v3453 = vunpack.c.h.b16 %v108
    %v3454 = vunpack.c.l.b16 %v109
    %v3455 = vunpack.c.h.b16 %v109
    %v3456 = vunpack.c.l.b16 %v110
    %v3457 = vunpack.c.h.b16 %v110
    %v3458 = vunpack.c.l.b16 %v111
    %v3459 = vunpack.c.h.b16 %v111
    %v3460 = vunpack.c.l.b16 %v112
    %v3461 = vunpack.c.h.b16 %v112
    %v3462 = vunpack.c.l.b16 %v113
    %v3463 = vunpack.c.h.b16 %v113
    %v3464 = vunpack.c.l.b16 %v114
    %v3465 = vunpack.c.h.b16 %v114
    %v3466 = vunpack.c.l.b16 %v115
    %v3467 = vunpack.c.h.b16 %v115
    %v3468 = vunpack.c.l.b16 %v116
    %v3469 = vunpack.c.h.b16 %v116
    %v3470 = vunpack.c.l.b16 %v117
    %v3471 = vunpack.c.h.b16 %v117
    %v3472 = vunpack.c.l.b16 %v118
    %v3473 = vunpack.c.h.b16 %v118
    %v3474 = vunpack.c.l.b16 %v119
    %v3475 = vunpack.c.h.b16 %v119
    %v3476 = vunpack.c.l.b16 %v120
    %v3477 = vunpack.c.h.b16 %v120
    %v3478 = vunpack.c.l.b16 %v121
    %v3479 = vunpack.c.h.b16 %v121
    %v3480 = vunpack.c.l.b16 %v122
    %v3481 = vunpack.c.h.b16 %v122
    %v3482 = vunpack.c.l.b16 %v123
    %v3483 = vunpack.c.h.b16 %v123
    %v3484 = vunpack.c.l.b16 %v124
    %v3485 = vunpack.c.h.b16 %v124
    %v3486 = vunpack.c.l.b16 %v125
    %v3487 = vunpack.c.h.b16 %v125
    %v3488 = vunpack.c.l.b16 %v126
    %v3489 = vunpack.c.h.b16 %v126
    %v3490 = vunpack.c.l.b16 %v127
    %v3491 = vunpack.c.h.b16 %v127
    %v3492 = vunpack.c.l.b16 %v128
    %v3493 = vunpack.c.h.b16 %v128
    %v3494 = vunpack.c.l.b16 %v129
    %v3495 = vunpack.c.h.b16 %v129
    %v3496 = vunpack.c.l.b16 %v130
    %v3497 = vunpack.c.h.b16 %v130
    %v3498 = vunpack.c.l.b16 %v131
    %v3499 = vunpack.c.h.b16 %v131
    %v3500 = vunpack.c.l.b16 %v132
    %v3501 = vunpack.c.h.b16 %v132
    %v3502 = vunpack.c.l.b16 %v133
    %v3503 = vunpack.c.h.b16 %v133
    %v3504 = vunpack.c.l.b16 %v134
    %v3505 = vunpack.c.h.b16 %v134
    %v3506 = vunpack.c.l.b16 %v135
    %v3507 = vunpack.c.h.b16 %v135
    %v3508 = vunpack.c.l.b16 %v136
    %v3509 = vunpack.c.h.b16 %v136
    %v3510 = vunpack.c.l.b16 %v137
    %v3511 = vunpack.c.h.b16 %v137
    %v3512 = vunpack.c.l.b16 %v138
    %v3513 = vunpack.c.h.b16 %v138
    %v3514 = vunpack.c.l.b16 %v139
    %v3515 = vunpack.c.h.b16 %v139
    %v3516 = vunpack.c.l.b16 %v140
    %v3517 = vunpack.c.h.b16 %v140
    %v3518 = vunpack.c.l.b16 %v141
    %v3519 = vunpack.c.h.b16 %v141
    %v3520 = vunpack.c.l.b16 %v142
    %v3521 = vunpack.c.h.b16 %v142
    %v3522 = vunpack.c.l.b16 %v143
    %v3523 = vunpack.c.h.b16 %v143
    %v3524 = vunpack.c.l.b16 %v144
    %v3525 = vunpack.c.h.b16 %v144
    %v3526 = vunpack.c.l.b16 %v145
    %v3527 = vunpack.c.h.b16 %v145
    %v3528 = vunpack.c.l.b16 %v146
    %v3529 = vunpack.c.h.b16 %v146
    %v3530 = vunpack.c.l.b16 %v147
    %v3531 = vunpack.c.h.b16 %v147
    %v3532 = vunpack.c.l.b16 %v148
    %v3533 = vunpack.c.h.b16 %v148
    %v3534 = vunpack.c.l.b16 %v149
    %v3535 = vunpack.c.h.b16 %v149
    %v3536 = vunpack.c.l.b16 %v150
    %v3537 = vunpack.c.h.b16 %v150
    %v3538 = vunpack.c.l.b16 %v151
    %v3539 = vunpack.c.h.b16 %v151
    %v3540 = vunpack.c.l.b16 %v152
    %v3541 = vunpack.c.h.b16 %v152
    %v3542 = vunpack.c.l.b16 %v153
    %v3543 = vunpack.c.h.b16 %v153
    %v3544 = vunpack.c.l.b16 %v154
    %v3545 = vunpack.c.h.b16 %v154
    %v3546 = vunpack.c.l.b16 %v155
    %v3547 = vunpack.c.h.b16 %v155
    %v3548 = vunpack.c.l.b16 %v156
    %v3549 = vunpack.c.h.b16 %v156
    %v3550 = vunpack.c.l.b16 %v157
    %v3551 = vunpack.c.h.b16 %v157
    %v3552 = vunpack.c.l.b16 %v158
    %v3553 = vunpack.c.h.b16 %v158
    %v3554 = vunpack.c.l.b16 %v159
    %v3555 = vunpack.c.h.b16 %v159
    %v3556 = vunpack.c.l.b16 %v160
    %v3557 = vunpack.c.h.b16 %v160
    %v3558 = vunpack.c.l.b16 %v161
    %v3559 = vunpack.c.h.b16 %v161
    %v3560 = vunpack.c.l.b16 %v162
    %v3561 = vunpack.c.h.b16 %v162
    %v3562 = vunpack.c.l.b16 %v163
    %v3563 = vunpack.c.h.b16 %v163
    %v3564 = vunpack.c.l.b16 %v164
    %v3565 = vunpack.c.h.b16 %v164
    %v3566 = vunpack.c.l.b16 %v165
    %v3567 = vunpack.c.h.b16 %v165
    %v3568 = vunpack.c.l.b16 %v166
    %v3569 = vunpack.c.h.b16 %v166
    %v3570 = vunpack.c.l.b16 %v167
    %v3571 = vunpack.c.h.b16 %v167
    %v3572 = vunpack.c.l.b16 %v168
    %v3573 = vunpack.c.h.b16 %v168
    %v3574 = vunpack.c.l.b16 %v169
    %v3575 = vunpack.c.h.b16 %v169
    %v3576 = vunpack.c.l.b16 %v170
    %v3577 = vunpack.c.h.b16 %v170
    %v3578 = vunpack.c.l.b16 %v171
    %v3579 = vunpack.c.h.b16 %v171
    %v3580 = vunpack.c.l.b16 %v172
    %v3581 = vunpack.c.h.b16 %v172
    %v3582 = vunpack.c.l.b16 %v173
    %v3583 = vunpack.c.h.b16 %v173
    %v3584 = vunpack.c.l.b16 %v174
    %v3585 = vunpack.c.h.b16 %v174
    %v3586 = vunpack.c.l.b16 %v175
    %v3587 = vunpack.c.h.b16 %v175
    %v3588 = vunpack.c.l.b16 %v176
    %v3589 = vunpack.c.h.b16 %v176
    %v3590 = vunpack.c.l.b16 %v177
    %v3591 = vunpack.c.h.b16 %v177
    %v3592 = vunpack.c.l.b16 %v178
    %v3593 = vunpack.c.h.b16 %v178
    %v3594 = vunpack.c.l.b16 %v179
    %v3595 = vunpack.c.h.b16 %v179
    %v3596 = vunpack.c.l.b16 %v180
    %v3597 = vunpack.c.h.b16 %v180
    %v3598 = vunpack.c.l.b16 %v181
    %v3599 = vunpack.c.h.b16 %v181
    %v3600 = vunpack.c.l.b16 %v182
    %v3601 = vunpack.c.h.b16 %v182
    %v3602 = vunpack.c.l.b16 %v183
    %v3603 = vunpack.c.h.b16 %v183
    %v3604 = vunpack.c.l.b16 %v184
    %v3605 = vunpack.c.h.b16 %v184
    %v3606 = vunpack.c.l.b16 %v185
    %v3607 = vunpack.c.h.b16 %v185
    %v3608 = vunpack.c.l.b16 %v186
    %v3609 = vunpack.c.h.b16 %v186
    %v3610 = vunpack.c.l.b16 %v187
    %v3611 = vunpack.c.h.b16 %v187
    %v3612 = vunpack.c.l.b16 %v188
    %v3613 = vunpack.c.h.b16 %v188
    %v3614 = vunpack.c.l.b16 %v189
    %v3615 = vunpack.c.h.b16 %v189
    %v3616 = vunpack.c.l.b16 %v190
    %v3617 = vunpack.c.h.b16 %v190
    %v3618 = vunpack.c.l.b16 %v191
    %v3619 = vunpack.c.h.b16 %v191
    %v3620 = vunpack.c.l.b16 %v192
    %v3621 = vunpack.c.h.b16 %v192
    %v3622 = vunpack.c.l.b16 %v193
    %v3623 = vunpack.c.h.b16 %v193
    %v3624 = vunpack.c.l.b16 %v194
    %v3625 = vunpack.c.h.b16 %v194
    %v3626 = vunpack.c.l.b16 %v195
    %v3627 = vunpack.c.h.b16 %v195
    %v3628 = vunpack.c.l.b16 %v196
    %v3629 = vunpack.c.h.b16 %v196
    %v3630 = vunpack.c.l.b16 %v197
    %v3631 = vunpack.c.h.b16 %v197
    %v3632 = vunpack.c.l.b16 %v198
    %v3633 = vunpack.c.h.b16 %v198
    %v3634 = vunpack.c.l.b16 %v199
    %v3635 = vunpack.c.h.b16 %v199
    %v3636 = vunpack.c.l.b16 %v200
    %v3637 = vunpack.c.h.b16 %v200
    %v3638 = vunpack.c.l.b16 %v201
    %v3639 = vunpack.c.h.b16 %v201
    %v3640 = vunpack.c.l.b16 %v202
    %v3641 = vunpack.c.h.b16 %v202
    %v3642 = vunpack.c.l.b16 %v203
    %v3643 = vunpack.c.h.b16 %v203
    %v3644 = vunpack.c.l.b16 %v204
    %v3645 = vunpack.c.h.b16 %v204
    %v3646 = vunpack.c.l.b16 %v205
    %v3647 = vunpack.c.h.b16 %v205
    %v3648 = vunpack.c.l.b16 %v206
    %v3649 = vunpack.c.h.b16 %v206
    %v3650 = vunpack.c.l.b16 %v207
    %v3651 = vunpack.c.h.b16 %v207
    %v3652 = vunpack.c.l.b16 %v208
    %v3653 = vunpack.c.h.b16 %v208
    %v3654 = vunpack.c.l.b16 %v209
    %v3655 = vunpack.c.h.b16 %v209
    %v3656 = vunpack.c.l.b16 %v210
    %v3657 = vunpack.c.h.b16 %v210
    %v3658 = vunpack.c.l.b16 %v211
    %v3659 = vunpack.c.h.b16 %v211
    %v3660 = vunpack.c.l.b16 %v212
    %v3661 = vunpack.c.h.b16 %v212
    %v3662 = vunpack.c.l.b16 %v213
    %v3663 = vunpack.c.h.b16 %v213
    %v3664 = vunpack.c.l.b16 %v214
    %v3665 = vunpack.c.h.b16 %v214
    %v3666 = vunpack.c.l.b16 %v215
    %v3667 = vunpack.c.h.b16 %v215
    %v3668 = vunpack.c.l.b16 %v216
    %v3669 = vunpack.c.h.b16 %v216
    %v3670 = vunpack.c.l.b16 %v217
    %v3671 = vunpack.c.h.b16 %v217
    %v3672 = vunpack.c.l.b16 %v218
    %v3673 = vunpack.c.h.b16 %v218
    %v3674 = vunpack.c.l.b16 %v219
    %v3675 = vunpack.c.h.b16 %v219
    %v3676 = vunpack.c.l.b16 %v220
    %v3677 = vunpack.c.h.b16 %v220
    %v3678 = vunpack.c.l.b16 %v221
    %v3679 = vunpack.c.h.b16 %v221
    %v3680 = vunpack.c.l.b16 %v222
    %v3681 = vunpack.c.h.b16 %v222
    %v3682 = vunpack.c.l.b16 %v223
    %v3683 = vunpack.c.h.b16 %v223
    %v3684 = vunpack.c.l.b16 %v224
    %v3685 = vunpack.c.h.b16 %v224
    %v3686 = vunpack.c.l.b16 %v225
    %v3687 = vunpack.c.h.b16 %v225
    %v3688 = vunpack.c.l.b16 %v226
    %v3689 = vunpack.c.h.b16 %v226
    %v3690 = vunpack.c.l.b16 %v227
    %v3691 = vunpack.c.h.b16 %v227
    %v3692 = vunpack.c.l.b16 %v228
    %v3693 = vunpack.c.h.b16 %v228
    %v3694 = vunpack.c.l.b16 %v229
    %v3695 = vunpack.c.h.b16 %v229
    %v3696 = vunpack.c.l.b16 %v230
    %v3697 = vunpack.c.h.b16 %v230
    %v3698 = vunpack.c.l.b16 %v231
    %v3699 = vunpack.c.h.b16 %v231
    %v3700 = vunpack.c.l.b16 %v232
    %v3701 = vunpack.c.h.b16 %v232
    %v3702 = vunpack.c.l.b16 %v233
    %v3703 = vunpack.c.h.b16 %v233
    %v3704 = vunpack.c.l.b16 %v234
    %v3705 = vunpack.c.h.b16 %v234
    %v3706 = vunpack.c.l.b16 %v235
    %v3707 = vunpack.c.h.b16 %v235
    %v3708 = vunpack.c.l.b16 %v236
    %v3709 = vunpack.c.h.b16 %v236
    %v3710 = vunpack.c.l.b16 %v237
    %v3711 = vunpack.c.h.b16 %v237
    %v3712 = vunpack.c.l.b16 %v238
    %v3713 = vunpack.c.h.b16 %v238
    %v3714 = vunpack.c.l.b16 %v239
    %v3715 = vunpack.c.h.b16 %v239
    %v3716 = vunpack.c.l.b16 %v240
    %v3717 = vunpack.c.h.b16 %v240
    %v3718 = vunpack.c.l.b16 %v241
    %v3719 = vunpack.c.h.b16 %v241
    %v3720 = vunpack.c.l.b16 %v242
    %v3721 = vunpack.c.h.b16 %v242
    %v3722 = vunpack.c.l.b16 %v243
    %v3723 = vunpack.c.h.b16 %v243
    %v3724 = vunpack.c.l.b16 %v244
    %v3725 = vunpack.c.h.b16 %v244
    %v3726 = vunpack.c.l.b16 %v245
    %v3727 = vunpack.c.h.b16 %v245
    %v3728 = vunpack.c.l.b16 %v246
    %v3729 = vunpack.c.h.b16 %v246
    %v3730 = vunpack.c.l.b16 %v247
    %v3731 = vunpack.c.h.b16 %v247
    %v3732 = vunpack.c.l.b16 %v248
    %v3733 = vunpack.c.h.b16 %v248
    %v3734 = vunpack.c.l.b16 %v249
    %v3735 = vunpack.c.h.b16 %v249
    %v3736 = vunpack.c.l.b16 %v250
    %v3737 = vunpack.c.h.b16 %v250
    %v3738 = vunpack.c.l.b16 %v251
    %v3739 = vunpack.c.h.b16 %v251
    %v3740 = vunpack.c.l.b16 %v252
    %v3741 = vunpack.c.h.b16 %v252
    %v3742 = vunpack.c.l.b16 %v253
    %v3743 = vunpack.c.h.b16 %v253
    %v3744 = vunpack.c.l.b16 %v254
    %v3745 = vunpack.c.h.b16 %v254
    %v3746 = vunpack.c.l.b16 %v255
    %v3747 = vunpack.c.h.b16 %v255
    %v3748 = vunpack.c.l.b16 %v256
    %v3749 = vunpack.c.h.b16 %v256
    %v3750 = vunpack.c.l.b16 %v257
    %v3751 = vunpack.c.h.b16 %v257
    %v3752 = vunpack.c.l.b16 %v258
    %v3753 = vunpack.c.h.b16 %v258
    %v3754 = vunpack.c.l.b16 %v259
    %v3755 = vunpack.c.h.b16 %v259
    %v3756 = vunpack.c.l.b16 %v260
    %v3757 = vunpack.c.h.b16 %v260
    %v3758 = vunpack.c.l.b16 %v261
    %v3759 = vunpack.c.h.b16 %v261
    %v3760 = vunpack.c.l.b16 %v262
    %v3761 = vunpack.c.h.b16 %v262
    %v3762 = vunpack.c.l.b16 %v263
    %v3763 = vunpack.c.h.b16 %v263
    %v3764 = vunpack.c.l.b16 %v264
    %v3765 = vunpack.c.h.b16 %v264
    %v3766 = vunpack.c.l.b16 %v265
    %v3767 = vunpack.c.h.b16 %v265
    %v3768 = vunpack.c.l.b16 %v266
    %v3769 = vunpack.c.h.b16 %v266
    %v3770 = vunpack.c.l.b16 %v267
    %v3771 = vunpack.c.h.b16 %v267
    %v3772 = vunpack.c.l.b16 %v268
    %v3773 = vunpack.c.h.b16 %v268
    %v3774 = vunpack.c.l.b16 %v269
    %v3775 = vunpack.c.h.b16 %v269
    %v3776 = vunpack.c.l.b16 %v270
    %v3777 = vunpack.c.h.b16 %v270
    %v3778 = vunpack.c.l.b16 %v271
    %v3779 = vunpack.c.h.b16 %v271
    %v3780 = vunpack.c.l.b16 %v272
    %v3781 = vunpack.c.h.b16 %v272
    %v3782 = vunpack.c.l.b16 %v273
    %v3783 = vunpack.c.h.b16 %v273
    %v3784 = vunpack.c.l.b16 %v274
    %v3785 = vunpack.c.h.b16 %v274
    %v3786 = vunpack.c.l.b16 %v275
    %v3787 = vunpack.c.h.b16 %v275
    %v3788 = vunpack.c.l.b16 %v276
    %v3789 = vunpack.c.h.b16 %v276
    %v3790 = vunpack.c.l.b16 %v277
    %v3791 = vunpack.c.h.b16 %v277
    %v3792 = vunpack.c.l.b16 %v278
    %v3793 = vunpack.c.h.b16 %v278
    %v3794 = vunpack.c.l.b16 %v279
    %v3795 = vunpack.c.h.b16 %v279
    %v3796 = vunpack.c.l.b16 %v280
    %v3797 = vunpack.c.h.b16 %v280
    %v3798 = vunpack.c.l.b16 %v281
    %v3799 = vunpack.c.h.b16 %v281
    %v3800 = vunpack.c.l.b16 %v282
    %v3801 = vunpack.c.h.b16 %v282
    %v3802 = vunpack.c.l.b16 %v283
    %v3803 = vunpack.c.h.b16 %v283
    %v3804 = vunpack.c.l.b16 %v284
    %v3805 = vunpack.c.h.b16 %v284
    %v3806 = vunpack.c.l.b16 %v285
    %v3807 = vunpack.c.h.b16 %v285
    %v3808 = vunpack.c.l.b16 %v286
    %v3809 = vunpack.c.h.b16 %v286
    %v3810 = vunpack.c.l.b16 %v287
    %v3811 = vunpack.c.h.b16 %v287
    %v3812 = vunpack.c.l.b16 %v288
    %v3813 = vunpack.c.h.b16 %v288
    %v3814 = vunpack.c.l.b16 %v289
    %v3815 = vunpack.c.h.b16 %v289
    %v3816 = vunpack.c.l.b16 %v290
    %v3817 = vunpack.c.h.b16 %v290
    %v3818 = vunpack.c.l.b16 %v291
    %v3819 = vunpack.c.h.b16 %v291
    %v3820 = vunpack.c.l.b16 %v292
    %v3821 = vunpack.c.h.b16 %v292
    %v3822 = vunpack.c.l.b16 %v293
    %v3823 = vunpack.c.h.b16 %v293
    %v3824 = vunpack.c.l.b16 %v294
    %v3825 = vunpack.c.h.b16 %v294
    %v3826 = vunpack.c.l.b16 %v295
    %v3827 = vunpack.c.h.b16 %v295
    %v3828 = vunpack.c.l.b16 %v296
    %v3829 = vunpack.c.h.b16 %v296
    %v3830 = vunpack.c.l.b16 %v297
    %v3831 = vunpack.c.h.b16 %v297
    %v3832 = vunpack.c.l.b16 %v298
    %v3833 = vunpack.c.h.b16 %v298
    %v3834 = vunpack.c.l.b16 %v299
    %v3835 = vunpack.c.h.b16 %v299
    %v3836 = vunpack.c.l.b16 %v300
    %v3837 = vunpack.c.h.b16 %v300
    %v3838 = vunpack.c.l.b16 %v301
    %v3839 = vunpack.c.h.b16 %v301
    %v3840 = vunpack.c.l.b16 %v302
    %v3841 = vunpack.c.h.b16 %v302
    %v3842 = vunpack.c.l.b16 %v303
    %v3843 = vunpack.c.h.b16 %v303
    %v3844 = vunpack.c.l.b16 %v304
    %v3845 = vunpack.c.h.b16 %v304
    %v3846 = vunpack.c.l.b16 %v305
    %v3847 = vunpack.c.h.b16 %v305
    %v3848 = vunpack.c.l.b16 %v306
    %v3849 = vunpack.c.h.b16 %v306
    %v3850 = vunpack.c.l.b16 %v307
    %v3851 = vunpack.c.h.b16 %v307
    %v3852 = vunpack.c.l.b16 %v308
    %v3853 = vunpack.c.h.b16 %v308
    %v3854 = vunpack.c.l.b16 %v309
    %v3855 = vunpack.c.h.b16 %v309
    %v3856 = vunpack.c.l.b16 %v310
    %v3857 = vunpack.c.h.b16 %v310
    %v3858 = vunpack.c.l.b16 %v311
    %v3859 = vunpack.c.h.b16 %v311
    %v3860 = vunpack.c.l.b16 %v312
    %v3861 = vunpack.c.h.b16 %v312
    %v3862 = vunpack.c.l.b16 %v313
    %v3863 = vunpack.c.h.b16 %v313
    %v3864 = vunpack.c.l.b16 %v314
    %v3865 = vunpack.c.h.b16 %v314
    %v3866 = vunpack.c.l.b16 %v315
    %v3867 = vunpack.c.h.b16 %v315
    %v3868 = vunpack.c.l.b16 %v316
    %v3869 = vunpack.c.h.b16 %v316
    %v3870 = vunpack.c.l.b16 %v317
    %v3871 = vunpack.c.h.b16 %v317
    %v3872 = vunpack.c.l.b16 %v318
    %v3873 = vunpack.c.h.b16 %v318
    %v3874 = vunpack.c.l.b16 %v319
    %v3875 = vunpack.c.h.b16 %v319
    %v3876 = vunpack.c.l.b16 %v320
    %v3877 = vunpack.c.h.b16 %v320
    %v3878 = vunpack.c.l.b16 %v321
    %v3879 = vunpack.c.h.b16 %v321
    %v3880 = vunpack.c.l.b16 %v322
    %v3881 = vunpack.c.h.b16 %v322
    %v3882 = vunpack.c.l.b16 %v323
    %v3883 = vunpack.c.h.b16 %v323
    %v3884 = vunpack.c.l.b16 %v324
    %v3885 = vunpack.c.h.b16 %v324
    %v3886 = vunpack.c.l.b16 %v325
    %v3887 = vunpack.c.h.b16 %v325
    %v3888 = vunpack.c.l.b16 %v326
    %v3889 = vunpack.c.h.b16 %v326
    %v3890 = vunpack.c.l.b16 %v327
    %v3891 = vunpack.c.h.b16 %v327
    %v3892 = vunpack.c.l.b16 %v328
    %v3893 = vunpack.c.h.b16 %v328
    %v3894 = vunpack.c.l.b16 %v329
    %v3895 = vunpack.c.h.b16 %v329
    %v3896 = vunpack.c.l.b16 %v330
    %v3897 = vunpack.c.h.b16 %v330
    %v3898 = vunpack.c.l.b16 %v331
    %v3899 = vunpack.c.h.b16 %v331
    %v3900 = vunpack.c.l.b16 %v332
    %v3901 = vunpack.c.h.b16 %v332
    %v3902 = vunpack.c.l.b16 %v333
    %v3903 = vunpack.c.h.b16 %v333
    %v3904 = vunpack.c.l.b16 %v334
    %v3905 = vunpack.c.h.b16 %v334
    %v3906 = vunpack.c.l.b16 %v335
    %v3907 = vunpack.c.h.b16 %v335
    %v3908 = vunpack.c.l.b16 %v336
    %v3909 = vunpack.c.h.b16 %v336
    %v3910 = vunpack.c.l.b16 %v337
    %v3911 = vunpack.c.h.b16 %v337
    %v3912 = vunpack.c.l.b16 %v338
    %v3913 = vunpack.c.h.b16 %v338
    %v3914 = vunpack.c.l.b16 %v339
    %v3915 = vunpack.c.h.b16 %v339
    %v3916 = vunpack.c.l.b16 %v340
    %v3917 = vunpack.c.h.b16 %v340
    %v3918 = vunpack.c.l.b16 %v341
    %v3919 = vunpack.c.h.b16 %v341
    %v3920 = vunpack.c.l.b16 %v342
    %v3921 = vunpack.c.h.b16 %v342
    %v3922 = vunpack.c.l.b16 %v343
    %v3923 = vunpack.c.h.b16 %v343
    %v3924 = vunpack.c.l.b16 %v344
    %v3925 = vunpack.c.h.b16 %v344
    %v3926 = vunpack.c.l.b16 %v345
    %v3927 = vunpack.c.h.b16 %v345
    %v3928 = vunpack.c.l.b16 %v346
    %v3929 = vunpack.c.h.b16 %v346
    %v3930 = vunpack.c.l.b16 %v347
    %v3931 = vunpack.c.h.b16 %v347
    %v3932 = vunpack.c.l.b16 %v348
    %v3933 = vunpack.c.h.b16 %v348
    %v3934 = vunpack.c.l.b16 %v349
    %v3935 = vunpack.c.h.b16 %v349
    %v3936 = vunpack.c.l.b16 %v350
    %v3937 = vunpack.c.h.b16 %v350
    %v3938 = vunpack.c.l.b16 %v351
    %v3939 = vunpack.c.h.b16 %v351
    %v3940 = vunpack.c.l.b16 %v352
    %v3941 = vunpack.c.h.b16 %v352
    %v3942 = vunpack.c.l.b16 %v353
    %v3943 = vunpack.c.h.b16 %v353
    %v3944 = vunpack.c.l.b16 %v354
    %v3945 = vunpack.c.h.b16 %v354
    %v3946 = vunpack.c.l.b16 %v355
    %v3947 = vunpack.c.h.b16 %v355
    %v3948 = vunpack.c.l.b16 %v356
    %v3949 = vunpack.c.h.b16 %v356
    %v3950 = vunpack.c.l.b16 %v357
    %v3951 = vunpack.c.h.b16 %v357
    %v3952 = vunpack.c.l.b16 %v358
    %v3953 = vunpack.c.h.b16 %v358
    %v3954 = vunpack.c.l.b16 %v359
    %v3955 = vunpack.c.h.b16 %v359
    %v3956 = vunpack.c.l.b16 %v360
    %v3957 = vunpack.c.h.b16 %v360
    %v3958 = vunpack.c.l.b16 %v361
    %v3959 = vunpack.c.h.b16 %v361
    %v3960 = vunpack.c.l.b16 %v362
    %v3961 = vunpack.c.h.b16 %v362
    %v3962 = vunpack.c.l.b16 %v363
    %v3963 = vunpack.c.h.b16 %v363
    %v3964 = vunpack.c.l.b16 %v364
    %v3965 = vunpack.c.h.b16 %v364
    %v3966 = vunpack.c.l.b16 %v365
    %v3967 = vunpack.c.h.b16 %v365
    %v3968 = vunpack.c.l.b16 %v366
    %v3969 = vunpack.c.h.b16 %v366
    %v3970 = vunpack.c.l.b16 %v367
    %v3971 = vunpack.c.h.b16 %v367
    %v3972 = vunpack.c.l.b16 %v368
    %v3973 = vunpack.c.h.b16 %v368
    %v3974 = vunpack.c.l.b16 %v369
    %v3975 = vunpack.c.h.b16 %v369
    %v3976 = vunpack.c.l.b16 %v370
    %v3977 = vunpack.c.h.b16 %v370
    %v3978 = vunpack.c.l.b16 %v371
    %v3979 = vunpack.c.h.b16 %v371
    %v3980 = vunpack.c.l.b16 %v372
    %v3981 = vunpack.c.h.b16 %v372
    %v3982 = vunpack.c.l.b16 %v373
    %v3983 = vunpack.c.h.b16 %v373
    %v3984 = vunpack.c.l.b16 %v374
    %v3985 = vunpack.c.h.b16 %v374
    %v3986 = vunpack.c.l.b16 %v375
    %v3987 = vunpack.c.h.b16 %v375
    %v3988 = vunpack.c.l.b16 %v376
    %v3989 = vunpack.c.h.b16 %v376
    %v3990 = vunpack.c.l.b16 %v377
    %v3991 = vunpack.c.h.b16 %v377
    %v3992 = vunpack.c.l.b16 %v378
    %v3993 = vunpack.c.h.b16 %v378
    %v3994 = vunpack.c.l.b16 %v379
    %v3995 = vunpack.c.h.b16 %v379
    %v3996 = vunpack.c.l.b16 %v380
    %v3997 = vunpack.c.h.b16 %v380
    %v3998 = vunpack.c.l.b16 %v381
    %v3999 = vunpack.c.h.b16 %v381
    %v4000 = vunpack.c.l.b16 %v382
    %v4001 = vunpack.c.h.b16 %v382
    %v4002 = vunpack.c.l.b16 %v383
    %v4003 = vunpack.c.h.b16 %v383
    %v4004 = vunpack.c.l.b16 %v384
    %v4005 = vunpack.c.h.b16 %v384
    %v4006 = vunpack.c.l.b16 %v385
    %v4007 = vunpack.c.h.b16 %v385
    %v4008 = vunpack.c.l.b16 %v386
    %v4009 = vunpack.c.h.b16 %v386
    %v4010 = vunpack.c.l.b16 %v387
    %v4011 = vunpack.c.h.b16 %v387
    %v4012 = vunpack.c.l.b16 %v388
    %v4013 = vunpack.c.h.b16 %v388
    %v4014 = vunpack.c.l.b16 %v389
    %v4015 = vunpack.c.h.b16 %v389
    %v4016 = vunpack.c.l.b16 %v390
    %v4017 = vunpack.c.h.b16 %v390
    %v4018 = vunpack.c.l.b16 %v391
    %v4019 = vunpack.c.h.b16 %v391
    %v4020 = vunpack.c.l.b16 %v392
    %v4021 = vunpack.c.h.b16 %v392
    %v4022 = vunpack.c.l.b16 %v393
    %v4023 = vunpack.c.h.b16 %v393
    %v4024 = vunpack.c.l.b16 %v394
    %v4025 = vunpack.c.h.b16 %v394
    %v4026 = vunpack.c.l.b16 %v395
    %v4027 = vunpack.c.h.b16 %v395
    %v4028 = vunpack.c.l.b16 %v396
    %v4029 = vunpack.c.h.b16 %v396
    %v4030 = vunpack.c.l.b16 %v397
    %v4031 = vunpack.c.h.b16 %v397
    %v4032 = vunpack.c.l.b16 %v398
    %v4033 = vunpack.c.h.b16 %v398
    %v4034 = vunpack.c.l.b16 %v399
    %v4035 = vunpack.c.h.b16 %v399
    %v4036 = vunpack.c.l.b16 %v400
    %v4037 = vunpack.c.h.b16 %v400
    %v4038 = vunpack.c.l.b16 %v401
    %v4039 = vunpack.c.h.b16 %v401
    %v4040 = vunpack.c.l.b16 %v402
    %v4041 = vunpack.c.h.b16 %v402
    %v4042 = vunpack.c.l.b16 %v403
    %v4043 = vunpack.c.h.b16 %v403
    %v4044 = vunpack.c.l.b16 %v404
    %v4045 = vunpack.c.h.b16 %v404
    %v4046 = vunpack.c.l.b16 %v405
    %v4047 = vunpack.c.h.b16 %v405
    %v4048 = vunpack.c.l.b16 %v406
    %v4049 = vunpack.c.h.b16 %v406
    %v4050 = vunpack.c.l.b16 %v407
    %v4051 = vunpack.c.h.b16 %v407
    %v4052 = vunpack.c.l.b16 %v408
    %v4053 = vunpack.c.h.b16 %v408
    %v4054 = vunpack.c.l.b16 %v409
    %v4055 = vunpack.c.h.b16 %v409
    %v4056 = vunpack.c.l.b16 %v410
    %v4057 = vunpack.c.h.b16 %v410
    %v4058 = vunpack.c.l.b16 %v411
    %v4059 = vunpack.c.h.b16 %v411
    %v4060 = vunpack.c.l.b16 %v412
    %v4061 = vunpack.c.h.b16 %v412
    %v4062 = vunpack.c.l.b16 %v413
    %v4063 = vunpack.c.h.b16 %v413
    %v4064 = vunpack.c.l.b16 %v414
    %v4065 = vunpack.c.h.b16 %v414
    %v4066 = vunpack.c.l.b16 %v415
    %v4067 = vunpack.c.h.b16 %v415
    %v4068 = vunpack.c.l.b16 %v416
    %v4069 = vunpack.c.h.b16 %v416
    %v4070 = vunpack.c.l.b16 %v417
    %v4071 = vunpack.c.h.b16 %v417
    %v4072 = vunpack.c.l.b16 %v418
    %v4073 = vunpack.c.h.b16 %v418
    %v4074 = vunpack.c.l.b16 %v419
    %v4075 = vunpack.c.h.b16 %v419
    %v4076 = vunpack.c.l.b16 %v420
    %v4077 = vunpack.c.h.b16 %v420
    %v4078 = vunpack.c.l.b16 %v421
    %v4079 = vunpack.c.h.b16 %v421
    %v4080 = vunpack.c.l.b16 %v422
    %v4081 = vunpack.c.h.b16 %v422
    %v4082 = vunpack.c.l.b16 %v423
    %v4083 = vunpack.c.h.b16 %v423
    %v4084 = vunpack.c.l.b16 %v424
    %v4085 = vunpack.c.h.b16 %v424
    %v4086 = vunpack.c.l.b16 %v425
    %v4087 = vunpack.c.h.b16 %v425
    %v4088 = vunpack.c.l.b16 %v426
    %v4089 = vunpack.c.h.b16 %v426
    %v4090 = vunpack.c.l.b16 %v427
    %v4091 = vunpack.c.h.b16 %v427
    %v4092 = vunpack.c.l.b16 %v428
    %v4093 = vunpack.c.h.b16 %v428
    %v4094 = vunpack.c.l.b16 %v429
    %v4095 = vunpack.c.h.b16 %v429
    %v4096 = vunpack.c.l.b16 %v430
    %v4097 = vunpack.c.h.b16 %v430
    %v4098 = vunpack.c.l.b16 %v431
    %v4099 = vunpack.c.h.b16 %v431
    %v4100 = vunpack.c.l.b16 %v432
    %v4101 = vunpack.c.h.b16 %v432
    %v4102 = vunpack.c.l.b16 %v433
    %v4103 = vunpack.c.h.b16 %v433
    %v4104 = vunpack.c.l.b16 %v434
    %v4105 = vunpack.c.h.b16 %v434
    %v4106 = vunpack.c.l.b16 %v435
    %v4107 = vunpack.c.h.b16 %v435
    %v4108 = vunpack.c.l.b16 %v436
    %v4109 = vunpack.c.h.b16 %v436
    %v4110 = vunpack.c.l.b16 %v437
    %v4111 = vunpack.c.h.b16 %v437
    %v4112 = vunpack.c.l.b16 %v438
    %v4113 = vunpack.c.h.b16 %v438
    %v4114 = vunpack.c.l.b16 %v439
    %v4115 = vunpack.c.h.b16 %v439
    %v4116 = vunpack.c.l.b16 %v440
    %v4117 = vunpack.c.h.b16 %v440
    %v4118 = vunpack.c.l.b16 %v441
    %v4119 = vunpack.c.h.b16 %v441
    %v4120 = vunpack.c.l.b16 %v442
    %v4121 = vunpack.c.h.b16 %v442
    %v4122 = vunpack.c.l.b16 %v443
    %v4123 = vunpack.c.h.b16 %v443
    %v4124 = vunpack.c.l.b16 %v444
    %v4125 = vunpack.c.h.b16 %v444
    %v4126 = vunpack.c.l.b16 %v445
    %v4127 = vunpack.c.h.b16 %v445
    %v4128 = vunpack.c.l.b16 %v446
    %v4129 = vunpack.c.h.b16 %v446
    %v4130 = vunpack.c.l.b16 %v447
    %v4131 = vunpack.c.h.b16 %v447
    %v4132 = vunpack.c.l.b16 %v448
    %v4133 = vunpack.c.h.b16 %v448
    %v4134 = vunpack.c.l.b16 %v449
    %v4135 = vunpack.c.h.b16 %v449
    %v4136 = vunpack.c.l.b16 %v450
    %v4137 = vunpack.c.h.b16 %v450
    %v4138 = vunpack.c.l.b16 %v451
    %v4139 = vunpack.c.h.b16 %v451
    %v4140 = vunpack.c.l.b16 %v452
    %v4141 = vunpack.c.h.b16 %v452
    %v4142 = vunpack.c.l.b16 %v453
    %v4143 = vunpack.c.h.b16 %v453
    %v4144 = vunpack.c.l.b16 %v454
    %v4145 = vunpack.c.h.b16 %v454
    %v4146 = vunpack.c.l.b16 %v455
    %v4147 = vunpack.c.h.b16 %v455
    %v4148 = vunpack.c.l.b16 %v456
    %v4149 = vunpack.c.h.b16 %v456
    %v4150 = vunpack.c.l.b16 %v457
    %v4151 = vunpack.c.h.b16 %v457
    %v4152 = vunpack.c.l.b16 %v458
    %v4153 = vunpack.c.h.b16 %v458
    %v4154 = vunpack.c.l.b16 %v459
    %v4155 = vunpack.c.h.b16 %v459
    %v4156 = vunpack.c.l.b16 %v460
    %v4157 = vunpack.c.h.b16 %v460
    %v4158 = vunpack.c.l.b16 %v461
    %v4159 = vunpack.c.h.b16 %v461
    %v4160 = vunpack.c.l.b16 %v462
    %v4161 = vunpack.c.h.b16 %v462
    %v4162 = vunpack.c.l.b16 %v463
    %v4163 = vunpack.c.h.b16 %v463
    %v4164 = vunpack.c.l.b16 %v464
    %v4165 = vunpack.c.h.b16 %v464
    %v4166 = vunpack.c.l.b16 %v465
    %v4167 = vunpack.c.h.b16 %v465
    %v4168 = vunpack.c.l.b16 %v466
    %v4169 = vunpack.c.h.b16 %v466
    %v4170 = vunpack.c.l.b16 %v467
    %v4171 = vunpack.c.h.b16 %v467
    %v4172 = vunpack.c.l.b16 %v468
    %v4173 = vunpack.c.h.b16 %v468
    %v4174 = vunpack.c.l.b16 %v469
    %v4175 = vunpack.c.h.b16 %v469
    %v4176 = vunpack.c.l.b16 %v470
    %v4177 = vunpack.c.h.b16 %v470
    %v4178 = vunpack.c.l.b16 %v471
    %v4179 = vunpack.c.h.b16 %v471
    %v4180 = vunpack.c.l.b16 %v472
    %v4181 = vunpack.c.h.b16 %v472
    %v4182 = vunpack.c.l.b16 %v473
    %v4183 = vunpack.c.h.b16 %v473
    %v4184 = vunpack.c.l.b16 %v474
    %v4185 = vunpack.c.h.b16 %v474
    %v4186 = vunpack.c.l.b16 %v475
    %v4187 = vunpack.c.h.b16 %v475
    %v4188 = vunpack.c.l.b16 %v476
    %v4189 = vunpack.c.h.b16 %v476
    %v4190 = vunpack.c.l.b16 %v477
    %v4191 = vunpack.c.h.b16 %v477
    %v4192 = vunpack.c.l.b16 %v478
    %v4193 = vunpack.c.h.b16 %v478
    %v4194 = vunpack.c.l.b16 %v479
    %v4195 = vunpack.c.h.b16 %v479
    %v4196 = vunpack.c.l.b16 %v480
    %v4197 = vunpack.c.h.b16 %v480
    %v4198 = vunpack.c.l.b16 %v481
    %v4199 = vunpack.c.h.b16 %v481
    %v4200 = vunpack.c.l.b16 %v482
    %v4201 = vunpack.c.h.b16 %v482
    %v4202 = vunpack.c.l.b16 %v483
    %v4203 = vunpack.c.h.b16 %v483
    %v4204 = vunpack.c.l.b16 %v484
    %v4205 = vunpack.c.h.b16 %v484
    %v4206 = vunpack.c.l.b16 %v485
    %v4207 = vunpack.c.h.b16 %v485
    %v4208 = vunpack.c.l.b16 %v486
    %v4209 = vunpack.c.h.b16 %v486
    %v4210 = vunpack.c.l.b16 %v487
    %v4211 = vunpack.c.h.b16 %v487
    %v4212 = vunpack.c.l.b16 %v488
    %v4213 = vunpack.c.h.b16 %v488
    %v4214 = vunpack.c.l.b16 %v489
    %v4215 = vunpack.c.h.b16 %v489
    %v4216 = vunpack.c.l.b16 %v490
    %v4217 = vunpack.c.h.b16 %v490
    %v4218 = vunpack.c.l.b16 %v491
    %v4219 = vunpack.c.h.b16 %v491
    %v4220 = vunpack.c.l.b16 %v492
    %v4221 = vunpack.c.h.b16 %v492
    %v4222 = vunpack.c.l.b16 %v493
    %v4223 = vunpack.c.h.b16 %v493
    %v4224 = vunpack.c.l.b16 %v494
    %v4225 = vunpack.c.h.b16 %v494
    %v4226 = vunpack.c.l.b16 %v495
    %v4227 = vunpack.c.h.b16 %v495
    %v4228 = vunpack.c.l.b16 %v496
    %v4229 = vunpack.c.h.b16 %v496
    %v4230 = vunpack.c.l.b16 %v497
    %v4231 = vunpack.c.h.b16 %v497
    %v4232 = vunpack.c.l.b16 %v498
    %v4233 = vunpack.c.h.b16 %v498
    %v4234 = vunpack.c.l.b16 %v499
    %v4235 = vunpack.c.h.b16 %v499
    %v4236 = vunpack.c.l.b16 %v500
    %v4237 = vunpack.c.h.b16 %v500
    %v4238 = vunpack.c.l.b16 %v501
    %v4239 = vunpack.c.h.b16 %v501
    %v4240 = vunpack.c.l.b16 %v502
    %v4241 = vunpack.c.h.b16 %v502
    %v4242 = vunpack.c.l.b16 %v503
    %v4243 = vunpack.c.h.b16 %v503
    %v4244 = vunpack.c.l.b16 %v504
    %v4245 = vunpack.c.h.b16 %v504
    %v4246 = vunpack.c.l.b16 %v505
    %v4247 = vunpack.c.h.b16 %v505
    %v4248 = vunpack.c.l.b16 %v506
    %v4249 = vunpack.c.h.b16 %v506
    %v4250 = vunpack.c.l.b16 %v507
    %v4251 = vunpack.c.h.b16 %v507
    %v4252 = vunpack.c.l.b16 %v508
    %v4253 = vunpack.c.h.b16 %v508
    %v4254 = vunpack.c.l.b16 %v509
    %v4255 = vunpack.c.h.b16 %v509
    %v4256 = vunpack.c.l.b16 %v510
    %v4257 = vunpack.c.h.b16 %v510
    %v4258 = vunpack.c.l.b16 %v511
    %v4259 = vunpack.c.h.b16 %v511
    %v4260 = vunpack.c.l.b16 %v512
    %v4261 = vunpack.c.h.b16 %v512
    %v4262 = vunpack.c.l.b16 %v513
    %v4263 = vunpack.c.h.b16 %v513
    %v4264 = vunpack.c.l.b16 %v514
    %v4265 = vunpack.c.h.b16 %v514
    %v4266 = vunpack.c.l.b16 %v515
    %v4267 = vunpack.c.h.b16 %v515
    %v4268 = vunpack.c.l.b16 %v516
    %v4269 = vunpack.c.h.b16 %v516
    %v4270 = vunpack.c.l.b16 %v517
    %v4271 = vunpack.c.h.b16 %v517
    %v4272 = vunpack.c.l.b16 %v518
    %v4273 = vunpack.c.h.b16 %v518
    %v4274 = vunpack.c.l.b16 %v519
    %v4275 = vunpack.c.h.b16 %v519
    %v4276 = vunpack.c.l.b16 %v520
    %v4277 = vunpack.c.h.b16 %v520
    %v4278 = vunpack.c.l.b16 %v521
    %v4279 = vunpack.c.h.b16 %v521
    %v4280 = vunpack.c.l.b16 %v522
    %v4281 = vunpack.c.h.b16 %v522
    %v4282 = vunpack.c.l.b16 %v523
    %v4283 = vunpack.c.h.b16 %v523
    %v4284 = vunpack.c.l.b16 %v524
    %v4285 = vunpack.c.h.b16 %v524
    %v4286 = vunpack.c.l.b16 %v525
    %v4287 = vunpack.c.h.b16 %v525
    %v4288 = vunpack.c.l.b16 %v526
    %v4289 = vunpack.c.h.b16 %v526
    %v4290 = vunpack.c.l.b16 %v527
    %v4291 = vunpack.c.h.b16 %v527
    %v4292 = vunpack.c.l.b16 %v528
    %v4293 = vunpack.c.h.b16 %v528
    %v4294 = vunpack.c.l.b16 %v529
    %v4295 = vunpack.c.h.b16 %v529
    %v4296 = vunpack.c.l.b16 %v530
    %v4297 = vunpack.c.h.b16 %v530
    %v4298 = vunpack.c.l.b16 %v531
    %v4299 = vunpack.c.h.b16 %v531
    %v4300 = vunpack.c.l.b16 %v532
    %v4301 = vunpack.c.h.b16 %v532
    %v4302 = vunpack.c.l.b16 %v533
    %v4303 = vunpack.c.h.b16 %v533
    %v4304 = vunpack.c.l.b16 %v534
    %v4305 = vunpack.c.h.b16 %v534
    %v4306 = vunpack.c.l.b16 %v535
    %v4307 = vunpack.c.h.b16 %v535
    %v4308 = vunpack.c.l.b16 %v536
    %v4309 = vunpack.c.h.b16 %v536
    %v4310 = vunpack.c.l.b16 %v537
    %v4311 = vunpack.c.h.b16 %v537
    %v4312 = vunpack.c.l.b16 %v538
    %v4313 = vunpack.c.h.b16 %v538
    %v4314 = vunpack.c.l.b16 %v539
    %v4315 = vunpack.c.h.b16 %v539
    %v4316 = vunpack.c.l.b16 %v540
    %v4317 = vunpack.c.h.b16 %v540
    %v4318 = vunpack.c.l.b16 %v541
    %v4319 = vunpack.c.h.b16 %v541
    %v4320 = vunpack.c.l.b16 %v542
    %v4321 = vunpack.c.h.b16 %v542
    %v4322 = vunpack.c.l.b16 %v543
    %v4323 = vunpack.c.h.b16 %v543
    %v4324 = vunpack.c.l.b16 %v544
    %v4325 = vunpack.c.h.b16 %v544
    %v4326 = vunpack.c.l.b16 %v545
    %v4327 = vunpack.c.h.b16 %v545
    %v4328 = vunpack.c.l.b16 %v546
    %v4329 = vunpack.c.h.b16 %v546
    %v4330 = vunpack.c.l.b16 %v547
    %v4331 = vunpack.c.h.b16 %v547
    %v4332 = vunpack.c.l.b16 %v548
    %v4333 = vunpack.c.h.b16 %v548
    %v4334 = vunpack.c.l.b16 %v549
    %v4335 = vunpack.c.h.b16 %v549
    %v4336 = vunpack.c.l.b16 %v550
    %v4337 = vunpack.c.h.b16 %v550
    %v4338 = vunpack.c.l.b16 %v551
    %v4339 = vunpack.c.h.b16 %v551
    %v4340 = vunpack.c.l.b16 %v552
    %v4341 = vunpack.c.h.b16 %v552
    %v4342 = vunpack.c.l.b16 %v553
    %v4343 = vunpack.c.h.b16 %v553
    %v4344 = vunpack.c.l.b16 %v554
    %v4345 = vunpack.c.h.b16 %v554
    %v4346 = vunpack.c.l.b16 %v555
    %v4347 = vunpack.c.h.b16 %v555
    %v4348 = vunpack.c.l.b16 %v556
    %v4349 = vunpack.c.h.b16 %v556
    %v4350 = vunpack.c.l.b16 %v557
    %v4351 = vunpack.c.h.b16 %v557
    %v4352 = vunpack.c.l.b16 %v558
    %v4353 = vunpack.c.h.b16 %v558
    %v4354 = vunpack.c.l.b16 %v559
    %v4355 = vunpack.c.h.b16 %v559
    %v4356 = vunpack.c.l.b16 %v560
    %v4357 = vunpack.c.h.b16 %v560
    %v4358 = vunpack.c.l.b16 %v561
    %v4359 = vunpack.c.h.b16 %v561
    %v4360 = vunpack.c.l.b16 %v562
    %v4361 = vunpack.c.h.b16 %v562
    %v4362 = vunpack.c.l.b16 %v563
    %v4363 = vunpack.c.h.b16 %v563
    %v4364 = vunpack.c.l.b16 %v564
    %v4365 = vunpack.c.h.b16 %v564
    %v4366 = vunpack.c.l.b16 %v565
    %v4367 = vunpack.c.h.b16 %v565
    %v4368 = vunpack.c.l.b16 %v566
    %v4369 = vunpack.c.h.b16 %v566
    %v4370 = vunpack.c.l.b16 %v567
    %v4371 = vunpack.c.h.b16 %v567
    %v4372 = vunpack.c.l.b16 %v568
    %v4373 = vunpack.c.h.b16 %v568
    %v4374 = vunpack.c.l.b16 %v569
    %v4375 = vunpack.c.h.b16 %v569
    %v4376 = vunpack.c.l.b16 %v570
    %v4377 = vunpack.c.h.b16 %v570
    %v4378 = vunpack.c.l.b16 %v571
    %v4379 = vunpack.c.h.b16 %v571
    %v4380 = vunpack.c.l.b16 %v572
    %v4381 = vunpack.c.h.b16 %v572
    %v4382 = vunpack.c.l.b16 %v573
    %v4383 = vunpack.c.h.b16 %v573
    %v4384 = vunpack.c.l.b16 %v574
    %v4385 = vunpack.c.h.b16 %v574
    %v4386 = vunpack.c.l.b16 %v575
    %v4387 = vunpack.c.h.b16 %v575
    %v4388 = vunpack.c.l.b16 %v576
    %v4389 = vunpack.c.h.b16 %v576
    %v4390 = vunpack.c.l.b16 %v577
    %v4391 = vunpack.c.h.b16 %v577
    %v4392 = vunpack.c.l.b16 %v578
    %v4393 = vunpack.c.h.b16 %v578
    %v4394 = vunpack.c.l.b16 %v579
    %v4395 = vunpack.c.h.b16 %v579
    %v4396 = vunpack.c.l.b16 %v580
    %v4397 = vunpack.c.h.b16 %v580
    %v4398 = vunpack.c.l.b16 %v581
    %v4399 = vunpack.c.h.b16 %v581
    %v4400 = vunpack.c.l.b16 %v582
    %v4401 = vunpack.c.h.b16 %v582
    %v4402 = vunpack.c.l.b16 %v583
    %v4403 = vunpack.c.h.b16 %v583
    %v4404 = vunpack.c.l.b16 %v584
    %v4405 = vunpack.c.h.b16 %v584
    %v4406 = vunpack.c.l.b16 %v585
    %v4407 = vunpack.c.h.b16 %v585
    %v4408 = vunpack.c.l.b16 %v586
    %v4409 = vunpack.c.h.b16 %v586
    %v4410 = vunpack.c.l.b16 %v587
    %v4411 = vunpack.c.h.b16 %v587
    %v4412 = vunpack.c.l.b16 %v588
    %v4413 = vunpack.c.h.b16 %v588
    %v4414 = vunpack.c.l.b16 %v589
    %v4415 = vunpack.c.h.b16 %v589
    %v4416 = vunpack.c.l.b16 %v590
    %v4417 = vunpack.c.h.b16 %v590
    %v4418 = vunpack.c.l.b16 %v591
    %v4419 = vunpack.c.h.b16 %v591
    %v4420 = vunpack.c.l.b16 %v592
    %v4421 = vunpack.c.h.b16 %v592
    %v4422 = vunpack.c.l.b16 %v593
    %v4423 = vunpack.c.h.b16 %v593
    %v4424 = vunpack.c.l.b16 %v594
    %v4425 = vunpack.c.h.b16 %v594
    %v4426 = vunpack.c.l.b16 %v595
    %v4427 = vunpack.c.h.b16 %v595
    %v4428 = vunpack.c.l.b16 %v596
    %v4429 = vunpack.c.h.b16 %v596
    %v4430 = vunpack.c.l.b16 %v597
    %v4431 = vunpack.c.h.b16 %v597
    %v4432 = vunpack.c.l.b16 %v598
    %v4433 = vunpack.c.h.b16 %v598
    %v4434 = vunpack.c.l.b16 %v599
    %v4435 = vunpack.c.h.b16 %v599
    %v4436 = vunpack.c.l.b16 %v600
    %v4437 = vunpack.c.h.b16 %v600
    %v4438 = vunpack.c.l.b16 %v601
    %v4439 = vunpack.c.h.b16 %v601
    %v4440 = vunpack.c.l.b16 %v602
    %v4441 = vunpack.c.h.b16 %v602
    %v4442 = vunpack.c.l.b16 %v603
    %v4443 = vunpack.c.h.b16 %v603
    %v4444 = vunpack.c.l.b16 %v604
    %v4445 = vunpack.c.h.b16 %v604
    %v4446 = vunpack.c.l.b16 %v605
    %v4447 = vunpack.c.h.b16 %v605
    %v4448 = vunpack.c.l.b16 %v606
    %v4449 = vunpack.c.h.b16 %v606
    %v4450 = vunpack.c.l.b16 %v607
    %v4451 = vunpack.c.h.b16 %v607
    %v4452 = vunpack.c.l.b16 %v608
    %v4453 = vunpack.c.h.b16 %v608
    %v4454 = vunpack.c.l.b16 %v609
    %v4455 = vunpack.c.h.b16 %v609
    %v4456 = vunpack.c.l.b16 %v610
    %v4457 = vunpack.c.h.b16 %v610
    %v4458 = vunpack.c.l.b16 %v611
    %v4459 = vunpack.c.h.b16 %v611
    %v4460 = vunpack.c.l.b16 %v612
    %v4461 = vunpack.c.h.b16 %v612
    %v4462 = vunpack.c.l.b16 %v613
    %v4463 = vunpack.c.h.b16 %v613
    %v4464 = vunpack.c.l.b16 %v614
    %v4465 = vunpack.c.h.b16 %v614
    %v4466 = vunpack.c.l.b16 %v615
    %v4467 = vunpack.c.h.b16 %v615
    %v4468 = vunpack.c.l.b16 %v616
    %v4469 = vunpack.c.h.b16 %v616
    %v4470 = vunpack.c.l.b16 %v617
    %v4471 = vunpack.c.h.b16 %v617
    %v4472 = vunpack.c.l.b16 %v618
    %v4473 = vunpack.c.h.b16 %v618
    %v4474 = vunpack.c.l.b16 %v619
    %v4475 = vunpack.c.h.b16 %v619
    %v4476 = vunpack.c.l.b16 %v620
    %v4477 = vunpack.c.h.b16 %v620
    %v4478 = vunpack.c.l.b16 %v621
    %v4479 = vunpack.c.h.b16 %v621
    %v4480 = vunpack.c.l.b16 %v622
    %v4481 = vunpack.c.h.b16 %v622
    %v4482 = vunpack.c.l.b16 %v623
    %v4483 = vunpack.c.h.b16 %v623
    %v4484 = vunpack.c.l.b16 %v624
    %v4485 = vunpack.c.h.b16 %v624
    %v4486 = vunpack.c.l.b16 %v625
    %v4487 = vunpack.c.h.b16 %v625
    %v4488 = vunpack.c.l.b16 %v626
    %v4489 = vunpack.c.h.b16 %v626
    %v4490 = vunpack.c.l.b16 %v627
    %v4491 = vunpack.c.h.b16 %v627
    %v4492 = vunpack.c.l.b16 %v628
    %v4493 = vunpack.c.h.b16 %v628
    %v4494 = vunpack.c.l.b16 %v629
    %v4495 = vunpack.c.h.b16 %v629
    %v4496 = vunpack.c.l.b16 %v630
    %v4497 = vunpack.c.h.b16 %v630
    %v4498 = vunpack.c.l.b16 %v631
    %v4499 = vunpack.c.h.b16 %v631
    %v4500 = vunpack.c.l.b16 %v632
    %v4501 = vunpack.c.h.b16 %v632
    %v4502 = vunpack.c.l.b16 %v633
    %v4503 = vunpack.c.h.b16 %v633
    %v4504 = vunpack.c.l.b16 %v634
    %v4505 = vunpack.c.h.b16 %v634
    %v4506 = vunpack.c.l.b16 %v635
    %v4507 = vunpack.c.h.b16 %v635
    %v4508 = vunpack.c.l.b16 %v636
    %v4509 = vunpack.c.h.b16 %v636
    %v4510 = vunpack.c.l.b16 %v637
    %v4511 = vunpack.c.h.b16 %v637
    %v4512 = vunpack.c.l.b16 %v638
    %v4513 = vunpack.c.h.b16 %v638
    %v4514 = vunpack.c.l.b16 %v639
    %v4515 = vunpack.c.h.b16 %v639
    %v4516 = vunpack.c.l.b16 %v640
    %v4517 = vunpack.c.h.b16 %v640
    %v4518 = vunpack.c.l.b16 %v641
    %v4519 = vunpack.c.h.b16 %v641
    %v4520 = vunpack.c.l.b16 %v642
    %v4521 = vunpack.c.h.b16 %v642
    %v4522 = vunpack.c.l.b16 %v643
    %v4523 = vunpack.c.h.b16 %v643
    %v4524 = vunpack.c.l.b16 %v644
    %v4525 = vunpack.c.h.b16 %v644
    %v4526 = vunpack.c.l.b16 %v645
    %v4527 = vunpack.c.h.b16 %v645
    %v4528 = vunpack.c.l.b16 %v646
    %v4529 = vunpack.c.h.b16 %v646
    %v4530 = vunpack.c.l.b16 %v647
    %v4531 = vunpack.c.h.b16 %v647
    %v4532 = vunpack.c.l.b16 %v648
    %v4533 = vunpack.c.h.b16 %v648
    %v4534 = vunpack.c.l.b16 %v649
    %v4535 = vunpack.c.h.b16 %v649
    %v4536 = vunpack.c.l.b16 %v650
    %v4537 = vunpack.c.h.b16 %v650
    %v4538 = vunpack.c.l.b16 %v651
    %v4539 = vunpack.c.h.b16 %v651
    %v4540 = vunpack.c.l.b16 %v652
    %v4541 = vunpack.c.h.b16 %v652
    %v4542 = vunpack.c.l.b16 %v653
    %v4543 = vunpack.c.h.b16 %v653
    %v4544 = vunpack.c.l.b16 %v654
    %v4545 = vunpack.c.h.b16 %v654
    %v4546 = vunpack.c.l.b16 %v655
    %v4547 = vunpack.c.h.b16 %v655
    %v4548 = vunpack.c.l.b16 %v656
    %v4549 = vunpack.c.h.b16 %v656
    %v4550 = vunpack.c.l.b16 %v657
    %v4551 = vunpack.c.h.b16 %v657
    %v4552 = vunpack.c.l.b16 %v658
    %v4553 = vunpack.c.h.b16 %v658
    %v4554 = vunpack.c.l.b16 %v659
    %v4555 = vunpack.c.h.b16 %v659
    %v4556 = vunpack.c.l.b16 %v660
    %v4557 = vunpack.c.h.b16 %v660
    %v4558 = vunpack.c.l.b16 %v661
    %v4559 = vunpack.c.h.b16 %v661
    %v4560 = vunpack.c.l.b16 %v662
    %v4561 = vunpack.c.h.b16 %v662
    %v4562 = vunpack.c.l.b16 %v663
    %v4563 = vunpack.c.h.b16 %v663
    %v4564 = vunpack.c.l.b16 %v664
    %v4565 = vunpack.c.h.b16 %v664
    %v4566 = vunpack.c.l.b16 %v665
    %v4567 = vunpack.c.h.b16 %v665
    %v4568 = vunpack.c.l.b16 %v666
    %v4569 = vunpack.c.h.b16 %v666
    %v4570 = vunpack.c.l.b16 %v667
    %v4571 = vunpack.c.h.b16 %v667
    %v4572 = vunpack.c.l.b16 %v668
    %v4573 = vunpack.c.h.b16 %v668
    %v4574 = vunpack.c.l.b16 %v669
    %v4575 = vunpack.c.h.b16 %v669
    %v4576 = vunpack.c.l.b16 %v670
    %v4577 = vunpack.c.h.b16 %v670
    %v4578 = vunpack.c.l.b16 %v671
    %v4579 = vunpack.c.h.b16 %v671
    %v4580 = vunpack.c.l.b16 %v672
    %v4581 = vunpack.c.h.b16 %v672
    %v4582 = vunpack.c.l.b16 %v673
    %v4583 = vunpack.c.h.b16 %v673
    %v4584 = vunpack.c.l.b16 %v674
    %v4585 = vunpack.c.h.b16 %v674
    %v4586 = vunpack.c.l.b16 %v675
    %v4587 = vunpack.c.h.b16 %v675
    %v4588 = vunpack.c.l.b16 %v676
    %v4589 = vunpack.c.h.b16 %v676
    %v4590 = vunpack.c.l.b16 %v677
    %v4591 = vunpack.c.h.b16 %v677
    %v4592 = vunpack.c.l.b16 %v678
    %v4593 = vunpack.c.h.b16 %v678
    %v4594 = vunpack.c.l.b16 %v679
    %v4595 = vunpack.c.h.b16 %v679
    %v4596 = vunpack.c.l.b16 %v680
    %v4597 = vunpack.c.h.b16 %v680
    %v4598 = vunpack.c.l.b16 %v681
    %v4599 = vunpack.c.h.b16 %v681
    %v4600 = vunpack.c.l.b16 %v682
    %v4601 = vunpack.c.h.b16 %v682
    %v4602 = vunpack.c.l.b16 %v683
    %v4603 = vunpack.c.h.b16 %v683
    %v4604 = vunpack.c.l.b16 %v684
    %v4605 = vunpack.c.h.b16 %v684
    %v4606 = vunpack.c.l.b16 %v685
    %v4607 = vunpack.c.h.b16 %v685
    %v4608 = vunpack.c.l.b16 %v686
    %v4609 = vunpack.c.h.b16 %v686
    %v4610 = vunpack.c.l.b16 %v687
    %v4611 = vunpack.c.h.b16 %v687
    %v4612 = vunpack.c.l.b16 %v688
    %v4613 = vunpack.c.h.b16 %v688
    %v4614 = vunpack.c.l.b16 %v689
    %v4615 = vunpack.c.h.b16 %v689
    %v4616 = vunpack.c.l.b16 %v690
    %v4617 = vunpack.c.h.b16 %v690
    %v4618 = vunpack.c.l.b16 %v691
    %v4619 = vunpack.c.h.b16 %v691
    %v4620 = vunpack.c.l.b16 %v692
    %v4621 = vunpack.c.h.b16 %v692
    %v4622 = vunpack.c.l.b16 %v693
    %v4623 = vunpack.c.h.b16 %v693
    %v4624 = vunpack.c.l.b16 %v694
    %v4625 = vunpack.c.h.b16 %v694
    %v4626 = vunpack.c.l.b16 %v695
    %v4627 = vunpack.c.h.b16 %v695
    %v4628 = vunpack.c.l.b16 %v696
    %v4629 = vunpack.c.h.b16 %v696
    %v4630 = vunpack.c.l.b16 %v697
    %v4631 = vunpack.c.h.b16 %v697
    %v4632 = vunpack.c.l.b16 %v698
    %v4633 = vunpack.c.h.b16 %v698
    %v4634 = vunpack.c.l.b16 %v699
    %v4635 = vunpack.c.h.b16 %v699
    %v4636 = vunpack.c.l.b16 %v700
    %v4637 = vunpack.c.h.b16 %v700
    %v4638 = vunpack.c.l.b16 %v701
    %v4639 = vunpack.c.h.b16 %v701
    %v4640 = vunpack.c.l.b16 %v702
    %v4641 = vunpack.c.h.b16 %v702
    %v4642 = vunpack.c.l.b16 %v703
    %v4643 = vunpack.c.h.b16 %v703
    %v4644 = vunpack.c.l.b16 %v704
    %v4645 = vunpack.c.h.b16 %v704
    %v4646 = vunpack.c.l.b16 %v705
    %v4647 = vunpack.c.h.b16 %v705
    %v4648 = vunpack.c.l.b16 %v706
    %v4649 = vunpack.c.h.b16 %v706
    %v4650 = vunpack.c.l.b16 %v707
    %v4651 = vunpack.c.h.b16 %v707
    %v4652 = vunpack.c.l.b16 %v708
    %v4653 = vunpack.c.h.b16 %v708
    %v4654 = vunpack.c.l.b16 %v709
    %v4655 = vunpack.c.h.b16 %v709
    %v4656 = vunpack.c.l.b16 %v710
    %v4657 = vunpack.c.h.b16 %v710
    %v4658 = vunpack.c.l.b16 %v711
    %v4659 = vunpack.c.h.b16 %v711
    %v4660 = vunpack.c.l.b16 %v712
    %v4661 = vunpack.c.h.b16 %v712
    %v4662 = vunpack.c.l.b16 %v713
    %v4663 = vunpack.c.h.b16 %v713
    %v4664 = vunpack.c.l.b16 %v714
    %v4665 = vunpack.c.h.b16 %v714
    %v4666 = vunpack.c.l.b16 %v715
    %v4667 = vunpack.c.h.b16 %v715
    %v4668 = vunpack.c.l.b16 %v716
    %v4669 = vunpack.c.h.b16 %v716
    %v4670 = vunpack.c.l.b16 %v717
    %v4671 = vunpack.c.h.b16 %v717
    %v4672 = vunpack.c.l.b16 %v718
    %v4673 = vunpack.c.h.b16 %v718
    %v4674 = vunpack.c.l.b16 %v719
    %v4675 = vunpack.c.h.b16 %v719
    %v4676 = vunpack.c.l.b16 %v720
    %v4677 = vunpack.c.h.b16 %v720
    %v4678 = vunpack.c.l.b16 %v721
    %v4679 = vunpack.c.h.b16 %v721
    %v4680 = vunpack.c.l.b16 %v722
    %v4681 = vunpack.c.h.b16 %v722
    %v4682 = vunpack.c.l.b16 %v723
    %v4683 = vunpack.c.h.b16 %v723
    %v4684 = vunpack.c.l.b16 %v724
    %v4685 = vunpack.c.h.b16 %v724
    %v4686 = vunpack.c.l.b16 %v725
    %v4687 = vunpack.c.h.b16 %v725
    %v4688 = vunpack.c.l.b16 %v726
    %v4689 = vunpack.c.h.b16 %v726
    %v4690 = vunpack.c.l.b16 %v727
    %v4691 = vunpack.c.h.b16 %v727
    %v4692 = vunpack.c.l.b16 %v728
    %v4693 = vunpack.c.h.b16 %v728
    %v4694 = vunpack.c.l.b16 %v729
    %v4695 = vunpack.c.h.b16 %v729
    %v4696 = vunpack.c.l.b16 %v730
    %v4697 = vunpack.c.h.b16 %v730
    %v4698 = vunpack.c.l.b16 %v731
    %v4699 = vunpack.c.h.b16 %v731
    %v4700 = vunpack.c.l.b16 %v732
    %v4701 = vunpack.c.h.b16 %v732
    %v4702 = vunpack.c.l.b16 %v733
    %v4703 = vunpack.c.h.b16 %v733
    %v4704 = vunpack.c.l.b16 %v734
    %v4705 = vunpack.c.h.b16 %v734
    %v4706 = vunpack.c.l.b16 %v735
    %v4707 = vunpack.c.h.b16 %v735
    %v4708 = vunpack.c.l.b16 %v736
    %v4709 = vunpack.c.h.b16 %v736
    %v4710 = vunpack.c.l.b16 %v737
    %v4711 = vunpack.c.h.b16 %v737
    %v4712 = vunpack.c.l.b16 %v738
    %v4713 = vunpack.c.h.b16 %v738
    %v4714 = vunpack.c.l.b16 %v739
    %v4715 = vunpack.c.h.b16 %v739
    %v4716 = vunpack.c.l.b16 %v740
    %v4717 = vunpack.c.h.b16 %v740
    %v4718 = vunpack.c.l.b16 %v741
    %v4719 = vunpack.c.h.b16 %v741
    %v4720 = vunpack.c.l.b16 %v742
    %v4721 = vunpack.c.h.b16 %v742
    %v4722 = vunpack.c.l.b16 %v743
    %v4723 = vunpack.c.h.b16 %v743
    %v4724 = vunpack.c.l.b16 %v744
    %v4725 = vunpack.c.h.b16 %v744
    %v4726 = vunpack.c.l.b16 %v745
    %v4727 = vunpack.c.h.b16 %v745
    %v4728 = vunpack.c.l.b16 %v746
    %v4729 = vunpack.c.h.b16 %v746
    %v4730 = vunpack.c.l.b16 %v747
    %v4731 = vunpack.c.h.b16 %v747
    %v4732 = vunpack.c.l.b16 %v748
    %v4733 = vunpack.c.h.b16 %v748
    %v4734 = vunpack.c.l.b16 %v749
    %v4735 = vunpack.c.h.b16 %v749
    %v4736 = vunpack.c.l.b16 %v750
    %v4737 = vunpack.c.h.b16 %v750
    %v4738 = vunpack.c.l.b16 %v751
    %v4739 = vunpack.c.h.b16 %v751
    %v4740 = vunpack.c.l.b16 %v752
    %v4741 = vunpack.c.h.b16 %v752
    %v4742 = vunpack.c.l.b16 %v753
    %v4743 = vunpack.c.h.b16 %v753
    %v4744 = vunpack.c.l.b16 %v754
    %v4745 = vunpack.c.h.b16 %v754
    %v4746 = vunpack.c.l.b16 %v755
    %v4747 = vunpack.c.h.b16 %v755
    %v4748 = vunpack.c.l.b16 %v756
    %v4749 = vunpack.c.h.b16 %v756
    %v4750 = vunpack.c.l.b16 %v757
    %v4751 = vunpack.c.h.b16 %v757
    %v4752 = vunpack.c.l.b16 %v758
    %v4753 = vunpack.c.h.b16 %v758
    %v4754 = vunpack.c.l.b16 %v759
    %v4755 = vunpack.c.h.b16 %v759
    %v4756 = vunpack.c.l.b16 %v760
    %v4757 = vunpack.c.h.b16 %v760
    %v4758 = vunpack.c.l.b16 %v761
    %v4759 = vunpack.c.h.b16 %v761
    %v4760 = vunpack.c.l.b16 %v762
    %v4761 = vunpack.c.h.b16 %v762
    %v4762 = vunpack.c.l.b16 %v763
    %v4763 = vunpack.c.h.b16 %v763
    %v4764 = vunpack.c.l.b16 %v764
    %v4765 = vunpack.c.h.b16 %v764
    %v4766 = vunpack.c.l.b16 %v765
    %v4767 = vunpack.c.h.b16 %v765
    %v4768 = vunpack.c.l.b16 %v766
    %v4769 = vunpack.c.h.b16 %v766
    %v4770 = vunpack.c.l.b16 %v767
    %v4771 = vunpack.c.h.b16 %v767
    %v4772 = vunpack.c.l.b16 %v768
    %v4773 = vunpack.c.h.b16 %v768
    %v4774 = vunpack.c.l.b16 %v769
    %v4775 = vunpack.c.h.b16 %v769
    %v4776 = vunpack.c.l.b16 %v770
    %v4777 = vunpack.c.h.b16 %v770
    %v4778 = vunpack.c.l.b16 %v771
    %v4779 = vunpack.c.h.b16 %v771
    %v4780 = vunpack.c.l.b16 %v772
    %v4781 = vunpack.c.h.b16 %v772
    %v4782 = vunpack.c.l.b16 %v773
    %v4783 = vunpack.c.h.b16 %v773
    %v4784 = vunpack.c.l.b16 %v774
    %v4785 = vunpack.c.h.b16 %v774
    %v4786 = vunpack.c.l.b16 %v775
    %v4787 = vunpack.c.h.b16 %v775
    %v4788 = vunpack.c.l.b16 %v776
    %v4789 = vunpack.c.h.b16 %v776
    %v4790 = vunpack.c.l.b16 %v777
    %v4791 = vunpack.c.h.b16 %v777
    %v4792 = vunpack.c.l.b16 %v778
    %v4793 = vunpack.c.h.b16 %v778
    %v4794 = vunpack.c.l.b16 %v779
    %v4795 = vunpack.c.h.b16 %v779
    %v4796 = vunpack.c.l.b16 %v780
    %v4797 = vunpack.c.h.b16 %v780
    %v4798 = vunpack.c.l.b16 %v781
    %v4799 = vunpack.c.h.b16 %v781
    %v4800 = vunpack.c.l.b16 %v782
    %v4801 = vunpack.c.h.b16 %v782
    %v4802 = vunpack.c.l.b16 %v783
    %v4803 = vunpack.c.h.b16 %v783
    %v4804 = vunpack.c.l.b16 %v784
    %v4805 = vunpack.c.h.b16 %v784
    %v4806 = vunpack.c.l.b16 %v785
    %v4807 = vunpack.c.h.b16 %v785
    %v4808 = vunpack.c.l.b16 %v786
    %v4809 = vunpack.c.h.b16 %v786
    %v4810 = vunpack.c.l.b16 %v787
    %v4811 = vunpack.c.h.b16 %v787
    %v4812 = vunpack.c.l.b16 %v788
    %v4813 = vunpack.c.h.b16 %v788
    %v4814 = vunpack.c.l.b16 %v789
    %v4815 = vunpack.c.h.b16 %v789
    %v4816 = vunpack.c.l.b16 %v790
    %v4817 = vunpack.c.h.b16 %v790
    %v4818 = vunpack.c.l.b16 %v791
    %v4819 = vunpack.c.h.b16 %v791
    %v4820 = vunpack.c.l.b16 %v792
    %v4821 = vunpack.c.h.b16 %v792
    %v4822 = vunpack.c.l.b16 %v793
    %v4823 = vunpack.c.h.b16 %v793
    %v4824 = vunpack.c.l.b16 %v794
    %v4825 = vunpack.c.h.b16 %v794
    %v4826 = vunpack.c.l.b16 %v795
    %v4827 = vunpack.c.h.b16 %v795
    %v4828 = vunpack.c.l.b16 %v796
    %v4829 = vunpack.c.h.b16 %v796
    %v4830 = vunpack.c.l.b16 %v797
    %v4831 = vunpack.c.h.b16 %v797
    %v4832 = vunpack.c.l.b16 %v798
    %v4833 = vunpack.c.h.b16 %v798
    %v4834 = vunpack.c.l.b16 %v799
    %v4835 = vunpack.c.h.b16 %v799
    %v4836 = vunpack.c.l.b16 %v800
    %v4837 = vunpack.c.h.b16 %v800
    %v4838 = vunpack.c.l.b16 %v801
    %v4839 = vunpack.c.h.b16 %v801
    %v4840 = vunpack.c.l.b16 %v802
    %v4841 = vunpack.c.h.b16 %v802
    %v4842 = vunpack.c.l.b16 %v803
    %v4843 = vunpack.c.h.b16 %v803
    %v4844 = vunpack.c.l.b16 %v804
    %v4845 = vunpack.c.h.b16 %v804
    %v4846 = vunpack.c.l.b16 %v805
    %v4847 = vunpack.c.h.b16 %v805
    %v4848 = vunpack.c.l.b16 %v806
    %v4849 = vunpack.c.h.b16 %v806
    %v4850 = vunpack.c.l.b16 %v807
    %v4851 = vunpack.c.h.b16 %v807
    %v4852 = vunpack.c.l.b16 %v808
    %v4853 = vunpack.c.h.b16 %v808
    %v4854 = vunpack.c.l.b16 %v809
    %v4855 = vunpack.c.h.b16 %v809
    %v4856 = vunpack.c.l.b16 %v810
    %v4857 = vunpack.c.h.b16 %v810
    %v4858 = vunpack.c.l.b16 %v811
    %v4859 = vunpack.c.h.b16 %v811
    %v4860 = vunpack.c.l.b16 %v812
    %v4861 = vunpack.c.h.b16 %v812
    %v4862 = vunpack.c.l.b16 %v813
    %v4863 = vunpack.c.h.b16 %v813
    %v4864 = vunpack.c.l.b16 %v814
    %v4865 = vunpack.c.h.b16 %v814
    %v4866 = vunpack.c.l.b16 %v815
    %v4867 = vunpack.c.h.b16 %v815
    %v4868 = vunpack.c.l.b16 %v816
    %v4869 = vunpack.c.h.b16 %v816
    %v4870 = vunpack.c.l.b16 %v817
    %v4871 = vunpack.c.h.b16 %v817
    %v4872 = vunpack.c.l.b16 %v818
    %v4873 = vunpack.c.h.b16 %v818
    %v4874 = vunpack.c.l.b16 %v819
    %v4875 = vunpack.c.h.b16 %v819
    %v4876 = vunpack.c.l.b16 %v820
    %v4877 = vunpack.c.h.b16 %v820
    %v4878 = vunpack.c.l.b16 %v821
    %v4879 = vunpack.c.h.b16 %v821
    %v4880 = vunpack.c.l.b16 %v822
    %v4881 = vunpack.c.h.b16 %v822
    %v4882 = vunpack.c.l.b16 %v823
    %v4883 = vunpack.c.h.b16 %v823
    %v4884 = vunpack.c.l.b16 %v824
    %v4885 = vunpack.c.h.b16 %v824
    %v4886 = vunpack.c.l.b16 %v825
    %v4887 = vunpack.c.h.b16 %v825
    %v4888 = vunpack.c.l.b16 %v826
    %v4889 = vunpack.c.h.b16 %v826
    %v4890 = vunpack.c.l.b16 %v827
    %v4891 = vunpack.c.h.b16 %v827
    %v4892 = vunpack.c.l.b16 %v828
    %v4893 = vunpack.c.h.b16 %v828
    %v4894 = vunpack.c.l.b16 %v829
    %v4895 = vunpack.c.h.b16 %v829
    %v4896 = vunpack.c.l.b16 %v830
    %v4897 = vunpack.c.h.b16 %v830
    %v4898 = vunpack.c.l.b16 %v831
    %v4899 = vunpack.c.h.b16 %v831
    %v4900 = vunpack.c.l.b16 %v832
    %v4901 = vunpack.c.h.b16 %v832
    %v4902 = vunpack.c.l.b16 %v833
    %v4903 = vunpack.c.h.b16 %v833
    %v4904 = vunpack.c.l.b16 %v834
    %v4905 = vunpack.c.h.b16 %v834
    %v4906 = vunpack.c.l.b16 %v835
    %v4907 = vunpack.c.h.b16 %v835
    %v4908 = vunpack.c.l.b16 %v836
    %v4909 = vunpack.c.h.b16 %v836
    %v4910 = vunpack.c.l.b16 %v837
    %v4911 = vunpack.c.h.b16 %v837
    %v4912 = vunpack.c.l.b16 %v838
    %v4913 = vunpack.c.h.b16 %v838
    %v4914 = vunpack.c.l.b16 %v839
    %v4915 = vunpack.c.h.b16 %v839
    %v4916 = vunpack.c.l.b16 %v840
    %v4917 = vunpack.c.h.b16 %v840
    %v4918 = vunpack.c.l.b16 %v841
    %v4919 = vunpack.c.h.b16 %v841
    %v4920 = vunpack.c.l.b16 %v842
    %v4921 = vunpack.c.h.b16 %v842
    %v4922 = vunpack.c.l.b16 %v843
    %v4923 = vunpack.c.h.b16 %v843
    %v4924 = vunpack.c.l.b16 %v844
    %v4925 = vunpack.c.h.b16 %v844
    %v4926 = vunpack.c.l.b16 %v845
    %v4927 = vunpack.c.h.b16 %v845
    %v4928 = vunpack.c.l.b16 %v846
    %v4929 = vunpack.c.h.b16 %v846
    %v4930 = vunpack.c.l.b16 %v847
    %v4931 = vunpack.c.h.b16 %v847
    %v4932 = vunpack.c.l.b16 %v848
    %v4933 = vunpack.c.h.b16 %v848
    %v4934 = vunpack.c.l.b16 %v849
    %v4935 = vunpack.c.h.b16 %v849
    %v4936 = vunpack.c.l.b16 %v850
    %v4937 = vunpack.c.h.b16 %v850
    %v4938 = vunpack.c.l.b16 %v851
    %v4939 = vunpack.c.h.b16 %v851
    %v4940 = vunpack.c.l.b16 %v852
    %v4941 = vunpack.c.h.b16 %v852
    %v4942 = vunpack.c.l.b16 %v853
    %v4943 = vunpack.c.h.b16 %v853
    %v4944 = vunpack.c.l.b16 %v854
    %v4945 = vunpack.c.h.b16 %v854
    %v4946 = vunpack.c.l.b16 %v855
    %v4947 = vunpack.c.h.b16 %v855
    %v4948 = vunpack.c.l.b16 %v856
    %v4949 = vunpack.c.h.b16 %v856
    %v4950 = vunpack.c.l.b16 %v857
    %v4951 = vunpack.c.h.b16 %v857
    %v4952 = vunpack.c.l.b16 %v858
    %v4953 = vunpack.c.h.b16 %v858
    %v4954 = vunpack.c.l.b16 %v859
    %v4955 = vunpack.c.h.b16 %v859
    %v4956 = vunpack.c.l.b16 %v860
    %v4957 = vunpack.c.h.b16 %v860
    %v4958 = vunpack.c.l.b16 %v861
    %v4959 = vunpack.c.h.b16 %v861
    %v4960 = vunpack.c.l.b16 %v862
    %v4961 = vunpack.c.h.b16 %v862
    %v4962 = vunpack.c.l.b16 %v863
    %v4963 = vunpack.c.h.b16 %v863
    %v4964 = vunpack.c.l.b16 %v864
    %v4965 = vunpack.c.h.b16 %v864
    %v4966 = vunpack.c.l.b16 %v865
    %v4967 = vunpack.c.h.b16 %v865
    %v4968 = vunpack.c.l.b16 %v866
    %v4969 = vunpack.c.h.b16 %v866
    %v4970 = vunpack.c.l.b16 %v867
    %v4971 = vunpack.c.h.b16 %v867
    %v4972 = vunpack.c.l.b16 %v868
    %v4973 = vunpack.c.h.b16 %v868
    %v4974 = vunpack.c.l.b16 %v869
    %v4975 = vunpack.c.h.b16 %v869
    %v4976 = vunpack.c.l.b16 %v870
    %v4977 = vunpack.c.h.b16 %v870
    %v4978 = vunpack.c.l.b16 %v871
    %v4979 = vunpack.c.h.b16 %v871
    %v4980 = vunpack.c.l.b16 %v872
    %v4981 = vunpack.c.h.b16 %v872
    %v4982 = vunpack.c.l.b16 %v873
    %v4983 = vunpack.c.h.b16 %v873
    %v4984 = vunpack.c.l.b16 %v874
    %v4985 = vunpack.c.h.b16 %v874
    %v4986 = vunpack.c.l.b16 %v875
    %v4987 = vunpack.c.h.b16 %v875
    %v4988 = vunpack.c.l.b16 %v876
    %v4989 = vunpack.c.h.b16 %v876
    %v4990 = vunpack.c.l.b16 %v877
    %v4991 = vunpack.c.h.b16 %v877
    %v4992 = vunpack.c.l.b16 %v878
    %v4993 = vunpack.c.h.b16 %v878
    %v4994 = vunpack.c.l.b16 %v879
    %v4995 = vunpack.c.h.b16 %v879
    %v4996 = vunpack.c.l.b16 %v880
    %v4997 = vunpack.c.h.b16 %v880
    %v4998 = vunpack.c.l.b16 %v881
    %v4999 = vunpack.c.h.b16 %v881
    %v5000 = vunpack.c.l.b16 %v882
    %v5001 = vunpack.c.h.b16 %v882
    %v5002 = vunpack.c.l.b16 %v883
    %v5003 = vunpack.c.h.b16 %v883
    %v5004 = vunpack.c.l.b16 %v884
    %v5005 = vunpack.c.h.b16 %v884
    %v5006 = vunpack.c.l.b16 %v885
    %v5007 = vunpack.c.h.b16 %v885
    %v5008 = vunpack.c.l.b16 %v886
    %v5009 = vunpack.c.h.b16 %v886
    %v5010 = vunpack.c.l.b16 %v887
    %v5011 = vunpack.c.h.b16 %v887
    %v5012 = vunpack.c.l.b16 %v888
    %v5013 = vunpack.c.h.b16 %v888
    %v5014 = vunpack.c.l.b16 %v889
    %v5015 = vunpack.c.h.b16 %v889
    %v5016 = vunpack.c.l.b16 %v890
    %v5017 = vunpack.c.h.b16 %v890
    %v5018 = vunpack.c.l.b16 %v891
    %v5019 = vunpack.c.h.b16 %v891
    %v5020 = vunpack.c.l.b16 %v892
    %v5021 = vunpack.c.h.b16 %v892
    %v5022 = vunpack.c.l.b16 %v893
    %v5023 = vunpack.c.h.b16 %v893
    %v5024 = vunpack.c.l.b16 %v894
    %v5025 = vunpack.c.h.b16 %v894
    %v5026 = vunpack.c.l.b16 %v895
    %v5027 = vunpack.c.h.b16 %v895
    %v5028 = vunpack.c.l.b16 %v896
    %v5029 = vunpack.c.h.b16 %v896
    %v5030 = vunpack.c.l.b16 %v897
    %v5031 = vunpack.c.h.b16 %v897
    %v5032 = vunpack.c.l.b16 %v898
    %v5033 = vunpack.c.h.b16 %v898
    %v5034 = vunpack.c.l.b16 %v899
    %v5035 = vunpack.c.h.b16 %v899
    %v5036 = vunpack.c.l.b16 %v900
    %v5037 = vunpack.c.h.b16 %v900
    %v5038 = vunpack.c.l.b16 %v901
    %v5039 = vunpack.c.h.b16 %v901
    %v5040 = vunpack.c.l.b16 %v902
    %v5041 = vunpack.c.h.b16 %v902
    %v5042 = vunpack.c.l.b16 %v903
    %v5043 = vunpack.c.h.b16 %v903
    %v5044 = vunpack.c.l.b16 %v904
    %v5045 = vunpack.c.h.b16 %v904
    %v5046 = vunpack.c.l.b16 %v905
    %v5047 = vunpack.c.h.b16 %v905
    %v5048 = vunpack.c.l.b16 %v906
    %v5049 = vunpack.c.h.b16 %v906
    %v5050 = vunpack.c.l.b16 %v907
    %v5051 = vunpack.c.h.b16 %v907
    %v5052 = vunpack.c.l.b16 %v908
    %v5053 = vunpack.c.h.b16 %v908
    %v5054 = vunpack.c.l.b16 %v909
    %v5055 = vunpack.c.h.b16 %v909
    %v5056 = vunpack.c.l.b16 %v910
    %v5057 = vunpack.c.h.b16 %v910
    %v5058 = vunpack.c.l.b16 %v911
    %v5059 = vunpack.c.h.b16 %v911
    %v5060 = vunpack.c.l.b16 %v912
    %v5061 = vunpack.c.h.b16 %v912
    %v5062 = vunpack.c.l.b16 %v913
    %v5063 = vunpack.c.h.b16 %v913
    %v5064 = vunpack.c.l.b16 %v914
    %v5065 = vunpack.c.h.b16 %v914
    %v5066 = vunpack.c.l.b16 %v915
    %v5067 = vunpack.c.h.b16 %v915
    %v5068 = vunpack.c.l.b16 %v916
    %v5069 = vunpack.c.h.b16 %v916
    %v5070 = vunpack.c.l.b16 %v917
    %v5071 = vunpack.c.h.b16 %v917
    %v5072 = vunpack.c.l.b16 %v918
    %v5073 = vunpack.c.h.b16 %v918
    %v5074 = vunpack.c.l.b16 %v919
    %v5075 = vunpack.c.h.b16 %v919
    %v5076 = vunpack.c.l.b16 %v920
    %v5077 = vunpack.c.h.b16 %v920
    %v5078 = vunpack.c.l.b16 %v921
    %v5079 = vunpack.c.h.b16 %v921
    %v5080 = vunpack.c.l.b16 %v922
    %v5081 = vunpack.c.h.b16 %v922
    %v5082 = vunpack.c.l.b16 %v923
    %v5083 = vunpack.c.h.b16 %v923
    %v5084 = vunpack.c.l.b16 %v924
    %v5085 = vunpack.c.h.b16 %v924
    %v5086 = vunpack.c.l.b16 %v925
    %v5087 = vunpack.c.h.b16 %v925
    %v5088 = vunpack.c.l.b16 %v926
    %v5089 = vunpack.c.h.b16 %v926
    %v5090 = vunpack.c.l.b16 %v927
    %v5091 = vunpack.c.h.b16 %v927
    %v5092 = vunpack.c.l.b16 %v928
    %v5093 = vunpack.c.h.b16 %v928
    %v5094 = vunpack.c.l.b16 %v929
    %v5095 = vunpack.c.h.b16 %v929
    %v5096 = vunpack.c.l.b16 %v930
    %v5097 = vunpack.c.h.b16 %v930
    %v5098 = vunpack.c.l.b16 %v931
    %v5099 = vunpack.c.h.b16 %v931
    %v5100 = vunpack.c.l.b16 %v932
    %v5101 = vunpack.c.h.b16 %v932
    %v5102 = vunpack.c.l.b16 %v933
    %v5103 = vunpack.c.h.b16 %v933
    %v5104 = vunpack.c.l.b16 %v934
    %v5105 = vunpack.c.h.b16 %v934
    %v5106 = vunpack.c.l.b16 %v935
    %v5107 = vunpack.c.h.b16 %v935
    %v5108 = vunpack.c.l.b16 %v936
    %v5109 = vunpack.c.h.b16 %v936
    %v5110 = vunpack.c.l.b16 %v937
    %v5111 = vunpack.c.h.b16 %v937
    %v5112 = vunpack.c.l.b16 %v938
    %v5113 = vunpack.c.h.b16 %v938
    %v5114 = vunpack.c.l.b16 %v939
    %v5115 = vunpack.c.h.b16 %v939
    %v5116 = vunpack.c.l.b16 %v940
    %v5117 = vunpack.c.h.b16 %v940
    %v5118 = vunpack.c.l.b16 %v941
    %v5119 = vunpack.c.h.b16 %v941
    %v5120 = vunpack.c.l.b16 %v942
    %v5121 = vunpack.c.h.b16 %v942
    %v5122 = vunpack.c.l.b16 %v943
    %v5123 = vunpack.c.h.b16 %v943
    %v5124 = vunpack.c.l.b16 %v944
    %v5125 = vunpack.c.h.b16 %v944
    %v5126 = vunpack.c.l.b16 %v945
    %v5127 = vunpack.c.h.b16 %v945
    %v5128 = vunpack.c.l.b16 %v946
    %v5129 = vunpack.c.h.b16 %v946
    %v5130 = vunpack.c.l.b16 %v947
    %v5131 = vunpack.c.h.b16 %v947
    %v5132 = vunpack.c.l.b16 %v948
    %v5133 = vunpack.c.h.b16 %v948
    %v5134 = vunpack.c.l.b16 %v949
    %v5135 = vunpack.c.h.b16 %v949
    %v5136 = vunpack.c.l.b16 %v950
    %v5137 = vunpack.c.h.b16 %v950
    %v5138 = vunpack.c.l.b16 %v951
    %v5139 = vunpack.c.h.b16 %v951
    %v5140 = vunpack.c.l.b16 %v952
    %v5141 = vunpack.c.h.b16 %v952
    %v5142 = vunpack.c.l.b16 %v953
    %v5143 = vunpack.c.h.b16 %v953
    %v5144 = vunpack.c.l.b16 %v954
    %v5145 = vunpack.c.h.b16 %v954
    %v5146 = vunpack.c.l.b16 %v955
    %v5147 = vunpack.c.h.b16 %v955
    %v5148 = vunpack.c.l.b16 %v956
    %v5149 = vunpack.c.h.b16 %v956
    %v5150 = vunpack.c.l.b16 %v957
    %v5151 = vunpack.c.h.b16 %v957
    %v5152 = vunpack.c.l.b16 %v958
    %v5153 = vunpack.c.h.b16 %v958
    %v5154 = vunpack.c.l.b16 %v959
    %v5155 = vunpack.c.h.b16 %v959
    %v5156 = vunpack.c.l.b16 %v960
    %v5157 = vunpack.c.h.b16 %v960
    %v5158 = vunpack.c.l.b16 %v961
    %v5159 = vunpack.c.h.b16 %v961
    %v5160 = vunpack.c.l.b16 %v962
    %v5161 = vunpack.c.h.b16 %v962
    %v5162 = vunpack.c.l.b16 %v963
    %v5163 = vunpack.c.h.b16 %v963
    %v5164 = vunpack.c.l.b16 %v964
    %v5165 = vunpack.c.h.b16 %v964
    %v5166 = vunpack.c.l.b16 %v965
    %v5167 = vunpack.c.h.b16 %v965
    %v5168 = vunpack.c.l.b16 %v966
    %v5169 = vunpack.c.h.b16 %v966
    %v5170 = vunpack.c.l.b16 %v967
    %v5171 = vunpack.c.h.b16 %v967
    %v5172 = vunpack.c.l.b16 %v968
    %v5173 = vunpack.c.h.b16 %v968
    %v5174 = vunpack.c.l.b16 %v969
    %v5175 = vunpack.c.h.b16 %v969
    %v5176 = vunpack.c.l.b16 %v970
    %v5177 = vunpack.c.h.b16 %v970
    %v5178 = vunpack.c.l.b16 %v971
    %v5179 = vunpack.c.h.b16 %v971
    %v5180 = vunpack.c.l.b16 %v972
    %v5181 = vunpack.c.h.b16 %v972
    %v5182 = vunpack.c.l.b16 %v973
    %v5183 = vunpack.c.h.b16 %v973
    %v5184 = vunpack.c.l.b16 %v974
    %v5185 = vunpack.c.h.b16 %v974
    %v5186 = vunpack.c.l.b16 %v975
    %v5187 = vunpack.c.h.b16 %v975
    %v5188 = vunpack.c.l.b16 %v976
    %v5189 = vunpack.c.h.b16 %v976
    %v5190 = vunpack.c.l.b16 %v977
    %v5191 = vunpack.c.h.b16 %v977
    %v5192 = vunpack.c.l.b16 %v978
    %v5193 = vunpack.c.h.b16 %v978
    %v5194 = vunpack.c.l.b16 %v979
    %v5195 = vunpack.c.h.b16 %v979
    %v5196 = vunpack.c.l.b16 %v980
    %v5197 = vunpack.c.h.b16 %v980
    %v5198 = vunpack.c.l.b16 %v981
    %v5199 = vunpack.c.h.b16 %v981
    %v5200 = vunpack.c.l.b16 %v982
    %v5201 = vunpack.c.h.b16 %v982
    %v5202 = vunpack.c.l.b16 %v983
    %v5203 = vunpack.c.h.b16 %v983
    %v5204 = vunpack.c.l.b16 %v984
    %v5205 = vunpack.c.h.b16 %v984
    %v5206 = vunpack.c.l.b16 %v985
    %v5207 = vunpack.c.h.b16 %v985
    %v5208 = vunpack.c.l.b16 %v986
    %v5209 = vunpack.c.h.b16 %v986
    %v5210 = vunpack.c.l.b16 %v987
    %v5211 = vunpack.c.h.b16 %v987
    %v5212 = vunpack.c.l.b16 %v988
    %v5213 = vunpack.c.h.b16 %v988
    %v5214 = vunpack.c.l.b16 %v989
    %v5215 = vunpack.c.h.b16 %v989
    %v5216 = vunpack.c.l.b16 %v990
    %v5217 = vunpack.c.h.b16 %v990
    %v5218 = vunpack.c.l.b16 %v991
    %v5219 = vunpack.c.h.b16 %v991
    %v5220 = vunpack.c.l.b16 %v992
    %v5221 = vunpack.c.h.b16 %v992
    %v5222 = vunpack.c.l.b16 %v993
    %v5223 = vunpack.c.h.b16 %v993
    %v5224 = vunpack.c.l.b16 %v994
    %v5225 = vunpack.c.h.b16 %v994
    %v5226 = vunpack.c.l.b16 %v995
    %v5227 = vunpack.c.h.b16 %v995
    %v5228 = vunpack.c.l.b16 %v996
    %v5229 = vunpack.c.h.b16 %v996
    %v5230 = vunpack.c.l.b16 %v997
    %v5231 = vunpack.c.h.b16 %v997
    %v5232 = vunpack.c.l.b16 %v998
    %v5233 = vunpack.c.h.b16 %v998
    %v5234 = vunpack.c.l.b16 %v999
    %v5235 = vunpack.c.h.b16 %v999
    %v5236 = vunpack.c.l.b16 %v1000
    %v5237 = vunpack.c.h.b16 %v1000
    %v5238 = vunpack.c.l.b16 %v1001
    %v5239 = vunpack.c.h.b16 %v1001
    %v5240 = vunpack.c.l.b16 %v1002
    %v5241 = vunpack.c.h.b16 %v1002
    %v5242 = vunpack.c.l.b16 %v1003
    %v5243 = vunpack.c.h.b16 %v1003
    %v5244 = vunpack.c.l.b16 %v1004
    %v5245 = vunpack.c.h.b16 %v1004
    %v5246 = vunpack.c.l.b16 %v1005
    %v5247 = vunpack.c.h.b16 %v1005
    %v5248 = vunpack.c.l.b16 %v1006
    %v5249 = vunpack.c.h.b16 %v1006
    %v5250 = vunpack.c.l.b16 %v1007
    %v5251 = vunpack.c.h.b16 %v1007
    %v5252 = vunpack.c.l.b16 %v1008
    %v5253 = vunpack.c.h.b16 %v1008
    %v5254 = vunpack.c.l.b16 %v1009
    %v5255 = vunpack.c.h.b16 %v1009
    %v5256 = vunpack.c.l.b16 %v1010
    %v5257 = vunpack.c.h.b16 %v1010
    %v5258 = vunpack.c.l.b16 %v1011
    %v5259 = vunpack.c.h.b16 %v1011
    %v5260 = vunpack.c.l.b16 %v1012
    %v5261 = vunpack.c.h.b16 %v1012
    %v5262 = vunpack.c.l.b16 %v1013
    %v5263 = vunpack.c.h.b16 %v1013
    %v5264 = vunpack.c.l.b16 %v1014
    %v5265 = vunpack.c.h.b16 %v1014
    %v5266 = vunpack.c.l.b16 %v1015
    %v5267 = vunpack.c.h.b16 %v1015
    %v5268 = vunpack.c.l.b16 %v1016
    %v5269 = vunpack.c.h.b16 %v1016
    %v5270 = vunpack.c.l.b16 %v1017
    %v5271 = vunpack.c.h.b16 %v1017
    %v5272 = vunpack.c.l.b16 %v1018
    %v5273 = vunpack.c.h.b16 %v1018
    %v5274 = vunpack.c.l.b16 %v1019
    %v5275 = vunpack.c.h.b16 %v1019
    %v5276 = vunpack.c.l.b16 %v1020
    %v5277 = vunpack.c.h.b16 %v1020
    %v5278 = vunpack.c.l.b16 %v1021
    %v5279 = vunpack.c.h.b16 %v1021
    %v5280 = vunpack.c.l.b16 %v1022
    %v5281 = vunpack.c.h.b16 %v1022
    %v5282 = vunpack.c.l.b16 %v1023
    %v5283 = vunpack.c.h.b16 %v1023
    %v5284 = vunpack.c.l.b16 %v1024
    %v5285 = vunpack.c.h.b16 %v1024
    %v5286 = vunpack.c.l.b16 %v1025
    %v5287 = vunpack.c.h.b16 %v1025
    %v5288 = vunpack.c.l.b16 %v1026
    %v5289 = vunpack.c.h.b16 %v1026
    %v5290 = vunpack.c.l.b16 %v1027
    %v5291 = vunpack.c.h.b16 %v1027
    %v5292 = vunpack.c.l.b16 %v1028
    %v5293 = vunpack.c.h.b16 %v1028
    %v5294 = vunpack.c.l.b16 %v1029
    %v5295 = vunpack.c.h.b16 %v1029
    %v5296 = vunpack.c.l.b16 %v1030
    %v5297 = vunpack.c.h.b16 %v1030
    %v5298 = vunpack.c.l.b16 %v1031
    %v5299 = vunpack.c.h.b16 %v1031
    %v5300 = vunpack.c.l.b16 %v1032
    %v5301 = vunpack.c.h.b16 %v1032
    %v5302 = vunpack.c.l.b16 %v1033
    %v5303 = vunpack.c.h.b16 %v1033
    %v5304 = vunpack.c.l.b16 %v1034
    %v5305 = vunpack.c.h.b16 %v1034
    %v5306 = vunpack.c.l.b16 %v1035
    %v5307 = vunpack.c.h.b16 %v1035
    %v5308 = vunpack.c.l.b16 %v1036
    %v5309 = vunpack.c.h.b16 %v1036
    %v5310 = vunpack.c.l.b16 %v1037
    %v5311 = vunpack.c.h.b16 %v1037
    %v5312 = vunpack.c.l.b16 %v1038
    %v5313 = vunpack.c.h.b16 %v1038
    %v5314 = vunpack.c.l.b16 %v1039
    %v5315 = vunpack.c.h.b16 %v1039
    %v5316 = vunpack.c.l.b16 %v1040
    %v5317 = vunpack.c.h.b16 %v1040
    %v5318 = vunpack.c.l.b16 %v1041
    %v5319 = vunpack.c.h.b16 %v1041
    %v5320 = vunpack.c.l.b16 %v1042
    %v5321 = vunpack.c.h.b16 %v1042
    %v5322 = vunpack.c.l.b16 %v1043
    %v5323 = vunpack.c.h.b16 %v1043
    %v5324 = vunpack.c.l.b16 %v1044
    %v5325 = vunpack.c.h.b16 %v1044
    %v5326 = vunpack.c.l.b16 %v1045
    %v5327 = vunpack.c.h.b16 %v1045
    %v5328 = vunpack.c.l.b16 %v1046
    %v5329 = vunpack.c.h.b16 %v1046
    %v5330 = vunpack.c.l.b16 %v1047
    %v5331 = vunpack.c.h.b16 %v1047
    %v5332 = vunpack.c.l.b16 %v1048
    %v5333 = vunpack.c.h.b16 %v1048
    %v5334 = vunpack.c.l.b16 %v1049
    %v5335 = vunpack.c.h.b16 %v1049
    %v5336 = vunpack.c.l.b16 %v1050
    %v5337 = vunpack.c.h.b16 %v1050
    %v5338 = vunpack.c.l.b16 %v1051
    %v5339 = vunpack.c.h.b16 %v1051
    %v5340 = vunpack.c.l.b16 %v1052
    %v5341 = vunpack.c.h.b16 %v1052
    %v5342 = vunpack.c.l.b16 %v1053
    %v5343 = vunpack.c.h.b16 %v1053
    %v5344 = vunpack.c.l.b16 %v1054
    %v5345 = vunpack.c.h.b16 %v1054
    %v5346 = vunpack.c.l.b16 %v1055
    %v5347 = vunpack.c.h.b16 %v1055
    %v5348 = vunpack.c.l.b16 %v1056
    %v5349 = vunpack.c.h.b16 %v1056
    %v5350 = vunpack.c.l.b16 %v1057
    %v5351 = vunpack.c.h.b16 %v1057
    %v5352 = vunpack.c.l.b16 %v1058
    %v5353 = vunpack.c.h.b16 %v1058
    %v5354 = vunpack.c.l.b16 %v1059
    %v5355 = vunpack.c.h.b16 %v1059
    %v5356 = vunpack.c.l.b16 %v1060
    %v5357 = vunpack.c.h.b16 %v1060
    %v5358 = vunpack.c.l.b16 %v1061
    %v5359 = vunpack.c.h.b16 %v1061
    %v5360 = vunpack.c.l.b16 %v1062
    %v5361 = vunpack.c.h.b16 %v1062
    %v5362 = vunpack.c.l.b16 %v1063
    %v5363 = vunpack.c.h.b16 %v1063
    %v5364 = vunpack.c.l.b16 %v1064
    %v5365 = vunpack.c.h.b16 %v1064
    %v5366 = vunpack.c.l.b16 %v1065
    %v5367 = vunpack.c.h.b16 %v1065
    %v5368 = vunpack.c.l.b16 %v1066
    %v5369 = vunpack.c.h.b16 %v1066
    %v5370 = vunpack.c.l.b16 %v1067
    %v5371 = vunpack.c.h.b16 %v1067
    %v5372 = vunpack.c.l.b16 %v1068
    %v5373 = vunpack.c.h.b16 %v1068
    %v5374 = vunpack.c.l.b16 %v1069
    %v5375 = vunpack.c.h.b16 %v1069
    %v5376 = vunpack.c.l.b16 %v1070
    %v5377 = vunpack.c.h.b16 %v1070
    %v5378 = vunpack.c.l.b16 %v1071
    %v5379 = vunpack.c.h.b16 %v1071
    %v5380 = vunpack.c.l.b16 %v1072
    %v5381 = vunpack.c.h.b16 %v1072
    %v5382 = vunpack.c.l.b16 %v1073
    %v5383 = vunpack.c.h.b16 %v1073
    %v5384 = vunpack.c.l.b16 %v1074
    %v5385 = vunpack.c.h.b16 %v1074
    %v5386 = vunpack.c.l.b16 %v1075
    %v5387 = vunpack.c.h.b16 %v1075
    %v5388 = vunpack.c.l.b16 %v1076
    %v5389 = vunpack.c.h.b16 %v1076
    %v5390 = vunpack.c.l.b16 %v1077
    %v5391 = vunpack.c.h.b16 %v1077
    %v5392 = vunpack.c.l.b16 %v1078
    %v5393 = vunpack.c.h.b16 %v1078
    %v5394 = vunpack.c.l.b16 %v1079
    %v5395 = vunpack.c.h.b16 %v1079
    %v5396 = vunpack.c.l.b16 %v1080
    %v5397 = vunpack.c.h.b16 %v1080
    %v5398 = vunpack.c.l.b16 %v1081
    %v5399 = vunpack.c.h.b16 %v1081
    %v5400 = vunpack.c.l.b16 %v1082
    %v5401 = vunpack.c.h.b16 %v1082
    %v5402 = vunpack.c.l.b16 %v1083
    %v5403 = vunpack.c.h.b16 %v1083
    %v5404 = vunpack.c.l.b16 %v1084
    %v5405 = vunpack.c.h.b16 %v1084
    %v5406 = vunpack.c.l.b16 %v1085
    %v5407 = vunpack.c.h.b16 %v1085
    %v5408 = vunpack.c.l.b16 %v1086
    %v5409 = vunpack.c.h.b16 %v1086
    %v5410 = vunpack.c.l.b16 %v1087
    %v5411 = vunpack.c.h.b16 %v1087
    %v5412 = vunpack.c.l.b16 %v1088
    %v5413 = vunpack.c.h.b16 %v1088
    %v5414 = vunpack.c.l.b16 %v1089
    %v5415 = vunpack.c.h.b16 %v1089
    %v5416 = vunpack.c.l.b16 %v1090
    %v5417 = vunpack.c.h.b16 %v1090
    %v5418 = vunpack.c.l.b16 %v1091
    %v5419 = vunpack.c.h.b16 %v1091
    %v5420 = vunpack.c.l.b16 %v1092
    %v5421 = vunpack.c.h.b16 %v1092
    %v5422 = vunpack.c.l.b16 %v1093
    %v5423 = vunpack.c.h.b16 %v1093
    %v5424 = vunpack.c.l.b16 %v1094
    %v5425 = vunpack.c.h.b16 %v1094
    %v5426 = vunpack.c.l.b16 %v1095
    %v5427 = vunpack.c.h.b16 %v1095
    %v5428 = vunpack.c.l.b16 %v1096
    %v5429 = vunpack.c.h.b16 %v1096
    %v5430 = vunpack.c.l.b16 %v1097
    %v5431 = vunpack.c.h.b16 %v1097
    %v5432 = vunpack.c.l.b16 %v1098
    %v5433 = vunpack.c.h.b16 %v1098
    %v5434 = vunpack.c.l.b16 %v1099
    %v5435 = vunpack.c.h.b16 %v1099
    %v5436 = vunpack.c.l.b16 %v1100
    %v5437 = vunpack.c.h.b16 %v1100
    %v5438 = vunpack.c.l.b16 %v1101
    %v5439 = vunpack.c.h.b16 %v1101
    %v5440 = vunpack.c.l.b16 %v1102
    %v5441 = vunpack.c.h.b16 %v1102
    %v5442 = vunpack.c.l.b16 %v1103
    %v5443 = vunpack.c.h.b16 %v1103
    %v5444 = vunpack.c.l.b16 %v1104
    %v5445 = vunpack.c.h.b16 %v1104
    %v5446 = vunpack.c.l.b16 %v1105
    %v5447 = vunpack.c.h.b16 %v1105
    %v5448 = vunpack.c.l.b16 %v1106
    %v5449 = vunpack.c.h.b16 %v1106
    %v5450 = vunpack.c.l.b16 %v1107
    %v5451 = vunpack.c.h.b16 %v1107
    %v5452 = vunpack.c.l.b16 %v1108
    %v5453 = vunpack.c.h.b16 %v1108
    %v5454 = vunpack.c.l.b16 %v1109
    %v5455 = vunpack.c.h.b16 %v1109
    %v5456 = vunpack.c.l.b16 %v1110
    %v5457 = vunpack.c.h.b16 %v1110
    %v5458 = vunpack.c.l.b16 %v1111
    %v5459 = vunpack.c.h.b16 %v1111
    %v5460 = vunpack.c.l.b16 %v1112
    %v5461 = vunpack.c.h.b16 %v1112
    %v5462 = vunpack.c.l.b16 %v1113
    %v5463 = vunpack.c.h.b16 %v1113
    %v5464 = vunpack.c.l.b16 %v1114
    %v5465 = vunpack.c.h.b16 %v1114
    %v5466 = vunpack.c.l.b16 %v1115
    %v5467 = vunpack.c.h.b16 %v1115
    %v5468 = vunpack.c.l.b16 %v1116
    %v5469 = vunpack.c.h.b16 %v1116
    %v5470 = vunpack.c.l.b16 %v1117
    %v5471 = vunpack.c.h.b16 %v1117
    %v5472 = vunpack.c.l.b16 %v1118
    %v5473 = vunpack.c.h.b16 %v1118
    %v5474 = vunpack.c.l.b16 %v1119
    %v5475 = vunpack.c.h.b16 %v1119
    %v5476 = vunpack.c.l.b16 %v1120
    %v5477 = vunpack.c.h.b16 %v1120
    %v5478 = vunpack.c.l.b16 %v1121
    %v5479 = vunpack.c.h.b16 %v1121
    %v5480 = vunpack.c.l.b16 %v1122
    %v5481 = vunpack.c.h.b16 %v1122
    %v5482 = vunpack.c.l.b16 %v1123
    %v5483 = vunpack.c.h.b16 %v1123
    %v5484 = vunpack.c.l.b16 %v1124
    %v5485 = vunpack.c.h.b16 %v1124
    %v5486 = vunpack.c.l.b16 %v1125
    %v5487 = vunpack.c.h.b16 %v1125
    %v5488 = vunpack.c.l.b16 %v1126
    %v5489 = vunpack.c.h.b16 %v1126
    %v5490 = vunpack.c.l.b16 %v1127
    %v5491 = vunpack.c.h.b16 %v1127
    %v5492 = vunpack.c.l.b16 %v1128
    %v5493 = vunpack.c.h.b16 %v1128
    %v5494 = vunpack.c.l.b16 %v1129
    %v5495 = vunpack.c.h.b16 %v1129
    %v5496 = vunpack.c.l.b16 %v1130
    %v5497 = vunpack.c.h.b16 %v1130
    %v5498 = vunpack.c.l.b16 %v1131
    %v5499 = vunpack.c.h.b16 %v1131
    %v5500 = vunpack.c.l.b16 %v1132
    %v5501 = vunpack.c.h.b16 %v1132
    %v5502 = vunpack.c.l.b16 %v1133
    %v5503 = vunpack.c.h.b16 %v1133
    %v5504 = vunpack.c.l.b16 %v1134
    %v5505 = vunpack.c.h.b16 %v1134
    %v5506 = vunpack.c.l.b16 %v1135
    %v5507 = vunpack.c.h.b16 %v1135
    %v5508 = vunpack.c.l.b16 %v1136
    %v5509 = vunpack.c.h.b16 %v1136
    %v5510 = vunpack.c.l.b16 %v1137
    %v5511 = vunpack.c.h.b16 %v1137
    %v5512 = vunpack.c.l.b16 %v1138
    %v5513 = vunpack.c.h.b16 %v1138
    %v5514 = vunpack.c.l.b16 %v1139
    %v5515 = vunpack.c.h.b16 %v1139
    %v5516 = vunpack.c.l.b16 %v1140
    %v5517 = vunpack.c.h.b16 %v1140
    %v5518 = vunpack.c.l.b16 %v1141
    %v5519 = vunpack.c.h.b16 %v1141
    %v5520 = vunpack.c.l.b16 %v1142
    %v5521 = vunpack.c.h.b16 %v1142
    %v5522 = vunpack.c.l.b16 %v1143
    %v5523 = vunpack.c.h.b16 %v1143
    %v5524 = vunpack.c.l.b16 %v1144
    %v5525 = vunpack.c.h.b16 %v1144
    %v5526 = vunpack.c.l.b16 %v1145
    %v5527 = vunpack.c.h.b16 %v1145
    %v5528 = vunpack.c.l.b16 %v1146
    %v5529 = vunpack.c.h.b16 %v1146
    %v5530 = vunpack.c.l.b16 %v1147
    %v5531 = vunpack.c.h.b16 %v1147
    %v5532 = vunpack.c.l.b16 %v1148
    %v5533 = vunpack.c.h.b16 %v1148
    %v5534 = vunpack.c.l.b16 %v1149
    %v5535 = vunpack.c.h.b16 %v1149
    %v5536 = vunpack.c.l.b16 %v1150
    %v5537 = vunpack.c.h.b16 %v1150
    %v5538 = vunpack.c.l.b16 %v1151
    %v5539 = vunpack.c.h.b16 %v1151
    %v5540 = vunpack.c.l.b16 %v1152
    %v5541 = vunpack.c.h.b16 %v1152
    %v5542 = vunpack.c.l.b16 %v1153
    %v5543 = vunpack.c.h.b16 %v1153
    %v5544 = vunpack.c.l.b16 %v1154
    %v5545 = vunpack.c.h.b16 %v1154
    %v5546 = vunpack.c.l.b16 %v1155
    %v5547 = vunpack.c.h.b16 %v1155
    %v5548 = vunpack.c.l.b16 %v1156
    %v5549 = vunpack.c.h.b16 %v1156
    %v5550 = vunpack.c.l.b16 %v1157
    %v5551 = vunpack.c.h.b16 %v1157
    %v5552 = vunpack.c.l.b16 %v1158
    %v5553 = vunpack.c.h.b16 %v1158
    %v5554 = vunpack.c.l.b16 %v1159
    %v5555 = vunpack.c.h.b16 %v1159
    %v5556 = vunpack.c.l.b16 %v1160
    %v5557 = vunpack.c.h.b16 %v1160
    %v5558 = vunpack.c.l.b16 %v1161
    %v5559 = vunpack.c.h.b16 %v1161
    %v5560 = vunpack.c.l.b16 %v1162
    %v5561 = vunpack.c.h.b16 %v1162
    %v5562 = vunpack.c.l.b16 %v1163
    %v5563 = vunpack.c.h.b16 %v1163
    %v5564 = vunpack.c.l.b16 %v1164
    %v5565 = vunpack.c.h.b16 %v1164
    %v5566 = vunpack.c.l.b16 %v1165
    %v5567 = vunpack.c.h.b16 %v1165
    %v5568 = vunpack.c.l.b16 %v1166
    %v5569 = vunpack.c.h.b16 %v1166
    %v5570 = vunpack.c.l.b16 %v1167
    %v5571 = vunpack.c.h.b16 %v1167
    %v5572 = vunpack.c.l.b16 %v1168
    %v5573 = vunpack.c.h.b16 %v1168
    %v5574 = vunpack.c.l.b16 %v1169
    %v5575 = vunpack.c.h.b16 %v1169
    %v5576 = vunpack.c.l.b16 %v1170
    %v5577 = vunpack.c.h.b16 %v1170
    %v5578 = vunpack.c.l.b16 %v1171
    %v5579 = vunpack.c.h.b16 %v1171
    %v5580 = vunpack.c.l.b16 %v1172
    %v5581 = vunpack.c.h.b16 %v1172
    %v5582 = vunpack.c.l.b16 %v1173
    %v5583 = vunpack.c.h.b16 %v1173
    %v5584 = vunpack.c.l.b16 %v1174
    %v5585 = vunpack.c.h.b16 %v1174
    %v5586 = vunpack.c.l.b16 %v1175
    %v5587 = vunpack.c.h.b16 %v1175
    %v5588 = vunpack.c.l.b16 %v1176
    %v5589 = vunpack.c.h.b16 %v1176
    %v5590 = vunpack.c.l.b16 %v1177
    %v5591 = vunpack.c.h.b16 %v1177
    %v5592 = vunpack.c.l.b16 %v1178
    %v5593 = vunpack.c.h.b16 %v1178
    %v5594 = vunpack.c.l.b16 %v1179
    %v5595 = vunpack.c.h.b16 %v1179
    %v5596 = vunpack.c.l.b16 %v1180
    %v5597 = vunpack.c.h.b16 %v1180
    %v5598 = vunpack.c.l.b16 %v1181
    %v5599 = vunpack.c.h.b16 %v1181
    %v5600 = vunpack.c.l.b16 %v1182
    %v5601 = vunpack.c.h.b16 %v1182
    %v5602 = vunpack.c.l.b16 %v1183
    %v5603 = vunpack.c.h.b16 %v1183
    %v5604 = vunpack.c.l.b16 %v1184
    %v5605 = vunpack.c.h.b16 %v1184
    %v5606 = vunpack.c.l.b16 %v1185
    %v5607 = vunpack.c.h.b16 %v1185
    %v5608 = vunpack.c.l.b16 %v1186
    %v5609 = vunpack.c.h.b16 %v1186
    %v5610 = vunpack.c.l.b16 %v1187
    %v5611 = vunpack.c.h.b16 %v1187
    %v5612 = vunpack.c.l.b16 %v1188
    %v5613 = vunpack.c.h.b16 %v1188
    %v5614 = vunpack.c.l.b16 %v1189
    %v5615 = vunpack.c.h.b16 %v1189
    %v5616 = vunpack.c.l.b16 %v1190
    %v5617 = vunpack.c.h.b16 %v1190
    %v5618 = vunpack.c.l.b16 %v1191
    %v5619 = vunpack.c.h.b16 %v1191
    %v5620 = vunpack.c.l.b16 %v1192
    %v5621 = vunpack.c.h.b16 %v1192
    %v5622 = vunpack.c.l.b16 %v1193
    %v5623 = vunpack.c.h.b16 %v1193
    %v5624 = vunpack.c.l.b16 %v1194
    %v5625 = vunpack.c.h.b16 %v1194
    %v5626 = vunpack.c.l.b16 %v1195
    %v5627 = vunpack.c.h.b16 %v1195
    %v5628 = vunpack.c.l.b16 %v1196
    %v5629 = vunpack.c.h.b16 %v1196
    %v5630 = vunpack.c.l.b16 %v1197
    %v5631 = vunpack.c.h.b16 %v1197
    %v5632 = vunpack.c.l.b16 %v1198
    %v5633 = vunpack.c.h.b16 %v1198
    %v5634 = vunpack.c.l.b16 %v1199
    %v5635 = vunpack.c.h.b16 %v1199
    %v5636 = vunpack.c.l.b16 %v1200
    %v5637 = vunpack.c.h.b16 %v1200
    %v5638 = vunpack.c.l.b16 %v1201
    %v5639 = vunpack.c.h.b16 %v1201
    %v5640 = vunpack.c.l.b16 %v1202
    %v5641 = vunpack.c.h.b16 %v1202
    %v5642 = vunpack.c.l.b16 %v1203
    %v5643 = vunpack.c.h.b16 %v1203
    %v5644 = vunpack.c.l.b16 %v1204
    %v5645 = vunpack.c.h.b16 %v1204
    %v5646 = vunpack.c.l.b16 %v1205
    %v5647 = vunpack.c.h.b16 %v1205
    %v5648 = vunpack.c.l.b16 %v1206
    %v5649 = vunpack.c.h.b16 %v1206
    %v5650 = vunpack.c.l.b16 %v1207
    %v5651 = vunpack.c.h.b16 %v1207
    %v5652 = vunpack.c.l.b16 %v1208
    %v5653 = vunpack.c.h.b16 %v1208
    %v5654 = vunpack.c.l.b16 %v1209
    %v5655 = vunpack.c.h.b16 %v1209
    %v5656 = vunpack.c.l.b16 %v1210
    %v5657 = vunpack.c.h.b16 %v1210
    %v5658 = vunpack.c.l.b16 %v1211
    %v5659 = vunpack.c.h.b16 %v1211
    %v5660 = vunpack.c.l.b16 %v1212
    %v5661 = vunpack.c.h.b16 %v1212
    %v5662 = vunpack.c.l.b16 %v1213
    %v5663 = vunpack.c.h.b16 %v1213
    %v5664 = vunpack.c.l.b16 %v1214
    %v5665 = vunpack.c.h.b16 %v1214
    %v5666 = vunpack.c.l.b16 %v1215
    %v5667 = vunpack.c.h.b16 %v1215
    %v5668 = vunpack.c.l.b16 %v1216
    %v5669 = vunpack.c.h.b16 %v1216
    %v5670 = vunpack.c.l.b16 %v1217
    %v5671 = vunpack.c.h.b16 %v1217
    %v5672 = vunpack.c.l.b16 %v1218
    %v5673 = vunpack.c.h.b16 %v1218
    %v5674 = vunpack.c.l.b16 %v1219
    %v5675 = vunpack.c.h.b16 %v1219
    %v5676 = vunpack.c.l.b16 %v1220
    %v5677 = vunpack.c.h.b16 %v1220
    %v5678 = vunpack.c.l.b16 %v1221
    %v5679 = vunpack.c.h.b16 %v1221
    %v5680 = vunpack.c.l.b16 %v1222
    %v5681 = vunpack.c.h.b16 %v1222
    %v5682 = vunpack.c.l.b16 %v1223
    %v5683 = vunpack.c.h.b16 %v1223
    %v5684 = vunpack.c.l.b16 %v1224
    %v5685 = vunpack.c.h.b16 %v1224
    %v5686 = vunpack.c.l.b16 %v1225
    %v5687 = vunpack.c.h.b16 %v1225
    %v5688 = vunpack.c.l.b16 %v1226
    %v5689 = vunpack.c.h.b16 %v1226
    %v5690 = vunpack.c.l.b16 %v1227
    %v5691 = vunpack.c.h.b16 %v1227
    %v5692 = vunpack.c.l.b16 %v1228
    %v5693 = vunpack.c.h.b16 %v1228
    %v5694 = vunpack.c.l.b16 %v1229
    %v5695 = vunpack.c.h.b16 %v1229
    %v5696 = vunpack.c.l.b16 %v1230
    %v5697 = vunpack.c.h.b16 %v1230
    %v5698 = vunpack.c.l.b16 %v1231
    %v5699 = vunpack.c.h.b16 %v1231
    %v5700 = vunpack.c.l.b16 %v1232
    %v5701 = vunpack.c.h.b16 %v1232
    %v5702 = vunpack.c.l.b16 %v1233
    %v5703 = vunpack.c.h.b16 %v1233
    %v5704 = vunpack.c.l.b16 %v1234
    %v5705 = vunpack.c.h.b16 %v1234
    %v5706 = vunpack.c.l.b16 %v1235
    %v5707 = vunpack.c.h.b16 %v1235
    %v5708 = vunpack.c.l.b16 %v1236
    %v5709 = vunpack.c.h.b16 %v1236
    %v5710 = vunpack.c.l.b16 %v1237
    %v5711 = vunpack.c.h.b16 %v1237
    %v5712 = vunpack.c.l.b16 %v1238
    %v5713 = vunpack.c.h.b16 %v1238
    %v5714 = vunpack.c.l.b16 %v1239
    %v5715 = vunpack.c.h.b16 %v1239
    %v5716 = vunpack.c.l.b16 %v1240
    %v5717 = vunpack.c.h.b16 %v1240
    %v5718 = vunpack.c.l.b16 %v1241
    %v5719 = vunpack.c.h.b16 %v1241
    %v5720 = vunpack.c.l.b16 %v1242
    %v5721 = vunpack.c.h.b16 %v1242
    %v5722 = vunpack.c.l.b16 %v1243
    %v5723 = vunpack.c.h.b16 %v1243
    %v5724 = vunpack.c.l.b16 %v1244
    %v5725 = vunpack.c.h.b16 %v1244
    %v5726 = vunpack.c.l.b16 %v1245
    %v5727 = vunpack.c.h.b16 %v1245
    %v5728 = vunpack.c.l.b16 %v1246
    %v5729 = vunpack.c.h.b16 %v1246
    %v5730 = vunpack.c.l.b16 %v1247
    %v5731 = vunpack.c.h.b16 %v1247
    %v5732 = vunpack.c.l.b16 %v1248
    %v5733 = vunpack.c.h.b16 %v1248
    %v5734 = vunpack.c.l.b16 %v1249
    %v5735 = vunpack.c.h.b16 %v1249
    %v5736 = vunpack.c.l.b16 %v1250
    %v5737 = vunpack.c.h.b16 %v1250
    %v5738 = vunpack.c.l.b16 %v1251
    %v5739 = vunpack.c.h.b16 %v1251
    %v5740 = vunpack.c.l.b16 %v1252
    %v5741 = vunpack.c.h.b16 %v1252
    %v5742 = vunpack.c.l.b16 %v1253
    %v5743 = vunpack.c.h.b16 %v1253
    %v5744 = vunpack.c.l.b16 %v1254
    %v5745 = vunpack.c.h.b16 %v1254
    %v5746 = vunpack.c.l.b16 %v1255
    %v5747 = vunpack.c.h.b16 %v1255
    %v5748 = vunpack.c.l.b16 %v1256
    %v5749 = vunpack.c.h.b16 %v1256
    %v5750 = vunpack.c.l.b16 %v1257
    %v5751 = vunpack.c.h.b16 %v1257
    %v5752 = vunpack.c.l.b16 %v1258
    %v5753 = vunpack.c.h.b16 %v1258
    %v5754 = vunpack.c.l.b16 %v1259
    %v5755 = vunpack.c.h.b16 %v1259
    %v5756 = vunpack.c.l.b16 %v1260
    %v5757 = vunpack.c.h.b16 %v1260
    %v5758 = vunpack.c.l.b16 %v1261
    %v5759 = vunpack.c.h.b16 %v1261
    %v5760 = vunpack.c.l.b16 %v1262
    %v5761 = vunpack.c.h.b16 %v1262
    %v5762 = vunpack.c.l.b16 %v1263
    %v5763 = vunpack.c.h.b16 %v1263
    %v5764 = vunpack.c.l.b16 %v1264
    %v5765 = vunpack.c.h.b16 %v1264
    %v5766 = vunpack.c.l.b16 %v1265
    %v5767 = vunpack.c.h.b16 %v1265
    %v5768 = vunpack.c.l.b16 %v1266
    %v5769 = vunpack.c.h.b16 %v1266
    %v5770 = vunpack.c.l.b16 %v1267
    %v5771 = vunpack.c.h.b16 %v1267
    %v5772 = vunpack.c.l.b16 %v1268
    %v5773 = vunpack.c.h.b16 %v1268
    %v5774 = vunpack.c.l.b16 %v1269
    %v5775 = vunpack.c.h.b16 %v1269
    %v5776 = vunpack.c.l.b16 %v1270
    %v5777 = vunpack.c.h.b16 %v1270
    %v5778 = vunpack.c.l.b16 %v1271
    %v5779 = vunpack.c.h.b16 %v1271
    %v5780 = vunpack.c.l.b16 %v1272
    %v5781 = vunpack.c.h.b16 %v1272
    %v5782 = vunpack.c.l.b16 %v1273
    %v5783 = vunpack.c.h.b16 %v1273
    %v5784 = vunpack.c.l.b16 %v1274
    %v5785 = vunpack.c.h.b16 %v1274
    %v5786 = vunpack.c.l.b16 %v1275
    %v5787 = vunpack.c.h.b16 %v1275
    %v5788 = vunpack.c.l.b16 %v1276
    %v5789 = vunpack.c.h.b16 %v1276
    %v5790 = vunpack.c.l.b16 %v1277
    %v5791 = vunpack.c.h.b16 %v1277
    %v5792 = vunpack.c.l.b16 %v1278
    %v5793 = vunpack.c.h.b16 %v1278
    %v5794 = vunpack.c.l.b16 %v1279
    %v5795 = vunpack.c.h.b16 %v1279
    %v5796 = vunpack.c.l.b16 %v1280
    %v5797 = vunpack.c.h.b16 %v1280
    %v5798 = vunpack.c.l.b16 %v1281
    %v5799 = vunpack.c.h.b16 %v1281
    %v5800 = vunpack.c.l.b16 %v1282
    %v5801 = vunpack.c.h.b16 %v1282
    %v5802 = vunpack.c.l.b16 %v1283
    %v5803 = vunpack.c.h.b16 %v1283
    %v5804 = vunpack.c.l.b16 %v1284
    %v5805 = vunpack.c.h.b16 %v1284
    %v5806 = vunpack.c.l.b16 %v1285
    %v5807 = vunpack.c.h.b16 %v1285
    %v5808 = vunpack.c.l.b16 %v1286
    %v5809 = vunpack.c.h.b16 %v1286
    %v5810 = vunpack.c.l.b16 %v1287
    %v5811 = vunpack.c.h.b16 %v1287
    %v5812 = vunpack.c.l.b16 %v1288
    %v5813 = vunpack.c.h.b16 %v1288
    %v5814 = vunpack.c.l.b16 %v1289
    %v5815 = vunpack.c.h.b16 %v1289
    %v5816 = vunpack.c.l.b16 %v1290
    %v5817 = vunpack.c.h.b16 %v1290
    %v5818 = vunpack.c.l.b16 %v1291
    %v5819 = vunpack.c.h.b16 %v1291
    %v5820 = vunpack.c.l.b16 %v1292
    %v5821 = vunpack.c.h.b16 %v1292
    %v5822 = vunpack.c.l.b16 %v1293
    %v5823 = vunpack.c.h.b16 %v1293
    %v5824 = vunpack.c.l.b16 %v1294
    %v5825 = vunpack.c.h.b16 %v1294
    %v5826 = vunpack.c.l.b16 %v1295
    %v5827 = vunpack.c.h.b16 %v1295
    %v5828 = vunpack.c.l.b16 %v1296
    %v5829 = vunpack.c.h.b16 %v1296
    %v5830 = vunpack.c.l.b16 %v1297
    %v5831 = vunpack.c.h.b16 %v1297
    %v5832 = vunpack.c.l.b16 %v1298
    %v5833 = vunpack.c.h.b16 %v1298
    %v5834 = vunpack.c.l.b16 %v1299
    %v5835 = vunpack.c.h.b16 %v1299
    %v5836 = vunpack.c.l.b16 %v1300
    %v5837 = vunpack.c.h.b16 %v1300
    %v5838 = vunpack.c.l.b16 %v1301
    %v5839 = vunpack.c.h.b16 %v1301
    %v5840 = vunpack.c.l.b16 %v1302
    %v5841 = vunpack.c.h.b16 %v1302
    %v5842 = vunpack.c.l.b16 %v1303
    %v5843 = vunpack.c.h.b16 %v1303
    %v5844 = vunpack.c.l.b16 %v1304
    %v5845 = vunpack.c.h.b16 %v1304
    %v5846 = vunpack.c.l.b16 %v1305
    %v5847 = vunpack.c.h.b16 %v1305
    %v5848 = vunpack.c.l.b16 %v1306
    %v5849 = vunpack.c.h.b16 %v1306
    %v5850 = vunpack.c.l.b16 %v1307
    %v5851 = vunpack.c.h.b16 %v1307
    %v5852 = vunpack.c.l.b16 %v1308
    %v5853 = vunpack.c.h.b16 %v1308
    %v5854 = vunpack.c.l.b16 %v1309
    %v5855 = vunpack.c.h.b16 %v1309
    %v5856 = vunpack.c.l.b16 %v1310
    %v5857 = vunpack.c.h.b16 %v1310
    %v5858 = vunpack.c.l.b16 %v1311
    %v5859 = vunpack.c.h.b16 %v1311
    %v5860 = vunpack.c.l.b16 %v1312
    %v5861 = vunpack.c.h.b16 %v1312
    %v5862 = vunpack.c.l.b16 %v1313
    %v5863 = vunpack.c.h.b16 %v1313
    %v5864 = vunpack.c.l.b16 %v1314
    %v5865 = vunpack.c.h.b16 %v1314
    %v5866 = vunpack.c.l.b16 %v1315
    %v5867 = vunpack.c.h.b16 %v1315
    %v5868 = vunpack.c.l.b16 %v1316
    %v5869 = vunpack.c.h.b16 %v1316
    %v5870 = vunpack.c.l.b16 %v1317
    %v5871 = vunpack.c.h.b16 %v1317
    %v5872 = vunpack.c.l.b16 %v1318
    %v5873 = vunpack.c.h.b16 %v1318
    %v5874 = vunpack.c.l.b16 %v1319
    %v5875 = vunpack.c.h.b16 %v1319
    %v5876 = vunpack.c.l.b16 %v1320
    %v5877 = vunpack.c.h.b16 %v1320
    %v5878 = vunpack.c.l.b16 %v1321
    %v5879 = vunpack.c.h.b16 %v1321
    %v5880 = vunpack.c.l.b16 %v1322
    %v5881 = vunpack.c.h.b16 %v1322
    %v5882 = vunpack.c.l.b16 %v1323
    %v5883 = vunpack.c.h.b16 %v1323
    %v5884 = vunpack.c.l.b16 %v1324
    %v5885 = vunpack.c.h.b16 %v1324
    %v5886 = vunpack.c.l.b16 %v1325
    %v5887 = vunpack.c.h.b16 %v1325
    %v5888 = vunpack.c.l.b16 %v1326
    %v5889 = vunpack.c.h.b16 %v1326
    %v5890 = vunpack.c.l.b16 %v1327
    %v5891 = vunpack.c.h.b16 %v1327
    %v5892 = vunpack.c.l.b16 %v1328
    %v5893 = vunpack.c.h.b16 %v1328
    %v5894 = vunpack.c.l.b16 %v1329
    %v5895 = vunpack.c.h.b16 %v1329
    %v5896 = vunpack.c.l.b16 %v1330
    %v5897 = vunpack.c.h.b16 %v1330
    %v5898 = vunpack.c.l.b16 %v1331
    %v5899 = vunpack.c.h.b16 %v1331
    %v5900 = vunpack.c.l.b16 %v1332
    %v5901 = vunpack.c.h.b16 %v1332
    %v5902 = vunpack.c.l.b16 %v1333
    %v5903 = vunpack.c.h.b16 %v1333
    %v5904 = vunpack.c.l.b16 %v1334
    %v5905 = vunpack.c.h.b16 %v1334
    %v5906 = vunpack.c.l.b16 %v1335
    %v5907 = vunpack.c.h.b16 %v1335
    %v5908 = vunpack.c.l.b16 %v1336
    %v5909 = vunpack.c.h.b16 %v1336
    %v5910 = vunpack.c.l.b16 %v1337
    %v5911 = vunpack.c.h.b16 %v1337
    %v5912 = vunpack.c.l.b16 %v1338
    %v5913 = vunpack.c.h.b16 %v1338
    %v5914 = vunpack.c.l.b16 %v1339
    %v5915 = vunpack.c.h.b16 %v1339
    %v5916 = vunpack.c.l.b16 %v1340
    %v5917 = vunpack.c.h.b16 %v1340
    %v5918 = vunpack.c.l.b16 %v1341
    %v5919 = vunpack.c.h.b16 %v1341
    %v5920 = vunpack.c.l.b16 %v1342
    %v5921 = vunpack.c.h.b16 %v1342
    %v5922 = vunpack.c.l.b16 %v1343
    %v5923 = vunpack.c.h.b16 %v1343
    %v5924 = vunpack.c.l.b16 %v1344
    %v5925 = vunpack.c.h.b16 %v1344
    %v5926 = vunpack.c.l.b16 %v1345
    %v5927 = vunpack.c.h.b16 %v1345
    %v5928 = vunpack.c.l.b16 %v1346
    %v5929 = vunpack.c.h.b16 %v1346
    %v5930 = vunpack.c.l.b16 %v1347
    %v5931 = vunpack.c.h.b16 %v1347
    %v5932 = vunpack.c.l.b16 %v1348
    %v5933 = vunpack.c.h.b16 %v1348
    %v5934 = vunpack.c.l.b16 %v1349
    %v5935 = vunpack.c.h.b16 %v1349
    %v5936 = vunpack.c.l.b16 %v1350
    %v5937 = vunpack.c.h.b16 %v1350
    %v5938 = vunpack.c.l.b16 %v1351
    %v5939 = vunpack.c.h.b16 %v1351
    %v5940 = vunpack.c.l.b16 %v1352
    %v5941 = vunpack.c.h.b16 %v1352
    %v5942 = vunpack.c.l.b16 %v1353
    %v5943 = vunpack.c.h.b16 %v1353
    %v5944 = vunpack.c.l.b16 %v1354
    %v5945 = vunpack.c.h.b16 %v1354
    %v5946 = vunpack.c.l.b16 %v1355
    %v5947 = vunpack.c.h.b16 %v1355
    %v5948 = vunpack.c.l.b16 %v1356
    %v5949 = vunpack.c.h.b16 %v1356
    %v5950 = vunpack.c.l.b16 %v1357
    %v5951 = vunpack.c.h.b16 %v1357
    %v5952 = vunpack.c.l.b16 %v1358
    %v5953 = vunpack.c.h.b16 %v1358
    %v5954 = vunpack.c.l.b16 %v1359
    %v5955 = vunpack.c.h.b16 %v1359
    %v5956 = vunpack.c.l.b16 %v1360
    %v5957 = vunpack.c.h.b16 %v1360
    %v5958 = vunpack.c.l.b16 %v1361
    %v5959 = vunpack.c.h.b16 %v1361
    %v5960 = vunpack.c.l.b16 %v1362
    %v5961 = vunpack.c.h.b16 %v1362
    %v5962 = vunpack.c.l.b16 %v1363
    %v5963 = vunpack.c.h.b16 %v1363
    %v5964 = vunpack.c.l.b16 %v1364
    %v5965 = vunpack.c.h.b16 %v1364
    %v5966 = vunpack.c.l.b16 %v1365
    %v5967 = vunpack.c.h.b16 %v1365
    %v5968 = vunpack.c.l.b16 %v1366
    %v5969 = vunpack.c.h.b16 %v1366
    %v5970 = vunpack.c.l.b16 %v1367
    %v5971 = vunpack.c.h.b16 %v1367
    %v5972 = vunpack.c.l.b16 %v1368
    %v5973 = vunpack.c.h.b16 %v1368
    %v5974 = vunpack.c.l.b16 %v1369
    %v5975 = vunpack.c.h.b16 %v1369
    %v5976 = vunpack.c.l.b16 %v1370
    %v5977 = vunpack.c.h.b16 %v1370
    %v5978 = vunpack.c.l.b16 %v1371
    %v5979 = vunpack.c.h.b16 %v1371
    %v5980 = vunpack.c.l.b16 %v1372
    %v5981 = vunpack.c.h.b16 %v1372
    %v5982 = vunpack.c.l.b16 %v1373
    %v5983 = vunpack.c.h.b16 %v1373
    %v5984 = vunpack.c.l.b16 %v1374
    %v5985 = vunpack.c.h.b16 %v1374
    %v5986 = vunpack.c.l.b16 %v1375
    %v5987 = vunpack.c.h.b16 %v1375
    %v5988 = vunpack.c.l.b16 %v1376
    %v5989 = vunpack.c.h.b16 %v1376
    %v5990 = vunpack.c.l.b16 %v1377
    %v5991 = vunpack.c.h.b16 %v1377
    %v5992 = vunpack.c.l.b16 %v1378
    %v5993 = vunpack.c.h.b16 %v1378
    %v5994 = vunpack.c.l.b16 %v1379
    %v5995 = vunpack.c.h.b16 %v1379
    %v5996 = vunpack.c.l.b16 %v1380
    %v5997 = vunpack.c.h.b16 %v1380
    %v5998 = vunpack.c.l.b16 %v1381
    %v5999 = vunpack.c.h.b16 %v1381
    %v6000 = vunpack.c.l.b16 %v1382
    %v6001 = vunpack.c.h.b16 %v1382
    %v6002 = vunpack.c.l.b16 %v1383
    %v6003 = vunpack.c.h.b16 %v1383
    %v6004 = vunpack.c.l.b16 %v1384
    %v6005 = vunpack.c.h.b16 %v1384
    %v6006 = vunpack.c.l.b16 %v1385
    %v6007 = vunpack.c.h.b16 %v1385
    %v6008 = vunpack.c.l.b16 %v1386
    %v6009 = vunpack.c.h.b16 %v1386
    %v6010 = vunpack.c.l.b16 %v1387
    %v6011 = vunpack.c.h.b16 %v1387
    %v6012 = vunpack.c.l.b16 %v1388
    %v6013 = vunpack.c.h.b16 %v1388
    %v6014 = vunpack.c.l.b16 %v1389
    %v6015 = vunpack.c.h.b16 %v1389
    %v6016 = vunpack.c.l.b16 %v1390
    %v6017 = vunpack.c.h.b16 %v1390
    %v6018 = vunpack.c.l.b16 %v1391
    %v6019 = vunpack.c.h.b16 %v1391
    %v6020 = vunpack.c.l.b16 %v1392
    %v6021 = vunpack.c.h.b16 %v1392
    %v6022 = vunpack.c.l.b16 %v1393
    %v6023 = vunpack.c.h.b16 %v1393
    %v6024 = vunpack.c.l.b16 %v1394
    %v6025 = vunpack.c.h.b16 %v1394
    %v6026 = vunpack.c.l.b16 %v1395
    %v6027 = vunpack.c.h.b16 %v1395
    %v6028 = vunpack.c.l.b16 %v1396
    %v6029 = vunpack.c.h.b16 %v1396
    %v6030 = vunpack.c.l.b16 %v1397
    %v6031 = vunpack.c.h.b16 %v1397
    %v6032 = vunpack.c.l.b16 %v1398
    %v6033 = vunpack.c.h.b16 %v1398
    %v6034 = vunpack.c.l.b16 %v1399
    %v6035 = vunpack.c.h.b16 %v1399
    %v6036 = vunpack.c.l.b16 %v1400
    %v6037 = vunpack.c.h.b16 %v1400
    %v6038 = vunpack.c.l.b16 %v1401
    %v6039 = vunpack.c.h.b16 %v1401
    %v6040 = vunpack.c.l.b16 %v1402
    %v6041 = vunpack.c.h.b16 %v1402
    %v6042 = vunpack.c.l.b16 %v1403
    %v6043 = vunpack.c.h.b16 %v1403
    %v6044 = vunpack.c.l.b16 %v1404
    %v6045 = vunpack.c.h.b16 %v1404
    %v6046 = vunpack.c.l.b16 %v1405
    %v6047 = vunpack.c.h.b16 %v1405
    %v6048 = vunpack.c.l.b16 %v1406
    %v6049 = vunpack.c.h.b16 %v1406
    %v6050 = vunpack.c.l.b16 %v1407
    %v6051 = vunpack.c.h.b16 %v1407
    %v6052 = vunpack.c.l.b16 %v1408
    %v6053 = vunpack.c.h.b16 %v1408
    %v6054 = vunpack.c.l.b16 %v1409
    %v6055 = vunpack.c.h.b16 %v1409
    %v6056 = vunpack.c.l.b16 %v1410
    %v6057 = vunpack.c.h.b16 %v1410
    %v6058 = vunpack.c.l.b16 %v1411
    %v6059 = vunpack.c.h.b16 %v1411
    %v6060 = vunpack.c.l.b16 %v1412
    %v6061 = vunpack.c.h.b16 %v1412
    %v6062 = vunpack.c.l.b16 %v1413
    %v6063 = vunpack.c.h.b16 %v1413
    %v6064 = vunpack.c.l.b16 %v1414
    %v6065 = vunpack.c.h.b16 %v1414
    %v6066 = vunpack.c.l.b16 %v1415
    %v6067 = vunpack.c.h.b16 %v1415
    %v6068 = vunpack.c.l.b16 %v1416
    %v6069 = vunpack.c.h.b16 %v1416
    %v6070 = vunpack.c.l.b16 %v1417
    %v6071 = vunpack.c.h.b16 %v1417
    %v6072 = vunpack.c.l.b16 %v1418
    %v6073 = vunpack.c.h.b16 %v1418
    %v6074 = vunpack.c.l.b16 %v1419
    %v6075 = vunpack.c.h.b16 %v1419
    %v6076 = vunpack.c.l.b16 %v1420
    %v6077 = vunpack.c.h.b16 %v1420
    %v6078 = vunpack.c.l.b16 %v1421
    %v6079 = vunpack.c.h.b16 %v1421
    %v6080 = vunpack.c.l.b16 %v1422
    %v6081 = vunpack.c.h.b16 %v1422
    %v6082 = vunpack.c.l.b16 %v1423
    %v6083 = vunpack.c.h.b16 %v1423
    %v6084 = vunpack.c.l.b16 %v1424
    %v6085 = vunpack.c.h.b16 %v1424
    %v6086 = vunpack.c.l.b16 %v1425
    %v6087 = vunpack.c.h.b16 %v1425
    %v6088 = vunpack.c.l.b16 %v1426
    %v6089 = vunpack.c.h.b16 %v1426
    %v6090 = vunpack.c.l.b16 %v1427
    %v6091 = vunpack.c.h.b16 %v1427
    %v6092 = vunpack.c.l.b16 %v1428
    %v6093 = vunpack.c.h.b16 %v1428
    %v6094 = vunpack.c.l.b16 %v1429
    %v6095 = vunpack.c.h.b16 %v1429
    %v6096 = vunpack.c.l.b16 %v1430
    %v6097 = vunpack.c.h.b16 %v1430
    %v6098 = vunpack.c.l.b16 %v1431
    %v6099 = vunpack.c.h.b16 %v1431
    %v6100 = vunpack.c.l.b16 %v1432
    %v6101 = vunpack.c.h.b16 %v1432
    %v6102 = vunpack.c.l.b16 %v1433
    %v6103 = vunpack.c.h.b16 %v1433
    %v6104 = vunpack.c.l.b16 %v1434
    %v6105 = vunpack.c.h.b16 %v1434
    %v6106 = vunpack.c.l.b16 %v1435
    %v6107 = vunpack.c.h.b16 %v1435
    %v6108 = vunpack.c.l.b16 %v1436
    %v6109 = vunpack.c.h.b16 %v1436
    %v6110 = vunpack.c.l.b16 %v1437
    %v6111 = vunpack.c.h.b16 %v1437
    %v6112 = vunpack.c.l.b16 %v1438
    %v6113 = vunpack.c.h.b16 %v1438
    %v6114 = vunpack.c.l.b16 %v1439
    %v6115 = vunpack.c.h.b16 %v1439
    %v6116 = vunpack.c.l.b16 %v1440
    %v6117 = vunpack.c.h.b16 %v1440
    %v6118 = vunpack.c.l.b16 %v1441
    %v6119 = vunpack.c.h.b16 %v1441
    %v6120 = vunpack.c.l.b16 %v1442
    %v6121 = vunpack.c.h.b16 %v1442
    %v6122 = vunpack.c.l.b16 %v1443
    %v6123 = vunpack.c.h.b16 %v1443
    %v6124 = vunpack.c.l.b16 %v1444
    %v6125 = vunpack.c.h.b16 %v1444
    %v6126 = vunpack.c.l.b16 %v1445
    %v6127 = vunpack.c.h.b16 %v1445
    %v6128 = vunpack.c.l.b16 %v1446
    %v6129 = vunpack.c.h.b16 %v1446
    %v6130 = vunpack.c.l.b16 %v1447
    %v6131 = vunpack.c.h.b16 %v1447
    %v6132 = vunpack.c.l.b16 %v1448
    %v6133 = vunpack.c.h.b16 %v1448
    %v6134 = vunpack.c.l.b16 %v1449
    %v6135 = vunpack.c.h.b16 %v1449
    %v6136 = vunpack.c.l.b16 %v1450
    %v6137 = vunpack.c.h.b16 %v1450
    %v6138 = vunpack.c.l.b16 %v1451
    %v6139 = vunpack.c.h.b16 %v1451
    %v6140 = vunpack.c.l.b16 %v1452
    %v6141 = vunpack.c.h.b16 %v1452
    %v6142 = vunpack.c.l.b16 %v1453
    %v6143 = vunpack.c.h.b16 %v1453
    %v6144 = vunpack.c.l.b16 %v1454
    %v6145 = vunpack.c.h.b16 %v1454
    %v6146 = vunpack.c.l.b16 %v1455
    %v6147 = vunpack.c.h.b16 %v1455
    %v6148 = vunpack.c.l.b16 %v1456
    %v6149 = vunpack.c.h.b16 %v1456
    %v6150 = vunpack.c.l.b16 %v1457
    %v6151 = vunpack.c.h.b16 %v1457
    %v6152 = vunpack.c.l.b16 %v1458
    %v6153 = vunpack.c.h.b16 %v1458
    %v6154 = vunpack.c.l.b16 %v1459
    %v6155 = vunpack.c.h.b16 %v1459
    %v6156 = vunpack.c.l.b16 %v1460
    %v6157 = vunpack.c.h.b16 %v1460
    %v6158 = vunpack.c.l.b16 %v1461
    %v6159 = vunpack.c.h.b16 %v1461
    %v6160 = vunpack.c.l.b16 %v1462
    %v6161 = vunpack.c.h.b16 %v1462
    %v6162 = vunpack.c.l.b16 %v1463
    %v6163 = vunpack.c.h.b16 %v1463
    %v6164 = vunpack.c.l.b16 %v1464
    %v6165 = vunpack.c.h.b16 %v1464
    %v6166 = vunpack.c.l.b16 %v1465
    %v6167 = vunpack.c.h.b16 %v1465
    %v6168 = vunpack.c.l.b16 %v1466
    %v6169 = vunpack.c.h.b16 %v1466
    %v6170 = vunpack.c.l.b16 %v1467
    %v6171 = vunpack.c.h.b16 %v1467
    %v6172 = vunpack.c.l.b16 %v1468
    %v6173 = vunpack.c.h.b16 %v1468
    %v6174 = vunpack.c.l.b16 %v1469
    %v6175 = vunpack.c.h.b16 %v1469
    %v6176 = vunpack.c.l.b16 %v1470
    %v6177 = vunpack.c.h.b16 %v1470
    %v6178 = vunpack.c.l.b16 %v1471
    %v6179 = vunpack.c.h.b16 %v1471
    %v6180 = vunpack.c.l.b16 %v1472
    %v6181 = vunpack.c.h.b16 %v1472
    %v6182 = vunpack.c.l.b16 %v1473
    %v6183 = vunpack.c.h.b16 %v1473
    %v6184 = vunpack.c.l.b16 %v1474
    %v6185 = vunpack.c.h.b16 %v1474
    %v6186 = vunpack.c.l.b16 %v1475
    %v6187 = vunpack.c.h.b16 %v1475
    %v6188 = vunpack.c.l.b16 %v1476
    %v6189 = vunpack.c.h.b16 %v1476
    %v6190 = vunpack.c.l.b16 %v1477
    %v6191 = vunpack.c.h.b16 %v1477
    %v6192 = vunpack.c.l.b16 %v1478
    %v6193 = vunpack.c.h.b16 %v1478
    %v6194 = vunpack.c.l.b16 %v1479
    %v6195 = vunpack.c.h.b16 %v1479
    %v6196 = vunpack.c.l.b16 %v1480
    %v6197 = vunpack.c.h.b16 %v1480
    %v6198 = vunpack.c.l.b16 %v1481
    %v6199 = vunpack.c.h.b16 %v1481
    %v6200 = vunpack.c.l.b16 %v1482
    %v6201 = vunpack.c.h.b16 %v1482
    %v6202 = vunpack.c.l.b16 %v1483
    %v6203 = vunpack.c.h.b16 %v1483
    %v6204 = vunpack.c.l.b16 %v1484
    %v6205 = vunpack.c.h.b16 %v1484
    %v6206 = vunpack.c.l.b16 %v1485
    %v6207 = vunpack.c.h.b16 %v1485
    %v6208 = vunpack.c.l.b16 %v1486
    %v6209 = vunpack.c.h.b16 %v1486
    %v6210 = vunpack.c.l.b16 %v1487
    %v6211 = vunpack.c.h.b16 %v1487
    %v6212 = vunpack.c.l.b16 %v1488
    %v6213 = vunpack.c.h.b16 %v1488
    %v6214 = vunpack.c.l.b16 %v1489
    %v6215 = vunpack.c.h.b16 %v1489
    %v6216 = vunpack.c.l.b16 %v1490
    %v6217 = vunpack.c.h.b16 %v1490
    %v6218 = vunpack.c.l.b16 %v1491
    %v6219 = vunpack.c.h.b16 %v1491
    %v6220 = vunpack.c.l.b16 %v1492
    %v6221 = vunpack.c.h.b16 %v1492
    %v6222 = vunpack.c.l.b16 %v1493
    %v6223 = vunpack.c.h.b16 %v1493
    %v6224 = vunpack.c.l.b16 %v1494
    %v6225 = vunpack.c.h.b16 %v1494
    %v6226 = vunpack.c.l.b16 %v1495
    %v6227 = vunpack.c.h.b16 %v1495
    %v6228 = vunpack.c.l.b16 %v1496
    %v6229 = vunpack.c.h.b16 %v1496
    %v6230 = vunpack.c.l.b16 %v1497
    %v6231 = vunpack.c.h.b16 %v1497
    %v6232 = vunpack.c.l.b16 %v1498
    %v6233 = vunpack.c.h.b16 %v1498
    %v6234 = vunpack.c.l.b16 %v1499
    %v6235 = vunpack.c.h.b16 %v1499
    %v6236 = vunpack.c.l.b16 %v1500
    %v6237 = vunpack.c.h.b16 %v1500
    %v6238 = vunpack.c.l.b16 %v1501
    %v6239 = vunpack.c.h.b16 %v1501
    %v6240 = vunpack.c.l.b16 %v1502
    %v6241 = vunpack.c.h.b16 %v1502
    %v6242 = vunpack.c.l.b16 %v1503
    %v6243 = vunpack.c.h.b16 %v1503
    %v6244 = vunpack.c.l.b16 %v1504
    %v6245 = vunpack.c.h.b16 %v1504
    %v6246 = vunpack.c.l.b16 %v1505
    %v6247 = vunpack.c.h.b16 %v1505
    %v6248 = vunpack.c.l.b16 %v1506
    %v6249 = vunpack.c.h.b16 %v1506
    %v6250 = vunpack.c.l.b16 %v1507
    %v6251 = vunpack.c.h.b16 %v1507
    %v6252 = vunpack.c.l.b16 %v1508
    %v6253 = vunpack.c.h.b16 %v1508
    %v6254 = vunpack.c.l.b16 %v1509
    %v6255 = vunpack.c.h.b16 %v1509
    %v6256 = vunpack.c.l.b16 %v1510
    %v6257 = vunpack.c.h.b16 %v1510
    %v6258 = vunpack.c.l.b16 %v1511
    %v6259 = vunpack.c.h.b16 %v1511
    %v6260 = vunpack.c.l.b16 %v1512
    %v6261 = vunpack.c.h.b16 %v1512
    %v6262 = vunpack.c.l.b16 %v1513
    %v6263 = vunpack.c.h.b16 %v1513
    %v6264 = vunpack.c.l.b16 %v1514
    %v6265 = vunpack.c.h.b16 %v1514
    %v6266 = vunpack.c.l.b16 %v1515
    %v6267 = vunpack.c.h.b16 %v1515
    %v6268 = vunpack.c.l.b16 %v1516
    %v6269 = vunpack.c.h.b16 %v1516
    %v6270 = vunpack.c.l.b16 %v1517
    %v6271 = vunpack.c.h.b16 %v1517
    %v6272 = vunpack.c.l.b16 %v1518
    %v6273 = vunpack.c.h.b16 %v1518
    %v6274 = vunpack.c.l.b16 %v1519
    %v6275 = vunpack.c.h.b16 %v1519
    %v6276 = vunpack.c.l.b16 %v1520
    %v6277 = vunpack.c.h.b16 %v1520
    %v6278 = vunpack.c.l.b16 %v1521
    %v6279 = vunpack.c.h.b16 %v1521
    %v6280 = vunpack.c.l.b16 %v1522
    %v6281 = vunpack.c.h.b16 %v1522
    %v6282 = vunpack.c.l.b16 %v1523
    %v6283 = vunpack.c.h.b16 %v1523
    %v6284 = vunpack.c.l.b16 %v1524
    %v6285 = vunpack.c.h.b16 %v1524
    %v6286 = vunpack.c.l.b16 %v1525
    %v6287 = vunpack.c.h.b16 %v1525
    %v6288 = vunpack.c.l.b16 %v1526
    %v6289 = vunpack.c.h.b16 %v1526
    %v6290 = vunpack.c.l.b16 %v1527
    %v6291 = vunpack.c.h.b16 %v1527
    %v6292 = vunpack.c.l.b16 %v1528
    %v6293 = vunpack.c.h.b16 %v1528
    %v6294 = vunpack.c.l.b16 %v1529
    %v6295 = vunpack.c.h.b16 %v1529
    %v6296 = vunpack.c.l.b16 %v1530
    %v6297 = vunpack.c.h.b16 %v1530
    %v6298 = vunpack.c.l.b16 %v1531
    %v6299 = vunpack.c.h.b16 %v1531
    %v6300 = vunpack.c.l.b16 %v1532
    %v6301 = vunpack.c.h.b16 %v1532
    %v6302 = vunpack.c.l.b16 %v1533
    %v6303 = vunpack.c.h.b16 %v1533
    %v6304 = vunpack.c.l.b16 %v1534
    %v6305 = vunpack.c.h.b16 %v1534
    %v6306 = vunpack.c.l.b16 %v1535
    %v6307 = vunpack.c.h.b16 %v1535
    %v6308 = vunpack.c.l.b16 %v1536
    %v6309 = vunpack.c.h.b16 %v1536
    %v6310 = vunpack.c.l.b16 %v1537
    %v6311 = vunpack.c.h.b16 %v1537
    %v6312 = vunpack.c.l.b16 %v1538
    %v6313 = vunpack.c.h.b16 %v1538
    %v6314 = vunpack.c.l.b16 %v1539
    %v6315 = vunpack.c.h.b16 %v1539
    %v6316 = vunpack.c.l.b16 %v1540
    %v6317 = vunpack.c.h.b16 %v1540
    %v6318 = vunpack.c.l.b16 %v1541
    %v6319 = vunpack.c.h.b16 %v1541
    %v6320 = vunpack.c.l.b16 %v1542
    %v6321 = vunpack.c.h.b16 %v1542
    %v6322 = vunpack.c.l.b16 %v1543
    %v6323 = vunpack.c.h.b16 %v1543
    %v6324 = vunpack.c.l.b16 %v1544
    %v6325 = vunpack.c.h.b16 %v1544
    %v6326 = vunpack.c.l.b16 %v1545
    %v6327 = vunpack.c.h.b16 %v1545
    %v6328 = vunpack.c.l.b16 %v1546
    %v6329 = vunpack.c.h.b16 %v1546
    %v6330 = vunpack.c.l.b16 %v1547
    %v6331 = vunpack.c.h.b16 %v1547
    %v6332 = vunpack.c.l.b16 %v1548
    %v6333 = vunpack.c.h.b16 %v1548
    %v6334 = vunpack.c.l.b16 %v1549
    %v6335 = vunpack.c.h.b16 %v1549
    %v6336 = vunpack.c.l.b16 %v1550
    %v6337 = vunpack.c.h.b16 %v1550
    %v6338 = vunpack.c.l.b16 %v1551
    %v6339 = vunpack.c.h.b16 %v1551
    %v6340 = vunpack.c.l.b16 %v1552
    %v6341 = vunpack.c.h.b16 %v1552
    %v6342 = vunpack.c.l.b16 %v1553
    %v6343 = vunpack.c.h.b16 %v1553
    %v6344 = vunpack.c.l.b16 %v1554
    %v6345 = vunpack.c.h.b16 %v1554
    %v6346 = vunpack.c.l.b16 %v1555
    %v6347 = vunpack.c.h.b16 %v1555
    %v6348 = vunpack.c.l.b16 %v1556
    %v6349 = vunpack.c.h.b16 %v1556
    %v6350 = vunpack.c.l.b16 %v1557
    %v6351 = vunpack.c.h.b16 %v1557
    %v6352 = vunpack.c.l.b16 %v1558
    %v6353 = vunpack.c.h.b16 %v1558
    %v6354 = vunpack.c.l.b16 %v1559
    %v6355 = vunpack.c.h.b16 %v1559
    %v6356 = vunpack.c.l.b16 %v1560
    %v6357 = vunpack.c.h.b16 %v1560
    %v6358 = vunpack.c.l.b16 %v1561
    %v6359 = vunpack.c.h.b16 %v1561
    %v6360 = vunpack.c.l.b16 %v1562
    %v6361 = vunpack.c.h.b16 %v1562
    %v6362 = vunpack.c.l.b16 %v1563
    %v6363 = vunpack.c.h.b16 %v1563
    %v6364 = vunpack.c.l.b16 %v1564
    %v6365 = vunpack.c.h.b16 %v1564
    %v6366 = vunpack.c.l.b16 %v1565
    %v6367 = vunpack.c.h.b16 %v1565
    %v6368 = vunpack.c.l.b16 %v1566
    %v6369 = vunpack.c.h.b16 %v1566
    %v6370 = vunpack.c.l.b16 %v1567
    %v6371 = vunpack.c.h.b16 %v1567
    %v6372 = vunpack.c.l.b16 %v1568
    %v6373 = vunpack.c.h.b16 %v1568
    %v6374 = vunpack.c.l.b16 %v1569
    %v6375 = vunpack.c.h.b16 %v1569
    %v6376 = vunpack.c.l.b16 %v1570
    %v6377 = vunpack.c.h.b16 %v1570
    %v6378 = vunpack.c.l.b16 %v1571
    %v6379 = vunpack.c.h.b16 %v1571
    %v6380 = vunpack.c.l.b16 %v1572
    %v6381 = vunpack.c.h.b16 %v1572
    %v6382 = vunpack.c.l.b16 %v1573
    %v6383 = vunpack.c.h.b16 %v1573
    %v6384 = vunpack.c.l.b16 %v1574
    %v6385 = vunpack.c.h.b16 %v1574
    %v6386 = vunpack.c.l.b16 %v1575
    %v6387 = vunpack.c.h.b16 %v1575
    %v6388 = vunpack.c.l.b16 %v1576
    %v6389 = vunpack.c.h.b16 %v1576
    %v6390 = vunpack.c.l.b16 %v1577
    %v6391 = vunpack.c.h.b16 %v1577
    %v6392 = vunpack.c.l.b16 %v1578
    %v6393 = vunpack.c.h.b16 %v1578
    %v6394 = vunpack.c.l.b16 %v1579
    %v6395 = vunpack.c.h.b16 %v1579
    %v6396 = vunpack.c.l.b16 %v1580
    %v6397 = vunpack.c.h.b16 %v1580
    %v6398 = vunpack.c.l.b16 %v1581
    %v6399 = vunpack.c.h.b16 %v1581
    %v6400 = vunpack.c.l.b16 %v1582
    %v6401 = vunpack.c.h.b16 %v1582
    %v6402 = vunpack.c.l.b16 %v1583
    %v6403 = vunpack.c.h.b16 %v1583
    %v6404 = vunpack.c.l.b16 %v1584
    %v6405 = vunpack.c.h.b16 %v1584
    %v6406 = vunpack.c.l.b16 %v1585
    %v6407 = vunpack.c.h.b16 %v1585
    %v6408 = vunpack.c.l.b16 %v1586
    %v6409 = vunpack.c.h.b16 %v1586
    %v6410 = vunpack.c.l.b16 %v1587
    %v6411 = vunpack.c.h.b16 %v1587
    %v6412 = vunpack.c.l.b16 %v1588
    %v6413 = vunpack.c.h.b16 %v1588
    %v6414 = vunpack.c.l.b16 %v1589
    %v6415 = vunpack.c.h.b16 %v1589
    %v6416 = vunpack.c.l.b16 %v1590
    %v6417 = vunpack.c.h.b16 %v1590
    %v6418 = vunpack.c.l.b16 %v1591
    %v6419 = vunpack.c.h.b16 %v1591
    %v6420 = vunpack.c.l.b16 %v1592
    %v6421 = vunpack.c.h.b16 %v1592
    %v6422 = vunpack.c.l.b16 %v1593
    %v6423 = vunpack.c.h.b16 %v1593
    %v6424 = vunpack.c.l.b16 %v1594
    %v6425 = vunpack.c.h.b16 %v1594
    %v6426 = vunpack.c.l.b16 %v1595
    %v6427 = vunpack.c.h.b16 %v1595
    %v6428 = vunpack.c.l.b16 %v1596
    %v6429 = vunpack.c.h.b16 %v1596
    %v6430 = vunpack.c.l.b16 %v1597
    %v6431 = vunpack.c.h.b16 %v1597
    %v6432 = vunpack.c.l.b16 %v1598
    %v6433 = vunpack.c.h.b16 %v1598
    %v6434 = vunpack.c.l.b16 %v1599
    %v6435 = vunpack.c.h.b16 %v1599
    %v6436 = vunpack.c.l.b16 %v1600
    %v6437 = vunpack.c.h.b16 %v1600
    %v6438 = vunpack.c.l.b16 %v1601
    %v6439 = vunpack.c.h.b16 %v1601
    %v6440 = vunpack.c.l.b16 %v1602
    %v6441 = vunpack.c.h.b16 %v1602
    %v6442 = vunpack.c.l.b16 %v1603
    %v6443 = vunpack.c.h.b16 %v1603
    %v6444 = vunpack.c.l.b16 %v1604
    %v6445 = vunpack.c.h.b16 %v1604
    %v6446 = vunpack.c.l.b16 %v1605
    %v6447 = vunpack.c.h.b16 %v1605
    %v6448 = vunpack.c.l.b16 %v1606
    %v6449 = vunpack.c.h.b16 %v1606
    %v6450 = vunpack.c.l.b16 %v1607
    %v6451 = vunpack.c.h.b16 %v1607
    %v6452 = vunpack.c.l.b16 %v1608
    %v6453 = vunpack.c.h.b16 %v1608
    %v6454 = vunpack.c.l.b16 %v1609
    %v6455 = vunpack.c.h.b16 %v1609
    %v6456 = vunpack.c.l.b16 %v1610
    %v6457 = vunpack.c.h.b16 %v1610
    %v6458 = vunpack.c.l.b16 %v1611
    %v6459 = vunpack.c.h.b16 %v1611
    %v6460 = vunpack.c.l.b16 %v1612
    %v6461 = vunpack.c.h.b16 %v1612
    %v6462 = vunpack.c.l.b16 %v1613
    %v6463 = vunpack.c.h.b16 %v1613
    %v6464 = vunpack.c.l.b16 %v1614
    %v6465 = vunpack.c.h.b16 %v1614
    %v6466 = vunpack.c.l.b16 %v1615
    %v6467 = vunpack.c.h.b16 %v1615
    %v6468 = vunpack.c.l.b16 %v1616
    %v6469 = vunpack.c.h.b16 %v1616
    %v6470 = vunpack.c.l.b16 %v1617
    %v6471 = vunpack.c.h.b16 %v1617
    %v6472 = vunpack.c.l.b16 %v1618
    %v6473 = vunpack.c.h.b16 %v1618
    %v6474 = vunpack.c.l.b16 %v1619
    %v6475 = vunpack.c.h.b16 %v1619
    %v6476 = vunpack.c.l.b16 %v1620
    %v6477 = vunpack.c.h.b16 %v1620
    %v6478 = vunpack.c.l.b16 %v1621
    %v6479 = vunpack.c.h.b16 %v1621
    %v6480 = vunpack.c.l.b16 %v1622
    %v6481 = vunpack.c.h.b16 %v1622
    %v6482 = vunpack.c.l.b16 %v1623
    %v6483 = vunpack.c.h.b16 %v1623
    %v6484 = vunpack.c.l.b16 %v1624
    %v6485 = vunpack.c.h.b16 %v1624
    %v6486 = vunpack.c.l.b16 %v1625
    %v6487 = vunpack.c.h.b16 %v1625
    %v6488 = vunpack.c.l.b16 %v1626
    %v6489 = vunpack.c.h.b16 %v1626
    %v6490 = vunpack.c.l.b16 %v1627
    %v6491 = vunpack.c.h.b16 %v1627
    %v6492 = vunpack.c.l.b16 %v1628
    %v6493 = vunpack.c.h.b16 %v1628
    %v6494 = vunpack.c.l.b16 %v1629
    %v6495 = vunpack.c.h.b16 %v1629
    %v6496 = vunpack.c.l.b16 %v1630
    %v6497 = vunpack.c.h.b16 %v1630
    %v6498 = vunpack.c.l.b16 %v1631
    %v6499 = vunpack.c.h.b16 %v1631
    %v6500 = vunpack.c.l.b16 %v1632
    %v6501 = vunpack.c.h.b16 %v1632
    %v6502 = vunpack.c.l.b16 %v1633
    %v6503 = vunpack.c.h.b16 %v1633
    %v6504 = vunpack.c.l.b16 %v1634
    %v6505 = vunpack.c.h.b16 %v1634
    %v6506 = vunpack.c.l.b16 %v1635
    %v6507 = vunpack.c.h.b16 %v1635
    %v6508 = vunpack.c.l.b16 %v1636
    %v6509 = vunpack.c.h.b16 %v1636
    %v6510 = vunpack.c.l.b16 %v1637
    %v6511 = vunpack.c.h.b16 %v1637
    %v6512 = vunpack.c.l.b16 %v1638
    %v6513 = vunpack.c.h.b16 %v1638
    %v6514 = vunpack.c.l.b16 %v1639
    %v6515 = vunpack.c.h.b16 %v1639
    %v6516 = vunpack.c.l.b16 %v1640
    %v6517 = vunpack.c.h.b16 %v1640
    %v6518 = vunpack.c.l.b16 %v1641
    %v6519 = vunpack.c.h.b16 %v1641
    %v6520 = vunpack.c.l.b16 %v1642
    %v6521 = vunpack.c.h.b16 %v1642
    %v6522 = vunpack.c.l.b16 %v1643
    %v6523 = vunpack.c.h.b16 %v1643
    %v6524 = vunpack.c.l.b16 %v1644
    %v6525 = vunpack.c.h.b16 %v1644
    %v6526 = vunpack.c.l.b16 %v1645
    %v6527 = vunpack.c.h.b16 %v1645
    %v6528 = vunpack.c.l.b16 %v1646
    %v6529 = vunpack.c.h.b16 %v1646
    %v6530 = vunpack.c.l.b16 %v1647
    %v6531 = vunpack.c.h.b16 %v1647
    %v6532 = vunpack.c.l.b16 %v1648
    %v6533 = vunpack.c.h.b16 %v1648
    %v6534 = vunpack.c.l.b16 %v1649
    %v6535 = vunpack.c.h.b16 %v1649
    %v6536 = vunpack.c.l.b16 %v1650
    %v6537 = vunpack.c.h.b16 %v1650
    %v6538 = vunpack.c.l.b16 %v1651
    %v6539 = vunpack.c.h.b16 %v1651
    %v6540 = vunpack.c.l.b16 %v1652
    %v6541 = vunpack.c.h.b16 %v1652
    %v6542 = vunpack.c.l.b16 %v1653
    %v6543 = vunpack.c.h.b16 %v1653
    %v6544 = vunpack.c.l.b16 %v1654
    %v6545 = vunpack.c.h.b16 %v1654
    %v6546 = vunpack.c.l.b16 %v1655
    %v6547 = vunpack.c.h.b16 %v1655
    %v6548 = vunpack.c.l.b16 %v1656
    %v6549 = vunpack.c.h.b16 %v1656
    %v6550 = vunpack.c.l.b16 %v1657
    %v6551 = vunpack.c.h.b16 %v1657
    %v6552 = vunpack.c.l.b16 %v1658
    %v6553 = vunpack.c.h.b16 %v1658
    %v6554 = vunpack.c.l.b16 %v1659
    %v6555 = vunpack.c.h.b16 %v1659
    %v6556 = vpack.c.b16 %v3376, %v3356
    %v6557 = vpack.c.b16 %v3377, %v3357
    %v6558 = vpack.c.b16 %v3378, %v3358
    %v6559 = vpack.c.b16 %v3379, %v3359
    %v6560 = vpack.c.b16 %v3380, %v3360
    %v6561 = vpack.c.b16 %v3381, %v3361
    %v6562 = vpack.c.b16 %v3382, %v3362
    %v6563 = vpack.c.b16 %v3383, %v3363
    %v6564 = vpack.c.b16 %v3384, %v3364
    %v6565 = vpack.c.b16 %v3385, %v3365
    %v6566 = vpack.c.b16 %v3386, %v3366
    %v6567 = vpack.c.b16 %v3387, %v3367
    %v6568 = vpack.c.b16 %v3388, %v3368
    %v6569 = vpack.c.b16 %v3389, %v3369
    %v6570 = vpack.c.b16 %v3390, %v3370
    %v6571 = vpack.c.b16 %v3391, %v3371
    %v6572 = vpack.c.b16 %v3392, %v3372
    %v6573 = vpack.c.b16 %v3393, %v3373
    %v6574 = vpack.c.b16 %v3394, %v3374
    %v6575 = vpack.c.b16 %v3395, %v3375
    %v6576 = vpack.c.b16 %v3416, %v3396
    %v6577 = vpack.c.b16 %v3417, %v3397
    %v6578 = vpack.c.b16 %v3418, %v3398
    %v6579 = vpack.c.b16 %v3419, %v3399
    %v6580 = vpack.c.b16 %v3420, %v3400
    %v6581 = vpack.c.b16 %v3421, %v3401
    %v6582 = vpack.c.b16 %v3422, %v3402
    %v6583 = vpack.c.b16 %v3423, %v3403
    %v6584 = vpack.c.b16 %v3424, %v3404
    %v6585 = vpack.c.b16 %v3425, %v3405
    %v6586 = vpack.c.b16 %v3426, %v3406
    %v6587 = vpack.c.b16 %v3427, %v3407
    %v6588 = vpack.c.b16 %v3428, %v3408
    %v6589 = vpack.c.b16 %v3429, %v3409
    %v6590 = vpack.c.b16 %v3430, %v3410
    %v6591 = vpack.c.b16 %v3431, %v3411
    %v6592 = vpack.c.b16 %v3432, %v3412
    %v6593 = vpack.c.b16 %v3433, %v3413
    %v6594 = vpack.c.b16 %v3434, %v3414
    %v6595 = vpack.c.b16 %v3435, %v3415
    %v6596 = vpack.c.b16 %v3456, %v3436
    %v6597 = vpack.c.b16 %v3457, %v3437
    %v6598 = vpack.c.b16 %v3458, %v3438
    %v6599 = vpack.c.b16 %v3459, %v3439
    %v6600 = vpack.c.b16 %v3460, %v3440
    %v6601 = vpack.c.b16 %v3461, %v3441
    %v6602 = vpack.c.b16 %v3462, %v3442
    %v6603 = vpack.c.b16 %v3463, %v3443
    %v6604 = vpack.c.b16 %v3464, %v3444
    %v6605 = vpack.c.b16 %v3465, %v3445
    %v6606 = vpack.c.b16 %v3466, %v3446
    %v6607 = vpack.c.b16 %v3467, %v3447
    %v6608 = vpack.c.b16 %v3468, %v3448
    %v6609 = vpack.c.b16 %v3469, %v3449
    %v6610 = vpack.c.b16 %v3470, %v3450
    %v6611 = vpack.c.b16 %v3471, %v3451
    %v6612 = vpack.c.b16 %v3472, %v3452
    %v6613 = vpack.c.b16 %v3473, %v3453
    %v6614 = vpack.c.b16 %v3474, %v3454
    %v6615 = vpack.c.b16 %v3475, %v3455
    %v6616 = vpack.c.b16 %v3496, %v3476
    %v6617 = vpack.c.b16 %v3497, %v3477
    %v6618 = vpack.c.b16 %v3498, %v3478
    %v6619 = vpack.c.b16 %v3499, %v3479
    %v6620 = vpack.c.b16 %v3500, %v3480
    %v6621 = vpack.c.b16 %v3501, %v3481
    %v6622 = vpack.c.b16 %v3502, %v3482
    %v6623 = vpack.c.b16 %v3503, %v3483
    %v6624 = vpack.c.b16 %v3504, %v3484
    %v6625 = vpack.c.b16 %v3505, %v3485
    %v6626 = vpack.c.b16 %v3506, %v3486
    %v6627 = vpack.c.b16 %v3507, %v3487
    %v6628 = vpack.c.b16 %v3508, %v3488
    %v6629 = vpack.c.b16 %v3509, %v3489
    %v6630 = vpack.c.b16 %v3510, %v3490
    %v6631 = vpack.c.b16 %v3511, %v3491
    %v6632 = vpack.c.b16 %v3512, %v3492
    %v6633 = vpack.c.b16 %v3513, %v3493
    %v6634 = vpack.c.b16 %v3514, %v3494
    %v6635 = vpack.c.b16 %v3515, %v3495
    %v6636 = vpack.c.b16 %v3536, %v3516
    %v6637 = vpack.c.b16 %v3537, %v3517
    %v6638 = vpack.c.b16 %v3538, %v3518
    %v6639 = vpack.c.b16 %v3539, %v3519
    %v6640 = vpack.c.b16 %v3540, %v3520
    %v6641 = vpack.c.b16 %v3541, %v3521
    %v6642 = vpack.c.b16 %v3542, %v3522
    %v6643 = vpack.c.b16 %v3543, %v3523
    %v6644 = vpack.c.b16 %v3544, %v3524
    %v6645 = vpack.c.b16 %v3545, %v3525
    %v6646 = vpack.c.b16 %v3546, %v3526
    %v6647 = vpack.c.b16 %v3547, %v3527
    %v6648 = vpack.c.b16 %v3548, %v3528
    %v6649 = vpack.c.b16 %v3549, %v3529
    %v6650 = vpack.c.b16 %v3550, %v3530
    %v6651 = vpack.c.b16 %v3551, %v3531
    %v6652 = vpack.c.b16 %v3552, %v3532
    %v6653 = vpack.c.b16 %v3553, %v3533
    %v6654 = vpack.c.b16 %v3554, %v3534
    %v6655 = vpack.c.b16 %v3555, %v3535
    %v6656 = vpack.c.b16 %v3576, %v3556
    %v6657 = vpack.c.b16 %v3577, %v3557
    %v6658 = vpack.c.b16 %v3578, %v3558
    %v6659 = vpack.c.b16 %v3579, %v3559
    %v6660 = vpack.c.b16 %v3580, %v3560
    %v6661 = vpack.c.b16 %v3581, %v3561
    %v6662 = vpack.c.b16 %v3582, %v3562
    %v6663 = vpack.c.b16 %v3583, %v3563
    %v6664 = vpack.c.b16 %v3584, %v3564
    %v6665 = vpack.c.b16 %v3585, %v3565
    %v6666 = vpack.c.b16 %v3586, %v3566
    %v6667 = vpack.c.b16 %v3587, %v3567
    %v6668 = vpack.c.b16 %v3588, %v3568
    %v6669 = vpack.c.b16 %v3589, %v3569
    %v6670 = vpack.c.b16 %v3590, %v3570
    %v6671 = vpack.c.b16 %v3591, %v3571
    %v6672 = vpack.c.b16 %v3592, %v3572
    %v6673 = vpack.c.b16 %v3593, %v3573
    %v6674 = vpack.c.b16 %v3594, %v3574
    %v6675 = vpack.c.b16 %v3595, %v3575
    %v6676 = vpack.c.b16 %v3616, %v3596
    %v6677 = vpack.c.b16 %v3617, %v3597
    %v6678 = vpack.c.b16 %v3618, %v3598
    %v6679 = vpack.c.b16 %v3619, %v3599
    %v6680 = vpack.c.b16 %v3620, %v3600
    %v6681 = vpack.c.b16 %v3621, %v3601
    %v6682 = vpack.c.b16 %v3622, %v3602
    %v6683 = vpack.c.b16 %v3623, %v3603
    %v6684 = vpack.c.b16 %v3624, %v3604
    %v6685 = vpack.c.b16 %v3625, %v3605
    %v6686 = vpack.c.b16 %v3626, %v3606
    %v6687 = vpack.c.b16 %v3627, %v3607
    %v6688 = vpack.c.b16 %v3628, %v3608
    %v6689 = vpack.c.b16 %v3629, %v3609
    %v6690 = vpack.c.b16 %v3630, %v3610
    %v6691 = vpack.c.b16 %v3631, %v3611
    %v6692 = vpack.c.b16 %v3632, %v3612
    %v6693 = vpack.c.b16 %v3633, %v3613
    %v6694 = vpack.c.b16 %v3634, %v3614
    %v6695 = vpack.c.b16 %v3635, %v3615
    %v6696 = vpack.c.b16 %v3656, %v3636
    %v6697 = vpack.c.b16 %v3657, %v3637
    %v6698 = vpack.c.b16 %v3658, %v3638
    %v6699 = vpack.c.b16 %v3659, %v3639
    %v6700 = vpack.c.b16 %v3660, %v3640
    %v6701 = vpack.c.b16 %v3661, %v3641
    %v6702 = vpack.c.b16 %v3662, %v3642
    %v6703 = vpack.c.b16 %v3663, %v3643
    %v6704 = vpack.c.b16 %v3664, %v3644
    %v6705 = vpack.c.b16 %v3665, %v3645
    %v6706 = vpack.c.b16 %v3666, %v3646
    %v6707 = vpack.c.b16 %v3667, %v3647
    %v6708 = vpack.c.b16 %v3668, %v3648
    %v6709 = vpack.c.b16 %v3669, %v3649
    %v6710 = vpack.c.b16 %v3670, %v3650
    %v6711 = vpack.c.b16 %v3671, %v3651
    %v6712 = vpack.c.b16 %v3672, %v3652
    %v6713 = vpack.c.b16 %v3673, %v3653
    %v6714 = vpack.c.b16 %v3674, %v3654
    %v6715 = vpack.c.b16 %v3675, %v3655
    %v6716 = vpack.c.b16 %v3696, %v3676
    %v6717 = vpack.c.b16 %v3697, %v3677
    %v6718 = vpack.c.b16 %v3698, %v3678
    %v6719 = vpack.c.b16 %v3699, %v3679
    %v6720 = vpack.c.b16 %v3700, %v3680
    %v6721 = vpack.c.b16 %v3701, %v3681
    %v6722 = vpack.c.b16 %v3702, %v3682
    %v6723 = vpack.c.b16 %v3703, %v3683
    %v6724 = vpack.c.b16 %v3704, %v3684
    %v6725 = vpack.c.b16 %v3705, %v3685
    %v6726 = vpack.c.b16 %v3706, %v3686
    %v6727 = vpack.c.b16 %v3707, %v3687
    %v6728 = vpack.c.b16 %v3708, %v3688
    %v6729 = vpack.c.b16 %v3709, %v3689
    %v6730 = vpack.c.b16 %v3710, %v3690
    %v6731 = vpack.c.b16 %v3711, %v3691
    %v6732 = vpack.c.b16 %v3712, %v3692
    %v6733 = vpack.c.b16 %v3713, %v3693
    %v6734 = vpack.c.b16 %v3714, %v3694
    %v6735 = vpack.c.b16 %v3715, %v3695
    %v6736 = vpack.c.b16 %v3736, %v3716
    %v6737 = vpack.c.b16 %v3737, %v3717
    %v6738 = vpack.c.b16 %v3738, %v3718
    %v6739 = vpack.c.b16 %v3739, %v3719
    %v6740 = vpack.c.b16 %v3740, %v3720
    %v6741 = vpack.c.b16 %v3741, %v3721
    %v6742 = vpack.c.b16 %v3742, %v3722
    %v6743 = vpack.c.b16 %v3743, %v3723
    %v6744 = vpack.c.b16 %v3744, %v3724
    %v6745 = vpack.c.b16 %v3745, %v3725
    %v6746 = vpack.c.b16 %v3746, %v3726
    %v6747 = vpack.c.b16 %v3747, %v3727
    %v6748 = vpack.c.b16 %v3748, %v3728
    %v6749 = vpack.c.b16 %v3749, %v3729
    %v6750 = vpack.c.b16 %v3750, %v3730
    %v6751 = vpack.c.b16 %v3751, %v3731
    %v6752 = vpack.c.b16 %v3752, %v3732
    %v6753 = vpack.c.b16 %v3753, %v3733
    %v6754 = vpack.c.b16 %v3754, %v3734
    %v6755 = vpack.c.b16 %v3755, %v3735
    %v6756 = vpack.c.b16 %v3776, %v3756
    %v6757 = vpack.c.b16 %v3777, %v3757
    %v6758 = vpack.c.b16 %v3778, %v3758
    %v6759 = vpack.c.b16 %v3779, %v3759
    %v6760 = vpack.c.b16 %v3780, %v3760
    %v6761 = vpack.c.b16 %v3781, %v3761
    %v6762 = vpack.c.b16 %v3782, %v3762
    %v6763 = vpack.c.b16 %v3783, %v3763
    %v6764 = vpack.c.b16 %v3784, %v3764
    %v6765 = vpack.c.b16 %v3785, %v3765
    %v6766 = vpack.c.b16 %v3786, %v3766
    %v6767 = vpack.c.b16 %v3787, %v3767
    %v6768 = vpack.c.b16 %v3788, %v3768
    %v6769 = vpack.c.b16 %v3789, %v3769
    %v6770 = vpack.c.b16 %v3790, %v3770
    %v6771 = vpack.c.b16 %v3791, %v3771
    %v6772 = vpack.c.b16 %v3792, %v3772
    %v6773 = vpack.c.b16 %v3793, %v3773
    %v6774 = vpack.c.b16 %v3794, %v3774
    %v6775 = vpack.c.b16 %v3795, %v3775
    %v6776 = vpack.c.b16 %v3816, %v3796
    %v6777 = vpack.c.b16 %v3817, %v3797
    %v6778 = vpack.c.b16 %v3818, %v3798
    %v6779 = vpack.c.b16 %v3819, %v3799
    %v6780 = vpack.c.b16 %v3820, %v3800
    %v6781 = vpack.c.b16 %v3821, %v3801
    %v6782 = vpack.c.b16 %v3822, %v3802
    %v6783 = vpack.c.b16 %v3823, %v3803
    %v6784 = vpack.c.b16 %v3824, %v3804
    %v6785 = vpack.c.b16 %v3825, %v3805
    %v6786 = vpack.c.b16 %v3826, %v3806
    %v6787 = vpack.c.b16 %v3827, %v3807
    %v6788 = vpack.c.b16 %v3828, %v3808
    %v6789 = vpack.c.b16 %v3829, %v3809
    %v6790 = vpack.c.b16 %v3830, %v3810
    %v6791 = vpack.c.b16 %v3831, %v3811
    %v6792 = vpack.c.b16 %v3832, %v3812
    %v6793 = vpack.c.b16 %v3833, %v3813
    %v6794 = vpack.c.b16 %v3834, %v3814
    %v6795 = vpack.c.b16 %v3835, %v3815
    %v6796 = vpack.c.b16 %v3856, %v3836
    %v6797 = vpack.c.b16 %v3857, %v3837
    %v6798 = vpack.c.b16 %v3858, %v3838
    %v6799 = vpack.c.b16 %v3859, %v3839
    %v6800 = vpack.c.b16 %v3860, %v3840
    %v6801 = vpack.c.b16 %v3861, %v3841
    %v6802 = vpack.c.b16 %v3862, %v3842
    %v6803 = vpack.c.b16 %v3863, %v3843
    %v6804 = vpack.c.b16 %v3864, %v3844
    %v6805 = vpack.c.b16 %v3865, %v3845
    %v6806 = vpack.c.b16 %v3866, %v3846
    %v6807 = vpack.c.b16 %v3867, %v3847
    %v6808 = vpack.c.b16 %v3868, %v3848
    %v6809 = vpack.c.b16 %v3869, %v3849
    %v6810 = vpack.c.b16 %v3870, %v3850
    %v6811 = vpack.c.b16 %v3871, %v3851
    %v6812 = vpack.c.b16 %v3872, %v3852
    %v6813 = vpack.c.b16 %v3873, %v3853
    %v6814 = vpack.c.b16 %v3874, %v3854
    %v6815 = vpack.c.b16 %v3875, %v3855
    %v6816 = vpack.c.b16 %v3896, %v3876
    %v6817 = vpack.c.b16 %v3897, %v3877
    %v6818 = vpack.c.b16 %v3898, %v3878
    %v6819 = vpack.c.b16 %v3899, %v3879
    %v6820 = vpack.c.b16 %v3900, %v3880
    %v6821 = vpack.c.b16 %v3901, %v3881
    %v6822 = vpack.c.b16 %v3902, %v3882
    %v6823 = vpack.c.b16 %v3903, %v3883
    %v6824 = vpack.c.b16 %v3904, %v3884
    %v6825 = vpack.c.b16 %v3905, %v3885
    %v6826 = vpack.c.b16 %v3906, %v3886
    %v6827 = vpack.c.b16 %v3907, %v3887
    %v6828 = vpack.c.b16 %v3908, %v3888
    %v6829 = vpack.c.b16 %v3909, %v3889
    %v6830 = vpack.c.b16 %v3910, %v3890
    %v6831 = vpack.c.b16 %v3911, %v3891
    %v6832 = vpack.c.b16 %v3912, %v3892
    %v6833 = vpack.c.b16 %v3913, %v3893
    %v6834 = vpack.c.b16 %v3914, %v3894
    %v6835 = vpack.c.b16 %v3915, %v3895
    %v6836 = vpack.c.b16 %v3936, %v3916
    %v6837 = vpack.c.b16 %v3937, %v3917
    %v6838 = vpack.c.b16 %v3938, %v3918
    %v6839 = vpack.c.b16 %v3939, %v3919
    %v6840 = vpack.c.b16 %v3940, %v3920
    %v6841 = vpack.c.b16 %v3941, %v3921
    %v6842 = vpack.c.b16 %v3942, %v3922
    %v6843 = vpack.c.b16 %v3943, %v3923
    %v6844 = vpack.c.b16 %v3944, %v3924
    %v6845 = vpack.c.b16 %v3945, %v3925
    %v6846 = vpack.c.b16 %v3946, %v3926
    %v6847 = vpack.c.b16 %v3947, %v3927
    %v6848 = vpack.c.b16 %v3948, %v3928
    %v6849 = vpack.c.b16 %v3949, %v3929
    %v6850 = vpack.c.b16 %v3950, %v3930
    %v6851 = vpack.c.b16 %v3951, %v3931
    %v6852 = vpack.c.b16 %v3952, %v3932
    %v6853 = vpack.c.b16 %v3953, %v3933
    %v6854 = vpack.c.b16 %v3954, %v3934
    %v6855 = vpack.c.b16 %v3955, %v3935
    %v6856 = vpack.c.b16 %v3976, %v3956
    %v6857 = vpack.c.b16 %v3977, %v3957
    %v6858 = vpack.c.b16 %v3978, %v3958
    %v6859 = vpack.c.b16 %v3979, %v3959
    %v6860 = vpack.c.b16 %v3980, %v3960
    %v6861 = vpack.c.b16 %v3981, %v3961
    %v6862 = vpack.c.b16 %v3982, %v3962
    %v6863 = vpack.c.b16 %v3983, %v3963
    %v6864 = vpack.c.b16 %v3984, %v3964
    %v6865 = vpack.c.b16 %v3985, %v3965
    %v6866 = vpack.c.b16 %v3986, %v3966
    %v6867 = vpack.c.b16 %v3987, %v3967
    %v6868 = vpack.c.b16 %v3988, %v3968
    %v6869 = vpack.c.b16 %v3989, %v3969
    %v6870 = vpack.c.b16 %v3990, %v3970
    %v6871 = vpack.c.b16 %v3991, %v3971
    %v6872 = vpack.c.b16 %v3992, %v3972
    %v6873 = vpack.c.b16 %v3993, %v3973
    %v6874 = vpack.c.b16 %v3994, %v3974
    %v6875 = vpack.c.b16 %v3995, %v3975
    %v6876 = vpack.c.b16 %v4016, %v3996
    %v6877 = vpack.c.b16 %v4017, %v3997
    %v6878 = vpack.c.b16 %v4018, %v3998
    %v6879 = vpack.c.b16 %v4019, %v3999
    %v6880 = vpack.c.b16 %v4020, %v4000
    %v6881 = vpack.c.b16 %v4021, %v4001
    %v6882 = vpack.c.b16 %v4022, %v4002
    %v6883 = vpack.c.b16 %v4023, %v4003
    %v6884 = vpack.c.b16 %v4024, %v4004
    %v6885 = vpack.c.b16 %v4025, %v4005
    %v6886 = vpack.c.b16 %v4026, %v4006
    %v6887 = vpack.c.b16 %v4027, %v4007
    %v6888 = vpack.c.b16 %v4028, %v4008
    %v6889 = vpack.c.b16 %v4029, %v4009
    %v6890 = vpack.c.b16 %v4030, %v4010
    %v6891 = vpack.c.b16 %v4031, %v4011
    %v6892 = vpack.c.b16 %v4032, %v4012
    %v6893 = vpack.c.b16 %v4033, %v4013
    %v6894 = vpack.c.b16 %v4034, %v4014
    %v6895 = vpack.c.b16 %v4035, %v4015
    %v6896 = vpack.c.b16 %v4056, %v4036
    %v6897 = vpack.c.b16 %v4057, %v4037
    %v6898 = vpack.c.b16 %v4058, %v4038
    %v6899 = vpack.c.b16 %v4059, %v4039
    %v6900 = vpack.c.b16 %v4060, %v4040
    %v6901 = vpack.c.b16 %v4061, %v4041
    %v6902 = vpack.c.b16 %v4062, %v4042
    %v6903 = vpack.c.b16 %v4063, %v4043
    %v6904 = vpack.c.b16 %v4064, %v4044
    %v6905 = vpack.c.b16 %v4065, %v4045
    %v6906 = vpack.c.b16 %v4066, %v4046
    %v6907 = vpack.c.b16 %v4067, %v4047
    %v6908 = vpack.c.b16 %v4068, %v4048
    %v6909 = vpack.c.b16 %v4069, %v4049
    %v6910 = vpack.c.b16 %v4070, %v4050
    %v6911 = vpack.c.b16 %v4071, %v4051
    %v6912 = vpack.c.b16 %v4072, %v4052
    %v6913 = vpack.c.b16 %v4073, %v4053
    %v6914 = vpack.c.b16 %v4074, %v4054
    %v6915 = vpack.c.b16 %v4075, %v4055
    %v6916 = vpack.c.b16 %v4096, %v4076
    %v6917 = vpack.c.b16 %v4097, %v4077
    %v6918 = vpack.c.b16 %v4098, %v4078
    %v6919 = vpack.c.b16 %v4099, %v4079
    %v6920 = vpack.c.b16 %v4100, %v4080
    %v6921 = vpack.c.b16 %v4101, %v4081
    %v6922 = vpack.c.b16 %v4102, %v4082
    %v6923 = vpack.c.b16 %v4103, %v4083
    %v6924 = vpack.c.b16 %v4104, %v4084
    %v6925 = vpack.c.b16 %v4105, %v4085
    %v6926 = vpack.c.b16 %v4106, %v4086
    %v6927 = vpack.c.b16 %v4107, %v4087
    %v6928 = vpack.c.b16 %v4108, %v4088
    %v6929 = vpack.c.b16 %v4109, %v4089
    %v6930 = vpack.c.b16 %v4110, %v4090
    %v6931 = vpack.c.b16 %v4111, %v4091
    %v6932 = vpack.c.b16 %v4112, %v4092
    %v6933 = vpack.c.b16 %v4113, %v4093
    %v6934 = vpack.c.b16 %v4114, %v4094
    %v6935 = vpack.c.b16 %v4115, %v4095
    %v6936 = vpack.c.b16 %v4136, %v4116
    %v6937 = vpack.c.b16 %v4137, %v4117
    %v6938 = vpack.c.b16 %v4138, %v4118
    %v6939 = vpack.c.b16 %v4139, %v4119
    %v6940 = vpack.c.b16 %v4140, %v4120
    %v6941 = vpack.c.b16 %v4141, %v4121
    %v6942 = vpack.c.b16 %v4142, %v4122
    %v6943 = vpack.c.b16 %v4143, %v4123
    %v6944 = vpack.c.b16 %v4144, %v4124
    %v6945 = vpack.c.b16 %v4145, %v4125
    %v6946 = vpack.c.b16 %v4146, %v4126
    %v6947 = vpack.c.b16 %v4147, %v4127
    %v6948 = vpack.c.b16 %v4148, %v4128
    %v6949 = vpack.c.b16 %v4149, %v4129
    %v6950 = vpack.c.b16 %v4150, %v4130
    %v6951 = vpack.c.b16 %v4151, %v4131
    %v6952 = vpack.c.b16 %v4152, %v4132
    %v6953 = vpack.c.b16 %v4153, %v4133
    %v6954 = vpack.c.b16 %v4154, %v4134
    %v6955 = vpack.c.b16 %v4155, %v4135
    %v6956 = vpack.c.b16 %v4176, %v4156
    %v6957 = vpack.c.b16 %v4177, %v4157
    %v6958 = vpack.c.b16 %v4178, %v4158
    %v6959 = vpack.c.b16 %v4179, %v4159
    %v6960 = vpack.c.b16 %v4180, %v4160
    %v6961 = vpack.c.b16 %v4181, %v4161
    %v6962 = vpack.c.b16 %v4182, %v4162
    %v6963 = vpack.c.b16 %v4183, %v4163
    %v6964 = vpack.c.b16 %v4184, %v4164
    %v6965 = vpack.c.b16 %v4185, %v4165
    %v6966 = vpack.c.b16 %v4186, %v4166
    %v6967 = vpack.c.b16 %v4187, %v4167
    %v6968 = vpack.c.b16 %v4188, %v4168
    %v6969 = vpack.c.b16 %v4189, %v4169
    %v6970 = vpack.c.b16 %v4190, %v4170
    %v6971 = vpack.c.b16 %v4191, %v4171
    %v6972 = vpack.c.b16 %v4192, %v4172
    %v6973 = vpack.c.b16 %v4193, %v4173
    %v6974 = vpack.c.b16 %v4194, %v4174
    %v6975 = vpack.c.b16 %v4195, %v4175
    %v6976 = vpack.c.b16 %v4216, %v4196
    %v6977 = vpack.c.b16 %v4217, %v4197
    %v6978 = vpack.c.b16 %v4218, %v4198
    %v6979 = vpack.c.b16 %v4219, %v4199
    %v6980 = vpack.c.b16 %v4220, %v4200
    %v6981 = vpack.c.b16 %v4221, %v4201
    %v6982 = vpack.c.b16 %v4222, %v4202
    %v6983 = vpack.c.b16 %v4223, %v4203
    %v6984 = vpack.c.b16 %v4224, %v4204
    %v6985 = vpack.c.b16 %v4225, %v4205
    %v6986 = vpack.c.b16 %v4226, %v4206
    %v6987 = vpack.c.b16 %v4227, %v4207
    %v6988 = vpack.c.b16 %v4228, %v4208
    %v6989 = vpack.c.b16 %v4229, %v4209
    %v6990 = vpack.c.b16 %v4230, %v4210
    %v6991 = vpack.c.b16 %v4231, %v4211
    %v6992 = vpack.c.b16 %v4232, %v4212
    %v6993 = vpack.c.b16 %v4233, %v4213
    %v6994 = vpack.c.b16 %v4234, %v4214
    %v6995 = vpack.c.b16 %v4235, %v4215
    %v6996 = vpack.c.b16 %v4256, %v4236
    %v6997 = vpack.c.b16 %v4257, %v4237
    %v6998 = vpack.c.b16 %v4258, %v4238
    %v6999 = vpack.c.b16 %v4259, %v4239
    %v7000 = vpack.c.b16 %v4260, %v4240
    %v7001 = vpack.c.b16 %v4261, %v4241
    %v7002 = vpack.c.b16 %v4262, %v4242
    %v7003 = vpack.c.b16 %v4263, %v4243
    %v7004 = vpack.c.b16 %v4264, %v4244
    %v7005 = vpack.c.b16 %v4265, %v4245
    %v7006 = vpack.c.b16 %v4266, %v4246
    %v7007 = vpack.c.b16 %v4267, %v4247
    %v7008 = vpack.c.b16 %v4268, %v4248
    %v7009 = vpack.c.b16 %v4269, %v4249
    %v7010 = vpack.c.b16 %v4270, %v4250
    %v7011 = vpack.c.b16 %v4271, %v4251
    %v7012 = vpack.c.b16 %v4272, %v4252
    %v7013 = vpack.c.b16 %v4273, %v4253
    %v7014 = vpack.c.b16 %v4274, %v4254
    %v7015 = vpack.c.b16 %v4275, %v4255
    %v7016 = vpack.c.b16 %v4296, %v4276
    %v7017 = vpack.c.b16 %v4297, %v4277
    %v7018 = vpack.c.b16 %v4298, %v4278
    %v7019 = vpack.c.b16 %v4299, %v4279
    %v7020 = vpack.c.b16 %v4300, %v4280
    %v7021 = vpack.c.b16 %v4301, %v4281
    %v7022 = vpack.c.b16 %v4302, %v4282
    %v7023 = vpack.c.b16 %v4303, %v4283
    %v7024 = vpack.c.b16 %v4304, %v4284
    %v7025 = vpack.c.b16 %v4305, %v4285
    %v7026 = vpack.c.b16 %v4306, %v4286
    %v7027 = vpack.c.b16 %v4307, %v4287
    %v7028 = vpack.c.b16 %v4308, %v4288
    %v7029 = vpack.c.b16 %v4309, %v4289
    %v7030 = vpack.c.b16 %v4310, %v4290
    %v7031 = vpack.c.b16 %v4311, %v4291
    %v7032 = vpack.c.b16 %v4312, %v4292
    %v7033 = vpack.c.b16 %v4313, %v4293
    %v7034 = vpack.c.b16 %v4314, %v4294
    %v7035 = vpack.c.b16 %v4315, %v4295
    %v7036 = vpack.c.b16 %v4336, %v4316
    %v7037 = vpack.c.b16 %v4337, %v4317
    %v7038 = vpack.c.b16 %v4338, %v4318
    %v7039 = vpack.c.b16 %v4339, %v4319
    %v7040 = vpack.c.b16 %v4340, %v4320
    %v7041 = vpack.c.b16 %v4341, %v4321
    %v7042 = vpack.c.b16 %v4342, %v4322
    %v7043 = vpack.c.b16 %v4343, %v4323
    %v7044 = vpack.c.b16 %v4344, %v4324
    %v7045 = vpack.c.b16 %v4345, %v4325
    %v7046 = vpack.c.b16 %v4346, %v4326
    %v7047 = vpack.c.b16 %v4347, %v4327
    %v7048 = vpack.c.b16 %v4348, %v4328
    %v7049 = vpack.c.b16 %v4349, %v4329
    %v7050 = vpack.c.b16 %v4350, %v4330
    %v7051 = vpack.c.b16 %v4351, %v4331
    %v7052 = vpack.c.b16 %v4352, %v4332
    %v7053 = vpack.c.b16 %v4353, %v4333
    %v7054 = vpack.c.b16 %v4354, %v4334
    %v7055 = vpack.c.b16 %v4355, %v4335
    %v7056 = vpack.c.b16 %v4376, %v4356
    %v7057 = vpack.c.b16 %v4377, %v4357
    %v7058 = vpack.c.b16 %v4378, %v4358
    %v7059 = vpack.c.b16 %v4379, %v4359
    %v7060 = vpack.c.b16 %v4380, %v4360
    %v7061 = vpack.c.b16 %v4381, %v4361
    %v7062 = vpack.c.b16 %v4382, %v4362
    %v7063 = vpack.c.b16 %v4383, %v4363
    %v7064 = vpack.c.b16 %v4384, %v4364
    %v7065 = vpack.c.b16 %v4385, %v4365
    %v7066 = vpack.c.b16 %v4386, %v4366
    %v7067 = vpack.c.b16 %v4387, %v4367
    %v7068 = vpack.c.b16 %v4388, %v4368
    %v7069 = vpack.c.b16 %v4389, %v4369
    %v7070 = vpack.c.b16 %v4390, %v4370
    %v7071 = vpack.c.b16 %v4391, %v4371
    %v7072 = vpack.c.b16 %v4392, %v4372
    %v7073 = vpack.c.b16 %v4393, %v4373
    %v7074 = vpack.c.b16 %v4394, %v4374
    %v7075 = vpack.c.b16 %v4395, %v4375
    %v7076 = vpack.c.b16 %v4416, %v4396
    %v7077 = vpack.c.b16 %v4417, %v4397
    %v7078 = vpack.c.b16 %v4418, %v4398
    %v7079 = vpack.c.b16 %v4419, %v4399
    %v7080 = vpack.c.b16 %v4420, %v4400
    %v7081 = vpack.c.b16 %v4421, %v4401
    %v7082 = vpack.c.b16 %v4422, %v4402
    %v7083 = vpack.c.b16 %v4423, %v4403
    %v7084 = vpack.c.b16 %v4424, %v4404
    %v7085 = vpack.c.b16 %v4425, %v4405
    %v7086 = vpack.c.b16 %v4426, %v4406
    %v7087 = vpack.c.b16 %v4427, %v4407
    %v7088 = vpack.c.b16 %v4428, %v4408
    %v7089 = vpack.c.b16 %v4429, %v4409
    %v7090 = vpack.c.b16 %v4430, %v4410
    %v7091 = vpack.c.b16 %v4431, %v4411
    %v7092 = vpack.c.b16 %v4432, %v4412
    %v7093 = vpack.c.b16 %v4433, %v4413
    %v7094 = vpack.c.b16 %v4434, %v4414
    %v7095 = vpack.c.b16 %v4435, %v4415
    %v7096 = vpack.c.b16 %v4456, %v4436
    %v7097 = vpack.c.b16 %v4457, %v4437
    %v7098 = vpack.c.b16 %v4458, %v4438
    %v7099 = vpack.c.b16 %v4459, %v4439
    %v7100 = vpack.c.b16 %v4460, %v4440
    %v7101 = vpack.c.b16 %v4461, %v4441
    %v7102 = vpack.c.b16 %v4462, %v4442
    %v7103 = vpack.c.b16 %v4463, %v4443
    %v7104 = vpack.c.b16 %v4464, %v4444
    %v7105 = vpack.c.b16 %v4465, %v4445
    %v7106 = vpack.c.b16 %v4466, %v4446
    %v7107 = vpack.c.b16 %v4467, %v4447
    %v7108 = vpack.c.b16 %v4468, %v4448
    %v7109 = vpack.c.b16 %v4469, %v4449
    %v7110 = vpack.c.b16 %v4470, %v4450
    %v7111 = vpack.c.b16 %v4471, %v4451
    %v7112 = vpack.c.b16 %v4472, %v4452
    %v7113 = vpack.c.b16 %v4473, %v4453
    %v7114 = vpack.c.b16 %v4474, %v4454
    %v7115 = vpack.c.b16 %v4475, %v4455
    %v7116 = vpack.c.b16 %v4496, %v4476
    %v7117 = vpack.c.b16 %v4497, %v4477
    %v7118 = vpack.c.b16 %v4498, %v4478
    %v7119 = vpack.c.b16 %v4499, %v4479
    %v7120 = vpack.c.b16 %v4500, %v4480
    %v7121 = vpack.c.b16 %v4501, %v4481
    %v7122 = vpack.c.b16 %v4502, %v4482
    %v7123 = vpack.c.b16 %v4503, %v4483
    %v7124 = vpack.c.b16 %v4504, %v4484
    %v7125 = vpack.c.b16 %v4505, %v4485
    %v7126 = vpack.c.b16 %v4506, %v4486
    %v7127 = vpack.c.b16 %v4507, %v4487
    %v7128 = vpack.c.b16 %v4508, %v4488
    %v7129 = vpack.c.b16 %v4509, %v4489
    %v7130 = vpack.c.b16 %v4510, %v4490
    %v7131 = vpack.c.b16 %v4511, %v4491
    %v7132 = vpack.c.b16 %v4512, %v4492
    %v7133 = vpack.c.b16 %v4513, %v4493
    %v7134 = vpack.c.b16 %v4514, %v4494
    %v7135 = vpack.c.b16 %v4515, %v4495
    %v7136 = vpack.c.b16 %v4536, %v4516
    %v7137 = vpack.c.b16 %v4537, %v4517
    %v7138 = vpack.c.b16 %v4538, %v4518
    %v7139 = vpack.c.b16 %v4539, %v4519
    %v7140 = vpack.c.b16 %v4540, %v4520
    %v7141 = vpack.c.b16 %v4541, %v4521
    %v7142 = vpack.c.b16 %v4542, %v4522
    %v7143 = vpack.c.b16 %v4543, %v4523
    %v7144 = vpack.c.b16 %v4544, %v4524
    %v7145 = vpack.c.b16 %v4545, %v4525
    %v7146 = vpack.c.b16 %v4546, %v4526
    %v7147 = vpack.c.b16 %v4547, %v4527
    %v7148 = vpack.c.b16 %v4548, %v4528
    %v7149 = vpack.c.b16 %v4549, %v4529
    %v7150 = vpack.c.b16 %v4550, %v4530
    %v7151 = vpack.c.b16 %v4551, %v4531
    %v7152 = vpack.c.b16 %v4552, %v4532
    %v7153 = vpack.c.b16 %v4553, %v4533
    %v7154 = vpack.c.b16 %v4554, %v4534
    %v7155 = vpack.c.b16 %v4555, %v4535
    %v7156 = vpack.c.b16 %v4576, %v4556
    %v7157 = vpack.c.b16 %v4577, %v4557
    %v7158 = vpack.c.b16 %v4578, %v4558
    %v7159 = vpack.c.b16 %v4579, %v4559
    %v7160 = vpack.c.b16 %v4580, %v4560
    %v7161 = vpack.c.b16 %v4581, %v4561
    %v7162 = vpack.c.b16 %v4582, %v4562
    %v7163 = vpack.c.b16 %v4583, %v4563
    %v7164 = vpack.c.b16 %v4584, %v4564
    %v7165 = vpack.c.b16 %v4585, %v4565
    %v7166 = vpack.c.b16 %v4586, %v4566
    %v7167 = vpack.c.b16 %v4587, %v4567
    %v7168 = vpack.c.b16 %v4588, %v4568
    %v7169 = vpack.c.b16 %v4589, %v4569
    %v7170 = vpack.c.b16 %v4590, %v4570
    %v7171 = vpack.c.b16 %v4591, %v4571
    %v7172 = vpack.c.b16 %v4592, %v4572
    %v7173 = vpack.c.b16 %v4593, %v4573
    %v7174 = vpack.c.b16 %v4594, %v4574
    %v7175 = vpack.c.b16 %v4595, %v4575
    %v7176 = vpack.c.b16 %v4616, %v4596
    %v7177 = vpack.c.b16 %v4617, %v4597
    %v7178 = vpack.c.b16 %v4618, %v4598
    %v7179 = vpack.c.b16 %v4619, %v4599
    %v7180 = vpack.c.b16 %v4620, %v4600
    %v7181 = vpack.c.b16 %v4621, %v4601
    %v7182 = vpack.c.b16 %v4622, %v4602
    %v7183 = vpack.c.b16 %v4623, %v4603
    %v7184 = vpack.c.b16 %v4624, %v4604
    %v7185 = vpack.c.b16 %v4625, %v4605
    %v7186 = vpack.c.b16 %v4626, %v4606
    %v7187 = vpack.c.b16 %v4627, %v4607
    %v7188 = vpack.c.b16 %v4628, %v4608
    %v7189 = vpack.c.b16 %v4629, %v4609
    %v7190 = vpack.c.b16 %v4630, %v4610
    %v7191 = vpack.c.b16 %v4631, %v4611
    %v7192 = vpack.c.b16 %v4632, %v4612
    %v7193 = vpack.c.b16 %v4633, %v4613
    %v7194 = vpack.c.b16 %v4634, %v4614
    %v7195 = vpack.c.b16 %v4635, %v4615
    %v7196 = vpack.c.b16 %v4656, %v4636
    %v7197 = vpack.c.b16 %v4657, %v4637
    %v7198 = vpack.c.b16 %v4658, %v4638
    %v7199 = vpack.c.b16 %v4659, %v4639
    %v7200 = vpack.c.b16 %v4660, %v4640
    %v7201 = vpack.c.b16 %v4661, %v4641
    %v7202 = vpack.c.b16 %v4662, %v4642
    %v7203 = vpack.c.b16 %v4663, %v4643
    %v7204 = vpack.c.b16 %v4664, %v4644
    %v7205 = vpack.c.b16 %v4665, %v4645
    %v7206 = vpack.c.b16 %v4666, %v4646
    %v7207 = vpack.c.b16 %v4667, %v4647
    %v7208 = vpack.c.b16 %v4668, %v4648
    %v7209 = vpack.c.b16 %v4669, %v4649
    %v7210 = vpack.c.b16 %v4670, %v4650
    %v7211 = vpack.c.b16 %v4671, %v4651
    %v7212 = vpack.c.b16 %v4672, %v4652
    %v7213 = vpack.c.b16 %v4673, %v4653
    %v7214 = vpack.c.b16 %v4674, %v4654
    %v7215 = vpack.c.b16 %v4675, %v4655
    %v7216 = vpack.c.b16 %v4696, %v4676
    %v7217 = vpack.c.b16 %v4697, %v4677
    %v7218 = vpack.c.b16 %v4698, %v4678
    %v7219 = vpack.c.b16 %v4699, %v4679
    %v7220 = vpack.c.b16 %v4700, %v4680
    %v7221 = vpack.c.b16 %v4701, %v4681
    %v7222 = vpack.c.b16 %v4702, %v4682
    %v7223 = vpack.c.b16 %v4703, %v4683
    %v7224 = vpack.c.b16 %v4704, %v4684
    %v7225 = vpack.c.b16 %v4705, %v4685
    %v7226 = vpack.c.b16 %v4706, %v4686
    %v7227 = vpack.c.b16 %v4707, %v4687
    %v7228 = vpack.c.b16 %v4708, %v4688
    %v7229 = vpack.c.b16 %v4709, %v4689
    %v7230 = vpack.c.b16 %v4710, %v4690
    %v7231 = vpack.c.b16 %v4711, %v4691
    %v7232 = vpack.c.b16 %v4712, %v4692
    %v7233 = vpack.c.b16 %v4713, %v4693
    %v7234 = vpack.c.b16 %v4714, %v4694
    %v7235 = vpack.c.b16 %v4715, %v4695
    %v7236 = vpack.c.b16 %v4736, %v4716
    %v7237 = vpack.c.b16 %v4737, %v4717
    %v7238 = vpack.c.b16 %v4738, %v4718
    %v7239 = vpack.c.b16 %v4739, %v4719
    %v7240 = vpack.c.b16 %v4740, %v4720
    %v7241 = vpack.c.b16 %v4741, %v4721
    %v7242 = vpack.c.b16 %v4742, %v4722
    %v7243 = vpack.c.b16 %v4743, %v4723
    %v7244 = vpack.c.b16 %v4744, %v4724
    %v7245 = vpack.c.b16 %v4745, %v4725
    %v7246 = vpack.c.b16 %v4746, %v4726
    %v7247 = vpack.c.b16 %v4747, %v4727
    %v7248 = vpack.c.b16 %v4748, %v4728
    %v7249 = vpack.c.b16 %v4749, %v4729
    %v7250 = vpack.c.b16 %v4750, %v4730
    %v7251 = vpack.c.b16 %v4751, %v4731
    %v7252 = vpack.c.b16 %v4752, %v4732
    %v7253 = vpack.c.b16 %v4753, %v4733
    %v7254 = vpack.c.b16 %v4754, %v4734
    %v7255 = vpack.c.b16 %v4755, %v4735
    %v7256 = vpack.c.b16 %v4776, %v4756
    %v7257 = vpack.c.b16 %v4777, %v4757
    %v7258 = vpack.c.b16 %v4778, %v4758
    %v7259 = vpack.c.b16 %v4779, %v4759
    %v7260 = vpack.c.b16 %v4780, %v4760
    %v7261 = vpack.c.b16 %v4781, %v4761
    %v7262 = vpack.c.b16 %v4782, %v4762
    %v7263 = vpack.c.b16 %v4783, %v4763
    %v7264 = vpack.c.b16 %v4784, %v4764
    %v7265 = vpack.c.b16 %v4785, %v4765
    %v7266 = vpack.c.b16 %v4786, %v4766
    %v7267 = vpack.c.b16 %v4787, %v4767
    %v7268 = vpack.c.b16 %v4788, %v4768
    %v7269 = vpack.c.b16 %v4789, %v4769
    %v7270 = vpack.c.b16 %v4790, %v4770
    %v7271 = vpack.c.b16 %v4791, %v4771
    %v7272 = vpack.c.b16 %v4792, %v4772
    %v7273 = vpack.c.b16 %v4793, %v4773
    %v7274 = vpack.c.b16 %v4794, %v4774
    %v7275 = vpack.c.b16 %v4795, %v4775
    %v7276 = vpack.c.b16 %v4816, %v4796
    %v7277 = vpack.c.b16 %v4817, %v4797
    %v7278 = vpack.c.b16 %v4818, %v4798
    %v7279 = vpack.c.b16 %v4819, %v4799
    %v7280 = vpack.c.b16 %v4820, %v4800
    %v7281 = vpack.c.b16 %v4821, %v4801
    %v7282 = vpack.c.b16 %v4822, %v4802
    %v7283 = vpack.c.b16 %v4823, %v4803
    %v7284 = vpack.c.b16 %v4824, %v4804
    %v7285 = vpack.c.b16 %v4825, %v4805
    %v7286 = vpack.c.b16 %v4826, %v4806
    %v7287 = vpack.c.b16 %v4827, %v4807
    %v7288 = vpack.c.b16 %v4828, %v4808
    %v7289 = vpack.c.b16 %v4829, %v4809
    %v7290 = vpack.c.b16 %v4830, %v4810
    %v7291 = vpack.c.b16 %v4831, %v4811
    %v7292 = vpack.c.b16 %v4832, %v4812
    %v7293 = vpack.c.b16 %v4833, %v4813
    %v7294 = vpack.c.b16 %v4834, %v4814
    %v7295 = vpack.c.b16 %v4835, %v4815
    %v7296 = vpack.c.b16 %v4856, %v4836
    %v7297 = vpack.c.b16 %v4857, %v4837
    %v7298 = vpack.c.b16 %v4858, %v4838
    %v7299 = vpack.c.b16 %v4859, %v4839
    %v7300 = vpack.c.b16 %v4860, %v4840
    %v7301 = vpack.c.b16 %v4861, %v4841
    %v7302 = vpack.c.b16 %v4862, %v4842
    %v7303 = vpack.c.b16 %v4863, %v4843
    %v7304 = vpack.c.b16 %v4864, %v4844
    %v7305 = vpack.c.b16 %v4865, %v4845
    %v7306 = vpack.c.b16 %v4866, %v4846
    %v7307 = vpack.c.b16 %v4867, %v4847
    %v7308 = vpack.c.b16 %v4868, %v4848
    %v7309 = vpack.c.b16 %v4869, %v4849
    %v7310 = vpack.c.b16 %v4870, %v4850
    %v7311 = vpack.c.b16 %v4871, %v4851
    %v7312 = vpack.c.b16 %v4872, %v4852
    %v7313 = vpack.c.b16 %v4873, %v4853
    %v7314 = vpack.c.b16 %v4874, %v4854
    %v7315 = vpack.c.b16 %v4875, %v4855
    %v7316 = vpack.c.b16 %v4896, %v4876
    %v7317 = vpack.c.b16 %v4897, %v4877
    %v7318 = vpack.c.b16 %v4898, %v4878
    %v7319 = vpack.c.b16 %v4899, %v4879
    %v7320 = vpack.c.b16 %v4900, %v4880
    %v7321 = vpack.c.b16 %v4901, %v4881
    %v7322 = vpack.c.b16 %v4902, %v4882
    %v7323 = vpack.c.b16 %v4903, %v4883
    %v7324 = vpack.c.b16 %v4904, %v4884
    %v7325 = vpack.c.b16 %v4905, %v4885
    %v7326 = vpack.c.b16 %v4906, %v4886
    %v7327 = vpack.c.b16 %v4907, %v4887
    %v7328 = vpack.c.b16 %v4908, %v4888
    %v7329 = vpack.c.b16 %v4909, %v4889
    %v7330 = vpack.c.b16 %v4910, %v4890
    %v7331 = vpack.c.b16 %v4911, %v4891
    %v7332 = vpack.c.b16 %v4912, %v4892
    %v7333 = vpack.c.b16 %v4913, %v4893
    %v7334 = vpack.c.b16 %v4914, %v4894
    %v7335 = vpack.c.b16 %v4915, %v4895
    %v7336 = vpack.c.b16 %v4936, %v4916
    %v7337 = vpack.c.b16 %v4937, %v4917
    %v7338 = vpack.c.b16 %v4938, %v4918
    %v7339 = vpack.c.b16 %v4939, %v4919
    %v7340 = vpack.c.b16 %v4940, %v4920
    %v7341 = vpack.c.b16 %v4941, %v4921
    %v7342 = vpack.c.b16 %v4942, %v4922
    %v7343 = vpack.c.b16 %v4943, %v4923
    %v7344 = vpack.c.b16 %v4944, %v4924
    %v7345 = vpack.c.b16 %v4945, %v4925
    %v7346 = vpack.c.b16 %v4946, %v4926
    %v7347 = vpack.c.b16 %v4947, %v4927
    %v7348 = vpack.c.b16 %v4948, %v4928
    %v7349 = vpack.c.b16 %v4949, %v4929
    %v7350 = vpack.c.b16 %v4950, %v4930
    %v7351 = vpack.c.b16 %v4951, %v4931
    %v7352 = vpack.c.b16 %v4952, %v4932
    %v7353 = vpack.c.b16 %v4953, %v4933
    %v7354 = vpack.c.b16 %v4954, %v4934
    %v7355 = vpack.c.b16 %v4955, %v4935
    %v7356 = vpack.c.b16 %v4976, %v4956
    %v7357 = vpack.c.b16 %v4977, %v4957
    %v7358 = vpack.c.b16 %v4978, %v4958
    %v7359 = vpack.c.b16 %v4979, %v4959
    %v7360 = vpack.c.b16 %v4980, %v4960
    %v7361 = vpack.c.b16 %v4981, %v4961
    %v7362 = vpack.c.b16 %v4982, %v4962
    %v7363 = vpack.c.b16 %v4983, %v4963
    %v7364 = vpack.c.b16 %v4984, %v4964
    %v7365 = vpack.c.b16 %v4985, %v4965
    %v7366 = vpack.c.b16 %v4986, %v4966
    %v7367 = vpack.c.b16 %v4987, %v4967
    %v7368 = vpack.c.b16 %v4988, %v4968
    %v7369 = vpack.c.b16 %v4989, %v4969
    %v7370 = vpack.c.b16 %v4990, %v4970
    %v7371 = vpack.c.b16 %v4991, %v4971
    %v7372 = vpack.c.b16 %v4992, %v4972
    %v7373 = vpack.c.b16 %v4993, %v4973
    %v7374 = vpack.c.b16 %v4994, %v4974
    %v7375 = vpack.c.b16 %v4995, %v4975
    %v7376 = vpack.c.b16 %v5016, %v4996
    %v7377 = vpack.c.b16 %v5017, %v4997
    %v7378 = vpack.c.b16 %v5018, %v4998
    %v7379 = vpack.c.b16 %v5019, %v4999
    %v7380 = vpack.c.b16 %v5020, %v5000
    %v7381 = vpack.c.b16 %v5021, %v5001
    %v7382 = vpack.c.b16 %v5022, %v5002
    %v7383 = vpack.c.b16 %v5023, %v5003
    %v7384 = vpack.c.b16 %v5024, %v5004
    %v7385 = vpack.c.b16 %v5025, %v5005
    %v7386 = vpack.c.b16 %v5026, %v5006
    %v7387 = vpack.c.b16 %v5027, %v5007
    %v7388 = vpack.c.b16 %v5028, %v5008
    %v7389 = vpack.c.b16 %v5029, %v5009
    %v7390 = vpack.c.b16 %v5030, %v5010
    %v7391 = vpack.c.b16 %v5031, %v5011
    %v7392 = vpack.c.b16 %v5032, %v5012
    %v7393 = vpack.c.b16 %v5033, %v5013
    %v7394 = vpack.c.b16 %v5034, %v5014
    %v7395 = vpack.c.b16 %v5035, %v5015
    %v7396 = vpack.c.b16 %v5056, %v5036
    %v7397 = vpack.c.b16 %v5057, %v5037
    %v7398 = vpack.c.b16 %v5058, %v5038
    %v7399 = vpack.c.b16 %v5059, %v5039
    %v7400 = vpack.c.b16 %v5060, %v5040
    %v7401 = vpack.c.b16 %v5061, %v5041
    %v7402 = vpack.c.b16 %v5062, %v5042
    %v7403 = vpack.c.b16 %v5063, %v5043
    %v7404 = vpack.c.b16 %v5064, %v5044
    %v7405 = vpack.c.b16 %v5065, %v5045
    %v7406 = vpack.c.b16 %v5066, %v5046
    %v7407 = vpack.c.b16 %v5067, %v5047
    %v7408 = vpack.c.b16 %v5068, %v5048
    %v7409 = vpack.c.b16 %v5069, %v5049
    %v7410 = vpack.c.b16 %v5070, %v5050
    %v7411 = vpack.c.b16 %v5071, %v5051
    %v7412 = vpack.c.b16 %v5072, %v5052
    %v7413 = vpack.c.b16 %v5073, %v5053
    %v7414 = vpack.c.b16 %v5074, %v5054
    %v7415 = vpack.c.b16 %v5075, %v5055
    %v7416 = vpack.c.b16 %v5096, %v5076
    %v7417 = vpack.c.b16 %v5097, %v5077
    %v7418 = vpack.c.b16 %v5098, %v5078
    %v7419 = vpack.c.b16 %v5099, %v5079
    %v7420 = vpack.c.b16 %v5100, %v5080
    %v7421 = vpack.c.b16 %v5101, %v5081
    %v7422 = vpack.c.b16 %v5102, %v5082
    %v7423 = vpack.c.b16 %v5103, %v5083
    %v7424 = vpack.c.b16 %v5104, %v5084
    %v7425 = vpack.c.b16 %v5105, %v5085
    %v7426 = vpack.c.b16 %v5106, %v5086
    %v7427 = vpack.c.b16 %v5107, %v5087
    %v7428 = vpack.c.b16 %v5108, %v5088
    %v7429 = vpack.c.b16 %v5109, %v5089
    %v7430 = vpack.c.b16 %v5110, %v5090
    %v7431 = vpack.c.b16 %v5111, %v5091
    %v7432 = vpack.c.b16 %v5112, %v5092
    %v7433 = vpack.c.b16 %v5113, %v5093
    %v7434 = vpack.c.b16 %v5114, %v5094
    %v7435 = vpack.c.b16 %v5115, %v5095
    %v7436 = vpack.c.b16 %v5136, %v5116
    %v7437 = vpack.c.b16 %v5137, %v5117
    %v7438 = vpack.c.b16 %v5138, %v5118
    %v7439 = vpack.c.b16 %v5139, %v5119
    %v7440 = vpack.c.b16 %v5140, %v5120
    %v7441 = vpack.c.b16 %v5141, %v5121
    %v7442 = vpack.c.b16 %v5142, %v5122
    %v7443 = vpack.c.b16 %v5143, %v5123
    %v7444 = vpack.c.b16 %v5144, %v5124
    %v7445 = vpack.c.b16 %v5145, %v5125
    %v7446 = vpack.c.b16 %v5146, %v5126
    %v7447 = vpack.c.b16 %v5147, %v5127
    %v7448 = vpack.c.b16 %v5148, %v5128
    %v7449 = vpack.c.b16 %v5149, %v5129
    %v7450 = vpack.c.b16 %v5150, %v5130
    %v7451 = vpack.c.b16 %v5151, %v5131
    %v7452 = vpack.c.b16 %v5152, %v5132
    %v7453 = vpack.c.b16 %v5153, %v5133
    %v7454 = vpack.c.b16 %v5154, %v5134
    %v7455 = vpack.c.b16 %v5155, %v5135
    %v7456 = vpack.c.b16 %v5176, %v5156
    %v7457 = vpack.c.b16 %v5177, %v5157
    %v7458 = vpack.c.b16 %v5178, %v5158
    %v7459 = vpack.c.b16 %v5179, %v5159
    %v7460 = vpack.c.b16 %v5180, %v5160
    %v7461 = vpack.c.b16 %v5181, %v5161
    %v7462 = vpack.c.b16 %v5182, %v5162
    %v7463 = vpack.c.b16 %v5183, %v5163
    %v7464 = vpack.c.b16 %v5184, %v5164
    %v7465 = vpack.c.b16 %v5185, %v5165
    %v7466 = vpack.c.b16 %v5186, %v5166
    %v7467 = vpack.c.b16 %v5187, %v5167
    %v7468 = vpack.c.b16 %v5188, %v5168
    %v7469 = vpack.c.b16 %v5189, %v5169
    %v7470 = vpack.c.b16 %v5190, %v5170
    %v7471 = vpack.c.b16 %v5191, %v5171
    %v7472 = vpack.c.b16 %v5192, %v5172
    %v7473 = vpack.c.b16 %v5193, %v5173
    %v7474 = vpack.c.b16 %v5194, %v5174
    %v7475 = vpack.c.b16 %v5195, %v5175
    %v7476 = vpack.c.b16 %v5216, %v5196
    %v7477 = vpack.c.b16 %v5217, %v5197
    %v7478 = vpack.c.b16 %v5218, %v5198
    %v7479 = vpack.c.b16 %v5219, %v5199
    %v7480 = vpack.c.b16 %v5220, %v5200
    %v7481 = vpack.c.b16 %v5221, %v5201
    %v7482 = vpack.c.b16 %v5222, %v5202
    %v7483 = vpack.c.b16 %v5223, %v5203
    %v7484 = vpack.c.b16 %v5224, %v5204
    %v7485 = vpack.c.b16 %v5225, %v5205
    %v7486 = vpack.c.b16 %v5226, %v5206
    %v7487 = vpack.c.b16 %v5227, %v5207
    %v7488 = vpack.c.b16 %v5228, %v5208
    %v7489 = vpack.c.b16 %v5229, %v5209
    %v7490 = vpack.c.b16 %v5230, %v5210
    %v7491 = vpack.c.b16 %v5231, %v5211
    %v7492 = vpack.c.b16 %v5232, %v5212
    %v7493 = vpack.c.b16 %v5233, %v5213
    %v7494 = vpack.c.b16 %v5234, %v5214
    %v7495 = vpack.c.b16 %v5235, %v5215
    %v7496 = vpack.c.b16 %v5256, %v5236
    %v7497 = vpack.c.b16 %v5257, %v5237
    %v7498 = vpack.c.b16 %v5258, %v5238
    %v7499 = vpack.c.b16 %v5259, %v5239
    %v7500 = vpack.c.b16 %v5260, %v5240
    %v7501 = vpack.c.b16 %v5261, %v5241
    %v7502 = vpack.c.b16 %v5262, %v5242
    %v7503 = vpack.c.b16 %v5263, %v5243
    %v7504 = vpack.c.b16 %v5264, %v5244
    %v7505 = vpack.c.b16 %v5265, %v5245
    %v7506 = vpack.c.b16 %v5266, %v5246
    %v7507 = vpack.c.b16 %v5267, %v5247
    %v7508 = vpack.c.b16 %v5268, %v5248
    %v7509 = vpack.c.b16 %v5269, %v5249
    %v7510 = vpack.c.b16 %v5270, %v5250
    %v7511 = vpack.c.b16 %v5271, %v5251
    %v7512 = vpack.c.b16 %v5272, %v5252
    %v7513 = vpack.c.b16 %v5273, %v5253
    %v7514 = vpack.c.b16 %v5274, %v5254
    %v7515 = vpack.c.b16 %v5275, %v5255
    %v7516 = vpack.c.b16 %v5296, %v5276
    %v7517 = vpack.c.b16 %v5297, %v5277
    %v7518 = vpack.c.b16 %v5298, %v5278
    %v7519 = vpack.c.b16 %v5299, %v5279
    %v7520 = vpack.c.b16 %v5300, %v5280
    %v7521 = vpack.c.b16 %v5301, %v5281
    %v7522 = vpack.c.b16 %v5302, %v5282
    %v7523 = vpack.c.b16 %v5303, %v5283
    %v7524 = vpack.c.b16 %v5304, %v5284
    %v7525 = vpack.c.b16 %v5305, %v5285
    %v7526 = vpack.c.b16 %v5306, %v5286
    %v7527 = vpack.c.b16 %v5307, %v5287
    %v7528 = vpack.c.b16 %v5308, %v5288
    %v7529 = vpack.c.b16 %v5309, %v5289
    %v7530 = vpack.c.b16 %v5310, %v5290
    %v7531 = vpack.c.b16 %v5311, %v5291
    %v7532 = vpack.c.b16 %v5312, %v5292
    %v7533 = vpack.c.b16 %v5313, %v5293
    %v7534 = vpack.c.b16 %v5314, %v5294
    %v7535 = vpack.c.b16 %v5315, %v5295
    %v7536 = vpack.c.b16 %v5336, %v5316
    %v7537 = vpack.c.b16 %v5337, %v5317
    %v7538 = vpack.c.b16 %v5338, %v5318
    %v7539 = vpack.c.b16 %v5339, %v5319
    %v7540 = vpack.c.b16 %v5340, %v5320
    %v7541 = vpack.c.b16 %v5341, %v5321
    %v7542 = vpack.c.b16 %v5342, %v5322
    %v7543 = vpack.c.b16 %v5343, %v5323
    %v7544 = vpack.c.b16 %v5344, %v5324
    %v7545 = vpack.c.b16 %v5345, %v5325
    %v7546 = vpack.c.b16 %v5346, %v5326
    %v7547 = vpack.c.b16 %v5347, %v5327
    %v7548 = vpack.c.b16 %v5348, %v5328
    %v7549 = vpack.c.b16 %v5349, %v5329
    %v7550 = vpack.c.b16 %v5350, %v5330
    %v7551 = vpack.c.b16 %v5351, %v5331
    %v7552 = vpack.c.b16 %v5352, %v5332
    %v7553 = vpack.c.b16 %v5353, %v5333
    %v7554 = vpack.c.b16 %v5354, %v5334
    %v7555 = vpack.c.b16 %v5355, %v5335
    %v7556 = vpack.c.b16 %v5376, %v5356
    %v7557 = vpack.c.b16 %v5377, %v5357
    %v7558 = vpack.c.b16 %v5378, %v5358
    %v7559 = vpack.c.b16 %v5379, %v5359
    %v7560 = vpack.c.b16 %v5380, %v5360
    %v7561 = vpack.c.b16 %v5381, %v5361
    %v7562 = vpack.c.b16 %v5382, %v5362
    %v7563 = vpack.c.b16 %v5383, %v5363
    %v7564 = vpack.c.b16 %v5384, %v5364
    %v7565 = vpack.c.b16 %v5385, %v5365
    %v7566 = vpack.c.b16 %v5386, %v5366
    %v7567 = vpack.c.b16 %v5387, %v5367
    %v7568 = vpack.c.b16 %v5388, %v5368
    %v7569 = vpack.c.b16 %v5389, %v5369
    %v7570 = vpack.c.b16 %v5390, %v5370
    %v7571 = vpack.c.b16 %v5391, %v5371
    %v7572 = vpack.c.b16 %v5392, %v5372
    %v7573 = vpack.c.b16 %v5393, %v5373
    %v7574 = vpack.c.b16 %v5394, %v5374
    %v7575 = vpack.c.b16 %v5395, %v5375
    %v7576 = vpack.c.b16 %v5416, %v5396
    %v7577 = vpack.c.b16 %v5417, %v5397
    %v7578 = vpack.c.b16 %v5418, %v5398
    %v7579 = vpack.c.b16 %v5419, %v5399
    %v7580 = vpack.c.b16 %v5420, %v5400
    %v7581 = vpack.c.b16 %v5421, %v5401
    %v7582 = vpack.c.b16 %v5422, %v5402
    %v7583 = vpack.c.b16 %v5423, %v5403
    %v7584 = vpack.c.b16 %v5424, %v5404
    %v7585 = vpack.c.b16 %v5425, %v5405
    %v7586 = vpack.c.b16 %v5426, %v5406
    %v7587 = vpack.c.b16 %v5427, %v5407
    %v7588 = vpack.c.b16 %v5428, %v5408
    %v7589 = vpack.c.b16 %v5429, %v5409
    %v7590 = vpack.c.b16 %v5430, %v5410
    %v7591 = vpack.c.b16 %v5431, %v5411
    %v7592 = vpack.c.b16 %v5432, %v5412
    %v7593 = vpack.c.b16 %v5433, %v5413
    %v7594 = vpack.c.b16 %v5434, %v5414
    %v7595 = vpack.c.b16 %v5435, %v5415
    %v7596 = vpack.c.b16 %v5456, %v5436
    %v7597 = vpack.c.b16 %v5457, %v5437
    %v7598 = vpack.c.b16 %v5458, %v5438
    %v7599 = vpack.c.b16 %v5459, %v5439
    %v7600 = vpack.c.b16 %v5460, %v5440
    %v7601 = vpack.c.b16 %v5461, %v5441
    %v7602 = vpack.c.b16 %v5462, %v5442
    %v7603 = vpack.c.b16 %v5463, %v5443
    %v7604 = vpack.c.b16 %v5464, %v5444
    %v7605 = vpack.c.b16 %v5465, %v5445
    %v7606 = vpack.c.b16 %v5466, %v5446
    %v7607 = vpack.c.b16 %v5467, %v5447
    %v7608 = vpack.c.b16 %v5468, %v5448
    %v7609 = vpack.c.b16 %v5469, %v5449
    %v7610 = vpack.c.b16 %v5470, %v5450
    %v7611 = vpack.c.b16 %v5471, %v5451
    %v7612 = vpack.c.b16 %v5472, %v5452
    %v7613 = vpack.c.b16 %v5473, %v5453
    %v7614 = vpack.c.b16 %v5474, %v5454
    %v7615 = vpack.c.b16 %v5475, %v5455
    %v7616 = vpack.c.b16 %v5496, %v5476
    %v7617 = vpack.c.b16 %v5497, %v5477
    %v7618 = vpack.c.b16 %v5498, %v5478
    %v7619 = vpack.c.b16 %v5499, %v5479
    %v7620 = vpack.c.b16 %v5500, %v5480
    %v7621 = vpack.c.b16 %v5501, %v5481
    %v7622 = vpack.c.b16 %v5502, %v5482
    %v7623 = vpack.c.b16 %v5503, %v5483
    %v7624 = vpack.c.b16 %v5504, %v5484
    %v7625 = vpack.c.b16 %v5505, %v5485
    %v7626 = vpack.c.b16 %v5506, %v5486
    %v7627 = vpack.c.b16 %v5507, %v5487
    %v7628 = vpack.c.b16 %v5508, %v5488
    %v7629 = vpack.c.b16 %v5509, %v5489
    %v7630 = vpack.c.b16 %v5510, %v5490
    %v7631 = vpack.c.b16 %v5511, %v5491
    %v7632 = vpack.c.b16 %v5512, %v5492
    %v7633 = vpack.c.b16 %v5513, %v5493
    %v7634 = vpack.c.b16 %v5514, %v5494
    %v7635 = vpack.c.b16 %v5515, %v5495
    %v7636 = vpack.c.b16 %v5536, %v5516
    %v7637 = vpack.c.b16 %v5537, %v5517
    %v7638 = vpack.c.b16 %v5538, %v5518
    %v7639 = vpack.c.b16 %v5539, %v5519
    %v7640 = vpack.c.b16 %v5540, %v5520
    %v7641 = vpack.c.b16 %v5541, %v5521
    %v7642 = vpack.c.b16 %v5542, %v5522
    %v7643 = vpack.c.b16 %v5543, %v5523
    %v7644 = vpack.c.b16 %v5544, %v5524
    %v7645 = vpack.c.b16 %v5545, %v5525
    %v7646 = vpack.c.b16 %v5546, %v5526
    %v7647 = vpack.c.b16 %v5547, %v5527
    %v7648 = vpack.c.b16 %v5548, %v5528
    %v7649 = vpack.c.b16 %v5549, %v5529
    %v7650 = vpack.c.b16 %v5550, %v5530
    %v7651 = vpack.c.b16 %v5551, %v5531
    %v7652 = vpack.c.b16 %v5552, %v5532
    %v7653 = vpack.c.b16 %v5553, %v5533
    %v7654 = vpack.c.b16 %v5554, %v5534
    %v7655 = vpack.c.b16 %v5555, %v5535
    %v7656 = vpack.c.b16 %v5576, %v5556
    %v7657 = vpack.c.b16 %v5577, %v5557
    %v7658 = vpack.c.b16 %v5578, %v5558
    %v7659 = vpack.c.b16 %v5579, %v5559
    %v7660 = vpack.c.b16 %v5580, %v5560
    %v7661 = vpack.c.b16 %v5581, %v5561
    %v7662 = vpack.c.b16 %v5582, %v5562
    %v7663 = vpack.c.b16 %v5583, %v5563
    %v7664 = vpack.c.b16 %v5584, %v5564
    %v7665 = vpack.c.b16 %v5585, %v5565
    %v7666 = vpack.c.b16 %v5586, %v5566
    %v7667 = vpack.c.b16 %v5587, %v5567
    %v7668 = vpack.c.b16 %v5588, %v5568
    %v7669 = vpack.c.b16 %v5589, %v5569
    %v7670 = vpack.c.b16 %v5590, %v5570
    %v7671 = vpack.c.b16 %v5591, %v5571
    %v7672 = vpack.c.b16 %v5592, %v5572
    %v7673 = vpack.c.b16 %v5593, %v5573
    %v7674 = vpack.c.b16 %v5594, %v5574
    %v7675 = vpack.c.b16 %v5595, %v5575
    %v7676 = vpack.c.b16 %v5616, %v5596
    %v7677 = vpack.c.b16 %v5617, %v5597
    %v7678 = vpack.c.b16 %v5618, %v5598
    %v7679 = vpack.c.b16 %v5619, %v5599
    %v7680 = vpack.c.b16 %v5620, %v5600
    %v7681 = vpack.c.b16 %v5621, %v5601
    %v7682 = vpack.c.b16 %v5622, %v5602
    %v7683 = vpack.c.b16 %v5623, %v5603
    %v7684 = vpack.c.b16 %v5624, %v5604
    %v7685 = vpack.c.b16 %v5625, %v5605
    %v7686 = vpack.c.b16 %v5626, %v5606
    %v7687 = vpack.c.b16 %v5627, %v5607
    %v7688 = vpack.c.b16 %v5628, %v5608
    %v7689 = vpack.c.b16 %v5629, %v5609
    %v7690 = vpack.c.b16 %v5630, %v5610
    %v7691 = vpack.c.b16 %v5631, %v5611
    %v7692 = vpack.c.b16 %v5632, %v5612
    %v7693 = vpack.c.b16 %v5633, %v5613
    %v7694 = vpack.c.b16 %v5634, %v5614
    %v7695 = vpack.c.b16 %v5635, %v5615
    %v7696 = vpack.c.b16 %v5656, %v5636
    %v7697 = vpack.c.b16 %v5657, %v5637
    %v7698 = vpack.c.b16 %v5658, %v5638
    %v7699 = vpack.c.b16 %v5659, %v5639
    %v7700 = vpack.c.b16 %v5660, %v5640
    %v7701 = vpack.c.b16 %v5661, %v5641
    %v7702 = vpack.c.b16 %v5662, %v5642
    %v7703 = vpack.c.b16 %v5663, %v5643
    %v7704 = vpack.c.b16 %v5664, %v5644
    %v7705 = vpack.c.b16 %v5665, %v5645
    %v7706 = vpack.c.b16 %v5666, %v5646
    %v7707 = vpack.c.b16 %v5667, %v5647
    %v7708 = vpack.c.b16 %v5668, %v5648
    %v7709 = vpack.c.b16 %v5669, %v5649
    %v7710 = vpack.c.b16 %v5670, %v5650
    %v7711 = vpack.c.b16 %v5671, %v5651
    %v7712 = vpack.c.b16 %v5672, %v5652
    %v7713 = vpack.c.b16 %v5673, %v5653
    %v7714 = vpack.c.b16 %v5674, %v5654
    %v7715 = vpack.c.b16 %v5675, %v5655
    %v7716 = vpack.c.b16 %v5696, %v5676
    %v7717 = vpack.c.b16 %v5697, %v5677
    %v7718 = vpack.c.b16 %v5698, %v5678
    %v7719 = vpack.c.b16 %v5699, %v5679
    %v7720 = vpack.c.b16 %v5700, %v5680
    %v7721 = vpack.c.b16 %v5701, %v5681
    %v7722 = vpack.c.b16 %v5702, %v5682
    %v7723 = vpack.c.b16 %v5703, %v5683
    %v7724 = vpack.c.b16 %v5704, %v5684
    %v7725 = vpack.c.b16 %v5705, %v5685
    %v7726 = vpack.c.b16 %v5706, %v5686
    %v7727 = vpack.c.b16 %v5707, %v5687
    %v7728 = vpack.c.b16 %v5708, %v5688
    %v7729 = vpack.c.b16 %v5709, %v5689
    %v7730 = vpack.c.b16 %v5710, %v5690
    %v7731 = vpack.c.b16 %v5711, %v5691
    %v7732 = vpack.c.b16 %v5712, %v5692
    %v7733 = vpack.c.b16 %v5713, %v5693
    %v7734 = vpack.c.b16 %v5714, %v5694
    %v7735 = vpack.c.b16 %v5715, %v5695
    %v7736 = vpack.c.b16 %v5736, %v5716
    %v7737 = vpack.c.b16 %v5737, %v5717
    %v7738 = vpack.c.b16 %v5738, %v5718
    %v7739 = vpack.c.b16 %v5739, %v5719
    %v7740 = vpack.c.b16 %v5740, %v5720
    %v7741 = vpack.c.b16 %v5741, %v5721
    %v7742 = vpack.c.b16 %v5742, %v5722
    %v7743 = vpack.c.b16 %v5743, %v5723
    %v7744 = vpack.c.b16 %v5744, %v5724
    %v7745 = vpack.c.b16 %v5745, %v5725
    %v7746 = vpack.c.b16 %v5746, %v5726
    %v7747 = vpack.c.b16 %v5747, %v5727
    %v7748 = vpack.c.b16 %v5748, %v5728
    %v7749 = vpack.c.b16 %v5749, %v5729
    %v7750 = vpack.c.b16 %v5750, %v5730
    %v7751 = vpack.c.b16 %v5751, %v5731
    %v7752 = vpack.c.b16 %v5752, %v5732
    %v7753 = vpack.c.b16 %v5753, %v5733
    %v7754 = vpack.c.b16 %v5754, %v5734
    %v7755 = vpack.c.b16 %v5755, %v5735
    %v7756 = vpack.c.b16 %v5776, %v5756
    %v7757 = vpack.c.b16 %v5777, %v5757
    %v7758 = vpack.c.b16 %v5778, %v5758
    %v7759 = vpack.c.b16 %v5779, %v5759
    %v7760 = vpack.c.b16 %v5780, %v5760
    %v7761 = vpack.c.b16 %v5781, %v5761
    %v7762 = vpack.c.b16 %v5782, %v5762
    %v7763 = vpack.c.b16 %v5783, %v5763
    %v7764 = vpack.c.b16 %v5784, %v5764
    %v7765 = vpack.c.b16 %v5785, %v5765
    %v7766 = vpack.c.b16 %v5786, %v5766
    %v7767 = vpack.c.b16 %v5787, %v5767
    %v7768 = vpack.c.b16 %v5788, %v5768
    %v7769 = vpack.c.b16 %v5789, %v5769
    %v7770 = vpack.c.b16 %v5790, %v5770
    %v7771 = vpack.c.b16 %v5791, %v5771
    %v7772 = vpack.c.b16 %v5792, %v5772
    %v7773 = vpack.c.b16 %v5793, %v5773
    %v7774 = vpack.c.b16 %v5794, %v5774
    %v7775 = vpack.c.b16 %v5795, %v5775
    %v7776 = vpack.c.b16 %v5816, %v5796
    %v7777 = vpack.c.b16 %v5817, %v5797
    %v7778 = vpack.c.b16 %v5818, %v5798
    %v7779 = vpack.c.b16 %v5819, %v5799
    %v7780 = vpack.c.b16 %v5820, %v5800
    %v7781 = vpack.c.b16 %v5821, %v5801
    %v7782 = vpack.c.b16 %v5822, %v5802
    %v7783 = vpack.c.b16 %v5823, %v5803
    %v7784 = vpack.c.b16 %v5824, %v5804
    %v7785 = vpack.c.b16 %v5825, %v5805
    %v7786 = vpack.c.b16 %v5826, %v5806
    %v7787 = vpack.c.b16 %v5827, %v5807
    %v7788 = vpack.c.b16 %v5828, %v5808
    %v7789 = vpack.c.b16 %v5829, %v5809
    %v7790 = vpack.c.b16 %v5830, %v5810
    %v7791 = vpack.c.b16 %v5831, %v5811
    %v7792 = vpack.c.b16 %v5832, %v5812
    %v7793 = vpack.c.b16 %v5833, %v5813
    %v7794 = vpack.c.b16 %v5834, %v5814
    %v7795 = vpack.c.b16 %v5835, %v5815
    %v7796 = vpack.c.b16 %v5856, %v5836
    %v7797 = vpack.c.b16 %v5857, %v5837
    %v7798 = vpack.c.b16 %v5858, %v5838
    %v7799 = vpack.c.b16 %v5859, %v5839
    %v7800 = vpack.c.b16 %v5860, %v5840
    %v7801 = vpack.c.b16 %v5861, %v5841
    %v7802 = vpack.c.b16 %v5862, %v5842
    %v7803 = vpack.c.b16 %v5863, %v5843
    %v7804 = vpack.c.b16 %v5864, %v5844
    %v7805 = vpack.c.b16 %v5865, %v5845
    %v7806 = vpack.c.b16 %v5866, %v5846
    %v7807 = vpack.c.b16 %v5867, %v5847
    %v7808 = vpack.c.b16 %v5868, %v5848
    %v7809 = vpack.c.b16 %v5869, %v5849
    %v7810 = vpack.c.b16 %v5870, %v5850
    %v7811 = vpack.c.b16 %v5871, %v5851
    %v7812 = vpack.c.b16 %v5872, %v5852
    %v7813 = vpack.c.b16 %v5873, %v5853
    %v7814 = vpack.c.b16 %v5874, %v5854
    %v7815 = vpack.c.b16 %v5875, %v5855
    %v7816 = vpack.c.b16 %v5896, %v5876
    %v7817 = vpack.c.b16 %v5897, %v5877
    %v7818 = vpack.c.b16 %v5898, %v5878
    %v7819 = vpack.c.b16 %v5899, %v5879
    %v7820 = vpack.c.b16 %v5900, %v5880
    %v7821 = vpack.c.b16 %v5901, %v5881
    %v7822 = vpack.c.b16 %v5902, %v5882
    %v7823 = vpack.c.b16 %v5903, %v5883
    %v7824 = vpack.c.b16 %v5904, %v5884
    %v7825 = vpack.c.b16 %v5905, %v5885
    %v7826 = vpack.c.b16 %v5906, %v5886
    %v7827 = vpack.c.b16 %v5907, %v5887
    %v7828 = vpack.c.b16 %v5908, %v5888
    %v7829 = vpack.c.b16 %v5909, %v5889
    %v7830 = vpack.c.b16 %v5910, %v5890
    %v7831 = vpack.c.b16 %v5911, %v5891
    %v7832 = vpack.c.b16 %v5912, %v5892
    %v7833 = vpack.c.b16 %v5913, %v5893
    %v7834 = vpack.c.b16 %v5914, %v5894
    %v7835 = vpack.c.b16 %v5915, %v5895
    %v7836 = vpack.c.b16 %v5936, %v5916
    %v7837 = vpack.c.b16 %v5937, %v5917
    %v7838 = vpack.c.b16 %v5938, %v5918
    %v7839 = vpack.c.b16 %v5939, %v5919
    %v7840 = vpack.c.b16 %v5940, %v5920
    %v7841 = vpack.c.b16 %v5941, %v5921
    %v7842 = vpack.c.b16 %v5942, %v5922
    %v7843 = vpack.c.b16 %v5943, %v5923
    %v7844 = vpack.c.b16 %v5944, %v5924
    %v7845 = vpack.c.b16 %v5945, %v5925
    %v7846 = vpack.c.b16 %v5946, %v5926
    %v7847 = vpack.c.b16 %v5947, %v5927
    %v7848 = vpack.c.b16 %v5948, %v5928
    %v7849 = vpack.c.b16 %v5949, %v5929
    %v7850 = vpack.c.b16 %v5950, %v5930
    %v7851 = vpack.c.b16 %v5951, %v5931
    %v7852 = vpack.c.b16 %v5952, %v5932
    %v7853 = vpack.c.b16 %v5953, %v5933
    %v7854 = vpack.c.b16 %v5954, %v5934
    %v7855 = vpack.c.b16 %v5955, %v5935
    %v7856 = vpack.c.b16 %v5976, %v5956
    %v7857 = vpack.c.b16 %v5977, %v5957
    %v7858 = vpack.c.b16 %v5978, %v5958
    %v7859 = vpack.c.b16 %v5979, %v5959
    %v7860 = vpack.c.b16 %v5980, %v5960
    %v7861 = vpack.c.b16 %v5981, %v5961
    %v7862 = vpack.c.b16 %v5982, %v5962
    %v7863 = vpack.c.b16 %v5983, %v5963
    %v7864 = vpack.c.b16 %v5984, %v5964
    %v7865 = vpack.c.b16 %v5985, %v5965
    %v7866 = vpack.c.b16 %v5986, %v5966
    %v7867 = vpack.c.b16 %v5987, %v5967
    %v7868 = vpack.c.b16 %v5988, %v5968
    %v7869 = vpack.c.b16 %v5989, %v5969
    %v7870 = vpack.c.b16 %v5990, %v5970
    %v7871 = vpack.c.b16 %v5991, %v5971
    %v7872 = vpack.c.b16 %v5992, %v5972
    %v7873 = vpack.c.b16 %v5993, %v5973
    %v7874 = vpack.c.b16 %v5994, %v5974
    %v7875 = vpack.c.b16 %v5995, %v5975
    %v7876 = vpack.c.b16 %v6016, %v5996
    %v7877 = vpack.c.b16 %v6017, %v5997
    %v7878 = vpack.c.b16 %v6018, %v5998
    %v7879 = vpack.c.b16 %v6019, %v5999
    %v7880 = vpack.c.b16 %v6020, %v6000
    %v7881 = vpack.c.b16 %v6021, %v6001
    %v7882 = vpack.c.b16 %v6022, %v6002
    %v7883 = vpack.c.b16 %v6023, %v6003
    %v7884 = vpack.c.b16 %v6024, %v6004
    %v7885 = vpack.c.b16 %v6025, %v6005
    %v7886 = vpack.c.b16 %v6026, %v6006
    %v7887 = vpack.c.b16 %v6027, %v6007
    %v7888 = vpack.c.b16 %v6028, %v6008
    %v7889 = vpack.c.b16 %v6029, %v6009
    %v7890 = vpack.c.b16 %v6030, %v6010
    %v7891 = vpack.c.b16 %v6031, %v6011
    %v7892 = vpack.c.b16 %v6032, %v6012
    %v7893 = vpack.c.b16 %v6033, %v6013
    %v7894 = vpack.c.b16 %v6034, %v6014
    %v7895 = vpack.c.b16 %v6035, %v6015
    %v7896 = vpack.c.b16 %v6056, %v6036
    %v7897 = vpack.c.b16 %v6057, %v6037
    %v7898 = vpack.c.b16 %v6058, %v6038
    %v7899 = vpack.c.b16 %v6059, %v6039
    %v7900 = vpack.c.b16 %v6060, %v6040
    %v7901 = vpack.c.b16 %v6061, %v6041
    %v7902 = vpack.c.b16 %v6062, %v6042
    %v7903 = vpack.c.b16 %v6063, %v6043
    %v7904 = vpack.c.b16 %v6064, %v6044
    %v7905 = vpack.c.b16 %v6065, %v6045
    %v7906 = vpack.c.b16 %v6066, %v6046
    %v7907 = vpack.c.b16 %v6067, %v6047
    %v7908 = vpack.c.b16 %v6068, %v6048
    %v7909 = vpack.c.b16 %v6069, %v6049
    %v7910 = vpack.c.b16 %v6070, %v6050
    %v7911 = vpack.c.b16 %v6071, %v6051
    %v7912 = vpack.c.b16 %v6072, %v6052
    %v7913 = vpack.c.b16 %v6073, %v6053
    %v7914 = vpack.c.b16 %v6074, %v6054
    %v7915 = vpack.c.b16 %v6075, %v6055
    %v7916 = vpack.c.b16 %v6096, %v6076
    %v7917 = vpack.c.b16 %v6097, %v6077
    %v7918 = vpack.c.b16 %v6098, %v6078
    %v7919 = vpack.c.b16 %v6099, %v6079
    %v7920 = vpack.c.b16 %v6100, %v6080
    %v7921 = vpack.c.b16 %v6101, %v6081
    %v7922 = vpack.c.b16 %v6102, %v6082
    %v7923 = vpack.c.b16 %v6103, %v6083
    %v7924 = vpack.c.b16 %v6104, %v6084
    %v7925 = vpack.c.b16 %v6105, %v6085
    %v7926 = vpack.c.b16 %v6106, %v6086
    %v7927 = vpack.c.b16 %v6107, %v6087
    %v7928 = vpack.c.b16 %v6108, %v6088
    %v7929 = vpack.c.b16 %v6109, %v6089
    %v7930 = vpack.c.b16 %v6110, %v6090
    %v7931 = vpack.c.b16 %v6111, %v6091
    %v7932 = vpack.c.b16 %v6112, %v6092
    %v7933 = vpack.c.b16 %v6113, %v6093
    %v7934 = vpack.c.b16 %v6114, %v6094
    %v7935 = vpack.c.b16 %v6115, %v6095
    %v7936 = vpack.c.b16 %v6136, %v6116
    %v7937 = vpack.c.b16 %v6137, %v6117
    %v7938 = vpack.c.b16 %v6138, %v6118
    %v7939 = vpack.c.b16 %v6139, %v6119
    %v7940 = vpack.c.b16 %v6140, %v6120
    %v7941 = vpack.c.b16 %v6141, %v6121
    %v7942 = vpack.c.b16 %v6142, %v6122
    %v7943 = vpack.c.b16 %v6143, %v6123
    %v7944 = vpack.c.b16 %v6144, %v6124
    %v7945 = vpack.c.b16 %v6145, %v6125
    %v7946 = vpack.c.b16 %v6146, %v6126
    %v7947 = vpack.c.b16 %v6147, %v6127
    %v7948 = vpack.c.b16 %v6148, %v6128
    %v7949 = vpack.c.b16 %v6149, %v6129
    %v7950 = vpack.c.b16 %v6150, %v6130
    %v7951 = vpack.c.b16 %v6151, %v6131
    %v7952 = vpack.c.b16 %v6152, %v6132
    %v7953 = vpack.c.b16 %v6153, %v6133
    %v7954 = vpack.c.b16 %v6154, %v6134
    %v7955 = vpack.c.b16 %v6155, %v6135
    %v7956 = vpack.c.b16 %v6176, %v6156
    %v7957 = vpack.c.b16 %v6177, %v6157
    %v7958 = vpack.c.b16 %v6178, %v6158
    %v7959 = vpack.c.b16 %v6179, %v6159
    %v7960 = vpack.c.b16 %v6180, %v6160
    %v7961 = vpack.c.b16 %v6181, %v6161
    %v7962 = vpack.c.b16 %v6182, %v6162
    %v7963 = vpack.c.b16 %v6183, %v6163
    %v7964 = vpack.c.b16 %v6184, %v6164
    %v7965 = vpack.c.b16 %v6185, %v6165
    %v7966 = vpack.c.b16 %v6186, %v6166
    %v7967 = vpack.c.b16 %v6187, %v6167
    %v7968 = vpack.c.b16 %v6188, %v6168
    %v7969 = vpack.c.b16 %v6189, %v6169
    %v7970 = vpack.c.b16 %v6190, %v6170
    %v7971 = vpack.c.b16 %v6191, %v6171
    %v7972 = vpack.c.b16 %v6192, %v6172
    %v7973 = vpack.c.b16 %v6193, %v6173
    %v7974 = vpack.c.b16 %v6194, %v6174
    %v7975 = vpack.c.b16 %v6195, %v6175
    %v7976 = vpack.c.b16 %v6216, %v6196
    %v7977 = vpack.c.b16 %v6217, %v6197
    %v7978 = vpack.c.b16 %v6218, %v6198
    %v7979 = vpack.c.b16 %v6219, %v6199
    %v7980 = vpack.c.b16 %v6220, %v6200
    %v7981 = vpack.c.b16 %v6221, %v6201
    %v7982 = vpack.c.b16 %v6222, %v6202
    %v7983 = vpack.c.b16 %v6223, %v6203
    %v7984 = vpack.c.b16 %v6224, %v6204
    %v7985 = vpack.c.b16 %v6225, %v6205
    %v7986 = vpack.c.b16 %v6226, %v6206
    %v7987 = vpack.c.b16 %v6227, %v6207
    %v7988 = vpack.c.b16 %v6228, %v6208
    %v7989 = vpack.c.b16 %v6229, %v6209
    %v7990 = vpack.c.b16 %v6230, %v6210
    %v7991 = vpack.c.b16 %v6231, %v6211
    %v7992 = vpack.c.b16 %v6232, %v6212
    %v7993 = vpack.c.b16 %v6233, %v6213
    %v7994 = vpack.c.b16 %v6234, %v6214
    %v7995 = vpack.c.b16 %v6235, %v6215
    %v7996 = vpack.c.b16 %v6256, %v6236
    %v7997 = vpack.c.b16 %v6257, %v6237
    %v7998 = vpack.c.b16 %v6258, %v6238
    %v7999 = vpack.c.b16 %v6259, %v6239
    %v8000 = vpack.c.b16 %v6260, %v6240
    %v8001 = vpack.c.b16 %v6261, %v6241
    %v8002 = vpack.c.b16 %v6262, %v6242
    %v8003 = vpack.c.b16 %v6263, %v6243
    %v8004 = vpack.c.b16 %v6264, %v6244
    %v8005 = vpack.c.b16 %v6265, %v6245
    %v8006 = vpack.c.b16 %v6266, %v6246
    %v8007 = vpack.c.b16 %v6267, %v6247
    %v8008 = vpack.c.b16 %v6268, %v6248
    %v8009 = vpack.c.b16 %v6269, %v6249
    %v8010 = vpack.c.b16 %v6270, %v6250
    %v8011 = vpack.c.b16 %v6271, %v6251
    %v8012 = vpack.c.b16 %v6272, %v6252
    %v8013 = vpack.c.b16 %v6273, %v6253
    %v8014 = vpack.c.b16 %v6274, %v6254
    %v8015 = vpack.c.b16 %v6275, %v6255
    %v8016 = vpack.c.b16 %v6296, %v6276
    %v8017 = vpack.c.b16 %v6297, %v6277
    %v8018 = vpack.c.b16 %v6298, %v6278
    %v8019 = vpack.c.b16 %v6299, %v6279
    %v8020 = vpack.c.b16 %v6300, %v6280
    %v8021 = vpack.c.b16 %v6301, %v6281
    %v8022 = vpack.c.b16 %v6302, %v6282
    %v8023 = vpack.c.b16 %v6303, %v6283
    %v8024 = vpack.c.b16 %v6304, %v6284
    %v8025 = vpack.c.b16 %v6305, %v6285
    %v8026 = vpack.c.b16 %v6306, %v6286
    %v8027 = vpack.c.b16 %v6307, %v6287
    %v8028 = vpack.c.b16 %v6308, %v6288
    %v8029 = vpack.c.b16 %v6309, %v6289
    %v8030 = vpack.c.b16 %v6310, %v6290
    %v8031 = vpack.c.b16 %v6311, %v6291
    %v8032 = vpack.c.b16 %v6312, %v6292
    %v8033 = vpack.c.b16 %v6313, %v6293
    %v8034 = vpack.c.b16 %v6314, %v6294
    %v8035 = vpack.c.b16 %v6315, %v6295
    %v8036 = vpack.c.b16 %v6336, %v6316
    %v8037 = vpack.c.b16 %v6337, %v6317
    %v8038 = vpack.c.b16 %v6338, %v6318
    %v8039 = vpack.c.b16 %v6339, %v6319
    %v8040 = vpack.c.b16 %v6340, %v6320
    %v8041 = vpack.c.b16 %v6341, %v6321
    %v8042 = vpack.c.b16 %v6342, %v6322
    %v8043 = vpack.c.b16 %v6343, %v6323
    %v8044 = vpack.c.b16 %v6344, %v6324
    %v8045 = vpack.c.b16 %v6345, %v6325
    %v8046 = vpack.c.b16 %v6346, %v6326
    %v8047 = vpack.c.b16 %v6347, %v6327
    %v8048 = vpack.c.b16 %v6348, %v6328
    %v8049 = vpack.c.b16 %v6349, %v6329
    %v8050 = vpack.c.b16 %v6350, %v6330
    %v8051 = vpack.c.b16 %v6351, %v6331
    %v8052 = vpack.c.b16 %v6352, %v6332
    %v8053 = vpack.c.b16 %v6353, %v6333
    %v8054 = vpack.c.b16 %v6354, %v6334
    %v8055 = vpack.c.b16 %v6355, %v6335
    %v8056 = vpack.c.b16 %v6376, %v6356
    %v8057 = vpack.c.b16 %v6377, %v6357
    %v8058 = vpack.c.b16 %v6378, %v6358
    %v8059 = vpack.c.b16 %v6379, %v6359
    %v8060 = vpack.c.b16 %v6380, %v6360
    %v8061 = vpack.c.b16 %v6381, %v6361
    %v8062 = vpack.c.b16 %v6382, %v6362
    %v8063 = vpack.c.b16 %v6383, %v6363
    %v8064 = vpack.c.b16 %v6384, %v6364
    %v8065 = vpack.c.b16 %v6385, %v6365
    %v8066 = vpack.c.b16 %v6386, %v6366
    %v8067 = vpack.c.b16 %v6387, %v6367
    %v8068 = vpack.c.b16 %v6388, %v6368
    %v8069 = vpack.c.b16 %v6389, %v6369
    %v8070 = vpack.c.b16 %v6390, %v6370
    %v8071 = vpack.c.b16 %v6391, %v6371
    %v8072 = vpack.c.b16 %v6392, %v6372
    %v8073 = vpack.c.b16 %v6393, %v6373
    %v8074 = vpack.c.b16 %v6394, %v6374
    %v8075 = vpack.c.b16 %v6395, %v6375
    %v8076 = vpack.c.b16 %v6416, %v6396
    %v8077 = vpack.c.b16 %v6417, %v6397
    %v8078 = vpack.c.b16 %v6418, %v6398
    %v8079 = vpack.c.b16 %v6419, %v6399
    %v8080 = vpack.c.b16 %v6420, %v6400
    %v8081 = vpack.c.b16 %v6421, %v6401
    %v8082 = vpack.c.b16 %v6422, %v6402
    %v8083 = vpack.c.b16 %v6423, %v6403
    %v8084 = vpack.c.b16 %v6424, %v6404
    %v8085 = vpack.c.b16 %v6425, %v6405
    %v8086 = vpack.c.b16 %v6426, %v6406
    %v8087 = vpack.c.b16 %v6427, %v6407
    %v8088 = vpack.c.b16 %v6428, %v6408
    %v8089 = vpack.c.b16 %v6429, %v6409
    %v8090 = vpack.c.b16 %v6430, %v6410
    %v8091 = vpack.c.b16 %v6431, %v6411
    %v8092 = vpack.c.b16 %v6432, %v6412
    %v8093 = vpack.c.b16 %v6433, %v6413
    %v8094 = vpack.c.b16 %v6434, %v6414
    %v8095 = vpack.c.b16 %v6435, %v6415
    %v8096 = vpack.c.b16 %v6456, %v6436
    %v8097 = vpack.c.b16 %v6457, %v6437
    %v8098 = vpack.c.b16 %v6458, %v6438
    %v8099 = vpack.c.b16 %v6459, %v6439
    %v8100 = vpack.c.b16 %v6460, %v6440
    %v8101 = vpack.c.b16 %v6461, %v6441
    %v8102 = vpack.c.b16 %v6462, %v6442
    %v8103 = vpack.c.b16 %v6463, %v6443
    %v8104 = vpack.c.b16 %v6464, %v6444
    %v8105 = vpack.c.b16 %v6465, %v6445
    %v8106 = vpack.c.b16 %v6466, %v6446
    %v8107 = vpack.c.b16 %v6467, %v6447
    %v8108 = vpack.c.b16 %v6468, %v6448
    %v8109 = vpack.c.b16 %v6469, %v6449
    %v8110 = vpack.c.b16 %v6470, %v6450
    %v8111 = vpack.c.b16 %v6471, %v6451
    %v8112 = vpack.c.b16 %v6472, %v6452
    %v8113 = vpack.c.b16 %v6473, %v6453
    %v8114 = vpack.c.b16 %v6474, %v6454
    %v8115 = vpack.c.b16 %v6475, %v6455
    %v8116 = vpack.c.b16 %v6496, %v6476
    %v8117 = vpack.c.b16 %v6497, %v6477
    %v8118 = vpack.c.b16 %v6498, %v6478
    %v8119 = vpack.c.b16 %v6499, %v6479
    %v8120 = vpack.c.b16 %v6500, %v6480
    %v8121 = vpack.c.b16 %v6501, %v6481
    %v8122 = vpack.c.b16 %v6502, %v6482
    %v8123 = vpack.c.b16 %v6503, %v6483
    %v8124 = vpack.c.b16 %v6504, %v6484
    %v8125 = vpack.c.b16 %v6505, %v6485
    %v8126 = vpack.c.b16 %v6506, %v6486
    %v8127 = vpack.c.b16 %v6507, %v6487
    %v8128 = vpack.c.b16 %v6508, %v6488
    %v8129 = vpack.c.b16 %v6509, %v6489
    %v8130 = vpack.c.b16 %v6510, %v6490
    %v8131 = vpack.c.b16 %v6511, %v6491
    %v8132 = vpack.c.b16 %v6512, %v6492
    %v8133 = vpack.c.b16 %v6513, %v6493
    %v8134 = vpack.c.b16 %v6514, %v6494
    %v8135 = vpack.c.b16 %v6515, %v6495
    %v8136 = vpack.c.b16 %v6536, %v6516
    %v8137 = vpack.c.b16 %v6537, %v6517
    %v8138 = vpack.c.b16 %v6538, %v6518
    %v8139 = vpack.c.b16 %v6539, %v6519
    %v8140 = vpack.c.b16 %v6540, %v6520
    %v8141 = vpack.c.b16 %v6541, %v6521
    %v8142 = vpack.c.b16 %v6542, %v6522
    %v8143 = vpack.c.b16 %v6543, %v6523
    %v8144 = vpack.c.b16 %v6544, %v6524
    %v8145 = vpack.c.b16 %v6545, %v6525
    %v8146 = vpack.c.b16 %v6546, %v6526
    %v8147 = vpack.c.b16 %v6547, %v6527
    %v8148 = vpack.c.b16 %v6548, %v6528
    %v8149 = vpack.c.b16 %v6549, %v6529
    %v8150 = vpack.c.b16 %v6550, %v6530
    %v8151 = vpack.c.b16 %v6551, %v6531
    %v8152 = vpack.c.b16 %v6552, %v6532
    %v8153 = vpack.c.b16 %v6553, %v6533
    %v8154 = vpack.c.b16 %v6554, %v6534
    %v8155 = vpack.c.b16 %v6555, %v6535
    %9756 = vmatpush.bf16.msra.mxu0 %v6696
    %9757 = vmatpush.bf16.msra.mxu0 %v6676
    %9758 = vmatpush.bf16.msra.mxu0 %v6656
    %9759 = vmatpush.bf16.msra.mxu0 %v6636
    %9760 = vmatpush.bf16.msra.mxu0 %v6616
    %9761 = vmatpush.bf16.msra.mxu0 %v6596
    %9762 = vmatpush.bf16.msra.mxu0 %v6576
    %9763 = vmatpush.bf16.msra.mxu0 %v6556
    %9764 = vmatmul.bf16.gmra.mxu0 %v1736
    %v9765 = vpop.f32.mrf.mxu0
    %v9766 = vadd.f32 %v1666, %v9765
    %v9767 = vpop.f32.mrf.mxu0
    %v9768 = vadd.f32 %v1666, %v9767
    %9769 = vdwg.mxu0
    %9770 = vmatpush.bf16.msra.mxu0 %v6856
    %9771 = vmatpush.bf16.msra.mxu0 %v6836
    %9772 = vmatpush.bf16.msra.mxu0 %v6816
    %9773 = vmatpush.bf16.msra.mxu0 %v6796
    %9774 = vmatpush.bf16.msra.mxu0 %v6776
    %9775 = vmatpush.bf16.msra.mxu0 %v6756
    %9776 = vmatpush.bf16.msra.mxu0 %v6736
    %9777 = vmatpush.bf16.msra.mxu0 %v6716
    %9778 = vmatmul.bf16.gmra.mxu0 %v1737
    %v9779 = vpop.f32.mrf.mxu0
    %v9780 = vadd.f32 %v9766, %v9779
    %v9781 = vpop.f32.mrf.mxu0
    %v9782 = vadd.f32 %v9768, %v9781
    %9783 = vdwg.mxu0
    %9784 = vmatpush.bf16.msra.mxu0 %v7016
    %9785 = vmatpush.bf16.msra.mxu0 %v6996
    %9786 = vmatpush.bf16.msra.mxu0 %v6976
    %9787 = vmatpush.bf16.msra.mxu0 %v6956
    %9788 = vmatpush.bf16.msra.mxu0 %v6936
    %9789 = vmatpush.bf16.msra.mxu0 %v6916
    %9790 = vmatpush.bf16.msra.mxu0 %v6896
    %9791 = vmatpush.bf16.msra.mxu0 %v6876
    %9792 = vmatmul.bf16.gmra.mxu0 %v1738
    %v9793 = vpop.f32.mrf.mxu0
    %v9794 = vadd.f32 %v9780, %v9793
    %v9795 = vpop.f32.mrf.mxu0
    %v9796 = vadd.f32 %v9782, %v9795
    %9797 = vdwg.mxu0
    %9798 = vmatpush.bf16.msra.mxu0 %v7176
    %9799 = vmatpush.bf16.msra.mxu0 %v7156
    %9800 = vmatpush.bf16.msra.mxu0 %v7136
    %9801 = vmatpush.bf16.msra.mxu0 %v7116
    %9802 = vmatpush.bf16.msra.mxu0 %v7096
    %9803 = vmatpush.bf16.msra.mxu0 %v7076
    %9804 = vmatpush.bf16.msra.mxu0 %v7056
    %9805 = vmatpush.bf16.msra.mxu0 %v7036
    %9806 = vmatmul.bf16.gmra.mxu0 %v1739
    %v9807 = vpop.f32.mrf.mxu0
    %v9808 = vadd.f32 %v9794, %v9807
    %v9809 = vpop.f32.mrf.mxu0
    %v9810 = vadd.f32 %v9796, %v9809
    %9811 = vdwg.mxu0
    %9812 = vmatpush.bf16.msra.mxu0 %v7336
    %9813 = vmatpush.bf16.msra.mxu0 %v7316
    %9814 = vmatpush.bf16.msra.mxu0 %v7296
    %9815 = vmatpush.bf16.msra.mxu0 %v7276
    %9816 = vmatpush.bf16.msra.mxu0 %v7256
    %9817 = vmatpush.bf16.msra.mxu0 %v7236
    %9818 = vmatpush.bf16.msra.mxu0 %v7216
    %9819 = vmatpush.bf16.msra.mxu0 %v7196
    %9820 = vmatmul.bf16.gmra.mxu0 %v1740
    %v9821 = vpop.f32.mrf.mxu0
    %v9822 = vadd.f32 %v9808, %v9821
    %v9823 = vpop.f32.mrf.mxu0
    %v9824 = vadd.f32 %v9810, %v9823
    %9825 = vdwg.mxu0
    %9826 = vmatpush.bf16.msra.mxu0 %v7496
    %9827 = vmatpush.bf16.msra.mxu0 %v7476
    %9828 = vmatpush.bf16.msra.mxu0 %v7456
    %9829 = vmatpush.bf16.msra.mxu0 %v7436
    %9830 = vmatpush.bf16.msra.mxu0 %v7416
    %9831 = vmatpush.bf16.msra.mxu0 %v7396
    %9832 = vmatpush.bf16.msra.mxu0 %v7376
    %9833 = vmatpush.bf16.msra.mxu0 %v7356
    %9834 = vmatmul.bf16.gmra.mxu0 %v1741
    %v9835 = vpop.f32.mrf.mxu0
    %v9836 = vadd.f32 %v9822, %v9835
    %v9837 = vpop.f32.mrf.mxu0
    %v9838 = vadd.f32 %v9824, %v9837
    %9839 = vdwg.mxu0
    %9840 = vmatpush.bf16.msra.mxu0 %v7656
    %9841 = vmatpush.bf16.msra.mxu0 %v7636
    %9842 = vmatpush.bf16.msra.mxu0 %v7616
    %9843 = vmatpush.bf16.msra.mxu0 %v7596
    %9844 = vmatpush.bf16.msra.mxu0 %v7576
    %9845 = vmatpush.bf16.msra.mxu0 %v7556
    %9846 = vmatpush.bf16.msra.mxu0 %v7536
    %9847 = vmatpush.bf16.msra.mxu0 %v7516
    %9848 = vmatmul.bf16.gmra.mxu0 %v1742
    %v9849 = vpop.f32.mrf.mxu0
    %v9850 = vadd.f32 %v9836, %v9849
    %v9851 = vpop.f32.mrf.mxu0
    %v9852 = vadd.f32 %v9838, %v9851
    %9853 = vdwg.mxu0
    %9854 = vmatpush.bf16.msra.mxu0 %v7816
    %9855 = vmatpush.bf16.msra.mxu0 %v7796
    %9856 = vmatpush.bf16.msra.mxu0 %v7776
    %9857 = vmatpush.bf16.msra.mxu0 %v7756
    %9858 = vmatpush.bf16.msra.mxu0 %v7736
    %9859 = vmatpush.bf16.msra.mxu0 %v7716
    %9860 = vmatpush.bf16.msra.mxu0 %v7696
    %9861 = vmatpush.bf16.msra.mxu0 %v7676
    %9862 = vmatmul.bf16.gmra.mxu0 %v1743
    %v9863 = vpop.f32.mrf.mxu0
    %v9864 = vadd.f32 %v9850, %v9863
    %v9865 = vpop.f32.mrf.mxu0
    %v9866 = vadd.f32 %v9852, %v9865
    %9867 = vdwg.mxu0
    %9868 = vmatpush.bf16.msra.mxu0 %v7976
    %9869 = vmatpush.bf16.msra.mxu0 %v7956
    %9870 = vmatpush.bf16.msra.mxu0 %v7936
    %9871 = vmatpush.bf16.msra.mxu0 %v7916
    %9872 = vmatpush.bf16.msra.mxu0 %v7896
    %9873 = vmatpush.bf16.msra.mxu0 %v7876
    %9874 = vmatpush.bf16.msra.mxu0 %v7856
    %9875 = vmatpush.bf16.msra.mxu0 %v7836
    %9876 = vmatmul.bf16.gmra.mxu0 %v1744
    %v9877 = vpop.f32.mrf.mxu0
    %v9878 = vadd.f32 %v9864, %v9877
    %v9879 = vpop.f32.mrf.mxu0
    %v9880 = vadd.f32 %v9866, %v9879
    %9881 = vdwg.mxu0
    %9882 = vmatpush.bf16.msra.mxu0 %v8136
    %9883 = vmatpush.bf16.msra.mxu0 %v8116
    %9884 = vmatpush.bf16.msra.mxu0 %v8096
    %9885 = vmatpush.bf16.msra.mxu0 %v8076
    %9886 = vmatpush.bf16.msra.mxu0 %v8056
    %9887 = vmatpush.bf16.msra.mxu0 %v8036
    %9888 = vmatpush.bf16.msra.mxu0 %v8016
    %9889 = vmatpush.bf16.msra.mxu0 %v7996
    %9890 = vmatmul.bf16.gmra.mxu0 %v1745
    %v9891 = vpop.f32.mrf.mxu0
    %v9892 = vadd.f32 %v9878, %v9891
    %v9893 = vpop.f32.mrf.mxu0
    %v9894 = vadd.f32 %v9880, %v9893
    %9895 = vdwg.mxu0
    %9896 = vmatpush.bf16.msra.mxu0 %v6697
    %9897 = vmatpush.bf16.msra.mxu0 %v6677
    %9898 = vmatpush.bf16.msra.mxu0 %v6657
    %9899 = vmatpush.bf16.msra.mxu0 %v6637
    %9900 = vmatpush.bf16.msra.mxu0 %v6617
    %9901 = vmatpush.bf16.msra.mxu0 %v6597
    %9902 = vmatpush.bf16.msra.mxu0 %v6577
    %9903 = vmatpush.bf16.msra.mxu0 %v6557
    %9904 = vmatmul.bf16.gmra.mxu0 %v1736
    %v9905 = vpop.f32.mrf.mxu0
    %v9906 = vadd.f32 %v1667, %v9905
    %v9907 = vpop.f32.mrf.mxu0
    %v9908 = vadd.f32 %v1667, %v9907
    %9909 = vdwg.mxu0
    %9910 = vmatpush.bf16.msra.mxu0 %v6857
    %9911 = vmatpush.bf16.msra.mxu0 %v6837
    %9912 = vmatpush.bf16.msra.mxu0 %v6817
    %9913 = vmatpush.bf16.msra.mxu0 %v6797
    %9914 = vmatpush.bf16.msra.mxu0 %v6777
    %9915 = vmatpush.bf16.msra.mxu0 %v6757
    %9916 = vmatpush.bf16.msra.mxu0 %v6737
    %9917 = vmatpush.bf16.msra.mxu0 %v6717
    %9918 = vmatmul.bf16.gmra.mxu0 %v1737
    %v9919 = vpop.f32.mrf.mxu0
    %v9920 = vadd.f32 %v9906, %v9919
    %v9921 = vpop.f32.mrf.mxu0
    %v9922 = vadd.f32 %v9908, %v9921
    %9923 = vdwg.mxu0
    %9924 = vmatpush.bf16.msra.mxu0 %v7017
    %9925 = vmatpush.bf16.msra.mxu0 %v6997
    %9926 = vmatpush.bf16.msra.mxu0 %v6977
    %9927 = vmatpush.bf16.msra.mxu0 %v6957
    %9928 = vmatpush.bf16.msra.mxu0 %v6937
    %9929 = vmatpush.bf16.msra.mxu0 %v6917
    %9930 = vmatpush.bf16.msra.mxu0 %v6897
    %9931 = vmatpush.bf16.msra.mxu0 %v6877
    %9932 = vmatmul.bf16.gmra.mxu0 %v1738
    %v9933 = vpop.f32.mrf.mxu0
    %v9934 = vadd.f32 %v9920, %v9933
    %v9935 = vpop.f32.mrf.mxu0
    %v9936 = vadd.f32 %v9922, %v9935
    %9937 = vdwg.mxu0
    %9938 = vmatpush.bf16.msra.mxu0 %v7177
    %9939 = vmatpush.bf16.msra.mxu0 %v7157
    %9940 = vmatpush.bf16.msra.mxu0 %v7137
    %9941 = vmatpush.bf16.msra.mxu0 %v7117
    %9942 = vmatpush.bf16.msra.mxu0 %v7097
    %9943 = vmatpush.bf16.msra.mxu0 %v7077
    %9944 = vmatpush.bf16.msra.mxu0 %v7057
    %9945 = vmatpush.bf16.msra.mxu0 %v7037
    %9946 = vmatmul.bf16.gmra.mxu0 %v1739
    %v9947 = vpop.f32.mrf.mxu0
    %v9948 = vadd.f32 %v9934, %v9947
    %v9949 = vpop.f32.mrf.mxu0
    %v9950 = vadd.f32 %v9936, %v9949
    %9951 = vdwg.mxu0
    %9952 = vmatpush.bf16.msra.mxu0 %v7337
    %9953 = vmatpush.bf16.msra.mxu0 %v7317
    %9954 = vmatpush.bf16.msra.mxu0 %v7297
    %9955 = vmatpush.bf16.msra.mxu0 %v7277
    %9956 = vmatpush.bf16.msra.mxu0 %v7257
    %9957 = vmatpush.bf16.msra.mxu0 %v7237
    %9958 = vmatpush.bf16.msra.mxu0 %v7217
    %9959 = vmatpush.bf16.msra.mxu0 %v7197
    %9960 = vmatmul.bf16.gmra.mxu0 %v1740
    %v9961 = vpop.f32.mrf.mxu0
    %v9962 = vadd.f32 %v9948, %v9961
    %v9963 = vpop.f32.mrf.mxu0
    %v9964 = vadd.f32 %v9950, %v9963
    %9965 = vdwg.mxu0
    %9966 = vmatpush.bf16.msra.mxu0 %v7497
    %9967 = vmatpush.bf16.msra.mxu0 %v7477
    %9968 = vmatpush.bf16.msra.mxu0 %v7457
    %9969 = vmatpush.bf16.msra.mxu0 %v7437
    %9970 = vmatpush.bf16.msra.mxu0 %v7417
    %9971 = vmatpush.bf16.msra.mxu0 %v7397
    %9972 = vmatpush.bf16.msra.mxu0 %v7377
    %9973 = vmatpush.bf16.msra.mxu0 %v7357
    %9974 = vmatmul.bf16.gmra.mxu0 %v1741
    %v9975 = vpop.f32.mrf.mxu0
    %v9976 = vadd.f32 %v9962, %v9975
    %v9977 = vpop.f32.mrf.mxu0
    %v9978 = vadd.f32 %v9964, %v9977
    %9979 = vdwg.mxu0
    %9980 = vmatpush.bf16.msra.mxu0 %v7657
    %9981 = vmatpush.bf16.msra.mxu0 %v7637
    %9982 = vmatpush.bf16.msra.mxu0 %v7617
    %9983 = vmatpush.bf16.msra.mxu0 %v7597
    %9984 = vmatpush.bf16.msra.mxu0 %v7577
    %9985 = vmatpush.bf16.msra.mxu0 %v7557
    %9986 = vmatpush.bf16.msra.mxu0 %v7537
    %9987 = vmatpush.bf16.msra.mxu0 %v7517
    %9988 = vmatmul.bf16.gmra.mxu0 %v1742
    %v9989 = vpop.f32.mrf.mxu0
    %v9990 = vadd.f32 %v9976, %v9989
    %v9991 = vpop.f32.mrf.mxu0
    %v9992 = vadd.f32 %v9978, %v9991
    %9993 = vdwg.mxu0
    %9994 = vmatpush.bf16.msra.mxu0 %v7817
    %9995 = vmatpush.bf16.msra.mxu0 %v7797
    %9996 = vmatpush.bf16.msra.mxu0 %v7777
    %9997 = vmatpush.bf16.msra.mxu0 %v7757
    %9998 = vmatpush.bf16.msra.mxu0 %v7737
    %9999 = vmatpush.bf16.msra.mxu0 %v7717
    %10000 = vmatpush.bf16.msra.mxu0 %v7697
    %10001 = vmatpush.bf16.msra.mxu0 %v7677
    %10002 = vmatmul.bf16.gmra.mxu0 %v1743
    %v10003 = vpop.f32.mrf.mxu0
    %v10004 = vadd.f32 %v9990, %v10003
    %v10005 = vpop.f32.mrf.mxu0
    %v10006 = vadd.f32 %v9992, %v10005
    %10007 = vdwg.mxu0
    %10008 = vmatpush.bf16.msra.mxu0 %v7977
    %10009 = vmatpush.bf16.msra.mxu0 %v7957
    %10010 = vmatpush.bf16.msra.mxu0 %v7937
    %10011 = vmatpush.bf16.msra.mxu0 %v7917
    %10012 = vmatpush.bf16.msra.mxu0 %v7897
    %10013 = vmatpush.bf16.msra.mxu0 %v7877
    %10014 = vmatpush.bf16.msra.mxu0 %v7857
    %10015 = vmatpush.bf16.msra.mxu0 %v7837
    %10016 = vmatmul.bf16.gmra.mxu0 %v1744
    %v10017 = vpop.f32.mrf.mxu0
    %v10018 = vadd.f32 %v10004, %v10017
    %v10019 = vpop.f32.mrf.mxu0
    %v10020 = vadd.f32 %v10006, %v10019
    %10021 = vdwg.mxu0
    %10022 = vmatpush.bf16.msra.mxu0 %v8137
    %10023 = vmatpush.bf16.msra.mxu0 %v8117
    %10024 = vmatpush.bf16.msra.mxu0 %v8097
    %10025 = vmatpush.bf16.msra.mxu0 %v8077
    %10026 = vmatpush.bf16.msra.mxu0 %v8057
    %10027 = vmatpush.bf16.msra.mxu0 %v8037
    %10028 = vmatpush.bf16.msra.mxu0 %v8017
    %10029 = vmatpush.bf16.msra.mxu0 %v7997
    %10030 = vmatmul.bf16.gmra.mxu0 %v1745
    %v10031 = vpop.f32.mrf.mxu0
    %v10032 = vadd.f32 %v10018, %v10031
    %v10033 = vpop.f32.mrf.mxu0
    %v10034 = vadd.f32 %v10020, %v10033
    %10035 = vdwg.mxu0
    %10036 = vmatpush.bf16.msra.mxu0 %v6698
    %10037 = vmatpush.bf16.msra.mxu0 %v6678
    %10038 = vmatpush.bf16.msra.mxu0 %v6658
    %10039 = vmatpush.bf16.msra.mxu0 %v6638
    %10040 = vmatpush.bf16.msra.mxu0 %v6618
    %10041 = vmatpush.bf16.msra.mxu0 %v6598
    %10042 = vmatpush.bf16.msra.mxu0 %v6578
    %10043 = vmatpush.bf16.msra.mxu0 %v6558
    %10044 = vmatmul.bf16.gmra.mxu0 %v1736
    %v10045 = vpop.f32.mrf.mxu0
    %v10046 = vadd.f32 %v1668, %v10045
    %v10047 = vpop.f32.mrf.mxu0
    %v10048 = vadd.f32 %v1668, %v10047
    %10049 = vdwg.mxu0
    %10050 = vmatpush.bf16.msra.mxu0 %v6858
    %10051 = vmatpush.bf16.msra.mxu0 %v6838
    %10052 = vmatpush.bf16.msra.mxu0 %v6818
    %10053 = vmatpush.bf16.msra.mxu0 %v6798
    %10054 = vmatpush.bf16.msra.mxu0 %v6778
    %10055 = vmatpush.bf16.msra.mxu0 %v6758
    %10056 = vmatpush.bf16.msra.mxu0 %v6738
    %10057 = vmatpush.bf16.msra.mxu0 %v6718
    %10058 = vmatmul.bf16.gmra.mxu0 %v1737
    %v10059 = vpop.f32.mrf.mxu0
    %v10060 = vadd.f32 %v10046, %v10059
    %v10061 = vpop.f32.mrf.mxu0
    %v10062 = vadd.f32 %v10048, %v10061
    %10063 = vdwg.mxu0
    %10064 = vmatpush.bf16.msra.mxu0 %v7018
    %10065 = vmatpush.bf16.msra.mxu0 %v6998
    %10066 = vmatpush.bf16.msra.mxu0 %v6978
    %10067 = vmatpush.bf16.msra.mxu0 %v6958
    %10068 = vmatpush.bf16.msra.mxu0 %v6938
    %10069 = vmatpush.bf16.msra.mxu0 %v6918
    %10070 = vmatpush.bf16.msra.mxu0 %v6898
    %10071 = vmatpush.bf16.msra.mxu0 %v6878
    %10072 = vmatmul.bf16.gmra.mxu0 %v1738
    %v10073 = vpop.f32.mrf.mxu0
    %v10074 = vadd.f32 %v10060, %v10073
    %v10075 = vpop.f32.mrf.mxu0
    %v10076 = vadd.f32 %v10062, %v10075
    %10077 = vdwg.mxu0
    %10078 = vmatpush.bf16.msra.mxu0 %v7178
    %10079 = vmatpush.bf16.msra.mxu0 %v7158
    %10080 = vmatpush.bf16.msra.mxu0 %v7138
    %10081 = vmatpush.bf16.msra.mxu0 %v7118
    %10082 = vmatpush.bf16.msra.mxu0 %v7098
    %10083 = vmatpush.bf16.msra.mxu0 %v7078
    %10084 = vmatpush.bf16.msra.mxu0 %v7058
    %10085 = vmatpush.bf16.msra.mxu0 %v7038
    %10086 = vmatmul.bf16.gmra.mxu0 %v1739
    %v10087 = vpop.f32.mrf.mxu0
    %v10088 = vadd.f32 %v10074, %v10087
    %v10089 = vpop.f32.mrf.mxu0
    %v10090 = vadd.f32 %v10076, %v10089
    %10091 = vdwg.mxu0
    %10092 = vmatpush.bf16.msra.mxu0 %v7338
    %10093 = vmatpush.bf16.msra.mxu0 %v7318
    %10094 = vmatpush.bf16.msra.mxu0 %v7298
    %10095 = vmatpush.bf16.msra.mxu0 %v7278
    %10096 = vmatpush.bf16.msra.mxu0 %v7258
    %10097 = vmatpush.bf16.msra.mxu0 %v7238
    %10098 = vmatpush.bf16.msra.mxu0 %v7218
    %10099 = vmatpush.bf16.msra.mxu0 %v7198
    %10100 = vmatmul.bf16.gmra.mxu0 %v1740
    %v10101 = vpop.f32.mrf.mxu0
    %v10102 = vadd.f32 %v10088, %v10101
    %v10103 = vpop.f32.mrf.mxu0
    %v10104 = vadd.f32 %v10090, %v10103
    %10105 = vdwg.mxu0
    %10106 = vmatpush.bf16.msra.mxu0 %v7498
    %10107 = vmatpush.bf16.msra.mxu0 %v7478
    %10108 = vmatpush.bf16.msra.mxu0 %v7458
    %10109 = vmatpush.bf16.msra.mxu0 %v7438
    %10110 = vmatpush.bf16.msra.mxu0 %v7418
    %10111 = vmatpush.bf16.msra.mxu0 %v7398
    %10112 = vmatpush.bf16.msra.mxu0 %v7378
    %10113 = vmatpush.bf16.msra.mxu0 %v7358
    %10114 = vmatmul.bf16.gmra.mxu0 %v1741
    %v10115 = vpop.f32.mrf.mxu0
    %v10116 = vadd.f32 %v10102, %v10115
    %v10117 = vpop.f32.mrf.mxu0
    %v10118 = vadd.f32 %v10104, %v10117
    %10119 = vdwg.mxu0
    %10120 = vmatpush.bf16.msra.mxu0 %v7658
    %10121 = vmatpush.bf16.msra.mxu0 %v7638
    %10122 = vmatpush.bf16.msra.mxu0 %v7618
    %10123 = vmatpush.bf16.msra.mxu0 %v7598
    %10124 = vmatpush.bf16.msra.mxu0 %v7578
    %10125 = vmatpush.bf16.msra.mxu0 %v7558
    %10126 = vmatpush.bf16.msra.mxu0 %v7538
    %10127 = vmatpush.bf16.msra.mxu0 %v7518
    %10128 = vmatmul.bf16.gmra.mxu0 %v1742
    %v10129 = vpop.f32.mrf.mxu0
    %v10130 = vadd.f32 %v10116, %v10129
    %v10131 = vpop.f32.mrf.mxu0
    %v10132 = vadd.f32 %v10118, %v10131
    %10133 = vdwg.mxu0
    %10134 = vmatpush.bf16.msra.mxu0 %v7818
    %10135 = vmatpush.bf16.msra.mxu0 %v7798
    %10136 = vmatpush.bf16.msra.mxu0 %v7778
    %10137 = vmatpush.bf16.msra.mxu0 %v7758
    %10138 = vmatpush.bf16.msra.mxu0 %v7738
    %10139 = vmatpush.bf16.msra.mxu0 %v7718
    %10140 = vmatpush.bf16.msra.mxu0 %v7698
    %10141 = vmatpush.bf16.msra.mxu0 %v7678
    %10142 = vmatmul.bf16.gmra.mxu0 %v1743
    %v10143 = vpop.f32.mrf.mxu0
    %v10144 = vadd.f32 %v10130, %v10143
    %v10145 = vpop.f32.mrf.mxu0
    %v10146 = vadd.f32 %v10132, %v10145
    %10147 = vdwg.mxu0
    %10148 = vmatpush.bf16.msra.mxu0 %v7978
    %10149 = vmatpush.bf16.msra.mxu0 %v7958
    %10150 = vmatpush.bf16.msra.mxu0 %v7938
    %10151 = vmatpush.bf16.msra.mxu0 %v7918
    %10152 = vmatpush.bf16.msra.mxu0 %v7898
    %10153 = vmatpush.bf16.msra.mxu0 %v7878
    %10154 = vmatpush.bf16.msra.mxu0 %v7858
    %10155 = vmatpush.bf16.msra.mxu0 %v7838
    %10156 = vmatmul.bf16.gmra.mxu0 %v1744
    %v10157 = vpop.f32.mrf.mxu0
    %v10158 = vadd.f32 %v10144, %v10157
    %v10159 = vpop.f32.mrf.mxu0
    %v10160 = vadd.f32 %v10146, %v10159
    %10161 = vdwg.mxu0
    %10162 = vmatpush.bf16.msra.mxu0 %v8138
    %10163 = vmatpush.bf16.msra.mxu0 %v8118
    %10164 = vmatpush.bf16.msra.mxu0 %v8098
    %10165 = vmatpush.bf16.msra.mxu0 %v8078
    %10166 = vmatpush.bf16.msra.mxu0 %v8058
    %10167 = vmatpush.bf16.msra.mxu0 %v8038
    %10168 = vmatpush.bf16.msra.mxu0 %v8018
    %10169 = vmatpush.bf16.msra.mxu0 %v7998
    %10170 = vmatmul.bf16.gmra.mxu0 %v1745
    %v10171 = vpop.f32.mrf.mxu0
    %v10172 = vadd.f32 %v10158, %v10171
    %v10173 = vpop.f32.mrf.mxu0
    %v10174 = vadd.f32 %v10160, %v10173
    %10175 = vdwg.mxu0
    %10176 = vmatpush.bf16.msra.mxu0 %v6699
    %10177 = vmatpush.bf16.msra.mxu0 %v6679
    %10178 = vmatpush.bf16.msra.mxu0 %v6659
    %10179 = vmatpush.bf16.msra.mxu0 %v6639
    %10180 = vmatpush.bf16.msra.mxu0 %v6619
    %10181 = vmatpush.bf16.msra.mxu0 %v6599
    %10182 = vmatpush.bf16.msra.mxu0 %v6579
    %10183 = vmatpush.bf16.msra.mxu0 %v6559
    %10184 = vmatmul.bf16.gmra.mxu0 %v1736
    %v10185 = vpop.f32.mrf.mxu0
    %v10186 = vadd.f32 %v1669, %v10185
    %v10187 = vpop.f32.mrf.mxu0
    %v10188 = vadd.f32 %v1669, %v10187
    %10189 = vdwg.mxu0
    %10190 = vmatpush.bf16.msra.mxu0 %v6859
    %10191 = vmatpush.bf16.msra.mxu0 %v6839
    %10192 = vmatpush.bf16.msra.mxu0 %v6819
    %10193 = vmatpush.bf16.msra.mxu0 %v6799
    %10194 = vmatpush.bf16.msra.mxu0 %v6779
    %10195 = vmatpush.bf16.msra.mxu0 %v6759
    %10196 = vmatpush.bf16.msra.mxu0 %v6739
    %10197 = vmatpush.bf16.msra.mxu0 %v6719
    %10198 = vmatmul.bf16.gmra.mxu0 %v1737
    %v10199 = vpop.f32.mrf.mxu0
    %v10200 = vadd.f32 %v10186, %v10199
    %v10201 = vpop.f32.mrf.mxu0
    %v10202 = vadd.f32 %v10188, %v10201
    %10203 = vdwg.mxu0
    %10204 = vmatpush.bf16.msra.mxu0 %v7019
    %10205 = vmatpush.bf16.msra.mxu0 %v6999
    %10206 = vmatpush.bf16.msra.mxu0 %v6979
    %10207 = vmatpush.bf16.msra.mxu0 %v6959
    %10208 = vmatpush.bf16.msra.mxu0 %v6939
    %10209 = vmatpush.bf16.msra.mxu0 %v6919
    %10210 = vmatpush.bf16.msra.mxu0 %v6899
    %10211 = vmatpush.bf16.msra.mxu0 %v6879
    %10212 = vmatmul.bf16.gmra.mxu0 %v1738
    %v10213 = vpop.f32.mrf.mxu0
    %v10214 = vadd.f32 %v10200, %v10213
    %v10215 = vpop.f32.mrf.mxu0
    %v10216 = vadd.f32 %v10202, %v10215
    %10217 = vdwg.mxu0
    %10218 = vmatpush.bf16.msra.mxu0 %v7179
    %10219 = vmatpush.bf16.msra.mxu0 %v7159
    %10220 = vmatpush.bf16.msra.mxu0 %v7139
    %10221 = vmatpush.bf16.msra.mxu0 %v7119
    %10222 = vmatpush.bf16.msra.mxu0 %v7099
    %10223 = vmatpush.bf16.msra.mxu0 %v7079
    %10224 = vmatpush.bf16.msra.mxu0 %v7059
    %10225 = vmatpush.bf16.msra.mxu0 %v7039
    %10226 = vmatmul.bf16.gmra.mxu0 %v1739
    %v10227 = vpop.f32.mrf.mxu0
    %v10228 = vadd.f32 %v10214, %v10227
    %v10229 = vpop.f32.mrf.mxu0
    %v10230 = vadd.f32 %v10216, %v10229
    %10231 = vdwg.mxu0
    %10232 = vmatpush.bf16.msra.mxu0 %v7339
    %10233 = vmatpush.bf16.msra.mxu0 %v7319
    %10234 = vmatpush.bf16.msra.mxu0 %v7299
    %10235 = vmatpush.bf16.msra.mxu0 %v7279
    %10236 = vmatpush.bf16.msra.mxu0 %v7259
    %10237 = vmatpush.bf16.msra.mxu0 %v7239
    %10238 = vmatpush.bf16.msra.mxu0 %v7219
    %10239 = vmatpush.bf16.msra.mxu0 %v7199
    %10240 = vmatmul.bf16.gmra.mxu0 %v1740
    %v10241 = vpop.f32.mrf.mxu0
    %v10242 = vadd.f32 %v10228, %v10241
    %v10243 = vpop.f32.mrf.mxu0
    %v10244 = vadd.f32 %v10230, %v10243
    %10245 = vdwg.mxu0
    %10246 = vmatpush.bf16.msra.mxu0 %v7499
    %10247 = vmatpush.bf16.msra.mxu0 %v7479
    %10248 = vmatpush.bf16.msra.mxu0 %v7459
    %10249 = vmatpush.bf16.msra.mxu0 %v7439
    %10250 = vmatpush.bf16.msra.mxu0 %v7419
    %10251 = vmatpush.bf16.msra.mxu0 %v7399
    %10252 = vmatpush.bf16.msra.mxu0 %v7379
    %10253 = vmatpush.bf16.msra.mxu0 %v7359
    %10254 = vmatmul.bf16.gmra.mxu0 %v1741
    %v10255 = vpop.f32.mrf.mxu0
    %v10256 = vadd.f32 %v10242, %v10255
    %v10257 = vpop.f32.mrf.mxu0
    %v10258 = vadd.f32 %v10244, %v10257
    %10259 = vdwg.mxu0
    %10260 = vmatpush.bf16.msra.mxu0 %v7659
    %10261 = vmatpush.bf16.msra.mxu0 %v7639
    %10262 = vmatpush.bf16.msra.mxu0 %v7619
    %10263 = vmatpush.bf16.msra.mxu0 %v7599
    %10264 = vmatpush.bf16.msra.mxu0 %v7579
    %10265 = vmatpush.bf16.msra.mxu0 %v7559
    %10266 = vmatpush.bf16.msra.mxu0 %v7539
    %10267 = vmatpush.bf16.msra.mxu0 %v7519
    %10268 = vmatmul.bf16.gmra.mxu0 %v1742
    %v10269 = vpop.f32.mrf.mxu0
    %v10270 = vadd.f32 %v10256, %v10269
    %v10271 = vpop.f32.mrf.mxu0
    %v10272 = vadd.f32 %v10258, %v10271
    %10273 = vdwg.mxu0
    %10274 = vmatpush.bf16.msra.mxu0 %v7819
    %10275 = vmatpush.bf16.msra.mxu0 %v7799
    %10276 = vmatpush.bf16.msra.mxu0 %v7779
    %10277 = vmatpush.bf16.msra.mxu0 %v7759
    %10278 = vmatpush.bf16.msra.mxu0 %v7739
    %10279 = vmatpush.bf16.msra.mxu0 %v7719
    %10280 = vmatpush.bf16.msra.mxu0 %v7699
    %10281 = vmatpush.bf16.msra.mxu0 %v7679
    %10282 = vmatmul.bf16.gmra.mxu0 %v1743
    %v10283 = vpop.f32.mrf.mxu0
    %v10284 = vadd.f32 %v10270, %v10283
    %v10285 = vpop.f32.mrf.mxu0
    %v10286 = vadd.f32 %v10272, %v10285
    %10287 = vdwg.mxu0
    %10288 = vmatpush.bf16.msra.mxu0 %v7979
    %10289 = vmatpush.bf16.msra.mxu0 %v7959
    %10290 = vmatpush.bf16.msra.mxu0 %v7939
    %10291 = vmatpush.bf16.msra.mxu0 %v7919
    %10292 = vmatpush.bf16.msra.mxu0 %v7899
    %10293 = vmatpush.bf16.msra.mxu0 %v7879
    %10294 = vmatpush.bf16.msra.mxu0 %v7859
    %10295 = vmatpush.bf16.msra.mxu0 %v7839
    %10296 = vmatmul.bf16.gmra.mxu0 %v1744
    %v10297 = vpop.f32.mrf.mxu0
    %v10298 = vadd.f32 %v10284, %v10297
    %v10299 = vpop.f32.mrf.mxu0
    %v10300 = vadd.f32 %v10286, %v10299
    %10301 = vdwg.mxu0
    %10302 = vmatpush.bf16.msra.mxu0 %v8139
    %10303 = vmatpush.bf16.msra.mxu0 %v8119
    %10304 = vmatpush.bf16.msra.mxu0 %v8099
    %10305 = vmatpush.bf16.msra.mxu0 %v8079
    %10306 = vmatpush.bf16.msra.mxu0 %v8059
    %10307 = vmatpush.bf16.msra.mxu0 %v8039
    %10308 = vmatpush.bf16.msra.mxu0 %v8019
    %10309 = vmatpush.bf16.msra.mxu0 %v7999
    %10310 = vmatmul.bf16.gmra.mxu0 %v1745
    %v10311 = vpop.f32.mrf.mxu0
    %v10312 = vadd.f32 %v10298, %v10311
    %v10313 = vpop.f32.mrf.mxu0
    %v10314 = vadd.f32 %v10300, %v10313
    %10315 = vdwg.mxu0
    %10316 = vmatpush.bf16.msra.mxu0 %v6700
    %10317 = vmatpush.bf16.msra.mxu0 %v6680
    %10318 = vmatpush.bf16.msra.mxu0 %v6660
    %10319 = vmatpush.bf16.msra.mxu0 %v6640
    %10320 = vmatpush.bf16.msra.mxu0 %v6620
    %10321 = vmatpush.bf16.msra.mxu0 %v6600
    %10322 = vmatpush.bf16.msra.mxu0 %v6580
    %10323 = vmatpush.bf16.msra.mxu0 %v6560
    %10324 = vmatmul.bf16.gmra.mxu0 %v1736
    %v10325 = vpop.f32.mrf.mxu0
    %v10326 = vadd.f32 %v1670, %v10325
    %v10327 = vpop.f32.mrf.mxu0
    %v10328 = vadd.f32 %v1670, %v10327
    %10329 = vdwg.mxu0
    %10330 = vmatpush.bf16.msra.mxu0 %v6860
    %10331 = vmatpush.bf16.msra.mxu0 %v6840
    %10332 = vmatpush.bf16.msra.mxu0 %v6820
    %10333 = vmatpush.bf16.msra.mxu0 %v6800
    %10334 = vmatpush.bf16.msra.mxu0 %v6780
    %10335 = vmatpush.bf16.msra.mxu0 %v6760
    %10336 = vmatpush.bf16.msra.mxu0 %v6740
    %10337 = vmatpush.bf16.msra.mxu0 %v6720
    %10338 = vmatmul.bf16.gmra.mxu0 %v1737
    %v10339 = vpop.f32.mrf.mxu0
    %v10340 = vadd.f32 %v10326, %v10339
    %v10341 = vpop.f32.mrf.mxu0
    %v10342 = vadd.f32 %v10328, %v10341
    %10343 = vdwg.mxu0
    %10344 = vmatpush.bf16.msra.mxu0 %v7020
    %10345 = vmatpush.bf16.msra.mxu0 %v7000
    %10346 = vmatpush.bf16.msra.mxu0 %v6980
    %10347 = vmatpush.bf16.msra.mxu0 %v6960
    %10348 = vmatpush.bf16.msra.mxu0 %v6940
    %10349 = vmatpush.bf16.msra.mxu0 %v6920
    %10350 = vmatpush.bf16.msra.mxu0 %v6900
    %10351 = vmatpush.bf16.msra.mxu0 %v6880
    %10352 = vmatmul.bf16.gmra.mxu0 %v1738
    %v10353 = vpop.f32.mrf.mxu0
    %v10354 = vadd.f32 %v10340, %v10353
    %v10355 = vpop.f32.mrf.mxu0
    %v10356 = vadd.f32 %v10342, %v10355
    %10357 = vdwg.mxu0
    %10358 = vmatpush.bf16.msra.mxu0 %v7180
    %10359 = vmatpush.bf16.msra.mxu0 %v7160
    %10360 = vmatpush.bf16.msra.mxu0 %v7140
    %10361 = vmatpush.bf16.msra.mxu0 %v7120
    %10362 = vmatpush.bf16.msra.mxu0 %v7100
    %10363 = vmatpush.bf16.msra.mxu0 %v7080
    %10364 = vmatpush.bf16.msra.mxu0 %v7060
    %10365 = vmatpush.bf16.msra.mxu0 %v7040
    %10366 = vmatmul.bf16.gmra.mxu0 %v1739
    %v10367 = vpop.f32.mrf.mxu0
    %v10368 = vadd.f32 %v10354, %v10367
    %v10369 = vpop.f32.mrf.mxu0
    %v10370 = vadd.f32 %v10356, %v10369
    %10371 = vdwg.mxu0
    %10372 = vmatpush.bf16.msra.mxu0 %v7340
    %10373 = vmatpush.bf16.msra.mxu0 %v7320
    %10374 = vmatpush.bf16.msra.mxu0 %v7300
    %10375 = vmatpush.bf16.msra.mxu0 %v7280
    %10376 = vmatpush.bf16.msra.mxu0 %v7260
    %10377 = vmatpush.bf16.msra.mxu0 %v7240
    %10378 = vmatpush.bf16.msra.mxu0 %v7220
    %10379 = vmatpush.bf16.msra.mxu0 %v7200
    %10380 = vmatmul.bf16.gmra.mxu0 %v1740
    %v10381 = vpop.f32.mrf.mxu0
    %v10382 = vadd.f32 %v10368, %v10381
    %v10383 = vpop.f32.mrf.mxu0
    %v10384 = vadd.f32 %v10370, %v10383
    %10385 = vdwg.mxu0
    %10386 = vmatpush.bf16.msra.mxu0 %v7500
    %10387 = vmatpush.bf16.msra.mxu0 %v7480
    %10388 = vmatpush.bf16.msra.mxu0 %v7460
    %10389 = vmatpush.bf16.msra.mxu0 %v7440
    %10390 = vmatpush.bf16.msra.mxu0 %v7420
    %10391 = vmatpush.bf16.msra.mxu0 %v7400
    %10392 = vmatpush.bf16.msra.mxu0 %v7380
    %10393 = vmatpush.bf16.msra.mxu0 %v7360
    %10394 = vmatmul.bf16.gmra.mxu0 %v1741
    %v10395 = vpop.f32.mrf.mxu0
    %v10396 = vadd.f32 %v10382, %v10395
    %v10397 = vpop.f32.mrf.mxu0
    %v10398 = vadd.f32 %v10384, %v10397
    %10399 = vdwg.mxu0
    %10400 = vmatpush.bf16.msra.mxu0 %v7660
    %10401 = vmatpush.bf16.msra.mxu0 %v7640
    %10402 = vmatpush.bf16.msra.mxu0 %v7620
    %10403 = vmatpush.bf16.msra.mxu0 %v7600
    %10404 = vmatpush.bf16.msra.mxu0 %v7580
    %10405 = vmatpush.bf16.msra.mxu0 %v7560
    %10406 = vmatpush.bf16.msra.mxu0 %v7540
    %10407 = vmatpush.bf16.msra.mxu0 %v7520
    %10408 = vmatmul.bf16.gmra.mxu0 %v1742
    %v10409 = vpop.f32.mrf.mxu0
    %v10410 = vadd.f32 %v10396, %v10409
    %v10411 = vpop.f32.mrf.mxu0
    %v10412 = vadd.f32 %v10398, %v10411
    %10413 = vdwg.mxu0
    %10414 = vmatpush.bf16.msra.mxu0 %v7820
    %10415 = vmatpush.bf16.msra.mxu0 %v7800
    %10416 = vmatpush.bf16.msra.mxu0 %v7780
    %10417 = vmatpush.bf16.msra.mxu0 %v7760
    %10418 = vmatpush.bf16.msra.mxu0 %v7740
    %10419 = vmatpush.bf16.msra.mxu0 %v7720
    %10420 = vmatpush.bf16.msra.mxu0 %v7700
    %10421 = vmatpush.bf16.msra.mxu0 %v7680
    %10422 = vmatmul.bf16.gmra.mxu0 %v1743
    %v10423 = vpop.f32.mrf.mxu0
    %v10424 = vadd.f32 %v10410, %v10423
    %v10425 = vpop.f32.mrf.mxu0
    %v10426 = vadd.f32 %v10412, %v10425
    %10427 = vdwg.mxu0
    %10428 = vmatpush.bf16.msra.mxu0 %v7980
    %10429 = vmatpush.bf16.msra.mxu0 %v7960
    %10430 = vmatpush.bf16.msra.mxu0 %v7940
    %10431 = vmatpush.bf16.msra.mxu0 %v7920
    %10432 = vmatpush.bf16.msra.mxu0 %v7900
    %10433 = vmatpush.bf16.msra.mxu0 %v7880
    %10434 = vmatpush.bf16.msra.mxu0 %v7860
    %10435 = vmatpush.bf16.msra.mxu0 %v7840
    %10436 = vmatmul.bf16.gmra.mxu0 %v1744
    %v10437 = vpop.f32.mrf.mxu0
    %v10438 = vadd.f32 %v10424, %v10437
    %v10439 = vpop.f32.mrf.mxu0
    %v10440 = vadd.f32 %v10426, %v10439
    %10441 = vdwg.mxu0
    %10442 = vmatpush.bf16.msra.mxu0 %v8140
    %10443 = vmatpush.bf16.msra.mxu0 %v8120
    %10444 = vmatpush.bf16.msra.mxu0 %v8100
    %10445 = vmatpush.bf16.msra.mxu0 %v8080
    %10446 = vmatpush.bf16.msra.mxu0 %v8060
    %10447 = vmatpush.bf16.msra.mxu0 %v8040
    %10448 = vmatpush.bf16.msra.mxu0 %v8020
    %10449 = vmatpush.bf16.msra.mxu0 %v8000
    %10450 = vmatmul.bf16.gmra.mxu0 %v1745
    %v10451 = vpop.f32.mrf.mxu0
    %v10452 = vadd.f32 %v10438, %v10451
    %v10453 = vpop.f32.mrf.mxu0
    %v10454 = vadd.f32 %v10440, %v10453
    %10455 = vdwg.mxu0
    %10456 = vmatpush.bf16.msra.mxu0 %v6701
    %10457 = vmatpush.bf16.msra.mxu0 %v6681
    %10458 = vmatpush.bf16.msra.mxu0 %v6661
    %10459 = vmatpush.bf16.msra.mxu0 %v6641
    %10460 = vmatpush.bf16.msra.mxu0 %v6621
    %10461 = vmatpush.bf16.msra.mxu0 %v6601
    %10462 = vmatpush.bf16.msra.mxu0 %v6581
    %10463 = vmatpush.bf16.msra.mxu0 %v6561
    %10464 = vmatmul.bf16.gmra.mxu0 %v1736
    %v10465 = vpop.f32.mrf.mxu0
    %v10466 = vadd.f32 %v1671, %v10465
    %v10467 = vpop.f32.mrf.mxu0
    %v10468 = vadd.f32 %v1671, %v10467
    %10469 = vdwg.mxu0
    %10470 = vmatpush.bf16.msra.mxu0 %v6861
    %10471 = vmatpush.bf16.msra.mxu0 %v6841
    %10472 = vmatpush.bf16.msra.mxu0 %v6821
    %10473 = vmatpush.bf16.msra.mxu0 %v6801
    %10474 = vmatpush.bf16.msra.mxu0 %v6781
    %10475 = vmatpush.bf16.msra.mxu0 %v6761
    %10476 = vmatpush.bf16.msra.mxu0 %v6741
    %10477 = vmatpush.bf16.msra.mxu0 %v6721
    %10478 = vmatmul.bf16.gmra.mxu0 %v1737
    %v10479 = vpop.f32.mrf.mxu0
    %v10480 = vadd.f32 %v10466, %v10479
    %v10481 = vpop.f32.mrf.mxu0
    %v10482 = vadd.f32 %v10468, %v10481
    %10483 = vdwg.mxu0
    %10484 = vmatpush.bf16.msra.mxu0 %v7021
    %10485 = vmatpush.bf16.msra.mxu0 %v7001
    %10486 = vmatpush.bf16.msra.mxu0 %v6981
    %10487 = vmatpush.bf16.msra.mxu0 %v6961
    %10488 = vmatpush.bf16.msra.mxu0 %v6941
    %10489 = vmatpush.bf16.msra.mxu0 %v6921
    %10490 = vmatpush.bf16.msra.mxu0 %v6901
    %10491 = vmatpush.bf16.msra.mxu0 %v6881
    %10492 = vmatmul.bf16.gmra.mxu0 %v1738
    %v10493 = vpop.f32.mrf.mxu0
    %v10494 = vadd.f32 %v10480, %v10493
    %v10495 = vpop.f32.mrf.mxu0
    %v10496 = vadd.f32 %v10482, %v10495
    %10497 = vdwg.mxu0
    %10498 = vmatpush.bf16.msra.mxu0 %v7181
    %10499 = vmatpush.bf16.msra.mxu0 %v7161
    %10500 = vmatpush.bf16.msra.mxu0 %v7141
    %10501 = vmatpush.bf16.msra.mxu0 %v7121
    %10502 = vmatpush.bf16.msra.mxu0 %v7101
    %10503 = vmatpush.bf16.msra.mxu0 %v7081
    %10504 = vmatpush.bf16.msra.mxu0 %v7061
    %10505 = vmatpush.bf16.msra.mxu0 %v7041
    %10506 = vmatmul.bf16.gmra.mxu0 %v1739
    %v10507 = vpop.f32.mrf.mxu0
    %v10508 = vadd.f32 %v10494, %v10507
    %v10509 = vpop.f32.mrf.mxu0
    %v10510 = vadd.f32 %v10496, %v10509
    %10511 = vdwg.mxu0
    %10512 = vmatpush.bf16.msra.mxu0 %v7341
    %10513 = vmatpush.bf16.msra.mxu0 %v7321
    %10514 = vmatpush.bf16.msra.mxu0 %v7301
    %10515 = vmatpush.bf16.msra.mxu0 %v7281
    %10516 = vmatpush.bf16.msra.mxu0 %v7261
    %10517 = vmatpush.bf16.msra.mxu0 %v7241
    %10518 = vmatpush.bf16.msra.mxu0 %v7221
    %10519 = vmatpush.bf16.msra.mxu0 %v7201
    %10520 = vmatmul.bf16.gmra.mxu0 %v1740
    %v10521 = vpop.f32.mrf.mxu0
    %v10522 = vadd.f32 %v10508, %v10521
    %v10523 = vpop.f32.mrf.mxu0
    %v10524 = vadd.f32 %v10510, %v10523
    %10525 = vdwg.mxu0
    %10526 = vmatpush.bf16.msra.mxu0 %v7501
    %10527 = vmatpush.bf16.msra.mxu0 %v7481
    %10528 = vmatpush.bf16.msra.mxu0 %v7461
    %10529 = vmatpush.bf16.msra.mxu0 %v7441
    %10530 = vmatpush.bf16.msra.mxu0 %v7421
    %10531 = vmatpush.bf16.msra.mxu0 %v7401
    %10532 = vmatpush.bf16.msra.mxu0 %v7381
    %10533 = vmatpush.bf16.msra.mxu0 %v7361
    %10534 = vmatmul.bf16.gmra.mxu0 %v1741
    %v10535 = vpop.f32.mrf.mxu0
    %v10536 = vadd.f32 %v10522, %v10535
    %v10537 = vpop.f32.mrf.mxu0
    %v10538 = vadd.f32 %v10524, %v10537
    %10539 = vdwg.mxu0
    %10540 = vmatpush.bf16.msra.mxu0 %v7661
    %10541 = vmatpush.bf16.msra.mxu0 %v7641
    %10542 = vmatpush.bf16.msra.mxu0 %v7621
    %10543 = vmatpush.bf16.msra.mxu0 %v7601
    %10544 = vmatpush.bf16.msra.mxu0 %v7581
    %10545 = vmatpush.bf16.msra.mxu0 %v7561
    %10546 = vmatpush.bf16.msra.mxu0 %v7541
    %10547 = vmatpush.bf16.msra.mxu0 %v7521
    %10548 = vmatmul.bf16.gmra.mxu0 %v1742
    %v10549 = vpop.f32.mrf.mxu0
    %v10550 = vadd.f32 %v10536, %v10549
    %v10551 = vpop.f32.mrf.mxu0
    %v10552 = vadd.f32 %v10538, %v10551
    %10553 = vdwg.mxu0
    %10554 = vmatpush.bf16.msra.mxu0 %v7821
    %10555 = vmatpush.bf16.msra.mxu0 %v7801
    %10556 = vmatpush.bf16.msra.mxu0 %v7781
    %10557 = vmatpush.bf16.msra.mxu0 %v7761
    %10558 = vmatpush.bf16.msra.mxu0 %v7741
    %10559 = vmatpush.bf16.msra.mxu0 %v7721
    %10560 = vmatpush.bf16.msra.mxu0 %v7701
    %10561 = vmatpush.bf16.msra.mxu0 %v7681
    %10562 = vmatmul.bf16.gmra.mxu0 %v1743
    %v10563 = vpop.f32.mrf.mxu0
    %v10564 = vadd.f32 %v10550, %v10563
    %v10565 = vpop.f32.mrf.mxu0
    %v10566 = vadd.f32 %v10552, %v10565
    %10567 = vdwg.mxu0
    %10568 = vmatpush.bf16.msra.mxu0 %v7981
    %10569 = vmatpush.bf16.msra.mxu0 %v7961
    %10570 = vmatpush.bf16.msra.mxu0 %v7941
    %10571 = vmatpush.bf16.msra.mxu0 %v7921
    %10572 = vmatpush.bf16.msra.mxu0 %v7901
    %10573 = vmatpush.bf16.msra.mxu0 %v7881
    %10574 = vmatpush.bf16.msra.mxu0 %v7861
    %10575 = vmatpush.bf16.msra.mxu0 %v7841
    %10576 = vmatmul.bf16.gmra.mxu0 %v1744
    %v10577 = vpop.f32.mrf.mxu0
    %v10578 = vadd.f32 %v10564, %v10577
    %v10579 = vpop.f32.mrf.mxu0
    %v10580 = vadd.f32 %v10566, %v10579
    %10581 = vdwg.mxu0
    %10582 = vmatpush.bf16.msra.mxu0 %v8141
    %10583 = vmatpush.bf16.msra.mxu0 %v8121
    %10584 = vmatpush.bf16.msra.mxu0 %v8101
    %10585 = vmatpush.bf16.msra.mxu0 %v8081
    %10586 = vmatpush.bf16.msra.mxu0 %v8061
    %10587 = vmatpush.bf16.msra.mxu0 %v8041
    %10588 = vmatpush.bf16.msra.mxu0 %v8021
    %10589 = vmatpush.bf16.msra.mxu0 %v8001
    %10590 = vmatmul.bf16.gmra.mxu0 %v1745
    %v10591 = vpop.f32.mrf.mxu0
    %v10592 = vadd.f32 %v10578, %v10591
    %v10593 = vpop.f32.mrf.mxu0
    %v10594 = vadd.f32 %v10580, %v10593
    %10595 = vdwg.mxu0
    %10596 = vmatpush.bf16.msra.mxu0 %v6702
    %10597 = vmatpush.bf16.msra.mxu0 %v6682
    %10598 = vmatpush.bf16.msra.mxu0 %v6662
    %10599 = vmatpush.bf16.msra.mxu0 %v6642
    %10600 = vmatpush.bf16.msra.mxu0 %v6622
    %10601 = vmatpush.bf16.msra.mxu0 %v6602
    %10602 = vmatpush.bf16.msra.mxu0 %v6582
    %10603 = vmatpush.bf16.msra.mxu0 %v6562
    %10604 = vmatmul.bf16.gmra.mxu0 %v1736
    %v10605 = vpop.f32.mrf.mxu0
    %v10606 = vadd.f32 %v1672, %v10605
    %v10607 = vpop.f32.mrf.mxu0
    %v10608 = vadd.f32 %v1672, %v10607
    %10609 = vdwg.mxu0
    %10610 = vmatpush.bf16.msra.mxu0 %v6862
    %10611 = vmatpush.bf16.msra.mxu0 %v6842
    %10612 = vmatpush.bf16.msra.mxu0 %v6822
    %10613 = vmatpush.bf16.msra.mxu0 %v6802
    %10614 = vmatpush.bf16.msra.mxu0 %v6782
    %10615 = vmatpush.bf16.msra.mxu0 %v6762
    %10616 = vmatpush.bf16.msra.mxu0 %v6742
    %10617 = vmatpush.bf16.msra.mxu0 %v6722
    %10618 = vmatmul.bf16.gmra.mxu0 %v1737
    %v10619 = vpop.f32.mrf.mxu0
    %v10620 = vadd.f32 %v10606, %v10619
    %v10621 = vpop.f32.mrf.mxu0
    %v10622 = vadd.f32 %v10608, %v10621
    %10623 = vdwg.mxu0
    %10624 = vmatpush.bf16.msra.mxu0 %v7022
    %10625 = vmatpush.bf16.msra.mxu0 %v7002
    %10626 = vmatpush.bf16.msra.mxu0 %v6982
    %10627 = vmatpush.bf16.msra.mxu0 %v6962
    %10628 = vmatpush.bf16.msra.mxu0 %v6942
    %10629 = vmatpush.bf16.msra.mxu0 %v6922
    %10630 = vmatpush.bf16.msra.mxu0 %v6902
    %10631 = vmatpush.bf16.msra.mxu0 %v6882
    %10632 = vmatmul.bf16.gmra.mxu0 %v1738
    %v10633 = vpop.f32.mrf.mxu0
    %v10634 = vadd.f32 %v10620, %v10633
    %v10635 = vpop.f32.mrf.mxu0
    %v10636 = vadd.f32 %v10622, %v10635
    %10637 = vdwg.mxu0
    %10638 = vmatpush.bf16.msra.mxu0 %v7182
    %10639 = vmatpush.bf16.msra.mxu0 %v7162
    %10640 = vmatpush.bf16.msra.mxu0 %v7142
    %10641 = vmatpush.bf16.msra.mxu0 %v7122
    %10642 = vmatpush.bf16.msra.mxu0 %v7102
    %10643 = vmatpush.bf16.msra.mxu0 %v7082
    %10644 = vmatpush.bf16.msra.mxu0 %v7062
    %10645 = vmatpush.bf16.msra.mxu0 %v7042
    %10646 = vmatmul.bf16.gmra.mxu0 %v1739
    %v10647 = vpop.f32.mrf.mxu0
    %v10648 = vadd.f32 %v10634, %v10647
    %v10649 = vpop.f32.mrf.mxu0
    %v10650 = vadd.f32 %v10636, %v10649
    %10651 = vdwg.mxu0
    %10652 = vmatpush.bf16.msra.mxu0 %v7342
    %10653 = vmatpush.bf16.msra.mxu0 %v7322
    %10654 = vmatpush.bf16.msra.mxu0 %v7302
    %10655 = vmatpush.bf16.msra.mxu0 %v7282
    %10656 = vmatpush.bf16.msra.mxu0 %v7262
    %10657 = vmatpush.bf16.msra.mxu0 %v7242
    %10658 = vmatpush.bf16.msra.mxu0 %v7222
    %10659 = vmatpush.bf16.msra.mxu0 %v7202
    %10660 = vmatmul.bf16.gmra.mxu0 %v1740
    %v10661 = vpop.f32.mrf.mxu0
    %v10662 = vadd.f32 %v10648, %v10661
    %v10663 = vpop.f32.mrf.mxu0
    %v10664 = vadd.f32 %v10650, %v10663
    %10665 = vdwg.mxu0
    %10666 = vmatpush.bf16.msra.mxu0 %v7502
    %10667 = vmatpush.bf16.msra.mxu0 %v7482
    %10668 = vmatpush.bf16.msra.mxu0 %v7462
    %10669 = vmatpush.bf16.msra.mxu0 %v7442
    %10670 = vmatpush.bf16.msra.mxu0 %v7422
    %10671 = vmatpush.bf16.msra.mxu0 %v7402
    %10672 = vmatpush.bf16.msra.mxu0 %v7382
    %10673 = vmatpush.bf16.msra.mxu0 %v7362
    %10674 = vmatmul.bf16.gmra.mxu0 %v1741
    %v10675 = vpop.f32.mrf.mxu0
    %v10676 = vadd.f32 %v10662, %v10675
    %v10677 = vpop.f32.mrf.mxu0
    %v10678 = vadd.f32 %v10664, %v10677
    %10679 = vdwg.mxu0
    %10680 = vmatpush.bf16.msra.mxu0 %v7662
    %10681 = vmatpush.bf16.msra.mxu0 %v7642
    %10682 = vmatpush.bf16.msra.mxu0 %v7622
    %10683 = vmatpush.bf16.msra.mxu0 %v7602
    %10684 = vmatpush.bf16.msra.mxu0 %v7582
    %10685 = vmatpush.bf16.msra.mxu0 %v7562
    %10686 = vmatpush.bf16.msra.mxu0 %v7542
    %10687 = vmatpush.bf16.msra.mxu0 %v7522
    %10688 = vmatmul.bf16.gmra.mxu0 %v1742
    %v10689 = vpop.f32.mrf.mxu0
    %v10690 = vadd.f32 %v10676, %v10689
    %v10691 = vpop.f32.mrf.mxu0
    %v10692 = vadd.f32 %v10678, %v10691
    %10693 = vdwg.mxu0
    %10694 = vmatpush.bf16.msra.mxu0 %v7822
    %10695 = vmatpush.bf16.msra.mxu0 %v7802
    %10696 = vmatpush.bf16.msra.mxu0 %v7782
    %10697 = vmatpush.bf16.msra.mxu0 %v7762
    %10698 = vmatpush.bf16.msra.mxu0 %v7742
    %10699 = vmatpush.bf16.msra.mxu0 %v7722
    %10700 = vmatpush.bf16.msra.mxu0 %v7702
    %10701 = vmatpush.bf16.msra.mxu0 %v7682
    %10702 = vmatmul.bf16.gmra.mxu0 %v1743
    %v10703 = vpop.f32.mrf.mxu0
    %v10704 = vadd.f32 %v10690, %v10703
    %v10705 = vpop.f32.mrf.mxu0
    %v10706 = vadd.f32 %v10692, %v10705
    %10707 = vdwg.mxu0
    %10708 = vmatpush.bf16.msra.mxu0 %v7982
    %10709 = vmatpush.bf16.msra.mxu0 %v7962
    %10710 = vmatpush.bf16.msra.mxu0 %v7942
    %10711 = vmatpush.bf16.msra.mxu0 %v7922
    %10712 = vmatpush.bf16.msra.mxu0 %v7902
    %10713 = vmatpush.bf16.msra.mxu0 %v7882
    %10714 = vmatpush.bf16.msra.mxu0 %v7862
    %10715 = vmatpush.bf16.msra.mxu0 %v7842
    %10716 = vmatmul.bf16.gmra.mxu0 %v1744
    %v10717 = vpop.f32.mrf.mxu0
    %v10718 = vadd.f32 %v10704, %v10717
    %v10719 = vpop.f32.mrf.mxu0
    %v10720 = vadd.f32 %v10706, %v10719
    %10721 = vdwg.mxu0
    %10722 = vmatpush.bf16.msra.mxu0 %v8142
    %10723 = vmatpush.bf16.msra.mxu0 %v8122
    %10724 = vmatpush.bf16.msra.mxu0 %v8102
    %10725 = vmatpush.bf16.msra.mxu0 %v8082
    %10726 = vmatpush.bf16.msra.mxu0 %v8062
    %10727 = vmatpush.bf16.msra.mxu0 %v8042
    %10728 = vmatpush.bf16.msra.mxu0 %v8022
    %10729 = vmatpush.bf16.msra.mxu0 %v8002
    %10730 = vmatmul.bf16.gmra.mxu0 %v1745
    %v10731 = vpop.f32.mrf.mxu0
    %v10732 = vadd.f32 %v10718, %v10731
    %v10733 = vpop.f32.mrf.mxu0
    %v10734 = vadd.f32 %v10720, %v10733
    %10735 = vdwg.mxu0
    %10736 = vmatpush.bf16.msra.mxu0 %v6703
    %10737 = vmatpush.bf16.msra.mxu0 %v6683
    %10738 = vmatpush.bf16.msra.mxu0 %v6663
    %10739 = vmatpush.bf16.msra.mxu0 %v6643
    %10740 = vmatpush.bf16.msra.mxu0 %v6623
    %10741 = vmatpush.bf16.msra.mxu0 %v6603
    %10742 = vmatpush.bf16.msra.mxu0 %v6583
    %10743 = vmatpush.bf16.msra.mxu0 %v6563
    %10744 = vmatmul.bf16.gmra.mxu0 %v1736
    %v10745 = vpop.f32.mrf.mxu0
    %v10746 = vadd.f32 %v1673, %v10745
    %v10747 = vpop.f32.mrf.mxu0
    %v10748 = vadd.f32 %v1673, %v10747
    %10749 = vdwg.mxu0
    %10750 = vmatpush.bf16.msra.mxu0 %v6863
    %10751 = vmatpush.bf16.msra.mxu0 %v6843
    %10752 = vmatpush.bf16.msra.mxu0 %v6823
    %10753 = vmatpush.bf16.msra.mxu0 %v6803
    %10754 = vmatpush.bf16.msra.mxu0 %v6783
    %10755 = vmatpush.bf16.msra.mxu0 %v6763
    %10756 = vmatpush.bf16.msra.mxu0 %v6743
    %10757 = vmatpush.bf16.msra.mxu0 %v6723
    %10758 = vmatmul.bf16.gmra.mxu0 %v1737
    %v10759 = vpop.f32.mrf.mxu0
    %v10760 = vadd.f32 %v10746, %v10759
    %v10761 = vpop.f32.mrf.mxu0
    %v10762 = vadd.f32 %v10748, %v10761
    %10763 = vdwg.mxu0
    %10764 = vmatpush.bf16.msra.mxu0 %v7023
    %10765 = vmatpush.bf16.msra.mxu0 %v7003
    %10766 = vmatpush.bf16.msra.mxu0 %v6983
    %10767 = vmatpush.bf16.msra.mxu0 %v6963
    %10768 = vmatpush.bf16.msra.mxu0 %v6943
    %10769 = vmatpush.bf16.msra.mxu0 %v6923
    %10770 = vmatpush.bf16.msra.mxu0 %v6903
    %10771 = vmatpush.bf16.msra.mxu0 %v6883
    %10772 = vmatmul.bf16.gmra.mxu0 %v1738
    %v10773 = vpop.f32.mrf.mxu0
    %v10774 = vadd.f32 %v10760, %v10773
    %v10775 = vpop.f32.mrf.mxu0
    %v10776 = vadd.f32 %v10762, %v10775
    %10777 = vdwg.mxu0
    %10778 = vmatpush.bf16.msra.mxu0 %v7183
    %10779 = vmatpush.bf16.msra.mxu0 %v7163
    %10780 = vmatpush.bf16.msra.mxu0 %v7143
    %10781 = vmatpush.bf16.msra.mxu0 %v7123
    %10782 = vmatpush.bf16.msra.mxu0 %v7103
    %10783 = vmatpush.bf16.msra.mxu0 %v7083
    %10784 = vmatpush.bf16.msra.mxu0 %v7063
    %10785 = vmatpush.bf16.msra.mxu0 %v7043
    %10786 = vmatmul.bf16.gmra.mxu0 %v1739
    %v10787 = vpop.f32.mrf.mxu0
    %v10788 = vadd.f32 %v10774, %v10787
    %v10789 = vpop.f32.mrf.mxu0
    %v10790 = vadd.f32 %v10776, %v10789
    %10791 = vdwg.mxu0
    %10792 = vmatpush.bf16.msra.mxu0 %v7343
    %10793 = vmatpush.bf16.msra.mxu0 %v7323
    %10794 = vmatpush.bf16.msra.mxu0 %v7303
    %10795 = vmatpush.bf16.msra.mxu0 %v7283
    %10796 = vmatpush.bf16.msra.mxu0 %v7263
    %10797 = vmatpush.bf16.msra.mxu0 %v7243
    %10798 = vmatpush.bf16.msra.mxu0 %v7223
    %10799 = vmatpush.bf16.msra.mxu0 %v7203
    %10800 = vmatmul.bf16.gmra.mxu0 %v1740
    %v10801 = vpop.f32.mrf.mxu0
    %v10802 = vadd.f32 %v10788, %v10801
    %v10803 = vpop.f32.mrf.mxu0
    %v10804 = vadd.f32 %v10790, %v10803
    %10805 = vdwg.mxu0
    %10806 = vmatpush.bf16.msra.mxu0 %v7503
    %10807 = vmatpush.bf16.msra.mxu0 %v7483
    %10808 = vmatpush.bf16.msra.mxu0 %v7463
    %10809 = vmatpush.bf16.msra.mxu0 %v7443
    %10810 = vmatpush.bf16.msra.mxu0 %v7423
    %10811 = vmatpush.bf16.msra.mxu0 %v7403
    %10812 = vmatpush.bf16.msra.mxu0 %v7383
    %10813 = vmatpush.bf16.msra.mxu0 %v7363
    %10814 = vmatmul.bf16.gmra.mxu0 %v1741
    %v10815 = vpop.f32.mrf.mxu0
    %v10816 = vadd.f32 %v10802, %v10815
    %v10817 = vpop.f32.mrf.mxu0
    %v10818 = vadd.f32 %v10804, %v10817
    %10819 = vdwg.mxu0
    %10820 = vmatpush.bf16.msra.mxu0 %v7663
    %10821 = vmatpush.bf16.msra.mxu0 %v7643
    %10822 = vmatpush.bf16.msra.mxu0 %v7623
    %10823 = vmatpush.bf16.msra.mxu0 %v7603
    %10824 = vmatpush.bf16.msra.mxu0 %v7583
    %10825 = vmatpush.bf16.msra.mxu0 %v7563
    %10826 = vmatpush.bf16.msra.mxu0 %v7543
    %10827 = vmatpush.bf16.msra.mxu0 %v7523
    %10828 = vmatmul.bf16.gmra.mxu0 %v1742
    %v10829 = vpop.f32.mrf.mxu0
    %v10830 = vadd.f32 %v10816, %v10829
    %v10831 = vpop.f32.mrf.mxu0
    %v10832 = vadd.f32 %v10818, %v10831
    %10833 = vdwg.mxu0
    %10834 = vmatpush.bf16.msra.mxu0 %v7823
    %10835 = vmatpush.bf16.msra.mxu0 %v7803
    %10836 = vmatpush.bf16.msra.mxu0 %v7783
    %10837 = vmatpush.bf16.msra.mxu0 %v7763
    %10838 = vmatpush.bf16.msra.mxu0 %v7743
    %10839 = vmatpush.bf16.msra.mxu0 %v7723
    %10840 = vmatpush.bf16.msra.mxu0 %v7703
    %10841 = vmatpush.bf16.msra.mxu0 %v7683
    %10842 = vmatmul.bf16.gmra.mxu0 %v1743
    %v10843 = vpop.f32.mrf.mxu0
    %v10844 = vadd.f32 %v10830, %v10843
    %v10845 = vpop.f32.mrf.mxu0
    %v10846 = vadd.f32 %v10832, %v10845
    %10847 = vdwg.mxu0
    %10848 = vmatpush.bf16.msra.mxu0 %v7983
    %10849 = vmatpush.bf16.msra.mxu0 %v7963
    %10850 = vmatpush.bf16.msra.mxu0 %v7943
    %10851 = vmatpush.bf16.msra.mxu0 %v7923
    %10852 = vmatpush.bf16.msra.mxu0 %v7903
    %10853 = vmatpush.bf16.msra.mxu0 %v7883
    %10854 = vmatpush.bf16.msra.mxu0 %v7863
    %10855 = vmatpush.bf16.msra.mxu0 %v7843
    %10856 = vmatmul.bf16.gmra.mxu0 %v1744
    %v10857 = vpop.f32.mrf.mxu0
    %v10858 = vadd.f32 %v10844, %v10857
    %v10859 = vpop.f32.mrf.mxu0
    %v10860 = vadd.f32 %v10846, %v10859
    %10861 = vdwg.mxu0
    %10862 = vmatpush.bf16.msra.mxu0 %v8143
    %10863 = vmatpush.bf16.msra.mxu0 %v8123
    %10864 = vmatpush.bf16.msra.mxu0 %v8103
    %10865 = vmatpush.bf16.msra.mxu0 %v8083
    %10866 = vmatpush.bf16.msra.mxu0 %v8063
    %10867 = vmatpush.bf16.msra.mxu0 %v8043
    %10868 = vmatpush.bf16.msra.mxu0 %v8023
    %10869 = vmatpush.bf16.msra.mxu0 %v8003
    %10870 = vmatmul.bf16.gmra.mxu0 %v1745
    %v10871 = vpop.f32.mrf.mxu0
    %v10872 = vadd.f32 %v10858, %v10871
    %v10873 = vpop.f32.mrf.mxu0
    %v10874 = vadd.f32 %v10860, %v10873
    %10875 = vdwg.mxu0
    %10876 = vmatpush.bf16.msra.mxu0 %v6704
    %10877 = vmatpush.bf16.msra.mxu0 %v6684
    %10878 = vmatpush.bf16.msra.mxu0 %v6664
    %10879 = vmatpush.bf16.msra.mxu0 %v6644
    %10880 = vmatpush.bf16.msra.mxu0 %v6624
    %10881 = vmatpush.bf16.msra.mxu0 %v6604
    %10882 = vmatpush.bf16.msra.mxu0 %v6584
    %10883 = vmatpush.bf16.msra.mxu0 %v6564
    %10884 = vmatmul.bf16.gmra.mxu0 %v1736
    %v10885 = vpop.f32.mrf.mxu0
    %v10886 = vadd.f32 %v1674, %v10885
    %v10887 = vpop.f32.mrf.mxu0
    %v10888 = vadd.f32 %v1674, %v10887
    %10889 = vdwg.mxu0
    %10890 = vmatpush.bf16.msra.mxu0 %v6864
    %10891 = vmatpush.bf16.msra.mxu0 %v6844
    %10892 = vmatpush.bf16.msra.mxu0 %v6824
    %10893 = vmatpush.bf16.msra.mxu0 %v6804
    %10894 = vmatpush.bf16.msra.mxu0 %v6784
    %10895 = vmatpush.bf16.msra.mxu0 %v6764
    %10896 = vmatpush.bf16.msra.mxu0 %v6744
    %10897 = vmatpush.bf16.msra.mxu0 %v6724
    %10898 = vmatmul.bf16.gmra.mxu0 %v1737
    %v10899 = vpop.f32.mrf.mxu0
    %v10900 = vadd.f32 %v10886, %v10899
    %v10901 = vpop.f32.mrf.mxu0
    %v10902 = vadd.f32 %v10888, %v10901
    %10903 = vdwg.mxu0
    %10904 = vmatpush.bf16.msra.mxu0 %v7024
    %10905 = vmatpush.bf16.msra.mxu0 %v7004
    %10906 = vmatpush.bf16.msra.mxu0 %v6984
    %10907 = vmatpush.bf16.msra.mxu0 %v6964
    %10908 = vmatpush.bf16.msra.mxu0 %v6944
    %10909 = vmatpush.bf16.msra.mxu0 %v6924
    %10910 = vmatpush.bf16.msra.mxu0 %v6904
    %10911 = vmatpush.bf16.msra.mxu0 %v6884
    %10912 = vmatmul.bf16.gmra.mxu0 %v1738
    %v10913 = vpop.f32.mrf.mxu0
    %v10914 = vadd.f32 %v10900, %v10913
    %v10915 = vpop.f32.mrf.mxu0
    %v10916 = vadd.f32 %v10902, %v10915
    %10917 = vdwg.mxu0
    %10918 = vmatpush.bf16.msra.mxu0 %v7184
    %10919 = vmatpush.bf16.msra.mxu0 %v7164
    %10920 = vmatpush.bf16.msra.mxu0 %v7144
    %10921 = vmatpush.bf16.msra.mxu0 %v7124
    %10922 = vmatpush.bf16.msra.mxu0 %v7104
    %10923 = vmatpush.bf16.msra.mxu0 %v7084
    %10924 = vmatpush.bf16.msra.mxu0 %v7064
    %10925 = vmatpush.bf16.msra.mxu0 %v7044
    %10926 = vmatmul.bf16.gmra.mxu0 %v1739
    %v10927 = vpop.f32.mrf.mxu0
    %v10928 = vadd.f32 %v10914, %v10927
    %v10929 = vpop.f32.mrf.mxu0
    %v10930 = vadd.f32 %v10916, %v10929
    %10931 = vdwg.mxu0
    %10932 = vmatpush.bf16.msra.mxu0 %v7344
    %10933 = vmatpush.bf16.msra.mxu0 %v7324
    %10934 = vmatpush.bf16.msra.mxu0 %v7304
    %10935 = vmatpush.bf16.msra.mxu0 %v7284
    %10936 = vmatpush.bf16.msra.mxu0 %v7264
    %10937 = vmatpush.bf16.msra.mxu0 %v7244
    %10938 = vmatpush.bf16.msra.mxu0 %v7224
    %10939 = vmatpush.bf16.msra.mxu0 %v7204
    %10940 = vmatmul.bf16.gmra.mxu0 %v1740
    %v10941 = vpop.f32.mrf.mxu0
    %v10942 = vadd.f32 %v10928, %v10941
    %v10943 = vpop.f32.mrf.mxu0
    %v10944 = vadd.f32 %v10930, %v10943
    %10945 = vdwg.mxu0
    %10946 = vmatpush.bf16.msra.mxu0 %v7504
    %10947 = vmatpush.bf16.msra.mxu0 %v7484
    %10948 = vmatpush.bf16.msra.mxu0 %v7464
    %10949 = vmatpush.bf16.msra.mxu0 %v7444
    %10950 = vmatpush.bf16.msra.mxu0 %v7424
    %10951 = vmatpush.bf16.msra.mxu0 %v7404
    %10952 = vmatpush.bf16.msra.mxu0 %v7384
    %10953 = vmatpush.bf16.msra.mxu0 %v7364
    %10954 = vmatmul.bf16.gmra.mxu0 %v1741
    %v10955 = vpop.f32.mrf.mxu0
    %v10956 = vadd.f32 %v10942, %v10955
    %v10957 = vpop.f32.mrf.mxu0
    %v10958 = vadd.f32 %v10944, %v10957
    %10959 = vdwg.mxu0
    %10960 = vmatpush.bf16.msra.mxu0 %v7664
    %10961 = vmatpush.bf16.msra.mxu0 %v7644
    %10962 = vmatpush.bf16.msra.mxu0 %v7624
    %10963 = vmatpush.bf16.msra.mxu0 %v7604
    %10964 = vmatpush.bf16.msra.mxu0 %v7584
    %10965 = vmatpush.bf16.msra.mxu0 %v7564
    %10966 = vmatpush.bf16.msra.mxu0 %v7544
    %10967 = vmatpush.bf16.msra.mxu0 %v7524
    %10968 = vmatmul.bf16.gmra.mxu0 %v1742
    %v10969 = vpop.f32.mrf.mxu0
    %v10970 = vadd.f32 %v10956, %v10969
    %v10971 = vpop.f32.mrf.mxu0
    %v10972 = vadd.f32 %v10958, %v10971
    %10973 = vdwg.mxu0
    %10974 = vmatpush.bf16.msra.mxu0 %v7824
    %10975 = vmatpush.bf16.msra.mxu0 %v7804
    %10976 = vmatpush.bf16.msra.mxu0 %v7784
    %10977 = vmatpush.bf16.msra.mxu0 %v7764
    %10978 = vmatpush.bf16.msra.mxu0 %v7744
    %10979 = vmatpush.bf16.msra.mxu0 %v7724
    %10980 = vmatpush.bf16.msra.mxu0 %v7704
    %10981 = vmatpush.bf16.msra.mxu0 %v7684
    %10982 = vmatmul.bf16.gmra.mxu0 %v1743
    %v10983 = vpop.f32.mrf.mxu0
    %v10984 = vadd.f32 %v10970, %v10983
    %v10985 = vpop.f32.mrf.mxu0
    %v10986 = vadd.f32 %v10972, %v10985
    %10987 = vdwg.mxu0
    %10988 = vmatpush.bf16.msra.mxu0 %v7984
    %10989 = vmatpush.bf16.msra.mxu0 %v7964
    %10990 = vmatpush.bf16.msra.mxu0 %v7944
    %10991 = vmatpush.bf16.msra.mxu0 %v7924
    %10992 = vmatpush.bf16.msra.mxu0 %v7904
    %10993 = vmatpush.bf16.msra.mxu0 %v7884
    %10994 = vmatpush.bf16.msra.mxu0 %v7864
    %10995 = vmatpush.bf16.msra.mxu0 %v7844
    %10996 = vmatmul.bf16.gmra.mxu0 %v1744
    %v10997 = vpop.f32.mrf.mxu0
    %v10998 = vadd.f32 %v10984, %v10997
    %v10999 = vpop.f32.mrf.mxu0
    %v11000 = vadd.f32 %v10986, %v10999
    %11001 = vdwg.mxu0
    %11002 = vmatpush.bf16.msra.mxu0 %v8144
    %11003 = vmatpush.bf16.msra.mxu0 %v8124
    %11004 = vmatpush.bf16.msra.mxu0 %v8104
    %11005 = vmatpush.bf16.msra.mxu0 %v8084
    %11006 = vmatpush.bf16.msra.mxu0 %v8064
    %11007 = vmatpush.bf16.msra.mxu0 %v8044
    %11008 = vmatpush.bf16.msra.mxu0 %v8024
    %11009 = vmatpush.bf16.msra.mxu0 %v8004
    %11010 = vmatmul.bf16.gmra.mxu0 %v1745
    %v11011 = vpop.f32.mrf.mxu0
    %v11012 = vadd.f32 %v10998, %v11011
    %v11013 = vpop.f32.mrf.mxu0
    %v11014 = vadd.f32 %v11000, %v11013
    %11015 = vdwg.mxu0
    %11016 = vmatpush.bf16.msra.mxu0 %v6705
    %11017 = vmatpush.bf16.msra.mxu0 %v6685
    %11018 = vmatpush.bf16.msra.mxu0 %v6665
    %11019 = vmatpush.bf16.msra.mxu0 %v6645
    %11020 = vmatpush.bf16.msra.mxu0 %v6625
    %11021 = vmatpush.bf16.msra.mxu0 %v6605
    %11022 = vmatpush.bf16.msra.mxu0 %v6585
    %11023 = vmatpush.bf16.msra.mxu0 %v6565
    %11024 = vmatmul.bf16.gmra.mxu0 %v1736
    %v11025 = vpop.f32.mrf.mxu0
    %v11026 = vadd.f32 %v1675, %v11025
    %v11027 = vpop.f32.mrf.mxu0
    %v11028 = vadd.f32 %v1675, %v11027
    %11029 = vdwg.mxu0
    %11030 = vmatpush.bf16.msra.mxu0 %v6865
    %11031 = vmatpush.bf16.msra.mxu0 %v6845
    %11032 = vmatpush.bf16.msra.mxu0 %v6825
    %11033 = vmatpush.bf16.msra.mxu0 %v6805
    %11034 = vmatpush.bf16.msra.mxu0 %v6785
    %11035 = vmatpush.bf16.msra.mxu0 %v6765
    %11036 = vmatpush.bf16.msra.mxu0 %v6745
    %11037 = vmatpush.bf16.msra.mxu0 %v6725
    %11038 = vmatmul.bf16.gmra.mxu0 %v1737
    %v11039 = vpop.f32.mrf.mxu0
    %v11040 = vadd.f32 %v11026, %v11039
    %v11041 = vpop.f32.mrf.mxu0
    %v11042 = vadd.f32 %v11028, %v11041
    %11043 = vdwg.mxu0
    %11044 = vmatpush.bf16.msra.mxu0 %v7025
    %11045 = vmatpush.bf16.msra.mxu0 %v7005
    %11046 = vmatpush.bf16.msra.mxu0 %v6985
    %11047 = vmatpush.bf16.msra.mxu0 %v6965
    %11048 = vmatpush.bf16.msra.mxu0 %v6945
    %11049 = vmatpush.bf16.msra.mxu0 %v6925
    %11050 = vmatpush.bf16.msra.mxu0 %v6905
    %11051 = vmatpush.bf16.msra.mxu0 %v6885
    %11052 = vmatmul.bf16.gmra.mxu0 %v1738
    %v11053 = vpop.f32.mrf.mxu0
    %v11054 = vadd.f32 %v11040, %v11053
    %v11055 = vpop.f32.mrf.mxu0
    %v11056 = vadd.f32 %v11042, %v11055
    %11057 = vdwg.mxu0
    %11058 = vmatpush.bf16.msra.mxu0 %v7185
    %11059 = vmatpush.bf16.msra.mxu0 %v7165
    %11060 = vmatpush.bf16.msra.mxu0 %v7145
    %11061 = vmatpush.bf16.msra.mxu0 %v7125
    %11062 = vmatpush.bf16.msra.mxu0 %v7105
    %11063 = vmatpush.bf16.msra.mxu0 %v7085
    %11064 = vmatpush.bf16.msra.mxu0 %v7065
    %11065 = vmatpush.bf16.msra.mxu0 %v7045
    %11066 = vmatmul.bf16.gmra.mxu0 %v1739
    %v11067 = vpop.f32.mrf.mxu0
    %v11068 = vadd.f32 %v11054, %v11067
    %v11069 = vpop.f32.mrf.mxu0
    %v11070 = vadd.f32 %v11056, %v11069
    %11071 = vdwg.mxu0
    %11072 = vmatpush.bf16.msra.mxu0 %v7345
    %11073 = vmatpush.bf16.msra.mxu0 %v7325
    %11074 = vmatpush.bf16.msra.mxu0 %v7305
    %11075 = vmatpush.bf16.msra.mxu0 %v7285
    %11076 = vmatpush.bf16.msra.mxu0 %v7265
    %11077 = vmatpush.bf16.msra.mxu0 %v7245
    %11078 = vmatpush.bf16.msra.mxu0 %v7225
    %11079 = vmatpush.bf16.msra.mxu0 %v7205
    %11080 = vmatmul.bf16.gmra.mxu0 %v1740
    %v11081 = vpop.f32.mrf.mxu0
    %v11082 = vadd.f32 %v11068, %v11081
    %v11083 = vpop.f32.mrf.mxu0
    %v11084 = vadd.f32 %v11070, %v11083
    %11085 = vdwg.mxu0
    %11086 = vmatpush.bf16.msra.mxu0 %v7505
    %11087 = vmatpush.bf16.msra.mxu0 %v7485
    %11088 = vmatpush.bf16.msra.mxu0 %v7465
    %11089 = vmatpush.bf16.msra.mxu0 %v7445
    %11090 = vmatpush.bf16.msra.mxu0 %v7425
    %11091 = vmatpush.bf16.msra.mxu0 %v7405
    %11092 = vmatpush.bf16.msra.mxu0 %v7385
    %11093 = vmatpush.bf16.msra.mxu0 %v7365
    %11094 = vmatmul.bf16.gmra.mxu0 %v1741
    %v11095 = vpop.f32.mrf.mxu0
    %v11096 = vadd.f32 %v11082, %v11095
    %v11097 = vpop.f32.mrf.mxu0
    %v11098 = vadd.f32 %v11084, %v11097
    %11099 = vdwg.mxu0
    %11100 = vmatpush.bf16.msra.mxu0 %v7665
    %11101 = vmatpush.bf16.msra.mxu0 %v7645
    %11102 = vmatpush.bf16.msra.mxu0 %v7625
    %11103 = vmatpush.bf16.msra.mxu0 %v7605
    %11104 = vmatpush.bf16.msra.mxu0 %v7585
    %11105 = vmatpush.bf16.msra.mxu0 %v7565
    %11106 = vmatpush.bf16.msra.mxu0 %v7545
    %11107 = vmatpush.bf16.msra.mxu0 %v7525
    %11108 = vmatmul.bf16.gmra.mxu0 %v1742
    %v11109 = vpop.f32.mrf.mxu0
    %v11110 = vadd.f32 %v11096, %v11109
    %v11111 = vpop.f32.mrf.mxu0
    %v11112 = vadd.f32 %v11098, %v11111
    %11113 = vdwg.mxu0
    %11114 = vmatpush.bf16.msra.mxu0 %v7825
    %11115 = vmatpush.bf16.msra.mxu0 %v7805
    %11116 = vmatpush.bf16.msra.mxu0 %v7785
    %11117 = vmatpush.bf16.msra.mxu0 %v7765
    %11118 = vmatpush.bf16.msra.mxu0 %v7745
    %11119 = vmatpush.bf16.msra.mxu0 %v7725
    %11120 = vmatpush.bf16.msra.mxu0 %v7705
    %11121 = vmatpush.bf16.msra.mxu0 %v7685
    %11122 = vmatmul.bf16.gmra.mxu0 %v1743
    %v11123 = vpop.f32.mrf.mxu0
    %v11124 = vadd.f32 %v11110, %v11123
    %v11125 = vpop.f32.mrf.mxu0
    %v11126 = vadd.f32 %v11112, %v11125
    %11127 = vdwg.mxu0
    %11128 = vmatpush.bf16.msra.mxu0 %v7985
    %11129 = vmatpush.bf16.msra.mxu0 %v7965
    %11130 = vmatpush.bf16.msra.mxu0 %v7945
    %11131 = vmatpush.bf16.msra.mxu0 %v7925
    %11132 = vmatpush.bf16.msra.mxu0 %v7905
    %11133 = vmatpush.bf16.msra.mxu0 %v7885
    %11134 = vmatpush.bf16.msra.mxu0 %v7865
    %11135 = vmatpush.bf16.msra.mxu0 %v7845
    %11136 = vmatmul.bf16.gmra.mxu0 %v1744
    %v11137 = vpop.f32.mrf.mxu0
    %v11138 = vadd.f32 %v11124, %v11137
    %v11139 = vpop.f32.mrf.mxu0
    %v11140 = vadd.f32 %v11126, %v11139
    %11141 = vdwg.mxu0
    %11142 = vmatpush.bf16.msra.mxu0 %v8145
    %11143 = vmatpush.bf16.msra.mxu0 %v8125
    %11144 = vmatpush.bf16.msra.mxu0 %v8105
    %11145 = vmatpush.bf16.msra.mxu0 %v8085
    %11146 = vmatpush.bf16.msra.mxu0 %v8065
    %11147 = vmatpush.bf16.msra.mxu0 %v8045
    %11148 = vmatpush.bf16.msra.mxu0 %v8025
    %11149 = vmatpush.bf16.msra.mxu0 %v8005
    %11150 = vmatmul.bf16.gmra.mxu0 %v1745
    %v11151 = vpop.f32.mrf.mxu0
    %v11152 = vadd.f32 %v11138, %v11151
    %v11153 = vpop.f32.mrf.mxu0
    %v11154 = vadd.f32 %v11140, %v11153
    %11155 = vdwg.mxu0
    %11156 = vmatpush.bf16.msra.mxu0 %v6706
    %11157 = vmatpush.bf16.msra.mxu0 %v6686
    %11158 = vmatpush.bf16.msra.mxu0 %v6666
    %11159 = vmatpush.bf16.msra.mxu0 %v6646
    %11160 = vmatpush.bf16.msra.mxu0 %v6626
    %11161 = vmatpush.bf16.msra.mxu0 %v6606
    %11162 = vmatpush.bf16.msra.mxu0 %v6586
    %11163 = vmatpush.bf16.msra.mxu0 %v6566
    %11164 = vmatmul.bf16.gmra.mxu0 %v1736
    %v11165 = vpop.f32.mrf.mxu0
    %v11166 = vadd.f32 %v1676, %v11165
    %v11167 = vpop.f32.mrf.mxu0
    %v11168 = vadd.f32 %v1676, %v11167
    %11169 = vdwg.mxu0
    %11170 = vmatpush.bf16.msra.mxu0 %v6866
    %11171 = vmatpush.bf16.msra.mxu0 %v6846
    %11172 = vmatpush.bf16.msra.mxu0 %v6826
    %11173 = vmatpush.bf16.msra.mxu0 %v6806
    %11174 = vmatpush.bf16.msra.mxu0 %v6786
    %11175 = vmatpush.bf16.msra.mxu0 %v6766
    %11176 = vmatpush.bf16.msra.mxu0 %v6746
    %11177 = vmatpush.bf16.msra.mxu0 %v6726
    %11178 = vmatmul.bf16.gmra.mxu0 %v1737
    %v11179 = vpop.f32.mrf.mxu0
    %v11180 = vadd.f32 %v11166, %v11179
    %v11181 = vpop.f32.mrf.mxu0
    %v11182 = vadd.f32 %v11168, %v11181
    %11183 = vdwg.mxu0
    %11184 = vmatpush.bf16.msra.mxu0 %v7026
    %11185 = vmatpush.bf16.msra.mxu0 %v7006
    %11186 = vmatpush.bf16.msra.mxu0 %v6986
    %11187 = vmatpush.bf16.msra.mxu0 %v6966
    %11188 = vmatpush.bf16.msra.mxu0 %v6946
    %11189 = vmatpush.bf16.msra.mxu0 %v6926
    %11190 = vmatpush.bf16.msra.mxu0 %v6906
    %11191 = vmatpush.bf16.msra.mxu0 %v6886
    %11192 = vmatmul.bf16.gmra.mxu0 %v1738
    %v11193 = vpop.f32.mrf.mxu0
    %v11194 = vadd.f32 %v11180, %v11193
    %v11195 = vpop.f32.mrf.mxu0
    %v11196 = vadd.f32 %v11182, %v11195
    %11197 = vdwg.mxu0
    %11198 = vmatpush.bf16.msra.mxu0 %v7186
    %11199 = vmatpush.bf16.msra.mxu0 %v7166
    %11200 = vmatpush.bf16.msra.mxu0 %v7146
    %11201 = vmatpush.bf16.msra.mxu0 %v7126
    %11202 = vmatpush.bf16.msra.mxu0 %v7106
    %11203 = vmatpush.bf16.msra.mxu0 %v7086
    %11204 = vmatpush.bf16.msra.mxu0 %v7066
    %11205 = vmatpush.bf16.msra.mxu0 %v7046
    %11206 = vmatmul.bf16.gmra.mxu0 %v1739
    %v11207 = vpop.f32.mrf.mxu0
    %v11208 = vadd.f32 %v11194, %v11207
    %v11209 = vpop.f32.mrf.mxu0
    %v11210 = vadd.f32 %v11196, %v11209
    %11211 = vdwg.mxu0
    %11212 = vmatpush.bf16.msra.mxu0 %v7346
    %11213 = vmatpush.bf16.msra.mxu0 %v7326
    %11214 = vmatpush.bf16.msra.mxu0 %v7306
    %11215 = vmatpush.bf16.msra.mxu0 %v7286
    %11216 = vmatpush.bf16.msra.mxu0 %v7266
    %11217 = vmatpush.bf16.msra.mxu0 %v7246
    %11218 = vmatpush.bf16.msra.mxu0 %v7226
    %11219 = vmatpush.bf16.msra.mxu0 %v7206
    %11220 = vmatmul.bf16.gmra.mxu0 %v1740
    %v11221 = vpop.f32.mrf.mxu0
    %v11222 = vadd.f32 %v11208, %v11221
    %v11223 = vpop.f32.mrf.mxu0
    %v11224 = vadd.f32 %v11210, %v11223
    %11225 = vdwg.mxu0
    %11226 = vmatpush.bf16.msra.mxu0 %v7506
    %11227 = vmatpush.bf16.msra.mxu0 %v7486
    %11228 = vmatpush.bf16.msra.mxu0 %v7466
    %11229 = vmatpush.bf16.msra.mxu0 %v7446
    %11230 = vmatpush.bf16.msra.mxu0 %v7426
    %11231 = vmatpush.bf16.msra.mxu0 %v7406
    %11232 = vmatpush.bf16.msra.mxu0 %v7386
    %11233 = vmatpush.bf16.msra.mxu0 %v7366
    %11234 = vmatmul.bf16.gmra.mxu0 %v1741
    %v11235 = vpop.f32.mrf.mxu0
    %v11236 = vadd.f32 %v11222, %v11235
    %v11237 = vpop.f32.mrf.mxu0
    %v11238 = vadd.f32 %v11224, %v11237
    %11239 = vdwg.mxu0
    %11240 = vmatpush.bf16.msra.mxu0 %v7666
    %11241 = vmatpush.bf16.msra.mxu0 %v7646
    %11242 = vmatpush.bf16.msra.mxu0 %v7626
    %11243 = vmatpush.bf16.msra.mxu0 %v7606
    %11244 = vmatpush.bf16.msra.mxu0 %v7586
    %11245 = vmatpush.bf16.msra.mxu0 %v7566
    %11246 = vmatpush.bf16.msra.mxu0 %v7546
    %11247 = vmatpush.bf16.msra.mxu0 %v7526
    %11248 = vmatmul.bf16.gmra.mxu0 %v1742
    %v11249 = vpop.f32.mrf.mxu0
    %v11250 = vadd.f32 %v11236, %v11249
    %v11251 = vpop.f32.mrf.mxu0
    %v11252 = vadd.f32 %v11238, %v11251
    %11253 = vdwg.mxu0
    %11254 = vmatpush.bf16.msra.mxu0 %v7826
    %11255 = vmatpush.bf16.msra.mxu0 %v7806
    %11256 = vmatpush.bf16.msra.mxu0 %v7786
    %11257 = vmatpush.bf16.msra.mxu0 %v7766
    %11258 = vmatpush.bf16.msra.mxu0 %v7746
    %11259 = vmatpush.bf16.msra.mxu0 %v7726
    %11260 = vmatpush.bf16.msra.mxu0 %v7706
    %11261 = vmatpush.bf16.msra.mxu0 %v7686
    %11262 = vmatmul.bf16.gmra.mxu0 %v1743
    %v11263 = vpop.f32.mrf.mxu0
    %v11264 = vadd.f32 %v11250, %v11263
    %v11265 = vpop.f32.mrf.mxu0
    %v11266 = vadd.f32 %v11252, %v11265
    %11267 = vdwg.mxu0
    %11268 = vmatpush.bf16.msra.mxu0 %v7986
    %11269 = vmatpush.bf16.msra.mxu0 %v7966
    %11270 = vmatpush.bf16.msra.mxu0 %v7946
    %11271 = vmatpush.bf16.msra.mxu0 %v7926
    %11272 = vmatpush.bf16.msra.mxu0 %v7906
    %11273 = vmatpush.bf16.msra.mxu0 %v7886
    %11274 = vmatpush.bf16.msra.mxu0 %v7866
    %11275 = vmatpush.bf16.msra.mxu0 %v7846
    %11276 = vmatmul.bf16.gmra.mxu0 %v1744
    %v11277 = vpop.f32.mrf.mxu0
    %v11278 = vadd.f32 %v11264, %v11277
    %v11279 = vpop.f32.mrf.mxu0
    %v11280 = vadd.f32 %v11266, %v11279
    %11281 = vdwg.mxu0
    %11282 = vmatpush.bf16.msra.mxu0 %v8146
    %11283 = vmatpush.bf16.msra.mxu0 %v8126
    %11284 = vmatpush.bf16.msra.mxu0 %v8106
    %11285 = vmatpush.bf16.msra.mxu0 %v8086
    %11286 = vmatpush.bf16.msra.mxu0 %v8066
    %11287 = vmatpush.bf16.msra.mxu0 %v8046
    %11288 = vmatpush.bf16.msra.mxu0 %v8026
    %11289 = vmatpush.bf16.msra.mxu0 %v8006
    %11290 = vmatmul.bf16.gmra.mxu0 %v1745
    %v11291 = vpop.f32.mrf.mxu0
    %v11292 = vadd.f32 %v11278, %v11291
    %v11293 = vpop.f32.mrf.mxu0
    %v11294 = vadd.f32 %v11280, %v11293
    %11295 = vdwg.mxu0
    %11296 = vmatpush.bf16.msra.mxu0 %v6707
    %11297 = vmatpush.bf16.msra.mxu0 %v6687
    %11298 = vmatpush.bf16.msra.mxu0 %v6667
    %11299 = vmatpush.bf16.msra.mxu0 %v6647
    %11300 = vmatpush.bf16.msra.mxu0 %v6627
    %11301 = vmatpush.bf16.msra.mxu0 %v6607
    %11302 = vmatpush.bf16.msra.mxu0 %v6587
    %11303 = vmatpush.bf16.msra.mxu0 %v6567
    %11304 = vmatmul.bf16.gmra.mxu0 %v1736
    %v11305 = vpop.f32.mrf.mxu0
    %v11306 = vadd.f32 %v1677, %v11305
    %v11307 = vpop.f32.mrf.mxu0
    %v11308 = vadd.f32 %v1677, %v11307
    %11309 = vdwg.mxu0
    %11310 = vmatpush.bf16.msra.mxu0 %v6867
    %11311 = vmatpush.bf16.msra.mxu0 %v6847
    %11312 = vmatpush.bf16.msra.mxu0 %v6827
    %11313 = vmatpush.bf16.msra.mxu0 %v6807
    %11314 = vmatpush.bf16.msra.mxu0 %v6787
    %11315 = vmatpush.bf16.msra.mxu0 %v6767
    %11316 = vmatpush.bf16.msra.mxu0 %v6747
    %11317 = vmatpush.bf16.msra.mxu0 %v6727
    %11318 = vmatmul.bf16.gmra.mxu0 %v1737
    %v11319 = vpop.f32.mrf.mxu0
    %v11320 = vadd.f32 %v11306, %v11319
    %v11321 = vpop.f32.mrf.mxu0
    %v11322 = vadd.f32 %v11308, %v11321
    %11323 = vdwg.mxu0
    %11324 = vmatpush.bf16.msra.mxu0 %v7027
    %11325 = vmatpush.bf16.msra.mxu0 %v7007
    %11326 = vmatpush.bf16.msra.mxu0 %v6987
    %11327 = vmatpush.bf16.msra.mxu0 %v6967
    %11328 = vmatpush.bf16.msra.mxu0 %v6947
    %11329 = vmatpush.bf16.msra.mxu0 %v6927
    %11330 = vmatpush.bf16.msra.mxu0 %v6907
    %11331 = vmatpush.bf16.msra.mxu0 %v6887
    %11332 = vmatmul.bf16.gmra.mxu0 %v1738
    %v11333 = vpop.f32.mrf.mxu0
    %v11334 = vadd.f32 %v11320, %v11333
    %v11335 = vpop.f32.mrf.mxu0
    %v11336 = vadd.f32 %v11322, %v11335
    %11337 = vdwg.mxu0
    %11338 = vmatpush.bf16.msra.mxu0 %v7187
    %11339 = vmatpush.bf16.msra.mxu0 %v7167
    %11340 = vmatpush.bf16.msra.mxu0 %v7147
    %11341 = vmatpush.bf16.msra.mxu0 %v7127
    %11342 = vmatpush.bf16.msra.mxu0 %v7107
    %11343 = vmatpush.bf16.msra.mxu0 %v7087
    %11344 = vmatpush.bf16.msra.mxu0 %v7067
    %11345 = vmatpush.bf16.msra.mxu0 %v7047
    %11346 = vmatmul.bf16.gmra.mxu0 %v1739
    %v11347 = vpop.f32.mrf.mxu0
    %v11348 = vadd.f32 %v11334, %v11347
    %v11349 = vpop.f32.mrf.mxu0
    %v11350 = vadd.f32 %v11336, %v11349
    %11351 = vdwg.mxu0
    %11352 = vmatpush.bf16.msra.mxu0 %v7347
    %11353 = vmatpush.bf16.msra.mxu0 %v7327
    %11354 = vmatpush.bf16.msra.mxu0 %v7307
    %11355 = vmatpush.bf16.msra.mxu0 %v7287
    %11356 = vmatpush.bf16.msra.mxu0 %v7267
    %11357 = vmatpush.bf16.msra.mxu0 %v7247
    %11358 = vmatpush.bf16.msra.mxu0 %v7227
    %11359 = vmatpush.bf16.msra.mxu0 %v7207
    %11360 = vmatmul.bf16.gmra.mxu0 %v1740
    %v11361 = vpop.f32.mrf.mxu0
    %v11362 = vadd.f32 %v11348, %v11361
    %v11363 = vpop.f32.mrf.mxu0
    %v11364 = vadd.f32 %v11350, %v11363
    %11365 = vdwg.mxu0
    %11366 = vmatpush.bf16.msra.mxu0 %v7507
    %11367 = vmatpush.bf16.msra.mxu0 %v7487
    %11368 = vmatpush.bf16.msra.mxu0 %v7467
    %11369 = vmatpush.bf16.msra.mxu0 %v7447
    %11370 = vmatpush.bf16.msra.mxu0 %v7427
    %11371 = vmatpush.bf16.msra.mxu0 %v7407
    %11372 = vmatpush.bf16.msra.mxu0 %v7387
    %11373 = vmatpush.bf16.msra.mxu0 %v7367
    %11374 = vmatmul.bf16.gmra.mxu0 %v1741
    %v11375 = vpop.f32.mrf.mxu0
    %v11376 = vadd.f32 %v11362, %v11375
    %v11377 = vpop.f32.mrf.mxu0
    %v11378 = vadd.f32 %v11364, %v11377
    %11379 = vdwg.mxu0
    %11380 = vmatpush.bf16.msra.mxu0 %v7667
    %11381 = vmatpush.bf16.msra.mxu0 %v7647
    %11382 = vmatpush.bf16.msra.mxu0 %v7627
    %11383 = vmatpush.bf16.msra.mxu0 %v7607
    %11384 = vmatpush.bf16.msra.mxu0 %v7587
    %11385 = vmatpush.bf16.msra.mxu0 %v7567
    %11386 = vmatpush.bf16.msra.mxu0 %v7547
    %11387 = vmatpush.bf16.msra.mxu0 %v7527
    %11388 = vmatmul.bf16.gmra.mxu0 %v1742
    %v11389 = vpop.f32.mrf.mxu0
    %v11390 = vadd.f32 %v11376, %v11389
    %v11391 = vpop.f32.mrf.mxu0
    %v11392 = vadd.f32 %v11378, %v11391
    %11393 = vdwg.mxu0
    %11394 = vmatpush.bf16.msra.mxu0 %v7827
    %11395 = vmatpush.bf16.msra.mxu0 %v7807
    %11396 = vmatpush.bf16.msra.mxu0 %v7787
    %11397 = vmatpush.bf16.msra.mxu0 %v7767
    %11398 = vmatpush.bf16.msra.mxu0 %v7747
    %11399 = vmatpush.bf16.msra.mxu0 %v7727
    %11400 = vmatpush.bf16.msra.mxu0 %v7707
    %11401 = vmatpush.bf16.msra.mxu0 %v7687
    %11402 = vmatmul.bf16.gmra.mxu0 %v1743
    %v11403 = vpop.f32.mrf.mxu0
    %v11404 = vadd.f32 %v11390, %v11403
    %v11405 = vpop.f32.mrf.mxu0
    %v11406 = vadd.f32 %v11392, %v11405
    %11407 = vdwg.mxu0
    %11408 = vmatpush.bf16.msra.mxu0 %v7987
    %11409 = vmatpush.bf16.msra.mxu0 %v7967
    %11410 = vmatpush.bf16.msra.mxu0 %v7947
    %11411 = vmatpush.bf16.msra.mxu0 %v7927
    %11412 = vmatpush.bf16.msra.mxu0 %v7907
    %11413 = vmatpush.bf16.msra.mxu0 %v7887
    %11414 = vmatpush.bf16.msra.mxu0 %v7867
    %11415 = vmatpush.bf16.msra.mxu0 %v7847
    %11416 = vmatmul.bf16.gmra.mxu0 %v1744
    %v11417 = vpop.f32.mrf.mxu0
    %v11418 = vadd.f32 %v11404, %v11417
    %v11419 = vpop.f32.mrf.mxu0
    %v11420 = vadd.f32 %v11406, %v11419
    %11421 = vdwg.mxu0
    %11422 = vmatpush.bf16.msra.mxu0 %v8147
    %11423 = vmatpush.bf16.msra.mxu0 %v8127
    %11424 = vmatpush.bf16.msra.mxu0 %v8107
    %11425 = vmatpush.bf16.msra.mxu0 %v8087
    %11426 = vmatpush.bf16.msra.mxu0 %v8067
    %11427 = vmatpush.bf16.msra.mxu0 %v8047
    %11428 = vmatpush.bf16.msra.mxu0 %v8027
    %11429 = vmatpush.bf16.msra.mxu0 %v8007
    %11430 = vmatmul.bf16.gmra.mxu0 %v1745
    %v11431 = vpop.f32.mrf.mxu0
    %v11432 = vadd.f32 %v11418, %v11431
    %v11433 = vpop.f32.mrf.mxu0
    %v11434 = vadd.f32 %v11420, %v11433
    %11435 = vdwg.mxu0
    %11436 = vmatpush.bf16.msra.mxu0 %v6708
    %11437 = vmatpush.bf16.msra.mxu0 %v6688
    %11438 = vmatpush.bf16.msra.mxu0 %v6668
    %11439 = vmatpush.bf16.msra.mxu0 %v6648
    %11440 = vmatpush.bf16.msra.mxu0 %v6628
    %11441 = vmatpush.bf16.msra.mxu0 %v6608
    %11442 = vmatpush.bf16.msra.mxu0 %v6588
    %11443 = vmatpush.bf16.msra.mxu0 %v6568
    %11444 = vmatmul.bf16.gmra.mxu0 %v1736
    %v11445 = vpop.f32.mrf.mxu0
    %v11446 = vadd.f32 %v1678, %v11445
    %v11447 = vpop.f32.mrf.mxu0
    %v11448 = vadd.f32 %v1678, %v11447
    %11449 = vdwg.mxu0
    %11450 = vmatpush.bf16.msra.mxu0 %v6868
    %11451 = vmatpush.bf16.msra.mxu0 %v6848
    %11452 = vmatpush.bf16.msra.mxu0 %v6828
    %11453 = vmatpush.bf16.msra.mxu0 %v6808
    %11454 = vmatpush.bf16.msra.mxu0 %v6788
    %11455 = vmatpush.bf16.msra.mxu0 %v6768
    %11456 = vmatpush.bf16.msra.mxu0 %v6748
    %11457 = vmatpush.bf16.msra.mxu0 %v6728
    %11458 = vmatmul.bf16.gmra.mxu0 %v1737
    %v11459 = vpop.f32.mrf.mxu0
    %v11460 = vadd.f32 %v11446, %v11459
    %v11461 = vpop.f32.mrf.mxu0
    %v11462 = vadd.f32 %v11448, %v11461
    %11463 = vdwg.mxu0
    %11464 = vmatpush.bf16.msra.mxu0 %v7028
    %11465 = vmatpush.bf16.msra.mxu0 %v7008
    %11466 = vmatpush.bf16.msra.mxu0 %v6988
    %11467 = vmatpush.bf16.msra.mxu0 %v6968
    %11468 = vmatpush.bf16.msra.mxu0 %v6948
    %11469 = vmatpush.bf16.msra.mxu0 %v6928
    %11470 = vmatpush.bf16.msra.mxu0 %v6908
    %11471 = vmatpush.bf16.msra.mxu0 %v6888
    %11472 = vmatmul.bf16.gmra.mxu0 %v1738
    %v11473 = vpop.f32.mrf.mxu0
    %v11474 = vadd.f32 %v11460, %v11473
    %v11475 = vpop.f32.mrf.mxu0
    %v11476 = vadd.f32 %v11462, %v11475
    %11477 = vdwg.mxu0
    %11478 = vmatpush.bf16.msra.mxu0 %v7188
    %11479 = vmatpush.bf16.msra.mxu0 %v7168
    %11480 = vmatpush.bf16.msra.mxu0 %v7148
    %11481 = vmatpush.bf16.msra.mxu0 %v7128
    %11482 = vmatpush.bf16.msra.mxu0 %v7108
    %11483 = vmatpush.bf16.msra.mxu0 %v7088
    %11484 = vmatpush.bf16.msra.mxu0 %v7068
    %11485 = vmatpush.bf16.msra.mxu0 %v7048
    %11486 = vmatmul.bf16.gmra.mxu0 %v1739
    %v11487 = vpop.f32.mrf.mxu0
    %v11488 = vadd.f32 %v11474, %v11487
    %v11489 = vpop.f32.mrf.mxu0
    %v11490 = vadd.f32 %v11476, %v11489
    %11491 = vdwg.mxu0
    %11492 = vmatpush.bf16.msra.mxu0 %v7348
    %11493 = vmatpush.bf16.msra.mxu0 %v7328
    %11494 = vmatpush.bf16.msra.mxu0 %v7308
    %11495 = vmatpush.bf16.msra.mxu0 %v7288
    %11496 = vmatpush.bf16.msra.mxu0 %v7268
    %11497 = vmatpush.bf16.msra.mxu0 %v7248
    %11498 = vmatpush.bf16.msra.mxu0 %v7228
    %11499 = vmatpush.bf16.msra.mxu0 %v7208
    %11500 = vmatmul.bf16.gmra.mxu0 %v1740
    %v11501 = vpop.f32.mrf.mxu0
    %v11502 = vadd.f32 %v11488, %v11501
    %v11503 = vpop.f32.mrf.mxu0
    %v11504 = vadd.f32 %v11490, %v11503
    %11505 = vdwg.mxu0
    %11506 = vmatpush.bf16.msra.mxu0 %v7508
    %11507 = vmatpush.bf16.msra.mxu0 %v7488
    %11508 = vmatpush.bf16.msra.mxu0 %v7468
    %11509 = vmatpush.bf16.msra.mxu0 %v7448
    %11510 = vmatpush.bf16.msra.mxu0 %v7428
    %11511 = vmatpush.bf16.msra.mxu0 %v7408
    %11512 = vmatpush.bf16.msra.mxu0 %v7388
    %11513 = vmatpush.bf16.msra.mxu0 %v7368
    %11514 = vmatmul.bf16.gmra.mxu0 %v1741
    %v11515 = vpop.f32.mrf.mxu0
    %v11516 = vadd.f32 %v11502, %v11515
    %v11517 = vpop.f32.mrf.mxu0
    %v11518 = vadd.f32 %v11504, %v11517
    %11519 = vdwg.mxu0
    %11520 = vmatpush.bf16.msra.mxu0 %v7668
    %11521 = vmatpush.bf16.msra.mxu0 %v7648
    %11522 = vmatpush.bf16.msra.mxu0 %v7628
    %11523 = vmatpush.bf16.msra.mxu0 %v7608
    %11524 = vmatpush.bf16.msra.mxu0 %v7588
    %11525 = vmatpush.bf16.msra.mxu0 %v7568
    %11526 = vmatpush.bf16.msra.mxu0 %v7548
    %11527 = vmatpush.bf16.msra.mxu0 %v7528
    %11528 = vmatmul.bf16.gmra.mxu0 %v1742
    %v11529 = vpop.f32.mrf.mxu0
    %v11530 = vadd.f32 %v11516, %v11529
    %v11531 = vpop.f32.mrf.mxu0
    %v11532 = vadd.f32 %v11518, %v11531
    %11533 = vdwg.mxu0
    %11534 = vmatpush.bf16.msra.mxu0 %v7828
    %11535 = vmatpush.bf16.msra.mxu0 %v7808
    %11536 = vmatpush.bf16.msra.mxu0 %v7788
    %11537 = vmatpush.bf16.msra.mxu0 %v7768
    %11538 = vmatpush.bf16.msra.mxu0 %v7748
    %11539 = vmatpush.bf16.msra.mxu0 %v7728
    %11540 = vmatpush.bf16.msra.mxu0 %v7708
    %11541 = vmatpush.bf16.msra.mxu0 %v7688
    %11542 = vmatmul.bf16.gmra.mxu0 %v1743
    %v11543 = vpop.f32.mrf.mxu0
    %v11544 = vadd.f32 %v11530, %v11543
    %v11545 = vpop.f32.mrf.mxu0
    %v11546 = vadd.f32 %v11532, %v11545
    %11547 = vdwg.mxu0
    %11548 = vmatpush.bf16.msra.mxu0 %v7988
    %11549 = vmatpush.bf16.msra.mxu0 %v7968
    %11550 = vmatpush.bf16.msra.mxu0 %v7948
    %11551 = vmatpush.bf16.msra.mxu0 %v7928
    %11552 = vmatpush.bf16.msra.mxu0 %v7908
    %11553 = vmatpush.bf16.msra.mxu0 %v7888
    %11554 = vmatpush.bf16.msra.mxu0 %v7868
    %11555 = vmatpush.bf16.msra.mxu0 %v7848
    %11556 = vmatmul.bf16.gmra.mxu0 %v1744
    %v11557 = vpop.f32.mrf.mxu0
    %v11558 = vadd.f32 %v11544, %v11557
    %v11559 = vpop.f32.mrf.mxu0
    %v11560 = vadd.f32 %v11546, %v11559
    %11561 = vdwg.mxu0
    %11562 = vmatpush.bf16.msra.mxu0 %v8148
    %11563 = vmatpush.bf16.msra.mxu0 %v8128
    %11564 = vmatpush.bf16.msra.mxu0 %v8108
    %11565 = vmatpush.bf16.msra.mxu0 %v8088
    %11566 = vmatpush.bf16.msra.mxu0 %v8068
    %11567 = vmatpush.bf16.msra.mxu0 %v8048
    %11568 = vmatpush.bf16.msra.mxu0 %v8028
    %11569 = vmatpush.bf16.msra.mxu0 %v8008
    %11570 = vmatmul.bf16.gmra.mxu0 %v1745
    %v11571 = vpop.f32.mrf.mxu0
    %v11572 = vadd.f32 %v11558, %v11571
    %v11573 = vpop.f32.mrf.mxu0
    %v11574 = vadd.f32 %v11560, %v11573
    %11575 = vdwg.mxu0
    %11576 = vmatpush.bf16.msra.mxu0 %v6709
    %11577 = vmatpush.bf16.msra.mxu0 %v6689
    %11578 = vmatpush.bf16.msra.mxu0 %v6669
    %11579 = vmatpush.bf16.msra.mxu0 %v6649
    %11580 = vmatpush.bf16.msra.mxu0 %v6629
    %11581 = vmatpush.bf16.msra.mxu0 %v6609
    %11582 = vmatpush.bf16.msra.mxu0 %v6589
    %11583 = vmatpush.bf16.msra.mxu0 %v6569
    %11584 = vmatmul.bf16.gmra.mxu0 %v1736
    %v11585 = vpop.f32.mrf.mxu0
    %v11586 = vadd.f32 %v1679, %v11585
    %v11587 = vpop.f32.mrf.mxu0
    %v11588 = vadd.f32 %v1679, %v11587
    %11589 = vdwg.mxu0
    %11590 = vmatpush.bf16.msra.mxu0 %v6869
    %11591 = vmatpush.bf16.msra.mxu0 %v6849
    %11592 = vmatpush.bf16.msra.mxu0 %v6829
    %11593 = vmatpush.bf16.msra.mxu0 %v6809
    %11594 = vmatpush.bf16.msra.mxu0 %v6789
    %11595 = vmatpush.bf16.msra.mxu0 %v6769
    %11596 = vmatpush.bf16.msra.mxu0 %v6749
    %11597 = vmatpush.bf16.msra.mxu0 %v6729
    %11598 = vmatmul.bf16.gmra.mxu0 %v1737
    %v11599 = vpop.f32.mrf.mxu0
    %v11600 = vadd.f32 %v11586, %v11599
    %v11601 = vpop.f32.mrf.mxu0
    %v11602 = vadd.f32 %v11588, %v11601
    %11603 = vdwg.mxu0
    %11604 = vmatpush.bf16.msra.mxu0 %v7029
    %11605 = vmatpush.bf16.msra.mxu0 %v7009
    %11606 = vmatpush.bf16.msra.mxu0 %v6989
    %11607 = vmatpush.bf16.msra.mxu0 %v6969
    %11608 = vmatpush.bf16.msra.mxu0 %v6949
    %11609 = vmatpush.bf16.msra.mxu0 %v6929
    %11610 = vmatpush.bf16.msra.mxu0 %v6909
    %11611 = vmatpush.bf16.msra.mxu0 %v6889
    %11612 = vmatmul.bf16.gmra.mxu0 %v1738
    %v11613 = vpop.f32.mrf.mxu0
    %v11614 = vadd.f32 %v11600, %v11613
    %v11615 = vpop.f32.mrf.mxu0
    %v11616 = vadd.f32 %v11602, %v11615
    %11617 = vdwg.mxu0
    %11618 = vmatpush.bf16.msra.mxu0 %v7189
    %11619 = vmatpush.bf16.msra.mxu0 %v7169
    %11620 = vmatpush.bf16.msra.mxu0 %v7149
    %11621 = vmatpush.bf16.msra.mxu0 %v7129
    %11622 = vmatpush.bf16.msra.mxu0 %v7109
    %11623 = vmatpush.bf16.msra.mxu0 %v7089
    %11624 = vmatpush.bf16.msra.mxu0 %v7069
    %11625 = vmatpush.bf16.msra.mxu0 %v7049
    %11626 = vmatmul.bf16.gmra.mxu0 %v1739
    %v11627 = vpop.f32.mrf.mxu0
    %v11628 = vadd.f32 %v11614, %v11627
    %v11629 = vpop.f32.mrf.mxu0
    %v11630 = vadd.f32 %v11616, %v11629
    %11631 = vdwg.mxu0
    %11632 = vmatpush.bf16.msra.mxu0 %v7349
    %11633 = vmatpush.bf16.msra.mxu0 %v7329
    %11634 = vmatpush.bf16.msra.mxu0 %v7309
    %11635 = vmatpush.bf16.msra.mxu0 %v7289
    %11636 = vmatpush.bf16.msra.mxu0 %v7269
    %11637 = vmatpush.bf16.msra.mxu0 %v7249
    %11638 = vmatpush.bf16.msra.mxu0 %v7229
    %11639 = vmatpush.bf16.msra.mxu0 %v7209
    %11640 = vmatmul.bf16.gmra.mxu0 %v1740
    %v11641 = vpop.f32.mrf.mxu0
    %v11642 = vadd.f32 %v11628, %v11641
    %v11643 = vpop.f32.mrf.mxu0
    %v11644 = vadd.f32 %v11630, %v11643
    %11645 = vdwg.mxu0
    %11646 = vmatpush.bf16.msra.mxu0 %v7509
    %11647 = vmatpush.bf16.msra.mxu0 %v7489
    %11648 = vmatpush.bf16.msra.mxu0 %v7469
    %11649 = vmatpush.bf16.msra.mxu0 %v7449
    %11650 = vmatpush.bf16.msra.mxu0 %v7429
    %11651 = vmatpush.bf16.msra.mxu0 %v7409
    %11652 = vmatpush.bf16.msra.mxu0 %v7389
    %11653 = vmatpush.bf16.msra.mxu0 %v7369
    %11654 = vmatmul.bf16.gmra.mxu0 %v1741
    %v11655 = vpop.f32.mrf.mxu0
    %v11656 = vadd.f32 %v11642, %v11655
    %v11657 = vpop.f32.mrf.mxu0
    %v11658 = vadd.f32 %v11644, %v11657
    %11659 = vdwg.mxu0
    %11660 = vmatpush.bf16.msra.mxu0 %v7669
    %11661 = vmatpush.bf16.msra.mxu0 %v7649
    %11662 = vmatpush.bf16.msra.mxu0 %v7629
    %11663 = vmatpush.bf16.msra.mxu0 %v7609
    %11664 = vmatpush.bf16.msra.mxu0 %v7589
    %11665 = vmatpush.bf16.msra.mxu0 %v7569
    %11666 = vmatpush.bf16.msra.mxu0 %v7549
    %11667 = vmatpush.bf16.msra.mxu0 %v7529
    %11668 = vmatmul.bf16.gmra.mxu0 %v1742
    %v11669 = vpop.f32.mrf.mxu0
    %v11670 = vadd.f32 %v11656, %v11669
    %v11671 = vpop.f32.mrf.mxu0
    %v11672 = vadd.f32 %v11658, %v11671
    %11673 = vdwg.mxu0
    %11674 = vmatpush.bf16.msra.mxu0 %v7829
    %11675 = vmatpush.bf16.msra.mxu0 %v7809
    %11676 = vmatpush.bf16.msra.mxu0 %v7789
    %11677 = vmatpush.bf16.msra.mxu0 %v7769
    %11678 = vmatpush.bf16.msra.mxu0 %v7749
    %11679 = vmatpush.bf16.msra.mxu0 %v7729
    %11680 = vmatpush.bf16.msra.mxu0 %v7709
    %11681 = vmatpush.bf16.msra.mxu0 %v7689
    %11682 = vmatmul.bf16.gmra.mxu0 %v1743
    %v11683 = vpop.f32.mrf.mxu0
    %v11684 = vadd.f32 %v11670, %v11683
    %v11685 = vpop.f32.mrf.mxu0
    %v11686 = vadd.f32 %v11672, %v11685
    %11687 = vdwg.mxu0
    %11688 = vmatpush.bf16.msra.mxu0 %v7989
    %11689 = vmatpush.bf16.msra.mxu0 %v7969
    %11690 = vmatpush.bf16.msra.mxu0 %v7949
    %11691 = vmatpush.bf16.msra.mxu0 %v7929
    %11692 = vmatpush.bf16.msra.mxu0 %v7909
    %11693 = vmatpush.bf16.msra.mxu0 %v7889
    %11694 = vmatpush.bf16.msra.mxu0 %v7869
    %11695 = vmatpush.bf16.msra.mxu0 %v7849
    %11696 = vmatmul.bf16.gmra.mxu0 %v1744
    %v11697 = vpop.f32.mrf.mxu0
    %v11698 = vadd.f32 %v11684, %v11697
    %v11699 = vpop.f32.mrf.mxu0
    %v11700 = vadd.f32 %v11686, %v11699
    %11701 = vdwg.mxu0
    %11702 = vmatpush.bf16.msra.mxu0 %v8149
    %11703 = vmatpush.bf16.msra.mxu0 %v8129
    %11704 = vmatpush.bf16.msra.mxu0 %v8109
    %11705 = vmatpush.bf16.msra.mxu0 %v8089
    %11706 = vmatpush.bf16.msra.mxu0 %v8069
    %11707 = vmatpush.bf16.msra.mxu0 %v8049
    %11708 = vmatpush.bf16.msra.mxu0 %v8029
    %11709 = vmatpush.bf16.msra.mxu0 %v8009
    %11710 = vmatmul.bf16.gmra.mxu0 %v1745
    %v11711 = vpop.f32.mrf.mxu0
    %v11712 = vadd.f32 %v11698, %v11711
    %v11713 = vpop.f32.mrf.mxu0
    %v11714 = vadd.f32 %v11700, %v11713
    %11715 = vdwg.mxu0
    %11716 = vmatpush.bf16.msra.mxu0 %v6710
    %11717 = vmatpush.bf16.msra.mxu0 %v6690
    %11718 = vmatpush.bf16.msra.mxu0 %v6670
    %11719 = vmatpush.bf16.msra.mxu0 %v6650
    %11720 = vmatpush.bf16.msra.mxu0 %v6630
    %11721 = vmatpush.bf16.msra.mxu0 %v6610
    %11722 = vmatpush.bf16.msra.mxu0 %v6590
    %11723 = vmatpush.bf16.msra.mxu0 %v6570
    %11724 = vmatmul.bf16.gmra.mxu0 %v1736
    %v11725 = vpop.f32.mrf.mxu0
    %v11726 = vadd.f32 %v1680, %v11725
    %v11727 = vpop.f32.mrf.mxu0
    %v11728 = vadd.f32 %v1680, %v11727
    %11729 = vdwg.mxu0
    %11730 = vmatpush.bf16.msra.mxu0 %v6870
    %11731 = vmatpush.bf16.msra.mxu0 %v6850
    %11732 = vmatpush.bf16.msra.mxu0 %v6830
    %11733 = vmatpush.bf16.msra.mxu0 %v6810
    %11734 = vmatpush.bf16.msra.mxu0 %v6790
    %11735 = vmatpush.bf16.msra.mxu0 %v6770
    %11736 = vmatpush.bf16.msra.mxu0 %v6750
    %11737 = vmatpush.bf16.msra.mxu0 %v6730
    %11738 = vmatmul.bf16.gmra.mxu0 %v1737
    %v11739 = vpop.f32.mrf.mxu0
    %v11740 = vadd.f32 %v11726, %v11739
    %v11741 = vpop.f32.mrf.mxu0
    %v11742 = vadd.f32 %v11728, %v11741
    %11743 = vdwg.mxu0
    %11744 = vmatpush.bf16.msra.mxu0 %v7030
    %11745 = vmatpush.bf16.msra.mxu0 %v7010
    %11746 = vmatpush.bf16.msra.mxu0 %v6990
    %11747 = vmatpush.bf16.msra.mxu0 %v6970
    %11748 = vmatpush.bf16.msra.mxu0 %v6950
    %11749 = vmatpush.bf16.msra.mxu0 %v6930
    %11750 = vmatpush.bf16.msra.mxu0 %v6910
    %11751 = vmatpush.bf16.msra.mxu0 %v6890
    %11752 = vmatmul.bf16.gmra.mxu0 %v1738
    %v11753 = vpop.f32.mrf.mxu0
    %v11754 = vadd.f32 %v11740, %v11753
    %v11755 = vpop.f32.mrf.mxu0
    %v11756 = vadd.f32 %v11742, %v11755
    %11757 = vdwg.mxu0
    %11758 = vmatpush.bf16.msra.mxu0 %v7190
    %11759 = vmatpush.bf16.msra.mxu0 %v7170
    %11760 = vmatpush.bf16.msra.mxu0 %v7150
    %11761 = vmatpush.bf16.msra.mxu0 %v7130
    %11762 = vmatpush.bf16.msra.mxu0 %v7110
    %11763 = vmatpush.bf16.msra.mxu0 %v7090
    %11764 = vmatpush.bf16.msra.mxu0 %v7070
    %11765 = vmatpush.bf16.msra.mxu0 %v7050
    %11766 = vmatmul.bf16.gmra.mxu0 %v1739
    %v11767 = vpop.f32.mrf.mxu0
    %v11768 = vadd.f32 %v11754, %v11767
    %v11769 = vpop.f32.mrf.mxu0
    %v11770 = vadd.f32 %v11756, %v11769
    %11771 = vdwg.mxu0
    %11772 = vmatpush.bf16.msra.mxu0 %v7350
    %11773 = vmatpush.bf16.msra.mxu0 %v7330
    %11774 = vmatpush.bf16.msra.mxu0 %v7310
    %11775 = vmatpush.bf16.msra.mxu0 %v7290
    %11776 = vmatpush.bf16.msra.mxu0 %v7270
    %11777 = vmatpush.bf16.msra.mxu0 %v7250
    %11778 = vmatpush.bf16.msra.mxu0 %v7230
    %11779 = vmatpush.bf16.msra.mxu0 %v7210
    %11780 = vmatmul.bf16.gmra.mxu0 %v1740
    %v11781 = vpop.f32.mrf.mxu0
    %v11782 = vadd.f32 %v11768, %v11781
    %v11783 = vpop.f32.mrf.mxu0
    %v11784 = vadd.f32 %v11770, %v11783
    %11785 = vdwg.mxu0
    %11786 = vmatpush.bf16.msra.mxu0 %v7510
    %11787 = vmatpush.bf16.msra.mxu0 %v7490
    %11788 = vmatpush.bf16.msra.mxu0 %v7470
    %11789 = vmatpush.bf16.msra.mxu0 %v7450
    %11790 = vmatpush.bf16.msra.mxu0 %v7430
    %11791 = vmatpush.bf16.msra.mxu0 %v7410
    %11792 = vmatpush.bf16.msra.mxu0 %v7390
    %11793 = vmatpush.bf16.msra.mxu0 %v7370
    %11794 = vmatmul.bf16.gmra.mxu0 %v1741
    %v11795 = vpop.f32.mrf.mxu0
    %v11796 = vadd.f32 %v11782, %v11795
    %v11797 = vpop.f32.mrf.mxu0
    %v11798 = vadd.f32 %v11784, %v11797
    %11799 = vdwg.mxu0
    %11800 = vmatpush.bf16.msra.mxu0 %v7670
    %11801 = vmatpush.bf16.msra.mxu0 %v7650
    %11802 = vmatpush.bf16.msra.mxu0 %v7630
    %11803 = vmatpush.bf16.msra.mxu0 %v7610
    %11804 = vmatpush.bf16.msra.mxu0 %v7590
    %11805 = vmatpush.bf16.msra.mxu0 %v7570
    %11806 = vmatpush.bf16.msra.mxu0 %v7550
    %11807 = vmatpush.bf16.msra.mxu0 %v7530
    %11808 = vmatmul.bf16.gmra.mxu0 %v1742
    %v11809 = vpop.f32.mrf.mxu0
    %v11810 = vadd.f32 %v11796, %v11809
    %v11811 = vpop.f32.mrf.mxu0
    %v11812 = vadd.f32 %v11798, %v11811
    %11813 = vdwg.mxu0
    %11814 = vmatpush.bf16.msra.mxu0 %v7830
    %11815 = vmatpush.bf16.msra.mxu0 %v7810
    %11816 = vmatpush.bf16.msra.mxu0 %v7790
    %11817 = vmatpush.bf16.msra.mxu0 %v7770
    %11818 = vmatpush.bf16.msra.mxu0 %v7750
    %11819 = vmatpush.bf16.msra.mxu0 %v7730
    %11820 = vmatpush.bf16.msra.mxu0 %v7710
    %11821 = vmatpush.bf16.msra.mxu0 %v7690
    %11822 = vmatmul.bf16.gmra.mxu0 %v1743
    %v11823 = vpop.f32.mrf.mxu0
    %v11824 = vadd.f32 %v11810, %v11823
    %v11825 = vpop.f32.mrf.mxu0
    %v11826 = vadd.f32 %v11812, %v11825
    %11827 = vdwg.mxu0
    %11828 = vmatpush.bf16.msra.mxu0 %v7990
    %11829 = vmatpush.bf16.msra.mxu0 %v7970
    %11830 = vmatpush.bf16.msra.mxu0 %v7950
    %11831 = vmatpush.bf16.msra.mxu0 %v7930
    %11832 = vmatpush.bf16.msra.mxu0 %v7910
    %11833 = vmatpush.bf16.msra.mxu0 %v7890
    %11834 = vmatpush.bf16.msra.mxu0 %v7870
    %11835 = vmatpush.bf16.msra.mxu0 %v7850
    %11836 = vmatmul.bf16.gmra.mxu0 %v1744
    %v11837 = vpop.f32.mrf.mxu0
    %v11838 = vadd.f32 %v11824, %v11837
    %v11839 = vpop.f32.mrf.mxu0
    %v11840 = vadd.f32 %v11826, %v11839
    %11841 = vdwg.mxu0
    %11842 = vmatpush.bf16.msra.mxu0 %v8150
    %11843 = vmatpush.bf16.msra.mxu0 %v8130
    %11844 = vmatpush.bf16.msra.mxu0 %v8110
    %11845 = vmatpush.bf16.msra.mxu0 %v8090
    %11846 = vmatpush.bf16.msra.mxu0 %v8070
    %11847 = vmatpush.bf16.msra.mxu0 %v8050
    %11848 = vmatpush.bf16.msra.mxu0 %v8030
    %11849 = vmatpush.bf16.msra.mxu0 %v8010
    %11850 = vmatmul.bf16.gmra.mxu0 %v1745
    %v11851 = vpop.f32.mrf.mxu0
    %v11852 = vadd.f32 %v11838, %v11851
    %v11853 = vpop.f32.mrf.mxu0
    %v11854 = vadd.f32 %v11840, %v11853
    %11855 = vdwg.mxu0
    %11856 = vmatpush.bf16.msra.mxu0 %v6711
    %11857 = vmatpush.bf16.msra.mxu0 %v6691
    %11858 = vmatpush.bf16.msra.mxu0 %v6671
    %11859 = vmatpush.bf16.msra.mxu0 %v6651
    %11860 = vmatpush.bf16.msra.mxu0 %v6631
    %11861 = vmatpush.bf16.msra.mxu0 %v6611
    %11862 = vmatpush.bf16.msra.mxu0 %v6591
    %11863 = vmatpush.bf16.msra.mxu0 %v6571
    %11864 = vmatmul.bf16.gmra.mxu0 %v1736
    %v11865 = vpop.f32.mrf.mxu0
    %v11866 = vadd.f32 %v1681, %v11865
    %v11867 = vpop.f32.mrf.mxu0
    %v11868 = vadd.f32 %v1681, %v11867
    %11869 = vdwg.mxu0
    %11870 = vmatpush.bf16.msra.mxu0 %v6871
    %11871 = vmatpush.bf16.msra.mxu0 %v6851
    %11872 = vmatpush.bf16.msra.mxu0 %v6831
    %11873 = vmatpush.bf16.msra.mxu0 %v6811
    %11874 = vmatpush.bf16.msra.mxu0 %v6791
    %11875 = vmatpush.bf16.msra.mxu0 %v6771
    %11876 = vmatpush.bf16.msra.mxu0 %v6751
    %11877 = vmatpush.bf16.msra.mxu0 %v6731
    %11878 = vmatmul.bf16.gmra.mxu0 %v1737
    %v11879 = vpop.f32.mrf.mxu0
    %v11880 = vadd.f32 %v11866, %v11879
    %v11881 = vpop.f32.mrf.mxu0
    %v11882 = vadd.f32 %v11868, %v11881
    %11883 = vdwg.mxu0
    %11884 = vmatpush.bf16.msra.mxu0 %v7031
    %11885 = vmatpush.bf16.msra.mxu0 %v7011
    %11886 = vmatpush.bf16.msra.mxu0 %v6991
    %11887 = vmatpush.bf16.msra.mxu0 %v6971
    %11888 = vmatpush.bf16.msra.mxu0 %v6951
    %11889 = vmatpush.bf16.msra.mxu0 %v6931
    %11890 = vmatpush.bf16.msra.mxu0 %v6911
    %11891 = vmatpush.bf16.msra.mxu0 %v6891
    %11892 = vmatmul.bf16.gmra.mxu0 %v1738
    %v11893 = vpop.f32.mrf.mxu0
    %v11894 = vadd.f32 %v11880, %v11893
    %v11895 = vpop.f32.mrf.mxu0
    %v11896 = vadd.f32 %v11882, %v11895
    %11897 = vdwg.mxu0
    %11898 = vmatpush.bf16.msra.mxu0 %v7191
    %11899 = vmatpush.bf16.msra.mxu0 %v7171
    %11900 = vmatpush.bf16.msra.mxu0 %v7151
    %11901 = vmatpush.bf16.msra.mxu0 %v7131
    %11902 = vmatpush.bf16.msra.mxu0 %v7111
    %11903 = vmatpush.bf16.msra.mxu0 %v7091
    %11904 = vmatpush.bf16.msra.mxu0 %v7071
    %11905 = vmatpush.bf16.msra.mxu0 %v7051
    %11906 = vmatmul.bf16.gmra.mxu0 %v1739
    %v11907 = vpop.f32.mrf.mxu0
    %v11908 = vadd.f32 %v11894, %v11907
    %v11909 = vpop.f32.mrf.mxu0
    %v11910 = vadd.f32 %v11896, %v11909
    %11911 = vdwg.mxu0
    %11912 = vmatpush.bf16.msra.mxu0 %v7351
    %11913 = vmatpush.bf16.msra.mxu0 %v7331
    %11914 = vmatpush.bf16.msra.mxu0 %v7311
    %11915 = vmatpush.bf16.msra.mxu0 %v7291
    %11916 = vmatpush.bf16.msra.mxu0 %v7271
    %11917 = vmatpush.bf16.msra.mxu0 %v7251
    %11918 = vmatpush.bf16.msra.mxu0 %v7231
    %11919 = vmatpush.bf16.msra.mxu0 %v7211
    %11920 = vmatmul.bf16.gmra.mxu0 %v1740
    %v11921 = vpop.f32.mrf.mxu0
    %v11922 = vadd.f32 %v11908, %v11921
    %v11923 = vpop.f32.mrf.mxu0
    %v11924 = vadd.f32 %v11910, %v11923
    %11925 = vdwg.mxu0
    %11926 = vmatpush.bf16.msra.mxu0 %v7511
    %11927 = vmatpush.bf16.msra.mxu0 %v7491
    %11928 = vmatpush.bf16.msra.mxu0 %v7471
    %11929 = vmatpush.bf16.msra.mxu0 %v7451
    %11930 = vmatpush.bf16.msra.mxu0 %v7431
    %11931 = vmatpush.bf16.msra.mxu0 %v7411
    %11932 = vmatpush.bf16.msra.mxu0 %v7391
    %11933 = vmatpush.bf16.msra.mxu0 %v7371
    %11934 = vmatmul.bf16.gmra.mxu0 %v1741
    %v11935 = vpop.f32.mrf.mxu0
    %v11936 = vadd.f32 %v11922, %v11935
    %v11937 = vpop.f32.mrf.mxu0
    %v11938 = vadd.f32 %v11924, %v11937
    %11939 = vdwg.mxu0
    %11940 = vmatpush.bf16.msra.mxu0 %v7671
    %11941 = vmatpush.bf16.msra.mxu0 %v7651
    %11942 = vmatpush.bf16.msra.mxu0 %v7631
    %11943 = vmatpush.bf16.msra.mxu0 %v7611
    %11944 = vmatpush.bf16.msra.mxu0 %v7591
    %11945 = vmatpush.bf16.msra.mxu0 %v7571
    %11946 = vmatpush.bf16.msra.mxu0 %v7551
    %11947 = vmatpush.bf16.msra.mxu0 %v7531
    %11948 = vmatmul.bf16.gmra.mxu0 %v1742
    %v11949 = vpop.f32.mrf.mxu0
    %v11950 = vadd.f32 %v11936, %v11949
    %v11951 = vpop.f32.mrf.mxu0
    %v11952 = vadd.f32 %v11938, %v11951
    %11953 = vdwg.mxu0
    %11954 = vmatpush.bf16.msra.mxu0 %v7831
    %11955 = vmatpush.bf16.msra.mxu0 %v7811
    %11956 = vmatpush.bf16.msra.mxu0 %v7791
    %11957 = vmatpush.bf16.msra.mxu0 %v7771
    %11958 = vmatpush.bf16.msra.mxu0 %v7751
    %11959 = vmatpush.bf16.msra.mxu0 %v7731
    %11960 = vmatpush.bf16.msra.mxu0 %v7711
    %11961 = vmatpush.bf16.msra.mxu0 %v7691
    %11962 = vmatmul.bf16.gmra.mxu0 %v1743
    %v11963 = vpop.f32.mrf.mxu0
    %v11964 = vadd.f32 %v11950, %v11963
    %v11965 = vpop.f32.mrf.mxu0
    %v11966 = vadd.f32 %v11952, %v11965
    %11967 = vdwg.mxu0
    %11968 = vmatpush.bf16.msra.mxu0 %v7991
    %11969 = vmatpush.bf16.msra.mxu0 %v7971
    %11970 = vmatpush.bf16.msra.mxu0 %v7951
    %11971 = vmatpush.bf16.msra.mxu0 %v7931
    %11972 = vmatpush.bf16.msra.mxu0 %v7911
    %11973 = vmatpush.bf16.msra.mxu0 %v7891
    %11974 = vmatpush.bf16.msra.mxu0 %v7871
    %11975 = vmatpush.bf16.msra.mxu0 %v7851
    %11976 = vmatmul.bf16.gmra.mxu0 %v1744
    %v11977 = vpop.f32.mrf.mxu0
    %v11978 = vadd.f32 %v11964, %v11977
    %v11979 = vpop.f32.mrf.mxu0
    %v11980 = vadd.f32 %v11966, %v11979
    %11981 = vdwg.mxu0
    %11982 = vmatpush.bf16.msra.mxu0 %v8151
    %11983 = vmatpush.bf16.msra.mxu0 %v8131
    %11984 = vmatpush.bf16.msra.mxu0 %v8111
    %11985 = vmatpush.bf16.msra.mxu0 %v8091
    %11986 = vmatpush.bf16.msra.mxu0 %v8071
    %11987 = vmatpush.bf16.msra.mxu0 %v8051
    %11988 = vmatpush.bf16.msra.mxu0 %v8031
    %11989 = vmatpush.bf16.msra.mxu0 %v8011
    %11990 = vmatmul.bf16.gmra.mxu0 %v1745
    %v11991 = vpop.f32.mrf.mxu0
    %v11992 = vadd.f32 %v11978, %v11991
    %v11993 = vpop.f32.mrf.mxu0
    %v11994 = vadd.f32 %v11980, %v11993
    %11995 = vdwg.mxu0
    %11996 = vmatpush.bf16.msra.mxu0 %v6712
    %11997 = vmatpush.bf16.msra.mxu0 %v6692
    %11998 = vmatpush.bf16.msra.mxu0 %v6672
    %11999 = vmatpush.bf16.msra.mxu0 %v6652
    %12000 = vmatpush.bf16.msra.mxu0 %v6632
    %12001 = vmatpush.bf16.msra.mxu0 %v6612
    %12002 = vmatpush.bf16.msra.mxu0 %v6592
    %12003 = vmatpush.bf16.msra.mxu0 %v6572
    %12004 = vmatmul.bf16.gmra.mxu0 %v1736
    %v12005 = vpop.f32.mrf.mxu0
    %v12006 = vadd.f32 %v1682, %v12005
    %v12007 = vpop.f32.mrf.mxu0
    %v12008 = vadd.f32 %v1682, %v12007
    %12009 = vdwg.mxu0
    %12010 = vmatpush.bf16.msra.mxu0 %v6872
    %12011 = vmatpush.bf16.msra.mxu0 %v6852
    %12012 = vmatpush.bf16.msra.mxu0 %v6832
    %12013 = vmatpush.bf16.msra.mxu0 %v6812
    %12014 = vmatpush.bf16.msra.mxu0 %v6792
    %12015 = vmatpush.bf16.msra.mxu0 %v6772
    %12016 = vmatpush.bf16.msra.mxu0 %v6752
    %12017 = vmatpush.bf16.msra.mxu0 %v6732
    %12018 = vmatmul.bf16.gmra.mxu0 %v1737
    %v12019 = vpop.f32.mrf.mxu0
    %v12020 = vadd.f32 %v12006, %v12019
    %v12021 = vpop.f32.mrf.mxu0
    %v12022 = vadd.f32 %v12008, %v12021
    %12023 = vdwg.mxu0
    %12024 = vmatpush.bf16.msra.mxu0 %v7032
    %12025 = vmatpush.bf16.msra.mxu0 %v7012
    %12026 = vmatpush.bf16.msra.mxu0 %v6992
    %12027 = vmatpush.bf16.msra.mxu0 %v6972
    %12028 = vmatpush.bf16.msra.mxu0 %v6952
    %12029 = vmatpush.bf16.msra.mxu0 %v6932
    %12030 = vmatpush.bf16.msra.mxu0 %v6912
    %12031 = vmatpush.bf16.msra.mxu0 %v6892
    %12032 = vmatmul.bf16.gmra.mxu0 %v1738
    %v12033 = vpop.f32.mrf.mxu0
    %v12034 = vadd.f32 %v12020, %v12033
    %v12035 = vpop.f32.mrf.mxu0
    %v12036 = vadd.f32 %v12022, %v12035
    %12037 = vdwg.mxu0
    %12038 = vmatpush.bf16.msra.mxu0 %v7192
    %12039 = vmatpush.bf16.msra.mxu0 %v7172
    %12040 = vmatpush.bf16.msra.mxu0 %v7152
    %12041 = vmatpush.bf16.msra.mxu0 %v7132
    %12042 = vmatpush.bf16.msra.mxu0 %v7112
    %12043 = vmatpush.bf16.msra.mxu0 %v7092
    %12044 = vmatpush.bf16.msra.mxu0 %v7072
    %12045 = vmatpush.bf16.msra.mxu0 %v7052
    %12046 = vmatmul.bf16.gmra.mxu0 %v1739
    %v12047 = vpop.f32.mrf.mxu0
    %v12048 = vadd.f32 %v12034, %v12047
    %v12049 = vpop.f32.mrf.mxu0
    %v12050 = vadd.f32 %v12036, %v12049
    %12051 = vdwg.mxu0
    %12052 = vmatpush.bf16.msra.mxu0 %v7352
    %12053 = vmatpush.bf16.msra.mxu0 %v7332
    %12054 = vmatpush.bf16.msra.mxu0 %v7312
    %12055 = vmatpush.bf16.msra.mxu0 %v7292
    %12056 = vmatpush.bf16.msra.mxu0 %v7272
    %12057 = vmatpush.bf16.msra.mxu0 %v7252
    %12058 = vmatpush.bf16.msra.mxu0 %v7232
    %12059 = vmatpush.bf16.msra.mxu0 %v7212
    %12060 = vmatmul.bf16.gmra.mxu0 %v1740
    %v12061 = vpop.f32.mrf.mxu0
    %v12062 = vadd.f32 %v12048, %v12061
    %v12063 = vpop.f32.mrf.mxu0
    %v12064 = vadd.f32 %v12050, %v12063
    %12065 = vdwg.mxu0
    %12066 = vmatpush.bf16.msra.mxu0 %v7512
    %12067 = vmatpush.bf16.msra.mxu0 %v7492
    %12068 = vmatpush.bf16.msra.mxu0 %v7472
    %12069 = vmatpush.bf16.msra.mxu0 %v7452
    %12070 = vmatpush.bf16.msra.mxu0 %v7432
    %12071 = vmatpush.bf16.msra.mxu0 %v7412
    %12072 = vmatpush.bf16.msra.mxu0 %v7392
    %12073 = vmatpush.bf16.msra.mxu0 %v7372
    %12074 = vmatmul.bf16.gmra.mxu0 %v1741
    %v12075 = vpop.f32.mrf.mxu0
    %v12076 = vadd.f32 %v12062, %v12075
    %v12077 = vpop.f32.mrf.mxu0
    %v12078 = vadd.f32 %v12064, %v12077
    %12079 = vdwg.mxu0
    %12080 = vmatpush.bf16.msra.mxu0 %v7672
    %12081 = vmatpush.bf16.msra.mxu0 %v7652
    %12082 = vmatpush.bf16.msra.mxu0 %v7632
    %12083 = vmatpush.bf16.msra.mxu0 %v7612
    %12084 = vmatpush.bf16.msra.mxu0 %v7592
    %12085 = vmatpush.bf16.msra.mxu0 %v7572
    %12086 = vmatpush.bf16.msra.mxu0 %v7552
    %12087 = vmatpush.bf16.msra.mxu0 %v7532
    %12088 = vmatmul.bf16.gmra.mxu0 %v1742
    %v12089 = vpop.f32.mrf.mxu0
    %v12090 = vadd.f32 %v12076, %v12089
    %v12091 = vpop.f32.mrf.mxu0
    %v12092 = vadd.f32 %v12078, %v12091
    %12093 = vdwg.mxu0
    %12094 = vmatpush.bf16.msra.mxu0 %v7832
    %12095 = vmatpush.bf16.msra.mxu0 %v7812
    %12096 = vmatpush.bf16.msra.mxu0 %v7792
    %12097 = vmatpush.bf16.msra.mxu0 %v7772
    %12098 = vmatpush.bf16.msra.mxu0 %v7752
    %12099 = vmatpush.bf16.msra.mxu0 %v7732
    %12100 = vmatpush.bf16.msra.mxu0 %v7712
    %12101 = vmatpush.bf16.msra.mxu0 %v7692
    %12102 = vmatmul.bf16.gmra.mxu0 %v1743
    %v12103 = vpop.f32.mrf.mxu0
    %v12104 = vadd.f32 %v12090, %v12103
    %v12105 = vpop.f32.mrf.mxu0
    %v12106 = vadd.f32 %v12092, %v12105
    %12107 = vdwg.mxu0
    %12108 = vmatpush.bf16.msra.mxu0 %v7992
    %12109 = vmatpush.bf16.msra.mxu0 %v7972
    %12110 = vmatpush.bf16.msra.mxu0 %v7952
    %12111 = vmatpush.bf16.msra.mxu0 %v7932
    %12112 = vmatpush.bf16.msra.mxu0 %v7912
    %12113 = vmatpush.bf16.msra.mxu0 %v7892
    %12114 = vmatpush.bf16.msra.mxu0 %v7872
    %12115 = vmatpush.bf16.msra.mxu0 %v7852
    %12116 = vmatmul.bf16.gmra.mxu0 %v1744
    %v12117 = vpop.f32.mrf.mxu0
    %v12118 = vadd.f32 %v12104, %v12117
    %v12119 = vpop.f32.mrf.mxu0
    %v12120 = vadd.f32 %v12106, %v12119
    %12121 = vdwg.mxu0
    %12122 = vmatpush.bf16.msra.mxu0 %v8152
    %12123 = vmatpush.bf16.msra.mxu0 %v8132
    %12124 = vmatpush.bf16.msra.mxu0 %v8112
    %12125 = vmatpush.bf16.msra.mxu0 %v8092
    %12126 = vmatpush.bf16.msra.mxu0 %v8072
    %12127 = vmatpush.bf16.msra.mxu0 %v8052
    %12128 = vmatpush.bf16.msra.mxu0 %v8032
    %12129 = vmatpush.bf16.msra.mxu0 %v8012
    %12130 = vmatmul.bf16.gmra.mxu0 %v1745
    %v12131 = vpop.f32.mrf.mxu0
    %v12132 = vadd.f32 %v12118, %v12131
    %v12133 = vpop.f32.mrf.mxu0
    %v12134 = vadd.f32 %v12120, %v12133
    %12135 = vdwg.mxu0
    %12136 = vmatpush.bf16.msra.mxu0 %v6713
    %12137 = vmatpush.bf16.msra.mxu0 %v6693
    %12138 = vmatpush.bf16.msra.mxu0 %v6673
    %12139 = vmatpush.bf16.msra.mxu0 %v6653
    %12140 = vmatpush.bf16.msra.mxu0 %v6633
    %12141 = vmatpush.bf16.msra.mxu0 %v6613
    %12142 = vmatpush.bf16.msra.mxu0 %v6593
    %12143 = vmatpush.bf16.msra.mxu0 %v6573
    %12144 = vmatmul.bf16.gmra.mxu0 %v1736
    %v12145 = vpop.f32.mrf.mxu0
    %v12146 = vadd.f32 %v1683, %v12145
    %v12147 = vpop.f32.mrf.mxu0
    %v12148 = vadd.f32 %v1683, %v12147
    %12149 = vdwg.mxu0
    %12150 = vmatpush.bf16.msra.mxu0 %v6873
    %12151 = vmatpush.bf16.msra.mxu0 %v6853
    %12152 = vmatpush.bf16.msra.mxu0 %v6833
    %12153 = vmatpush.bf16.msra.mxu0 %v6813
    %12154 = vmatpush.bf16.msra.mxu0 %v6793
    %12155 = vmatpush.bf16.msra.mxu0 %v6773
    %12156 = vmatpush.bf16.msra.mxu0 %v6753
    %12157 = vmatpush.bf16.msra.mxu0 %v6733
    %12158 = vmatmul.bf16.gmra.mxu0 %v1737
    %v12159 = vpop.f32.mrf.mxu0
    %v12160 = vadd.f32 %v12146, %v12159
    %v12161 = vpop.f32.mrf.mxu0
    %v12162 = vadd.f32 %v12148, %v12161
    %12163 = vdwg.mxu0
    %12164 = vmatpush.bf16.msra.mxu0 %v7033
    %12165 = vmatpush.bf16.msra.mxu0 %v7013
    %12166 = vmatpush.bf16.msra.mxu0 %v6993
    %12167 = vmatpush.bf16.msra.mxu0 %v6973
    %12168 = vmatpush.bf16.msra.mxu0 %v6953
    %12169 = vmatpush.bf16.msra.mxu0 %v6933
    %12170 = vmatpush.bf16.msra.mxu0 %v6913
    %12171 = vmatpush.bf16.msra.mxu0 %v6893
    %12172 = vmatmul.bf16.gmra.mxu0 %v1738
    %v12173 = vpop.f32.mrf.mxu0
    %v12174 = vadd.f32 %v12160, %v12173
    %v12175 = vpop.f32.mrf.mxu0
    %v12176 = vadd.f32 %v12162, %v12175
    %12177 = vdwg.mxu0
    %12178 = vmatpush.bf16.msra.mxu0 %v7193
    %12179 = vmatpush.bf16.msra.mxu0 %v7173
    %12180 = vmatpush.bf16.msra.mxu0 %v7153
    %12181 = vmatpush.bf16.msra.mxu0 %v7133
    %12182 = vmatpush.bf16.msra.mxu0 %v7113
    %12183 = vmatpush.bf16.msra.mxu0 %v7093
    %12184 = vmatpush.bf16.msra.mxu0 %v7073
    %12185 = vmatpush.bf16.msra.mxu0 %v7053
    %12186 = vmatmul.bf16.gmra.mxu0 %v1739
    %v12187 = vpop.f32.mrf.mxu0
    %v12188 = vadd.f32 %v12174, %v12187
    %v12189 = vpop.f32.mrf.mxu0
    %v12190 = vadd.f32 %v12176, %v12189
    %12191 = vdwg.mxu0
    %12192 = vmatpush.bf16.msra.mxu0 %v7353
    %12193 = vmatpush.bf16.msra.mxu0 %v7333
    %12194 = vmatpush.bf16.msra.mxu0 %v7313
    %12195 = vmatpush.bf16.msra.mxu0 %v7293
    %12196 = vmatpush.bf16.msra.mxu0 %v7273
    %12197 = vmatpush.bf16.msra.mxu0 %v7253
    %12198 = vmatpush.bf16.msra.mxu0 %v7233
    %12199 = vmatpush.bf16.msra.mxu0 %v7213
    %12200 = vmatmul.bf16.gmra.mxu0 %v1740
    %v12201 = vpop.f32.mrf.mxu0
    %v12202 = vadd.f32 %v12188, %v12201
    %v12203 = vpop.f32.mrf.mxu0
    %v12204 = vadd.f32 %v12190, %v12203
    %12205 = vdwg.mxu0
    %12206 = vmatpush.bf16.msra.mxu0 %v7513
    %12207 = vmatpush.bf16.msra.mxu0 %v7493
    %12208 = vmatpush.bf16.msra.mxu0 %v7473
    %12209 = vmatpush.bf16.msra.mxu0 %v7453
    %12210 = vmatpush.bf16.msra.mxu0 %v7433
    %12211 = vmatpush.bf16.msra.mxu0 %v7413
    %12212 = vmatpush.bf16.msra.mxu0 %v7393
    %12213 = vmatpush.bf16.msra.mxu0 %v7373
    %12214 = vmatmul.bf16.gmra.mxu0 %v1741
    %v12215 = vpop.f32.mrf.mxu0
    %v12216 = vadd.f32 %v12202, %v12215
    %v12217 = vpop.f32.mrf.mxu0
    %v12218 = vadd.f32 %v12204, %v12217
    %12219 = vdwg.mxu0
    %12220 = vmatpush.bf16.msra.mxu0 %v7673
    %12221 = vmatpush.bf16.msra.mxu0 %v7653
    %12222 = vmatpush.bf16.msra.mxu0 %v7633
    %12223 = vmatpush.bf16.msra.mxu0 %v7613
    %12224 = vmatpush.bf16.msra.mxu0 %v7593
    %12225 = vmatpush.bf16.msra.mxu0 %v7573
    %12226 = vmatpush.bf16.msra.mxu0 %v7553
    %12227 = vmatpush.bf16.msra.mxu0 %v7533
    %12228 = vmatmul.bf16.gmra.mxu0 %v1742
    %v12229 = vpop.f32.mrf.mxu0
    %v12230 = vadd.f32 %v12216, %v12229
    %v12231 = vpop.f32.mrf.mxu0
    %v12232 = vadd.f32 %v12218, %v12231
    %12233 = vdwg.mxu0
    %12234 = vmatpush.bf16.msra.mxu0 %v7833
    %12235 = vmatpush.bf16.msra.mxu0 %v7813
    %12236 = vmatpush.bf16.msra.mxu0 %v7793
    %12237 = vmatpush.bf16.msra.mxu0 %v7773
    %12238 = vmatpush.bf16.msra.mxu0 %v7753
    %12239 = vmatpush.bf16.msra.mxu0 %v7733
    %12240 = vmatpush.bf16.msra.mxu0 %v7713
    %12241 = vmatpush.bf16.msra.mxu0 %v7693
    %12242 = vmatmul.bf16.gmra.mxu0 %v1743
    %v12243 = vpop.f32.mrf.mxu0
    %v12244 = vadd.f32 %v12230, %v12243
    %v12245 = vpop.f32.mrf.mxu0
    %v12246 = vadd.f32 %v12232, %v12245
    %12247 = vdwg.mxu0
    %12248 = vmatpush.bf16.msra.mxu0 %v7993
    %12249 = vmatpush.bf16.msra.mxu0 %v7973
    %12250 = vmatpush.bf16.msra.mxu0 %v7953
    %12251 = vmatpush.bf16.msra.mxu0 %v7933
    %12252 = vmatpush.bf16.msra.mxu0 %v7913
    %12253 = vmatpush.bf16.msra.mxu0 %v7893
    %12254 = vmatpush.bf16.msra.mxu0 %v7873
    %12255 = vmatpush.bf16.msra.mxu0 %v7853
    %12256 = vmatmul.bf16.gmra.mxu0 %v1744
    %v12257 = vpop.f32.mrf.mxu0
    %v12258 = vadd.f32 %v12244, %v12257
    %v12259 = vpop.f32.mrf.mxu0
    %v12260 = vadd.f32 %v12246, %v12259
    %12261 = vdwg.mxu0
    %12262 = vmatpush.bf16.msra.mxu0 %v8153
    %12263 = vmatpush.bf16.msra.mxu0 %v8133
    %12264 = vmatpush.bf16.msra.mxu0 %v8113
    %12265 = vmatpush.bf16.msra.mxu0 %v8093
    %12266 = vmatpush.bf16.msra.mxu0 %v8073
    %12267 = vmatpush.bf16.msra.mxu0 %v8053
    %12268 = vmatpush.bf16.msra.mxu0 %v8033
    %12269 = vmatpush.bf16.msra.mxu0 %v8013
    %12270 = vmatmul.bf16.gmra.mxu0 %v1745
    %v12271 = vpop.f32.mrf.mxu0
    %v12272 = vadd.f32 %v12258, %v12271
    %v12273 = vpop.f32.mrf.mxu0
    %v12274 = vadd.f32 %v12260, %v12273
    %12275 = vdwg.mxu0
    %12276 = vmatpush.bf16.msra.mxu0 %v6714
    %12277 = vmatpush.bf16.msra.mxu0 %v6694
    %12278 = vmatpush.bf16.msra.mxu0 %v6674
    %12279 = vmatpush.bf16.msra.mxu0 %v6654
    %12280 = vmatpush.bf16.msra.mxu0 %v6634
    %12281 = vmatpush.bf16.msra.mxu0 %v6614
    %12282 = vmatpush.bf16.msra.mxu0 %v6594
    %12283 = vmatpush.bf16.msra.mxu0 %v6574
    %12284 = vmatmul.bf16.gmra.mxu0 %v1736
    %v12285 = vpop.f32.mrf.mxu0
    %v12286 = vadd.f32 %v1684, %v12285
    %v12287 = vpop.f32.mrf.mxu0
    %v12288 = vadd.f32 %v1684, %v12287
    %12289 = vdwg.mxu0
    %12290 = vmatpush.bf16.msra.mxu0 %v6874
    %12291 = vmatpush.bf16.msra.mxu0 %v6854
    %12292 = vmatpush.bf16.msra.mxu0 %v6834
    %12293 = vmatpush.bf16.msra.mxu0 %v6814
    %12294 = vmatpush.bf16.msra.mxu0 %v6794
    %12295 = vmatpush.bf16.msra.mxu0 %v6774
    %12296 = vmatpush.bf16.msra.mxu0 %v6754
    %12297 = vmatpush.bf16.msra.mxu0 %v6734
    %12298 = vmatmul.bf16.gmra.mxu0 %v1737
    %v12299 = vpop.f32.mrf.mxu0
    %v12300 = vadd.f32 %v12286, %v12299
    %v12301 = vpop.f32.mrf.mxu0
    %v12302 = vadd.f32 %v12288, %v12301
    %12303 = vdwg.mxu0
    %12304 = vmatpush.bf16.msra.mxu0 %v7034
    %12305 = vmatpush.bf16.msra.mxu0 %v7014
    %12306 = vmatpush.bf16.msra.mxu0 %v6994
    %12307 = vmatpush.bf16.msra.mxu0 %v6974
    %12308 = vmatpush.bf16.msra.mxu0 %v6954
    %12309 = vmatpush.bf16.msra.mxu0 %v6934
    %12310 = vmatpush.bf16.msra.mxu0 %v6914
    %12311 = vmatpush.bf16.msra.mxu0 %v6894
    %12312 = vmatmul.bf16.gmra.mxu0 %v1738
    %v12313 = vpop.f32.mrf.mxu0
    %v12314 = vadd.f32 %v12300, %v12313
    %v12315 = vpop.f32.mrf.mxu0
    %v12316 = vadd.f32 %v12302, %v12315
    %12317 = vdwg.mxu0
    %12318 = vmatpush.bf16.msra.mxu0 %v7194
    %12319 = vmatpush.bf16.msra.mxu0 %v7174
    %12320 = vmatpush.bf16.msra.mxu0 %v7154
    %12321 = vmatpush.bf16.msra.mxu0 %v7134
    %12322 = vmatpush.bf16.msra.mxu0 %v7114
    %12323 = vmatpush.bf16.msra.mxu0 %v7094
    %12324 = vmatpush.bf16.msra.mxu0 %v7074
    %12325 = vmatpush.bf16.msra.mxu0 %v7054
    %12326 = vmatmul.bf16.gmra.mxu0 %v1739
    %v12327 = vpop.f32.mrf.mxu0
    %v12328 = vadd.f32 %v12314, %v12327
    %v12329 = vpop.f32.mrf.mxu0
    %v12330 = vadd.f32 %v12316, %v12329
    %12331 = vdwg.mxu0
    %12332 = vmatpush.bf16.msra.mxu0 %v7354
    %12333 = vmatpush.bf16.msra.mxu0 %v7334
    %12334 = vmatpush.bf16.msra.mxu0 %v7314
    %12335 = vmatpush.bf16.msra.mxu0 %v7294
    %12336 = vmatpush.bf16.msra.mxu0 %v7274
    %12337 = vmatpush.bf16.msra.mxu0 %v7254
    %12338 = vmatpush.bf16.msra.mxu0 %v7234
    %12339 = vmatpush.bf16.msra.mxu0 %v7214
    %12340 = vmatmul.bf16.gmra.mxu0 %v1740
    %v12341 = vpop.f32.mrf.mxu0
    %v12342 = vadd.f32 %v12328, %v12341
    %v12343 = vpop.f32.mrf.mxu0
    %v12344 = vadd.f32 %v12330, %v12343
    %12345 = vdwg.mxu0
    %12346 = vmatpush.bf16.msra.mxu0 %v7514
    %12347 = vmatpush.bf16.msra.mxu0 %v7494
    %12348 = vmatpush.bf16.msra.mxu0 %v7474
    %12349 = vmatpush.bf16.msra.mxu0 %v7454
    %12350 = vmatpush.bf16.msra.mxu0 %v7434
    %12351 = vmatpush.bf16.msra.mxu0 %v7414
    %12352 = vmatpush.bf16.msra.mxu0 %v7394
    %12353 = vmatpush.bf16.msra.mxu0 %v7374
    %12354 = vmatmul.bf16.gmra.mxu0 %v1741
    %v12355 = vpop.f32.mrf.mxu0
    %v12356 = vadd.f32 %v12342, %v12355
    %v12357 = vpop.f32.mrf.mxu0
    %v12358 = vadd.f32 %v12344, %v12357
    %12359 = vdwg.mxu0
    %12360 = vmatpush.bf16.msra.mxu0 %v7674
    %12361 = vmatpush.bf16.msra.mxu0 %v7654
    %12362 = vmatpush.bf16.msra.mxu0 %v7634
    %12363 = vmatpush.bf16.msra.mxu0 %v7614
    %12364 = vmatpush.bf16.msra.mxu0 %v7594
    %12365 = vmatpush.bf16.msra.mxu0 %v7574
    %12366 = vmatpush.bf16.msra.mxu0 %v7554
    %12367 = vmatpush.bf16.msra.mxu0 %v7534
    %12368 = vmatmul.bf16.gmra.mxu0 %v1742
    %v12369 = vpop.f32.mrf.mxu0
    %v12370 = vadd.f32 %v12356, %v12369
    %v12371 = vpop.f32.mrf.mxu0
    %v12372 = vadd.f32 %v12358, %v12371
    %12373 = vdwg.mxu0
    %12374 = vmatpush.bf16.msra.mxu0 %v7834
    %12375 = vmatpush.bf16.msra.mxu0 %v7814
    %12376 = vmatpush.bf16.msra.mxu0 %v7794
    %12377 = vmatpush.bf16.msra.mxu0 %v7774
    %12378 = vmatpush.bf16.msra.mxu0 %v7754
    %12379 = vmatpush.bf16.msra.mxu0 %v7734
    %12380 = vmatpush.bf16.msra.mxu0 %v7714
    %12381 = vmatpush.bf16.msra.mxu0 %v7694
    %12382 = vmatmul.bf16.gmra.mxu0 %v1743
    %v12383 = vpop.f32.mrf.mxu0
    %v12384 = vadd.f32 %v12370, %v12383
    %v12385 = vpop.f32.mrf.mxu0
    %v12386 = vadd.f32 %v12372, %v12385
    %12387 = vdwg.mxu0
    %12388 = vmatpush.bf16.msra.mxu0 %v7994
    %12389 = vmatpush.bf16.msra.mxu0 %v7974
    %12390 = vmatpush.bf16.msra.mxu0 %v7954
    %12391 = vmatpush.bf16.msra.mxu0 %v7934
    %12392 = vmatpush.bf16.msra.mxu0 %v7914
    %12393 = vmatpush.bf16.msra.mxu0 %v7894
    %12394 = vmatpush.bf16.msra.mxu0 %v7874
    %12395 = vmatpush.bf16.msra.mxu0 %v7854
    %12396 = vmatmul.bf16.gmra.mxu0 %v1744
    %v12397 = vpop.f32.mrf.mxu0
    %v12398 = vadd.f32 %v12384, %v12397
    %v12399 = vpop.f32.mrf.mxu0
    %v12400 = vadd.f32 %v12386, %v12399
    %12401 = vdwg.mxu0
    %12402 = vmatpush.bf16.msra.mxu0 %v8154
    %12403 = vmatpush.bf16.msra.mxu0 %v8134
    %12404 = vmatpush.bf16.msra.mxu0 %v8114
    %12405 = vmatpush.bf16.msra.mxu0 %v8094
    %12406 = vmatpush.bf16.msra.mxu0 %v8074
    %12407 = vmatpush.bf16.msra.mxu0 %v8054
    %12408 = vmatpush.bf16.msra.mxu0 %v8034
    %12409 = vmatpush.bf16.msra.mxu0 %v8014
    %12410 = vmatmul.bf16.gmra.mxu0 %v1745
    %v12411 = vpop.f32.mrf.mxu0
    %v12412 = vadd.f32 %v12398, %v12411
    %v12413 = vpop.f32.mrf.mxu0
    %v12414 = vadd.f32 %v12400, %v12413
    %12415 = vdwg.mxu0
    %12416 = vmatpush.bf16.msra.mxu0 %v6715
    %12417 = vmatpush.bf16.msra.mxu0 %v6695
    %12418 = vmatpush.bf16.msra.mxu0 %v6675
    %12419 = vmatpush.bf16.msra.mxu0 %v6655
    %12420 = vmatpush.bf16.msra.mxu0 %v6635
    %12421 = vmatpush.bf16.msra.mxu0 %v6615
    %12422 = vmatpush.bf16.msra.mxu0 %v6595
    %12423 = vmatpush.bf16.msra.mxu0 %v6575
    %12424 = vmatmul.bf16.gmra.mxu0 %v1736
    %v12425 = vpop.f32.mrf.mxu0
    %v12426 = vadd.f32 %v1685, %v12425
    %v12427 = vpop.f32.mrf.mxu0
    %v12428 = vadd.f32 %v1685, %v12427
    %12429 = vdwg.mxu0
    %12430 = vmatpush.bf16.msra.mxu0 %v6875
    %12431 = vmatpush.bf16.msra.mxu0 %v6855
    %12432 = vmatpush.bf16.msra.mxu0 %v6835
    %12433 = vmatpush.bf16.msra.mxu0 %v6815
    %12434 = vmatpush.bf16.msra.mxu0 %v6795
    %12435 = vmatpush.bf16.msra.mxu0 %v6775
    %12436 = vmatpush.bf16.msra.mxu0 %v6755
    %12437 = vmatpush.bf16.msra.mxu0 %v6735
    %12438 = vmatmul.bf16.gmra.mxu0 %v1737
    %v12439 = vpop.f32.mrf.mxu0
    %v12440 = vadd.f32 %v12426, %v12439
    %v12441 = vpop.f32.mrf.mxu0
    %v12442 = vadd.f32 %v12428, %v12441
    %12443 = vdwg.mxu0
    %12444 = vmatpush.bf16.msra.mxu0 %v7035
    %12445 = vmatpush.bf16.msra.mxu0 %v7015
    %12446 = vmatpush.bf16.msra.mxu0 %v6995
    %12447 = vmatpush.bf16.msra.mxu0 %v6975
    %12448 = vmatpush.bf16.msra.mxu0 %v6955
    %12449 = vmatpush.bf16.msra.mxu0 %v6935
    %12450 = vmatpush.bf16.msra.mxu0 %v6915
    %12451 = vmatpush.bf16.msra.mxu0 %v6895
    %12452 = vmatmul.bf16.gmra.mxu0 %v1738
    %v12453 = vpop.f32.mrf.mxu0
    %v12454 = vadd.f32 %v12440, %v12453
    %v12455 = vpop.f32.mrf.mxu0
    %v12456 = vadd.f32 %v12442, %v12455
    %12457 = vdwg.mxu0
    %12458 = vmatpush.bf16.msra.mxu0 %v7195
    %12459 = vmatpush.bf16.msra.mxu0 %v7175
    %12460 = vmatpush.bf16.msra.mxu0 %v7155
    %12461 = vmatpush.bf16.msra.mxu0 %v7135
    %12462 = vmatpush.bf16.msra.mxu0 %v7115
    %12463 = vmatpush.bf16.msra.mxu0 %v7095
    %12464 = vmatpush.bf16.msra.mxu0 %v7075
    %12465 = vmatpush.bf16.msra.mxu0 %v7055
    %12466 = vmatmul.bf16.gmra.mxu0 %v1739
    %v12467 = vpop.f32.mrf.mxu0
    %v12468 = vadd.f32 %v12454, %v12467
    %v12469 = vpop.f32.mrf.mxu0
    %v12470 = vadd.f32 %v12456, %v12469
    %12471 = vdwg.mxu0
    %12472 = vmatpush.bf16.msra.mxu0 %v7355
    %12473 = vmatpush.bf16.msra.mxu0 %v7335
    %12474 = vmatpush.bf16.msra.mxu0 %v7315
    %12475 = vmatpush.bf16.msra.mxu0 %v7295
    %12476 = vmatpush.bf16.msra.mxu0 %v7275
    %12477 = vmatpush.bf16.msra.mxu0 %v7255
    %12478 = vmatpush.bf16.msra.mxu0 %v7235
    %12479 = vmatpush.bf16.msra.mxu0 %v7215
    %12480 = vmatmul.bf16.gmra.mxu0 %v1740
    %v12481 = vpop.f32.mrf.mxu0
    %v12482 = vadd.f32 %v12468, %v12481
    %v12483 = vpop.f32.mrf.mxu0
    %v12484 = vadd.f32 %v12470, %v12483
    %12485 = vdwg.mxu0
    %12486 = vmatpush.bf16.msra.mxu0 %v7515
    %12487 = vmatpush.bf16.msra.mxu0 %v7495
    %12488 = vmatpush.bf16.msra.mxu0 %v7475
    %12489 = vmatpush.bf16.msra.mxu0 %v7455
    %12490 = vmatpush.bf16.msra.mxu0 %v7435
    %12491 = vmatpush.bf16.msra.mxu0 %v7415
    %12492 = vmatpush.bf16.msra.mxu0 %v7395
    %12493 = vmatpush.bf16.msra.mxu0 %v7375
    %12494 = vmatmul.bf16.gmra.mxu0 %v1741
    %v12495 = vpop.f32.mrf.mxu0
    %v12496 = vadd.f32 %v12482, %v12495
    %v12497 = vpop.f32.mrf.mxu0
    %v12498 = vadd.f32 %v12484, %v12497
    %12499 = vdwg.mxu0
    %12500 = vmatpush.bf16.msra.mxu0 %v7675
    %12501 = vmatpush.bf16.msra.mxu0 %v7655
    %12502 = vmatpush.bf16.msra.mxu0 %v7635
    %12503 = vmatpush.bf16.msra.mxu0 %v7615
    %12504 = vmatpush.bf16.msra.mxu0 %v7595
    %12505 = vmatpush.bf16.msra.mxu0 %v7575
    %12506 = vmatpush.bf16.msra.mxu0 %v7555
    %12507 = vmatpush.bf16.msra.mxu0 %v7535
    %12508 = vmatmul.bf16.gmra.mxu0 %v1742
    %v12509 = vpop.f32.mrf.mxu0
    %v12510 = vadd.f32 %v12496, %v12509
    %v12511 = vpop.f32.mrf.mxu0
    %v12512 = vadd.f32 %v12498, %v12511
    %12513 = vdwg.mxu0
    %12514 = vmatpush.bf16.msra.mxu0 %v7835
    %12515 = vmatpush.bf16.msra.mxu0 %v7815
    %12516 = vmatpush.bf16.msra.mxu0 %v7795
    %12517 = vmatpush.bf16.msra.mxu0 %v7775
    %12518 = vmatpush.bf16.msra.mxu0 %v7755
    %12519 = vmatpush.bf16.msra.mxu0 %v7735
    %12520 = vmatpush.bf16.msra.mxu0 %v7715
    %12521 = vmatpush.bf16.msra.mxu0 %v7695
    %12522 = vmatmul.bf16.gmra.mxu0 %v1743
    %v12523 = vpop.f32.mrf.mxu0
    %v12524 = vadd.f32 %v12510, %v12523
    %v12525 = vpop.f32.mrf.mxu0
    %v12526 = vadd.f32 %v12512, %v12525
    %12527 = vdwg.mxu0
    %12528 = vmatpush.bf16.msra.mxu0 %v7995
    %12529 = vmatpush.bf16.msra.mxu0 %v7975
    %12530 = vmatpush.bf16.msra.mxu0 %v7955
    %12531 = vmatpush.bf16.msra.mxu0 %v7935
    %12532 = vmatpush.bf16.msra.mxu0 %v7915
    %12533 = vmatpush.bf16.msra.mxu0 %v7895
    %12534 = vmatpush.bf16.msra.mxu0 %v7875
    %12535 = vmatpush.bf16.msra.mxu0 %v7855
    %12536 = vmatmul.bf16.gmra.mxu0 %v1744
    %v12537 = vpop.f32.mrf.mxu0
    %v12538 = vadd.f32 %v12524, %v12537
    %v12539 = vpop.f32.mrf.mxu0
    %v12540 = vadd.f32 %v12526, %v12539
    %12541 = vdwg.mxu0
    %12542 = vmatpush.bf16.msra.mxu0 %v8155
    %12543 = vmatpush.bf16.msra.mxu0 %v8135
    %12544 = vmatpush.bf16.msra.mxu0 %v8115
    %12545 = vmatpush.bf16.msra.mxu0 %v8095
    %12546 = vmatpush.bf16.msra.mxu0 %v8075
    %12547 = vmatpush.bf16.msra.mxu0 %v8055
    %12548 = vmatpush.bf16.msra.mxu0 %v8035
    %12549 = vmatpush.bf16.msra.mxu0 %v8015
    %12550 = vmatmul.bf16.gmra.mxu0 %v1745
    %v12551 = vpop.f32.mrf.mxu0
    %v12552 = vadd.f32 %v12538, %v12551
    %v12553 = vpop.f32.mrf.mxu0
    %v12554 = vadd.f32 %v12540, %v12553
    %12555 = vdwg.mxu0
    %v12556 = vmax.f32 %v9892, 0.0
    %v12557 = vmax.f32 %v10032, 0.0
    %v12558 = vmax.f32 %v10172, 0.0
    %v12559 = vmax.f32 %v10312, 0.0
    %v12560 = vmax.f32 %v10452, 0.0
    %v12561 = vmax.f32 %v10592, 0.0
    %v12562 = vmax.f32 %v10732, 0.0
    %v12563 = vmax.f32 %v10872, 0.0
    %v12564 = vmax.f32 %v11012, 0.0
    %v12565 = vmax.f32 %v11152, 0.0
    %v12566 = vmax.f32 %v11292, 0.0
    %v12567 = vmax.f32 %v11432, 0.0
    %v12568 = vmax.f32 %v11572, 0.0
    %v12569 = vmax.f32 %v11712, 0.0
    %v12570 = vmax.f32 %v11852, 0.0
    %v12571 = vmax.f32 %v11992, 0.0
    %v12572 = vmax.f32 %v12132, 0.0
    %v12573 = vmax.f32 %v12272, 0.0
    %v12574 = vmax.f32 %v12412, 0.0
    %v12575 = vmax.f32 %v12552, 0.0
    %v12576 = vmax.f32 %v9894, 0.0
    %v12577 = vmax.f32 %v10034, 0.0
    %v12578 = vmax.f32 %v10174, 0.0
    %v12579 = vmax.f32 %v10314, 0.0
    %v12580 = vmax.f32 %v10454, 0.0
    %v12581 = vmax.f32 %v10594, 0.0
    %v12582 = vmax.f32 %v10734, 0.0
    %v12583 = vmax.f32 %v10874, 0.0
    %v12584 = vmax.f32 %v11014, 0.0
    %v12585 = vmax.f32 %v11154, 0.0
    %v12586 = vmax.f32 %v11294, 0.0
    %v12587 = vmax.f32 %v11434, 0.0
    %v12588 = vmax.f32 %v11574, 0.0
    %v12589 = vmax.f32 %v11714, 0.0
    %v12590 = vmax.f32 %v11854, 0.0
    %v12591 = vmax.f32 %v11994, 0.0
    %v12592 = vmax.f32 %v12134, 0.0
    %v12593 = vmax.f32 %v12274, 0.0
    %v12594 = vmax.f32 %v12414, 0.0
    %v12595 = vmax.f32 %v12554, 0.0
    %v12596 = vmax.f32 %v12556, %v12561
    %v12597 = vmax.f32 %v12557, %v12562
    %v12598 = vmax.f32 %v12558, %v12563
    %v12599 = vmax.f32 %v12559, %v12564
    %v12600 = vmax.f32 %v12560, %v12565
    %v12601 = vmax.f32 %v12576, %v12581
    %v12602 = vmax.f32 %v12577, %v12582
    %v12603 = vmax.f32 %v12578, %v12583
    %v12604 = vmax.f32 %v12579, %v12584
    %v12605 = vmax.f32 %v12580, %v12585
    %v12606 = vmax.f32 %v12566, %v12571
    %v12607 = vmax.f32 %v12567, %v12572
    %v12608 = vmax.f32 %v12568, %v12573
    %v12609 = vmax.f32 %v12569, %v12574
    %v12610 = vmax.f32 %v12570, %v12575
    %v12611 = vmax.f32 %v12586, %v12591
    %v12612 = vmax.f32 %v12587, %v12592
    %v12613 = vmax.f32 %v12588, %v12593
    %v12614 = vmax.f32 %v12589, %v12594
    %v12615 = vmax.f32 %v12590, %v12595
    %v12616 = vmax.f32 %v12596, %v12606
    %v12617 = vmax.f32 %v12597, %v12607
    %v12618 = vmax.f32 %v12598, %v12608
    %v12619 = vmax.f32 %v12599, %v12609
    %v12620 = vmax.f32 %v12600, %v12610
    %v12621 = vmax.f32 %v12601, %v12611
    %v12622 = vmax.f32 %v12602, %v12612
    %v12623 = vmax.f32 %v12603, %v12613
    %v12624 = vmax.f32 %v12604, %v12614
    %v12625 = vmax.f32 %v12605, %v12615
    %v12626 = vpack.c.bf16 %v12621, %v12616
    %v12627 = vpack.c.bf16 %v12622, %v12617
    %v12628 = vpack.c.bf16 %v12623, %v12618
    %v12629 = vpack.c.bf16 %v12624, %v12619
    %v12630 = vpack.c.bf16 %v12625, %v12620
    %v12631 = vld [vmem:[%s3] sm:$0xf]
    %v12632 = vld [vmem:[%s3 + $0x4] sm:$0xf]
    %v12633 = vld [vmem:[%s3 + $0x8] sm:$0xf]
    %v12634 = vld [vmem:[%s3 + $0xc] sm:$0xf]
    %v12635 = vld [vmem:[%s3 + $0x10] sm:$0xf]
    %v12636 = vld [vmem:[%s3 + $0x14] sm:$0xf]
    %v12637 = vld [vmem:[%s3 + $0x18] sm:$0xf]
    %v12638 = vld [vmem:[%s3 + $0x1c] sm:$0xf]
    %v12639 = vld [vmem:[%s3 + $0x20] sm:$0xf]
    %v12640 = vld [vmem:[%s3 + $0x24] sm:$0xf]
    %v12641 = vld [vmem:[%s3 + $0x28] sm:$0xf]
    %v12642 = vld [vmem:[%s3 + $0x2c] sm:$0xf]
    %v12643 = vld [vmem:[%s3 + $0x30] sm:$0xf]
    %v12644 = vld [vmem:[%s3 + $0x34] sm:$0xf]
    %v12645 = vld [vmem:[%s3 + $0x38] sm:$0xf]
    %v12646 = vld [vmem:[%s3 + $0x3c] sm:$0xf]
    %v12647 = vld [vmem:[%s3 + $0x40] sm:$0xf]
    %v12648 = vld [vmem:[%s3 + $0x44] sm:$0xf]
    %v12649 = vld [vmem:[%s3 + $0x48] sm:$0xf]
    %v12650 = vld [vmem:[%s3 + $0x4c] sm:$0xf]
    %v12651 = vld [vmem:[%s3 + $0x50] sm:$0xf]
    %v12652 = vld [vmem:[%s3 + $0x54] sm:$0xf]
    %v12653 = vld [vmem:[%s3 + $0x58] sm:$0xf]
    %v12654 = vld [vmem:[%s3 + $0x5c] sm:$0xf]
    %v12655 = vld [vmem:[%s3 + $0x60] sm:$0xf]
    %v12656 = vld [vmem:[%s3 + $0x64] sm:$0xf]
    %v12657 = vld [vmem:[%s3 + $0x68] sm:$0xf]
    %v12658 = vld [vmem:[%s3 + $0x6c] sm:$0xf]
    %v12659 = vld [vmem:[%s3 + $0x70] sm:$0xf]
    %v12660 = vld [vmem:[%s3 + $0x74] sm:$0xf]
    %v12661 = vld [vmem:[%s3 + $0x78] sm:$0xf]
    %v12662 = vld [vmem:[%s3 + $0x7c] sm:$0xf]
    %v12663 = vld [vmem:[%s3 + $0x80] sm:$0xf]
    %v12664 = vld [vmem:[%s3 + $0x84] sm:$0xf]
    %v12665 = vld [vmem:[%s3 + $0x88] sm:$0xf]
    %v12666 = vld [vmem:[%s3 + $0x8c] sm:$0xf]
    %v12667 = vld [vmem:[%s3 + $0x90] sm:$0xf]
    %v12668 = vld [vmem:[%s3 + $0x94] sm:$0xf]
    %v12669 = vld [vmem:[%s3 + $0x98] sm:$0xf]
    %v12670 = vld [vmem:[%s3 + $0x9c] sm:$0xf]
    %v12671 = vld [vmem:[%s3 + $0xa0] sm:$0xf]
    %v12672 = vld [vmem:[%s3 + $0xa4] sm:$0xf]
    %v12673 = vld [vmem:[%s3 + $0xa8] sm:$0xf]
    %v12674 = vld [vmem:[%s3 + $0xac] sm:$0xf]
    %v12675 = vld [vmem:[%s3 + $0xb0] sm:$0xf]
    %v12676 = vld [vmem:[%s3 + $0xb4] sm:$0xf]
    %v12677 = vld [vmem:[%s3 + $0xb8] sm:$0xf]
    %v12678 = vld [vmem:[%s3 + $0xbc] sm:$0xf]
    %v12679 = vld [vmem:[%s3 + $0xc0] sm:$0xf]
    %v12680 = vld [vmem:[%s3 + $0xc4] sm:$0xf]
    %v12681 = vld [vmem:[%s3 + $0xc8] sm:$0xf]
    %v12682 = vld [vmem:[%s3 + $0xcc] sm:$0xf]
    %v12683 = vld [vmem:[%s3 + $0xd0] sm:$0xf]
    %v12684 = vld [vmem:[%s3 + $0xd4] sm:$0xf]
    %v12685 = vld [vmem:[%s3 + $0xd8] sm:$0xf]
    %v12686 = vld [vmem:[%s3 + $0xdc] sm:$0xf]
    %v12687 = vld [vmem:[%s3 + $0xe0] sm:$0xf]
    %v12688 = vld [vmem:[%s3 + $0xe4] sm:$0xf]
    %v12689 = vld [vmem:[%s3 + $0xe8] sm:$0xf]
    %v12690 = vld [vmem:[%s3 + $0xec] sm:$0xf]
    %v12691 = vld [vmem:[%s3 + $0xf0] sm:$0xf]
    %v12692 = vld [vmem:[%s3 + $0xf4] sm:$0xf]
    %v12693 = vld [vmem:[%s3 + $0xf8] sm:$0xf]
    %v12694 = vld [vmem:[%s3 + $0xfc] sm:$0xf]
    %v12695 = vld [vmem:[%s3 + $0x100] sm:$0xf]
    %v12696 = vld [vmem:[%s3 + $0x104] sm:$0xf]
    %v12697 = vld [vmem:[%s3 + $0x108] sm:$0xf]
    %v12698 = vld [vmem:[%s3 + $0x10c] sm:$0xf]
    %v12699 = vld [vmem:[%s3 + $0x110] sm:$0xf]
    %v12700 = vld [vmem:[%s3 + $0x114] sm:$0xf]
    %v12701 = vld [vmem:[%s3 + $0x118] sm:$0xf]
    %v12702 = vld [vmem:[%s3 + $0x11c] sm:$0xf]
    %v12703 = vld [vmem:[%s3 + $0x120] sm:$0xf]
    %v12704 = vld [vmem:[%s3 + $0x124] sm:$0xf]
    %v12705 = vld [vmem:[%s3 + $0x128] sm:$0xf]
    %v12706 = vld [vmem:[%s3 + $0x12c] sm:$0xf]
    %v12707 = vld [vmem:[%s3 + $0x130] sm:$0xf]
    %v12708 = vld [vmem:[%s3 + $0x134] sm:$0xf]
    %v12709 = vld [vmem:[%s3 + $0x138] sm:$0xf]
    %v12710 = vld [vmem:[%s3 + $0x13c] sm:$0xf]
    %v12711 = vld [vmem:[#allocation4] sm:$0x1]
    %v12713 = vperm.slane %v12711, 0
    %v12795 = vunpack.c.l.b16 %v12631
    %v12796 = vunpack.c.l.b16 %v12632
    %v12797 = vunpack.c.l.b16 %v12633
    %v12798 = vunpack.c.l.b16 %v12634
    %v12799 = vunpack.c.l.b16 %v12635
    %v12800 = vunpack.c.l.b16 %v12636
    %v12801 = vunpack.c.l.b16 %v12637
    %v12802 = vunpack.c.l.b16 %v12638
    %v12803 = vunpack.c.l.b16 %v12639
    %v12804 = vunpack.c.l.b16 %v12640
    %v12805 = vunpack.c.l.b16 %v12641
    %v12806 = vunpack.c.l.b16 %v12642
    %v12807 = vunpack.c.l.b16 %v12643
    %v12808 = vunpack.c.l.b16 %v12644
    %v12809 = vunpack.c.l.b16 %v12645
    %v12810 = vunpack.c.l.b16 %v12646
    %v12811 = vunpack.c.l.b16 %v12647
    %v12812 = vunpack.c.l.b16 %v12648
    %v12813 = vunpack.c.l.b16 %v12649
    %v12814 = vunpack.c.l.b16 %v12650
    %v12815 = vunpack.c.l.b16 %v12651
    %v12816 = vunpack.c.l.b16 %v12652
    %v12817 = vunpack.c.l.b16 %v12653
    %v12818 = vunpack.c.l.b16 %v12654
    %v12819 = vunpack.c.l.b16 %v12655
    %v12820 = vunpack.c.l.b16 %v12656
    %v12821 = vunpack.c.l.b16 %v12657
    %v12822 = vunpack.c.l.b16 %v12658
    %v12823 = vunpack.c.l.b16 %v12659
    %v12824 = vunpack.c.l.b16 %v12660
    %v12825 = vunpack.c.l.b16 %v12661
    %v12826 = vunpack.c.l.b16 %v12662
    %v12827 = vunpack.c.l.b16 %v12663
    %v12828 = vunpack.c.l.b16 %v12664
    %v12829 = vunpack.c.l.b16 %v12665
    %v12830 = vunpack.c.l.b16 %v12666
    %v12831 = vunpack.c.l.b16 %v12667
    %v12832 = vunpack.c.l.b16 %v12668
    %v12833 = vunpack.c.l.b16 %v12669
    %v12834 = vunpack.c.l.b16 %v12670
    %v12835 = vunpack.c.l.b16 %v12671
    %v12836 = vunpack.c.l.b16 %v12672
    %v12837 = vunpack.c.l.b16 %v12673
    %v12838 = vunpack.c.l.b16 %v12674
    %v12839 = vunpack.c.l.b16 %v12675
    %v12840 = vunpack.c.l.b16 %v12676
    %v12841 = vunpack.c.l.b16 %v12677
    %v12842 = vunpack.c.l.b16 %v12678
    %v12843 = vunpack.c.l.b16 %v12679
    %v12844 = vunpack.c.l.b16 %v12680
    %v12845 = vunpack.c.l.b16 %v12681
    %v12846 = vunpack.c.l.b16 %v12682
    %v12847 = vunpack.c.l.b16 %v12683
    %v12848 = vunpack.c.l.b16 %v12684
    %v12849 = vunpack.c.l.b16 %v12685
    %v12850 = vunpack.c.l.b16 %v12686
    %v12851 = vunpack.c.l.b16 %v12687
    %v12852 = vunpack.c.l.b16 %v12688
    %v12853 = vunpack.c.l.b16 %v12689
    %v12854 = vunpack.c.l.b16 %v12690
    %v12855 = vunpack.c.l.b16 %v12691
    %v12856 = vunpack.c.l.b16 %v12692
    %v12857 = vunpack.c.l.b16 %v12693
    %v12858 = vunpack.c.l.b16 %v12694
    %v12859 = vunpack.c.l.b16 %v12695
    %v12860 = vunpack.c.l.b16 %v12696
    %v12861 = vunpack.c.l.b16 %v12697
    %v12862 = vunpack.c.l.b16 %v12698
    %v12863 = vunpack.c.l.b16 %v12699
    %v12864 = vunpack.c.l.b16 %v12700
    %v12865 = vunpack.c.l.b16 %v12701
    %v12866 = vunpack.c.l.b16 %v12702
    %v12867 = vunpack.c.l.b16 %v12703
    %v12868 = vunpack.c.l.b16 %v12704
    %v12869 = vunpack.c.l.b16 %v12705
    %v12870 = vunpack.c.l.b16 %v12706
    %v12871 = vunpack.c.l.b16 %v12707
    %v12872 = vunpack.c.l.b16 %v12708
    %v12873 = vunpack.c.l.b16 %v12709
    %v12874 = vunpack.c.l.b16 %v12710
    %v12875 = vpack.c.b16 %v12796, %v12795
    %v12876 = vpack.c.b16 %v12798, %v12797
    %v12877 = vpack.c.b16 %v12800, %v12799
    %v12878 = vpack.c.b16 %v12802, %v12801
    %v12879 = vpack.c.b16 %v12804, %v12803
    %v12880 = vpack.c.b16 %v12806, %v12805
    %v12881 = vpack.c.b16 %v12808, %v12807
    %v12882 = vpack.c.b16 %v12810, %v12809
    %v12883 = vpack.c.b16 %v12812, %v12811
    %v12884 = vpack.c.b16 %v12814, %v12813
    %v12885 = vpack.c.b16 %v12816, %v12815
    %v12886 = vpack.c.b16 %v12818, %v12817
    %v12887 = vpack.c.b16 %v12820, %v12819
    %v12888 = vpack.c.b16 %v12822, %v12821
    %v12889 = vpack.c.b16 %v12824, %v12823
    %v12890 = vpack.c.b16 %v12826, %v12825
    %v12891 = vpack.c.b16 %v12828, %v12827
    %v12892 = vpack.c.b16 %v12830, %v12829
    %v12893 = vpack.c.b16 %v12832, %v12831
    %v12894 = vpack.c.b16 %v12834, %v12833
    %v12895 = vpack.c.b16 %v12836, %v12835
    %v12896 = vpack.c.b16 %v12838, %v12837
    %v12897 = vpack.c.b16 %v12840, %v12839
    %v12898 = vpack.c.b16 %v12842, %v12841
    %v12899 = vpack.c.b16 %v12844, %v12843
    %v12900 = vpack.c.b16 %v12846, %v12845
    %v12901 = vpack.c.b16 %v12848, %v12847
    %v12902 = vpack.c.b16 %v12850, %v12849
    %v12903 = vpack.c.b16 %v12852, %v12851
    %v12904 = vpack.c.b16 %v12854, %v12853
    %v12905 = vpack.c.b16 %v12856, %v12855
    %v12906 = vpack.c.b16 %v12858, %v12857
    %v12907 = vpack.c.b16 %v12860, %v12859
    %v12908 = vpack.c.b16 %v12862, %v12861
    %v12909 = vpack.c.b16 %v12864, %v12863
    %v12910 = vpack.c.b16 %v12866, %v12865
    %v12911 = vpack.c.b16 %v12868, %v12867
    %v12912 = vpack.c.b16 %v12870, %v12869
    %v12913 = vpack.c.b16 %v12872, %v12871
    %v12914 = vpack.c.b16 %v12874, %v12873
    %12955 = vmatpush.bf16.msra.mxu0 %v12882
    %12956 = vmatpush.bf16.msra.mxu0 %v12881
    %12957 = vmatpush.bf16.msra.mxu0 %v12880
    %12958 = vmatpush.bf16.msra.mxu0 %v12879
    %12959 = vmatpush.bf16.msra.mxu0 %v12878
    %12960 = vmatpush.bf16.msra.mxu0 %v12877
    %12961 = vmatpush.bf16.msra.mxu0 %v12876
    %12962 = vmatpush.bf16.msra.mxu0 %v12875
    %12963 = vmatmul.bf16.gmra.mxu0 %v12626
    %v12964 = vpop.f32.mrf.mxu0
    %v12965 = vadd.f32 %v12713, %v12964
    %v12966 = vpop.f32.mrf.mxu0
    %v12967 = vadd.f32 %v12713, %v12966
    %12968 = vdwg.mxu0
    %12969 = vmatpush.bf16.msra.mxu0 %v12890
    %12970 = vmatpush.bf16.msra.mxu0 %v12889
    %12971 = vmatpush.bf16.msra.mxu0 %v12888
    %12972 = vmatpush.bf16.msra.mxu0 %v12887
    %12973 = vmatpush.bf16.msra.mxu0 %v12886
    %12974 = vmatpush.bf16.msra.mxu0 %v12885
    %12975 = vmatpush.bf16.msra.mxu0 %v12884
    %12976 = vmatpush.bf16.msra.mxu0 %v12883
    %12977 = vmatmul.bf16.gmra.mxu0 %v12627
    %v12978 = vpop.f32.mrf.mxu0
    %v12979 = vadd.f32 %v12965, %v12978
    %v12980 = vpop.f32.mrf.mxu0
    %v12981 = vadd.f32 %v12967, %v12980
    %12982 = vdwg.mxu0
    %12983 = vmatpush.bf16.msra.mxu0 %v12898
    %12984 = vmatpush.bf16.msra.mxu0 %v12897
    %12985 = vmatpush.bf16.msra.mxu0 %v12896
    %12986 = vmatpush.bf16.msra.mxu0 %v12895
    %12987 = vmatpush.bf16.msra.mxu0 %v12894
    %12988 = vmatpush.bf16.msra.mxu0 %v12893
    %12989 = vmatpush.bf16.msra.mxu0 %v12892
    %12990 = vmatpush.bf16.msra.mxu0 %v12891
    %12991 = vmatmul.bf16.gmra.mxu0 %v12628
    %v12992 = vpop.f32.mrf.mxu0
    %v12993 = vadd.f32 %v12979, %v12992
    %v12994 = vpop.f32.mrf.mxu0
    %v12995 = vadd.f32 %v12981, %v12994
    %12996 = vdwg.mxu0
    %12997 = vmatpush.bf16.msra.mxu0 %v12906
    %12998 = vmatpush.bf16.msra.mxu0 %v12905
    %12999 = vmatpush.bf16.msra.mxu0 %v12904
    %13000 = vmatpush.bf16.msra.mxu0 %v12903
    %13001 = vmatpush.bf16.msra.mxu0 %v12902
    %13002 = vmatpush.bf16.msra.mxu0 %v12901
    %13003 = vmatpush.bf16.msra.mxu0 %v12900
    %13004 = vmatpush.bf16.msra.mxu0 %v12899
    %13005 = vmatmul.bf16.gmra.mxu0 %v12629
    %v13006 = vpop.f32.mrf.mxu0
    %v13007 = vadd.f32 %v12993, %v13006
    %v13008 = vpop.f32.mrf.mxu0
    %v13009 = vadd.f32 %v12995, %v13008
    %13010 = vdwg.mxu0
    %13011 = vmatpush.bf16.msra.mxu0 %v12914
    %13012 = vmatpush.bf16.msra.mxu0 %v12913
    %13013 = vmatpush.bf16.msra.mxu0 %v12912
    %13014 = vmatpush.bf16.msra.mxu0 %v12911
    %13015 = vmatpush.bf16.msra.mxu0 %v12910
    %13016 = vmatpush.bf16.msra.mxu0 %v12909
    %13017 = vmatpush.bf16.msra.mxu0 %v12908
    %13018 = vmatpush.bf16.msra.mxu0 %v12907
    %13019 = vmatmul.bf16.gmra.mxu0 %v12630
    %v13020 = vpop.f32.mrf.mxu0
    %v13021 = vadd.f32 %v13007, %v13020
    %v13022 = vpop.f32.mrf.mxu0
    %v13023 = vadd.f32 %v13009, %v13022
    %13024 = vdwg.mxu0
    %v13025 = vmax.f32 %v13021, 0.0
    %v13026 = vmax.f32 %v13023, 0.0
    %13027 = vst [vmem:[%s5] sm:$0xff] %v13025
    %13028 = vst [vmem:[%s5 + $0x8] sm:$0xff] %v13026
    // Predicated region
    $region30: #{mfcc_forward.1} parent=1 // pred_check
      _
    $region31: #{mfcc_forward.1} parent=1 // pred_check_branch
      %13030 = sbr.rel (0) target = $region33
    $region32: #{mfcc_forward.1} parent=1 // pred_region
      _
    $region33: #{mfcc_forward.1} parent=1 // pred_fallthru
      _
    // Predicated region
    $region34: #{mfcc_forward.1} parent=1 // pred_check
      _
    $region35: #{mfcc_forward.1} parent=1 // pred_check_branch
      %13032 = sbr.rel (0) target = $region37
    $region36: #{mfcc_forward.1} parent=1 // pred_region
      _
    $region37: #{mfcc_forward.1} parent=1 // pred_fallthru
      _
    %13033 = vsyncpa [#allocation3], 1
    %13034 = vsyncpa [#allocation5], 1

</llo_original>
